<compile_context>
chip_gen: v5e
topology: v5e:2x2
jax: 0.10.0
libtpu: 0.0.40
codegen_flags: <defaults>
</compile_context>

<pallas_src>
from functools import partial

import jax
import jax.numpy as jnp
from jax import lax
from jax.experimental import pallas as pl
from jax.experimental.pallas import tpu as pltpu

# ----------------------------- hyper-params ---------------------------------
K_WAY = 5          # fixed: the reference unpacks s0..s4
N_SHOT = 1
N_QUERY = 3        # queries per class
FEAT_DIM = 64
C = 0.01
SQRT_C = C ** 0.5
TEMPERATURE = 1.0
PROJ_EPS = 1e-3    # hyptorch project() epsilon
MIN_NORM = 1e-5
BALL_EPS = 1e-5

BLOCK_EPISODES = 128   # episodes per grid step (amortizes step overhead / DMAs)
CHUNK_EPISODES = 8     # episodes per inner pl.loop iteration (bounds code size)


# ----------------------------- in-kernel math helpers ------------------------
def _to_poincare(x):
    """project(expmap0(x, c)) — hyptorch semantics, one reduction per row."""
    u_norm = jnp.maximum(jnp.sqrt(jnp.sum(x * x, axis=-1, keepdims=True)), MIN_NORM)
    t = jnp.tanh(SQRT_C * u_norm)
    gamma = (t / (SQRT_C * u_norm)) * x
    # ||gamma|| == tanh(sqrt_c*||x||)/sqrt_c exactly -> no second norm reduction
    g_norm = jnp.maximum(t * (1.0 / SQRT_C), MIN_NORM)
    maxnorm = (1.0 - PROJ_EPS) / SQRT_C
    return jnp.where(g_norm > maxnorm, gamma * (maxnorm / g_norm), gamma)


def _k2p_with_sq(xk):
    """Klein -> Poincare, plus ||result||^2 as a free by-product (hoisted y2)."""
    k2 = jnp.sum(xk * xk, axis=-1, keepdims=True)
    inv = 1.0 / (1.0 + jnp.sqrt(1.0 - C * k2))
    return xk * inv, k2 * (inv * inv)


# ----------------------------- fused Pallas kernel ---------------------------
def _make_hpr_d_kernel(chunk):
    def kernel(sup_ref, qry_ref, lab_ref, ypred_ref, loss_ref):
        be = sup_ref.shape[0]
        nq = qry_ref.shape[1]
        nchunks = be // chunk

        col_qk = lax.broadcasted_iota(jnp.int32, (nq, K_WAY), 1)    # (nq, K)
        col_qk_f = col_qk.astype(jnp.float32)
        col_k = lax.broadcasted_iota(jnp.int32, (1, K_WAY), 1)       # (1, K)

        def process(off):
            support = sup_ref[pl.ds(off, chunk), :, :].astype(jnp.float32)  # (m,ns,D)
            queries = qry_ref[pl.ds(off, chunk), :, :].astype(jnp.float32)  # (m,nq,D)
            lab = lab_ref[pl.ds(off, chunk), :, :]                          # (m,nq,1) int32

            # ---- Euclidean -> Poincare ball --------------------------------
            support_p = _to_poincare(support)
            queries_p = _to_poincare(queries)

            # ---- Klein coordinates + Lorenz factors ------------------------
            s_sq = jnp.sum(support_p * support_p, axis=-1, keepdims=True)
            q_sq = jnp.sum(queries_p * queries_p, axis=-1, keepdims=True)   # reused below
            sup_k = 2.0 * support_p / (1.0 + C * s_sq)
            qry_k = 2.0 * queries_p / (1.0 + C * q_sq)
            sup_l = lax.rsqrt(1.0 - C * jnp.sum(sup_k * sup_k, axis=-1, keepdims=True))
            qry_l = lax.rsqrt(1.0 - C * jnp.sum(qry_k * qry_k, axis=-1, keepdims=True))
            qry_lk = qry_l * qry_k

            # ---- class-wise Klein sums of support + initial prototypes -----
            num_s, den_s, protos, p2s = [], [], [], []
            for j in range(K_WAY):                       # unrolled, K_WAY = 5
                sk = sup_k[:, j * N_SHOT:(j + 1) * N_SHOT, :]
                sl = sup_l[:, j * N_SHOT:(j + 1) * N_SHOT, :]
                n_j = jnp.sum(sl * sk, axis=1, keepdims=True)   # (m,1,D)
                d_j = jnp.sum(sl, axis=1, keepdims=True)        # (m,1,1)
                num_s.append(n_j)
                den_s.append(d_j)
                pj, p2 = _k2p_with_sq(n_j / d_j)
                protos.append(pj)
                p2s.append(p2)

            # ---- pairwise Poincare distance, closed form, VPU/XLU only -----
            def hyp_dist(ps, ps2):
                qp = jnp.zeros((chunk, nq, K_WAY), jnp.float32)
                y2 = jnp.zeros((chunk, 1, K_WAY), jnp.float32)
                for j in range(K_WAY):                   # 5 broadcast-mul + lane reduces
                    qp = jnp.where(col_qk == j,
                                   jnp.sum(queries_p * ps[j], axis=-1, keepdims=True),
                                   qp)
                    y2 = jnp.where(col_k == j, ps2[j], y2)       # hoisted proto norms
                xy = -qp                                  # <-q, p>
                A = 1.0 + 2.0 * C * xy + C * y2
                Bm = 1.0 - C * q_sq
                den = 1.0 + 2.0 * C * xy + (C * C) * q_sq * y2
                num_sq = A * A * q_sq + 2.0 * A * Bm * xy + Bm * Bm * y2
                norm_res = jnp.sqrt(jnp.maximum(num_sq, 0.0)) / (den + 1e-5)
                z = jnp.minimum(SQRT_C * norm_res, 1.0 - BALL_EPS)   # z >= 0
                dist = (1.0 / SQRT_C) * jnp.log((1.0 + z) / (1.0 - z))
                return dist * (1.0 / TEMPERATURE)

            dist1 = hyp_dist(protos, p2s)                 # (m,nq,K)

            # ---- routing: first index attaining the minimum distance -------
            min_d = jnp.min(dist1, axis=-1, keepdims=True)
            first_min = jnp.min(jnp.where(dist1 <= min_d, col_qk_f, float(K_WAY)),
                                axis=-1, keepdims=True)   # (m,nq,1)

            # ---- augmented Klein means -> new prototypes --------------------
            protos2, p2s2 = [], []
            for j in range(K_WAY):
                mask = (first_min == float(j)).astype(jnp.float32)       # (m,nq,1)
                n_j = num_s[j] + jnp.sum(mask * qry_lk, axis=1, keepdims=True)
                d_j = den_s[j] + jnp.sum(mask * qry_l, axis=1, keepdims=True)
                pj, p2 = _k2p_with_sq(n_j / d_j)
                protos2.append(pj)
                p2s2.append(p2)

            dist2 = hyp_dist(protos2, p2s2)               # (m,nq,K)

            # ---- head: y_pred = softmax(-dist2) -----------------------------
            neg2 = -dist2
            mx = jnp.max(neg2, axis=-1, keepdims=True)
            e = jnp.exp(neg2 - mx)
            inv = pl.reciprocal(jnp.sum(e, axis=-1, keepdims=True), approx=True)
            ypred_ref[pl.ds(off, chunk), :, :] = (e * inv).astype(ypred_ref.dtype)

            # ---- loss = CrossEntropy(log_softmax(-dist1), label) ------------
            neg1 = -dist1
            m1 = jnp.max(neg1, axis=-1, keepdims=True)
            lse1 = m1 + jnp.log(jnp.sum(jnp.exp(neg1 - m1), axis=-1, keepdims=True))
            log_p_y = neg1 - lse1
            # nn.CrossEntropyLoss applies log_softmax again internally -> reproduced.
            m2 = jnp.max(log_p_y, axis=-1, keepdims=True)
            lse2 = m2 + jnp.log(jnp.sum(jnp.exp(log_p_y - m2), axis=-1, keepdims=True))
            picked = jnp.sum(jnp.where(col_qk == lab, log_p_y, 0.0),
                             axis=-1, keepdims=True)      # (m,nq,1)
            per_q = lse2 - picked
            loss = jnp.sum(per_q, axis=1, keepdims=True) * (1.0 / nq)   # (m,1,1)
            loss_ref[pl.ds(off, chunk), :, :] = loss.astype(loss_ref.dtype)

        if nchunks == 1:
            process(0)
        else:
            @pl.loop(0, nchunks)
            def _(ci):
                process(pl.multiple_of(ci * chunk, chunk))

    return kernel


# ----------------------------- wrappers ---------------------------------------
def _round_up(x, m):
    return ((x + m - 1) // m) * m


def _hpr_d_pallas(sup_b, qry_b, lab_b, block_b, chunk):
    bsz, ns, d = sup_b.shape
    nq = qry_b.shape[1]
    nb = bsz // block_b
    return pl.pallas_call(
        _make_hpr_d_kernel(chunk),
        grid=(nb,),
        in_specs=[
            pl.BlockSpec((block_b, ns, d), lambda b: (b, 0, 0)),
            pl.BlockSpec((block_b, nq, d), lambda b: (b, 0, 0)),
            pl.BlockSpec((block_b, nq, 1), lambda b: (b, 0, 0)),
        ],
        out_specs=(
            pl.BlockSpec((block_b, nq, K_WAY), lambda b: (b, 0, 0)),
            pl.BlockSpec((block_b, 1, 1), lambda b: (b, 0, 0)),
        ),
        out_shape=(
            jax.ShapeDtypeStruct((bsz, nq, K_WAY), jnp.float32),
            jax.ShapeDtypeStruct((bsz, 1, 1), jnp.float32),
        ),
        compiler_params=pltpu.CompilerParams(
            dimension_semantics=("parallel",),     # shard episode blocks across TCs (v7x)
            vmem_limit_bytes=32 * 1024 * 1024,     # safe on v5e/v6e/v7x for Be=128
        ),
    )(sup_b, qry_b, lab_b)


@partial(jax.jit, static_argnames=("block_episodes", "chunk"))
def hpr_d_forward_batched(feat_b, label_query_b, *,
                          block_episodes=BLOCK_EPISODES, chunk=CHUNK_EPISODES):
    """Batched episodes: feat_b (B, N, D), label_query_b (B, nq) -> ((B,nq,K), (B,))."""
    bsz, n_total, d = feat_b.shape
    ns = K_WAY * N_SHOT
    nq = n_total - ns
    assert block_episodes % chunk == 0

    be = min(block_episodes, _round_up(max(bsz, 1), chunk))   # block multiple of chunk
    bp = _round_up(bsz, be)                                   # pad batch to full blocks

    sup = feat_b[:, :ns, :].astype(jnp.float32)
    qry = feat_b[:, ns:, :].astype(jnp.float32)
    lab = label_query_b.reshape(bsz, nq, 1).astype(jnp.int32)
    if bp != bsz:
        pad = bp - bsz
        sup = jnp.concatenate([sup, jnp.zeros((pad, ns, d), jnp.float32)], axis=0)
        qry = jnp.concatenate([qry, jnp.zeros((pad, nq, d), jnp.float32)], axis=0)
        lab = jnp.concatenate([lab, jnp.zeros((pad, nq, 1), jnp.int32)], axis=0)

    y_pred, loss = _hpr_d_pallas(sup, qry, lab, be, chunk)
    return y_pred[:bsz], loss[:bsz, 0, 0]


@jax.jit
def hpr_d_forward(feat, label_query):
    """Single episode, matching HPR_D.forward: returns (y_pred, loss)."""
    y_pred_b, loss_b = hpr_d_forward_batched(feat[None], label_query[None])
    return y_pred_b[0], loss_b[0]


# ----------------------------- demo / smoke test ------------------------------
if __name__ == "__main__":
    key = jax.random.PRNGKey(0)
    k_feat, k_c0, k_batch = jax.random.split(key, 3)

    n_support = K_WAY * N_SHOT                 # 5
    n_queries = K_WAY * N_QUERY                # 15
    feat = jax.random.normal(k_feat, (n_support + n_queries, FEAT_DIM),
                             dtype=jnp.float32)

    # module parameter c0 (unused in forward) — deterministic init for fidelity
    _c0 = jax.random.normal(k_c0, (1,), dtype=jnp.float32)

    # label mirrors the PyTorch usage `label[1]` = query labels
    label_support = jnp.repeat(jnp.arange(K_WAY, dtype=jnp.int32), N_SHOT)
    label_query = jnp.repeat(jnp.arange(K_WAY, dtype=jnp.int32), N_QUERY)
    label = (label_support, label_query)

    # ---- single episode (module semantics) ------------------------------------
    y_pred, loss = hpr_d_forward(feat, label[1])
    jax.block_until_ready((y_pred, loss))
    assert y_pred.shape == (n_queries, K_WAY)
    assert loss.shape == ()
    assert bool(jnp.all(jnp.isfinite(y_pred))) and bool(jnp.isfinite(loss))
    assert bool(jnp.all(jnp.abs(jnp.sum(y_pred, axis=-1) - 1.0) < 1e-2))

    # ---- batched path must reproduce the single-episode result ----------------
    feat_rep = jnp.tile(feat[None], (16, 1, 1))
    labels_rep = jnp.tile(label_query[None], (16, 1))
    y_rep, l_rep = hpr_d_forward_batched(feat_rep, labels_rep)
    jax.block_until_ready((y_rep, l_rep))
    assert bool(jnp.all(jnp.abs(y_rep - y_pred[None]) < 1e-5))
    assert bool(jnp.all(jnp.abs(l_rep - loss) < 1e-5))

    # ---- large batch: 2 grid steps of 128 episodes (v7x megacore friendly) ----
    B = 256
    feat_b = jax.random.normal(k_batch, (B, n_support + n_queries, FEAT_DIM),
                               dtype=jnp.float32)
    labels_b = jnp.tile(label_query[None], (B, 1))
    y_pred_b, loss_b = hpr_d_forward_batched(feat_b, labels_b)
    jax.block_until_ready((y_pred_b, loss_b))
    assert y_pred_b.shape == (B, n_queries, K_WAY)
    assert loss_b.shape == (B,)
    assert bool(jnp.all(jnp.isfinite(y_pred_b))) and bool(jnp.all(jnp.isfinite(loss_b)))

    print("KERNEL_OK")
</pallas_src>

<mosaic_0001>
module attributes {stable_mosaic.version = 11 : i64} {
  func.func @kernel(%arg0: i32, %arg1: memref<8x5x64xf32, #tpu.memory_space<vmem>>, %arg2: memref<8x15x64xf32, #tpu.memory_space<vmem>>, %arg3: memref<8x15x1xi32, #tpu.memory_space<vmem>>, %arg4: memref<8x15x5xf32, #tpu.memory_space<vmem>>, %arg5: memref<8x1x1xf32, #tpu.memory_space<vmem>>) attributes {dimension_semantics = [#tpu.dimension_semantics<parallel>], iteration_bounds = array<i64: 1>, scalar_prefetch = 0 : i64, scratch_operands = 0 : i64, tpu.core_type = #tpu.core_type<tc>, window_params = [{transform_indices = @transform_0, window_bounds = array<i64: 8, 5, 64>}, {transform_indices = @transform_1, window_bounds = array<i64: 8, 15, 64>}, {transform_indices = @transform_2, window_bounds = array<i64: 8, 15, 1>}, {transform_indices = @transform_3, window_bounds = array<i64: 8, 15, 5>}, {transform_indices = @transform_4, window_bounds = array<i64: 8, 1, 1>}]} {
    %0 = tpu.iota {dimensions = array<i32: 1>} : vector<15x5xi32>
    %1 = arith.sitofp %0 : vector<15x5xi32> to vector<15x5xf32>
    %2 = tpu.iota {dimensions = array<i32: 1>} : vector<1x5xi32>
    %c0 = arith.constant 0 : index
    %c0_0 = arith.constant 0 : index
    %c0_1 = arith.constant 0 : index
    %3 = vector.load %arg1[%c0, %c0_0, %c0_1] : memref<8x5x64xf32, #tpu.memory_space<vmem>>, vector<8x5x64xf32>
    %c0_2 = arith.constant 0 : index
    %c0_3 = arith.constant 0 : index
    %c0_4 = arith.constant 0 : index
    %4 = vector.load %arg2[%c0_2, %c0_3, %c0_4] : memref<8x15x64xf32, #tpu.memory_space<vmem>>, vector<8x15x64xf32>
    %c0_5 = arith.constant 0 : index
    %c0_6 = arith.constant 0 : index
    %c0_7 = arith.constant 0 : index
    %5 = vector.load %arg3[%c0_5, %c0_6, %c0_7] : memref<8x15x1xi32, #tpu.memory_space<vmem>>, vector<8x15x1xi32>
    %6 = arith.mulf %3, %3 : vector<8x5x64xf32>
    %cst = arith.constant dense<0.000000e+00> : vector<8x5xf32>
    %7 = vector.multi_reduction <add>, %6, %cst [2] : vector<8x5x64xf32> to vector<8x5xf32>
    %8 = vector.shape_cast %7 : vector<8x5xf32> to vector<8x5x1xf32>
    %9 = math.sqrt %8 : vector<8x5x1xf32>
    %cst_8 = arith.constant 9.99999974E-6 : f32
    %10 = vector.broadcast %cst_8 : f32 to vector<8x5x1xf32>
    %11 = arith.maximumf %9, %10 : vector<8x5x1xf32>
    %cst_9 = arith.constant 1.000000e-01 : f32
    %12 = vector.broadcast %cst_9 : f32 to vector<8x5x1xf32>
    %13 = arith.mulf %12, %11 : vector<8x5x1xf32>
    %14 = math.tanh %13 : vector<8x5x1xf32>
    %cst_10 = arith.constant 1.000000e-01 : f32
    %15 = vector.broadcast %cst_10 : f32 to vector<8x5x1xf32>
    %16 = arith.mulf %15, %11 : vector<8x5x1xf32>
    %17 = arith.divf %14, %16 : vector<8x5x1xf32>
    %18 = vector.broadcast %17 : vector<8x5x1xf32> to vector<8x5x64xf32>
    %19 = arith.mulf %18, %3 : vector<8x5x64xf32>
    %cst_11 = arith.constant 1.000000e+01 : f32
    %20 = vector.broadcast %cst_11 : f32 to vector<8x5x1xf32>
    %21 = arith.mulf %14, %20 : vector<8x5x1xf32>
    %cst_12 = arith.constant 9.99999974E-6 : f32
    %22 = vector.broadcast %cst_12 : f32 to vector<8x5x1xf32>
    %23 = arith.maximumf %21, %22 : vector<8x5x1xf32>
    %cst_13 = arith.constant 9.98999977 : f32
    %24 = vector.broadcast %cst_13 : f32 to vector<8x5x1xf32>
    %25 = arith.cmpf ogt, %23, %24 : vector<8x5x1xf32>
    %cst_14 = arith.constant 9.98999977 : f32
    %26 = vector.broadcast %cst_14 : f32 to vector<8x5x1xf32>
    %27 = arith.divf %26, %23 : vector<8x5x1xf32>
    %28 = vector.broadcast %27 : vector<8x5x1xf32> to vector<8x5x64xf32>
    %29 = arith.mulf %19, %28 : vector<8x5x64xf32>
    %30 = vector.shape_cast %25 : vector<8x5x1xi1> to vector<8x5x1xi1>
    %31 = vector.broadcast %30 : vector<8x5x1xi1> to vector<8x5x64xi1>
    %32 = arith.select %31, %29, %19 : vector<8x5x64xi1>, vector<8x5x64xf32>
    %33 = arith.mulf %4, %4 : vector<8x15x64xf32>
    %cst_15 = arith.constant dense<0.000000e+00> : vector<8x15xf32>
    %34 = vector.multi_reduction <add>, %33, %cst_15 [2] : vector<8x15x64xf32> to vector<8x15xf32>
    %35 = vector.shape_cast %34 : vector<8x15xf32> to vector<8x15x1xf32>
    %36 = math.sqrt %35 : vector<8x15x1xf32>
    %cst_16 = arith.constant 9.99999974E-6 : f32
    %37 = vector.broadcast %cst_16 : f32 to vector<8x15x1xf32>
    %38 = arith.maximumf %36, %37 : vector<8x15x1xf32>
    %cst_17 = arith.constant 1.000000e-01 : f32
    %39 = vector.broadcast %cst_17 : f32 to vector<8x15x1xf32>
    %40 = arith.mulf %39, %38 : vector<8x15x1xf32>
    %41 = math.tanh %40 : vector<8x15x1xf32>
    %cst_18 = arith.constant 1.000000e-01 : f32
    %42 = vector.broadcast %cst_18 : f32 to vector<8x15x1xf32>
    %43 = arith.mulf %42, %38 : vector<8x15x1xf32>
    %44 = arith.divf %41, %43 : vector<8x15x1xf32>
    %45 = vector.broadcast %44 : vector<8x15x1xf32> to vector<8x15x64xf32>
    %46 = arith.mulf %45, %4 : vector<8x15x64xf32>
    %cst_19 = arith.constant 1.000000e+01 : f32
    %47 = vector.broadcast %cst_19 : f32 to vector<8x15x1xf32>
    %48 = arith.mulf %41, %47 : vector<8x15x1xf32>
    %cst_20 = arith.constant 9.99999974E-6 : f32
    %49 = vector.broadcast %cst_20 : f32 to vector<8x15x1xf32>
    %50 = arith.maximumf %48, %49 : vector<8x15x1xf32>
    %cst_21 = arith.constant 9.98999977 : f32
    %51 = vector.broadcast %cst_21 : f32 to vector<8x15x1xf32>
    %52 = arith.cmpf ogt, %50, %51 : vector<8x15x1xf32>
    %cst_22 = arith.constant 9.98999977 : f32
    %53 = vector.broadcast %cst_22 : f32 to vector<8x15x1xf32>
    %54 = arith.divf %53, %50 : vector<8x15x1xf32>
    %55 = vector.broadcast %54 : vector<8x15x1xf32> to vector<8x15x64xf32>
    %56 = arith.mulf %46, %55 : vector<8x15x64xf32>
    %57 = vector.shape_cast %52 : vector<8x15x1xi1> to vector<8x15x1xi1>
    %58 = vector.broadcast %57 : vector<8x15x1xi1> to vector<8x15x64xi1>
    %59 = arith.select %58, %56, %46 : vector<8x15x64xi1>, vector<8x15x64xf32>
    %60 = arith.mulf %32, %32 : vector<8x5x64xf32>
    %cst_23 = arith.constant dense<0.000000e+00> : vector<8x5xf32>
    %61 = vector.multi_reduction <add>, %60, %cst_23 [2] : vector<8x5x64xf32> to vector<8x5xf32>
    %62 = vector.shape_cast %61 : vector<8x5xf32> to vector<8x5x1xf32>
    %63 = arith.mulf %59, %59 : vector<8x15x64xf32>
    %cst_24 = arith.constant dense<0.000000e+00> : vector<8x15xf32>
    %64 = vector.multi_reduction <add>, %63, %cst_24 [2] : vector<8x15x64xf32> to vector<8x15xf32>
    %65 = vector.shape_cast %64 : vector<8x15xf32> to vector<8x15x1xf32>
    %cst_25 = arith.constant 2.000000e+00 : f32
    %66 = vector.broadcast %cst_25 : f32 to vector<8x5x64xf32>
    %67 = arith.mulf %66, %32 : vector<8x5x64xf32>
    %cst_26 = arith.constant 0.00999999977 : f32
    %68 = vector.broadcast %cst_26 : f32 to vector<8x5x1xf32>
    %69 = arith.mulf %68, %62 : vector<8x5x1xf32>
    %cst_27 = arith.constant 1.000000e+00 : f32
    %70 = vector.broadcast %cst_27 : f32 to vector<8x5x1xf32>
    %71 = arith.addf %70, %69 : vector<8x5x1xf32>
    %72 = vector.broadcast %71 : vector<8x5x1xf32> to vector<8x5x64xf32>
    %73 = arith.divf %67, %72 : vector<8x5x64xf32>
    %cst_28 = arith.constant 2.000000e+00 : f32
    %74 = vector.broadcast %cst_28 : f32 to vector<8x15x64xf32>
    %75 = arith.mulf %74, %59 : vector<8x15x64xf32>
    %cst_29 = arith.constant 0.00999999977 : f32
    %76 = vector.broadcast %cst_29 : f32 to vector<8x15x1xf32>
    %77 = arith.mulf %76, %65 : vector<8x15x1xf32>
    %cst_30 = arith.constant 1.000000e+00 : f32
    %78 = vector.broadcast %cst_30 : f32 to vector<8x15x1xf32>
    %79 = arith.addf %78, %77 : vector<8x15x1xf32>
    %80 = vector.broadcast %79 : vector<8x15x1xf32> to vector<8x15x64xf32>
    %81 = arith.divf %75, %80 : vector<8x15x64xf32>
    %82 = arith.mulf %73, %73 : vector<8x5x64xf32>
    %cst_31 = arith.constant dense<0.000000e+00> : vector<8x5xf32>
    %83 = vector.multi_reduction <add>, %82, %cst_31 [2] : vector<8x5x64xf32> to vector<8x5xf32>
    %84 = vector.shape_cast %83 : vector<8x5xf32> to vector<8x5x1xf32>
    %cst_32 = arith.constant 0.00999999977 : f32
    %85 = vector.broadcast %cst_32 : f32 to vector<8x5x1xf32>
    %86 = arith.mulf %85, %84 : vector<8x5x1xf32>
    %cst_33 = arith.constant 1.000000e+00 : f32
    %87 = vector.broadcast %cst_33 : f32 to vector<8x5x1xf32>
    %88 = arith.subf %87, %86 : vector<8x5x1xf32>
    %89 = math.rsqrt %88 : vector<8x5x1xf32>
    %90 = arith.mulf %81, %81 : vector<8x15x64xf32>
    %cst_34 = arith.constant dense<0.000000e+00> : vector<8x15xf32>
    %91 = vector.multi_reduction <add>, %90, %cst_34 [2] : vector<8x15x64xf32> to vector<8x15xf32>
    %92 = vector.shape_cast %91 : vector<8x15xf32> to vector<8x15x1xf32>
    %cst_35 = arith.constant 0.00999999977 : f32
    %93 = vector.broadcast %cst_35 : f32 to vector<8x15x1xf32>
    %94 = arith.mulf %93, %92 : vector<8x15x1xf32>
    %cst_36 = arith.constant 1.000000e+00 : f32
    %95 = vector.broadcast %cst_36 : f32 to vector<8x15x1xf32>
    %96 = arith.subf %95, %94 : vector<8x15x1xf32>
    %97 = math.rsqrt %96 : vector<8x15x1xf32>
    %98 = vector.broadcast %97 : vector<8x15x1xf32> to vector<8x15x64xf32>
    %99 = arith.mulf %98, %81 : vector<8x15x64xf32>
    %100 = vector.extract_strided_slice %73 {offsets = [0, 0, 0], sizes = [8, 1, 64], strides = [1, 1, 1]} : vector<8x5x64xf32> to vector<8x1x64xf32>
    %101 = vector.extract_strided_slice %89 {offsets = [0, 0, 0], sizes = [8, 1, 1], strides = [1, 1, 1]} : vector<8x5x1xf32> to vector<8x1x1xf32>
    %102 = vector.broadcast %101 : vector<8x1x1xf32> to vector<8x1x64xf32>
    %103 = arith.mulf %102, %100 : vector<8x1x64xf32>
    %cst_37 = arith.constant dense<0.000000e+00> : vector<8x64xf32>
    %104 = vector.multi_reduction <add>, %103, %cst_37 [1] : vector<8x1x64xf32> to vector<8x64xf32>
    %105 = vector.shape_cast %104 : vector<8x64xf32> to vector<8x1x64xf32>
    %cst_38 = arith.constant dense<0.000000e+00> : vector<8x1xf32>
    %106 = vector.multi_reduction <add>, %101, %cst_38 [1] : vector<8x1x1xf32> to vector<8x1xf32>
    %107 = vector.shape_cast %106 : vector<8x1xf32> to vector<8x1x1xf32>
    %108 = vector.broadcast %107 : vector<8x1x1xf32> to vector<8x1x64xf32>
    %109 = arith.divf %105, %108 : vector<8x1x64xf32>
    %110 = arith.mulf %109, %109 : vector<8x1x64xf32>
    %cst_39 = arith.constant dense<0.000000e+00> : vector<8x1xf32>
    %111 = vector.multi_reduction <add>, %110, %cst_39 [2] : vector<8x1x64xf32> to vector<8x1xf32>
    %112 = vector.shape_cast %111 : vector<8x1xf32> to vector<8x1x1xf32>
    %cst_40 = arith.constant 0.00999999977 : f32
    %113 = vector.broadcast %cst_40 : f32 to vector<8x1x1xf32>
    %114 = arith.mulf %113, %112 : vector<8x1x1xf32>
    %cst_41 = arith.constant 1.000000e+00 : f32
    %115 = vector.broadcast %cst_41 : f32 to vector<8x1x1xf32>
    %116 = arith.subf %115, %114 : vector<8x1x1xf32>
    %117 = math.sqrt %116 : vector<8x1x1xf32>
    %cst_42 = arith.constant 1.000000e+00 : f32
    %118 = vector.broadcast %cst_42 : f32 to vector<8x1x1xf32>
    %119 = arith.addf %118, %117 : vector<8x1x1xf32>
    %cst_43 = arith.constant 1.000000e+00 : f32
    %120 = vector.broadcast %cst_43 : f32 to vector<8x1x1xf32>
    %121 = arith.divf %120, %119 : vector<8x1x1xf32>
    %122 = vector.broadcast %121 : vector<8x1x1xf32> to vector<8x1x64xf32>
    %123 = arith.mulf %109, %122 : vector<8x1x64xf32>
    %124 = arith.mulf %121, %121 : vector<8x1x1xf32>
    %125 = arith.mulf %112, %124 : vector<8x1x1xf32>
    %126 = vector.extract_strided_slice %73 {offsets = [0, 1, 0], sizes = [8, 1, 64], strides = [1, 1, 1]} : vector<8x5x64xf32> to vector<8x1x64xf32>
    %127 = vector.extract_strided_slice %89 {offsets = [0, 1, 0], sizes = [8, 1, 1], strides = [1, 1, 1]} : vector<8x5x1xf32> to vector<8x1x1xf32>
    %128 = vector.broadcast %127 : vector<8x1x1xf32> to vector<8x1x64xf32>
    %129 = arith.mulf %128, %126 : vector<8x1x64xf32>
    %cst_44 = arith.constant dense<0.000000e+00> : vector<8x64xf32>
    %130 = vector.multi_reduction <add>, %129, %cst_44 [1] : vector<8x1x64xf32> to vector<8x64xf32>
    %131 = vector.shape_cast %130 : vector<8x64xf32> to vector<8x1x64xf32>
    %cst_45 = arith.constant dense<0.000000e+00> : vector<8x1xf32>
    %132 = vector.multi_reduction <add>, %127, %cst_45 [1] : vector<8x1x1xf32> to vector<8x1xf32>
    %133 = vector.shape_cast %132 : vector<8x1xf32> to vector<8x1x1xf32>
    %134 = vector.broadcast %133 : vector<8x1x1xf32> to vector<8x1x64xf32>
    %135 = arith.divf %131, %134 : vector<8x1x64xf32>
    %136 = arith.mulf %135, %135 : vector<8x1x64xf32>
    %cst_46 = arith.constant dense<0.000000e+00> : vector<8x1xf32>
    %137 = vector.multi_reduction <add>, %136, %cst_46 [2] : vector<8x1x64xf32> to vector<8x1xf32>
    %138 = vector.shape_cast %137 : vector<8x1xf32> to vector<8x1x1xf32>
    %cst_47 = arith.constant 0.00999999977 : f32
    %139 = vector.broadcast %cst_47 : f32 to vector<8x1x1xf32>
    %140 = arith.mulf %139, %138 : vector<8x1x1xf32>
    %cst_48 = arith.constant 1.000000e+00 : f32
    %141 = vector.broadcast %cst_48 : f32 to vector<8x1x1xf32>
    %142 = arith.subf %141, %140 : vector<8x1x1xf32>
    %143 = math.sqrt %142 : vector<8x1x1xf32>
    %cst_49 = arith.constant 1.000000e+00 : f32
    %144 = vector.broadcast %cst_49 : f32 to vector<8x1x1xf32>
    %145 = arith.addf %144, %143 : vector<8x1x1xf32>
    %cst_50 = arith.constant 1.000000e+00 : f32
    %146 = vector.broadcast %cst_50 : f32 to vector<8x1x1xf32>
    %147 = arith.divf %146, %145 : vector<8x1x1xf32>
    %148 = vector.broadcast %147 : vector<8x1x1xf32> to vector<8x1x64xf32>
    %149 = arith.mulf %135, %148 : vector<8x1x64xf32>
    %150 = arith.mulf %147, %147 : vector<8x1x1xf32>
    %151 = arith.mulf %138, %150 : vector<8x1x1xf32>
    %152 = vector.extract_strided_slice %73 {offsets = [0, 2, 0], sizes = [8, 1, 64], strides = [1, 1, 1]} : vector<8x5x64xf32> to vector<8x1x64xf32>
    %153 = vector.extract_strided_slice %89 {offsets = [0, 2, 0], sizes = [8, 1, 1], strides = [1, 1, 1]} : vector<8x5x1xf32> to vector<8x1x1xf32>
    %154 = vector.broadcast %153 : vector<8x1x1xf32> to vector<8x1x64xf32>
    %155 = arith.mulf %154, %152 : vector<8x1x64xf32>
    %cst_51 = arith.constant dense<0.000000e+00> : vector<8x64xf32>
    %156 = vector.multi_reduction <add>, %155, %cst_51 [1] : vector<8x1x64xf32> to vector<8x64xf32>
    %157 = vector.shape_cast %156 : vector<8x64xf32> to vector<8x1x64xf32>
    %cst_52 = arith.constant dense<0.000000e+00> : vector<8x1xf32>
    %158 = vector.multi_reduction <add>, %153, %cst_52 [1] : vector<8x1x1xf32> to vector<8x1xf32>
    %159 = vector.shape_cast %158 : vector<8x1xf32> to vector<8x1x1xf32>
    %160 = vector.broadcast %159 : vector<8x1x1xf32> to vector<8x1x64xf32>
    %161 = arith.divf %157, %160 : vector<8x1x64xf32>
    %162 = arith.mulf %161, %161 : vector<8x1x64xf32>
    %cst_53 = arith.constant dense<0.000000e+00> : vector<8x1xf32>
    %163 = vector.multi_reduction <add>, %162, %cst_53 [2] : vector<8x1x64xf32> to vector<8x1xf32>
    %164 = vector.shape_cast %163 : vector<8x1xf32> to vector<8x1x1xf32>
    %cst_54 = arith.constant 0.00999999977 : f32
    %165 = vector.broadcast %cst_54 : f32 to vector<8x1x1xf32>
    %166 = arith.mulf %165, %164 : vector<8x1x1xf32>
    %cst_55 = arith.constant 1.000000e+00 : f32
    %167 = vector.broadcast %cst_55 : f32 to vector<8x1x1xf32>
    %168 = arith.subf %167, %166 : vector<8x1x1xf32>
    %169 = math.sqrt %168 : vector<8x1x1xf32>
    %cst_56 = arith.constant 1.000000e+00 : f32
    %170 = vector.broadcast %cst_56 : f32 to vector<8x1x1xf32>
    %171 = arith.addf %170, %169 : vector<8x1x1xf32>
    %cst_57 = arith.constant 1.000000e+00 : f32
    %172 = vector.broadcast %cst_57 : f32 to vector<8x1x1xf32>
    %173 = arith.divf %172, %171 : vector<8x1x1xf32>
    %174 = vector.broadcast %173 : vector<8x1x1xf32> to vector<8x1x64xf32>
    %175 = arith.mulf %161, %174 : vector<8x1x64xf32>
    %176 = arith.mulf %173, %173 : vector<8x1x1xf32>
    %177 = arith.mulf %164, %176 : vector<8x1x1xf32>
    %178 = vector.extract_strided_slice %73 {offsets = [0, 3, 0], sizes = [8, 1, 64], strides = [1, 1, 1]} : vector<8x5x64xf32> to vector<8x1x64xf32>
    %179 = vector.extract_strided_slice %89 {offsets = [0, 3, 0], sizes = [8, 1, 1], strides = [1, 1, 1]} : vector<8x5x1xf32> to vector<8x1x1xf32>
    %180 = vector.broadcast %179 : vector<8x1x1xf32> to vector<8x1x64xf32>
    %181 = arith.mulf %180, %178 : vector<8x1x64xf32>
    %cst_58 = arith.constant dense<0.000000e+00> : vector<8x64xf32>
    %182 = vector.multi_reduction <add>, %181, %cst_58 [1] : vector<8x1x64xf32> to vector<8x64xf32>
    %183 = vector.shape_cast %182 : vector<8x64xf32> to vector<8x1x64xf32>
    %cst_59 = arith.constant dense<0.000000e+00> : vector<8x1xf32>
    %184 = vector.multi_reduction <add>, %179, %cst_59 [1] : vector<8x1x1xf32> to vector<8x1xf32>
    %185 = vector.shape_cast %184 : vector<8x1xf32> to vector<8x1x1xf32>
    %186 = vector.broadcast %185 : vector<8x1x1xf32> to vector<8x1x64xf32>
    %187 = arith.divf %183, %186 : vector<8x1x64xf32>
    %188 = arith.mulf %187, %187 : vector<8x1x64xf32>
    %cst_60 = arith.constant dense<0.000000e+00> : vector<8x1xf32>
    %189 = vector.multi_reduction <add>, %188, %cst_60 [2] : vector<8x1x64xf32> to vector<8x1xf32>
    %190 = vector.shape_cast %189 : vector<8x1xf32> to vector<8x1x1xf32>
    %cst_61 = arith.constant 0.00999999977 : f32
    %191 = vector.broadcast %cst_61 : f32 to vector<8x1x1xf32>
    %192 = arith.mulf %191, %190 : vector<8x1x1xf32>
    %cst_62 = arith.constant 1.000000e+00 : f32
    %193 = vector.broadcast %cst_62 : f32 to vector<8x1x1xf32>
    %194 = arith.subf %193, %192 : vector<8x1x1xf32>
    %195 = math.sqrt %194 : vector<8x1x1xf32>
    %cst_63 = arith.constant 1.000000e+00 : f32
    %196 = vector.broadcast %cst_63 : f32 to vector<8x1x1xf32>
    %197 = arith.addf %196, %195 : vector<8x1x1xf32>
    %cst_64 = arith.constant 1.000000e+00 : f32
    %198 = vector.broadcast %cst_64 : f32 to vector<8x1x1xf32>
    %199 = arith.divf %198, %197 : vector<8x1x1xf32>
    %200 = vector.broadcast %199 : vector<8x1x1xf32> to vector<8x1x64xf32>
    %201 = arith.mulf %187, %200 : vector<8x1x64xf32>
    %202 = arith.mulf %199, %199 : vector<8x1x1xf32>
    %203 = arith.mulf %190, %202 : vector<8x1x1xf32>
    %204 = vector.extract_strided_slice %73 {offsets = [0, 4, 0], sizes = [8, 1, 64], strides = [1, 1, 1]} : vector<8x5x64xf32> to vector<8x1x64xf32>
    %205 = vector.extract_strided_slice %89 {offsets = [0, 4, 0], sizes = [8, 1, 1], strides = [1, 1, 1]} : vector<8x5x1xf32> to vector<8x1x1xf32>
    %206 = vector.broadcast %205 : vector<8x1x1xf32> to vector<8x1x64xf32>
    %207 = arith.mulf %206, %204 : vector<8x1x64xf32>
    %cst_65 = arith.constant dense<0.000000e+00> : vector<8x64xf32>
    %208 = vector.multi_reduction <add>, %207, %cst_65 [1] : vector<8x1x64xf32> to vector<8x64xf32>
    %209 = vector.shape_cast %208 : vector<8x64xf32> to vector<8x1x64xf32>
    %cst_66 = arith.constant dense<0.000000e+00> : vector<8x1xf32>
    %210 = vector.multi_reduction <add>, %205, %cst_66 [1] : vector<8x1x1xf32> to vector<8x1xf32>
    %211 = vector.shape_cast %210 : vector<8x1xf32> to vector<8x1x1xf32>
    %212 = vector.broadcast %211 : vector<8x1x1xf32> to vector<8x1x64xf32>
    %213 = arith.divf %209, %212 : vector<8x1x64xf32>
    %214 = arith.mulf %213, %213 : vector<8x1x64xf32>
    %cst_67 = arith.constant dense<0.000000e+00> : vector<8x1xf32>
    %215 = vector.multi_reduction <add>, %214, %cst_67 [2] : vector<8x1x64xf32> to vector<8x1xf32>
    %216 = vector.shape_cast %215 : vector<8x1xf32> to vector<8x1x1xf32>
    %cst_68 = arith.constant 0.00999999977 : f32
    %217 = vector.broadcast %cst_68 : f32 to vector<8x1x1xf32>
    %218 = arith.mulf %217, %216 : vector<8x1x1xf32>
    %cst_69 = arith.constant 1.000000e+00 : f32
    %219 = vector.broadcast %cst_69 : f32 to vector<8x1x1xf32>
    %220 = arith.subf %219, %218 : vector<8x1x1xf32>
    %221 = math.sqrt %220 : vector<8x1x1xf32>
    %cst_70 = arith.constant 1.000000e+00 : f32
    %222 = vector.broadcast %cst_70 : f32 to vector<8x1x1xf32>
    %223 = arith.addf %222, %221 : vector<8x1x1xf32>
    %cst_71 = arith.constant 1.000000e+00 : f32
    %224 = vector.broadcast %cst_71 : f32 to vector<8x1x1xf32>
    %225 = arith.divf %224, %223 : vector<8x1x1xf32>
    %226 = vector.broadcast %225 : vector<8x1x1xf32> to vector<8x1x64xf32>
    %227 = arith.mulf %213, %226 : vector<8x1x64xf32>
    %228 = arith.mulf %225, %225 : vector<8x1x1xf32>
    %229 = arith.mulf %216, %228 : vector<8x1x1xf32>
    %cst_72 = arith.constant 0.000000e+00 : f32
    %230 = vector.broadcast %cst_72 : f32 to vector<8x15x5xf32>
    %cst_73 = arith.constant 0.000000e+00 : f32
    %231 = vector.broadcast %cst_73 : f32 to vector<8x1x5xf32>
    %c0_i32 = arith.constant 0 : i32
    %232 = vector.broadcast %c0_i32 : i32 to vector<15x5xi32>
    %233 = arith.cmpi eq, %0, %232 : vector<15x5xi32>
    %234 = vector.broadcast %123 : vector<8x1x64xf32> to vector<8x15x64xf32>
    %235 = arith.mulf %59, %234 : vector<8x15x64xf32>
    %cst_74 = arith.constant dense<0.000000e+00> : vector<8x15xf32>
    %236 = vector.multi_reduction <add>, %235, %cst_74 [2] : vector<8x15x64xf32> to vector<8x15xf32>
    %237 = vector.shape_cast %236 : vector<8x15xf32> to vector<8x15x1xf32>
    %238 = vector.shape_cast %233 : vector<15x5xi1> to vector<1x15x5xi1>
    %239 = vector.broadcast %238 : vector<1x15x5xi1> to vector<8x15x5xi1>
    %240 = vector.shape_cast %237 : vector<8x15x1xf32> to vector<8x15x1xf32>
    %241 = vector.broadcast %240 : vector<8x15x1xf32> to vector<8x15x5xf32>
    %242 = arith.select %239, %241, %230 : vector<8x15x5xi1>, vector<8x15x5xf32>
    %c0_i32_75 = arith.constant 0 : i32
    %243 = vector.broadcast %c0_i32_75 : i32 to vector<1x5xi32>
    %244 = arith.cmpi eq, %2, %243 : vector<1x5xi32>
    %245 = vector.shape_cast %244 : vector<1x5xi1> to vector<1x1x5xi1>
    %246 = vector.broadcast %245 : vector<1x1x5xi1> to vector<8x1x5xi1>
    %247 = vector.shape_cast %125 : vector<8x1x1xf32> to vector<8x1x1xf32>
    %248 = vector.broadcast %247 : vector<8x1x1xf32> to vector<8x1x5xf32>
    %249 = arith.select %246, %248, %231 : vector<8x1x5xi1>, vector<8x1x5xf32>
    %c1_i32 = arith.constant 1 : i32
    %250 = vector.broadcast %c1_i32 : i32 to vector<15x5xi32>
    %251 = arith.cmpi eq, %0, %250 : vector<15x5xi32>
    %252 = vector.broadcast %149 : vector<8x1x64xf32> to vector<8x15x64xf32>
    %253 = arith.mulf %59, %252 : vector<8x15x64xf32>
    %cst_76 = arith.constant dense<0.000000e+00> : vector<8x15xf32>
    %254 = vector.multi_reduction <add>, %253, %cst_76 [2] : vector<8x15x64xf32> to vector<8x15xf32>
    %255 = vector.shape_cast %254 : vector<8x15xf32> to vector<8x15x1xf32>
    %256 = vector.shape_cast %251 : vector<15x5xi1> to vector<1x15x5xi1>
    %257 = vector.broadcast %256 : vector<1x15x5xi1> to vector<8x15x5xi1>
    %258 = vector.shape_cast %255 : vector<8x15x1xf32> to vector<8x15x1xf32>
    %259 = vector.broadcast %258 : vector<8x15x1xf32> to vector<8x15x5xf32>
    %260 = arith.select %257, %259, %242 : vector<8x15x5xi1>, vector<8x15x5xf32>
    %c1_i32_77 = arith.constant 1 : i32
    %261 = vector.broadcast %c1_i32_77 : i32 to vector<1x5xi32>
    %262 = arith.cmpi eq, %2, %261 : vector<1x5xi32>
    %263 = vector.shape_cast %262 : vector<1x5xi1> to vector<1x1x5xi1>
    %264 = vector.broadcast %263 : vector<1x1x5xi1> to vector<8x1x5xi1>
    %265 = vector.shape_cast %151 : vector<8x1x1xf32> to vector<8x1x1xf32>
    %266 = vector.broadcast %265 : vector<8x1x1xf32> to vector<8x1x5xf32>
    %267 = arith.select %264, %266, %249 : vector<8x1x5xi1>, vector<8x1x5xf32>
    %c2_i32 = arith.constant 2 : i32
    %268 = vector.broadcast %c2_i32 : i32 to vector<15x5xi32>
    %269 = arith.cmpi eq, %0, %268 : vector<15x5xi32>
    %270 = vector.broadcast %175 : vector<8x1x64xf32> to vector<8x15x64xf32>
    %271 = arith.mulf %59, %270 : vector<8x15x64xf32>
    %cst_78 = arith.constant dense<0.000000e+00> : vector<8x15xf32>
    %272 = vector.multi_reduction <add>, %271, %cst_78 [2] : vector<8x15x64xf32> to vector<8x15xf32>
    %273 = vector.shape_cast %272 : vector<8x15xf32> to vector<8x15x1xf32>
    %274 = vector.shape_cast %269 : vector<15x5xi1> to vector<1x15x5xi1>
    %275 = vector.broadcast %274 : vector<1x15x5xi1> to vector<8x15x5xi1>
    %276 = vector.shape_cast %273 : vector<8x15x1xf32> to vector<8x15x1xf32>
    %277 = vector.broadcast %276 : vector<8x15x1xf32> to vector<8x15x5xf32>
    %278 = arith.select %275, %277, %260 : vector<8x15x5xi1>, vector<8x15x5xf32>
    %c2_i32_79 = arith.constant 2 : i32
    %279 = vector.broadcast %c2_i32_79 : i32 to vector<1x5xi32>
    %280 = arith.cmpi eq, %2, %279 : vector<1x5xi32>
    %281 = vector.shape_cast %280 : vector<1x5xi1> to vector<1x1x5xi1>
    %282 = vector.broadcast %281 : vector<1x1x5xi1> to vector<8x1x5xi1>
    %283 = vector.shape_cast %177 : vector<8x1x1xf32> to vector<8x1x1xf32>
    %284 = vector.broadcast %283 : vector<8x1x1xf32> to vector<8x1x5xf32>
    %285 = arith.select %282, %284, %267 : vector<8x1x5xi1>, vector<8x1x5xf32>
    %c3_i32 = arith.constant 3 : i32
    %286 = vector.broadcast %c3_i32 : i32 to vector<15x5xi32>
    %287 = arith.cmpi eq, %0, %286 : vector<15x5xi32>
    %288 = vector.broadcast %201 : vector<8x1x64xf32> to vector<8x15x64xf32>
    %289 = arith.mulf %59, %288 : vector<8x15x64xf32>
    %cst_80 = arith.constant dense<0.000000e+00> : vector<8x15xf32>
    %290 = vector.multi_reduction <add>, %289, %cst_80 [2] : vector<8x15x64xf32> to vector<8x15xf32>
    %291 = vector.shape_cast %290 : vector<8x15xf32> to vector<8x15x1xf32>
    %292 = vector.shape_cast %287 : vector<15x5xi1> to vector<1x15x5xi1>
    %293 = vector.broadcast %292 : vector<1x15x5xi1> to vector<8x15x5xi1>
    %294 = vector.shape_cast %291 : vector<8x15x1xf32> to vector<8x15x1xf32>
    %295 = vector.broadcast %294 : vector<8x15x1xf32> to vector<8x15x5xf32>
    %296 = arith.select %293, %295, %278 : vector<8x15x5xi1>, vector<8x15x5xf32>
    %c3_i32_81 = arith.constant 3 : i32
    %297 = vector.broadcast %c3_i32_81 : i32 to vector<1x5xi32>
    %298 = arith.cmpi eq, %2, %297 : vector<1x5xi32>
    %299 = vector.shape_cast %298 : vector<1x5xi1> to vector<1x1x5xi1>
    %300 = vector.broadcast %299 : vector<1x1x5xi1> to vector<8x1x5xi1>
    %301 = vector.shape_cast %203 : vector<8x1x1xf32> to vector<8x1x1xf32>
    %302 = vector.broadcast %301 : vector<8x1x1xf32> to vector<8x1x5xf32>
    %303 = arith.select %300, %302, %285 : vector<8x1x5xi1>, vector<8x1x5xf32>
    %c4_i32 = arith.constant 4 : i32
    %304 = vector.broadcast %c4_i32 : i32 to vector<15x5xi32>
    %305 = arith.cmpi eq, %0, %304 : vector<15x5xi32>
    %306 = vector.broadcast %227 : vector<8x1x64xf32> to vector<8x15x64xf32>
    %307 = arith.mulf %59, %306 : vector<8x15x64xf32>
    %cst_82 = arith.constant dense<0.000000e+00> : vector<8x15xf32>
    %308 = vector.multi_reduction <add>, %307, %cst_82 [2] : vector<8x15x64xf32> to vector<8x15xf32>
    %309 = vector.shape_cast %308 : vector<8x15xf32> to vector<8x15x1xf32>
    %310 = vector.shape_cast %305 : vector<15x5xi1> to vector<1x15x5xi1>
    %311 = vector.broadcast %310 : vector<1x15x5xi1> to vector<8x15x5xi1>
    %312 = vector.shape_cast %309 : vector<8x15x1xf32> to vector<8x15x1xf32>
    %313 = vector.broadcast %312 : vector<8x15x1xf32> to vector<8x15x5xf32>
    %314 = arith.select %311, %313, %296 : vector<8x15x5xi1>, vector<8x15x5xf32>
    %c4_i32_83 = arith.constant 4 : i32
    %315 = vector.broadcast %c4_i32_83 : i32 to vector<1x5xi32>
    %316 = arith.cmpi eq, %2, %315 : vector<1x5xi32>
    %317 = vector.shape_cast %316 : vector<1x5xi1> to vector<1x1x5xi1>
    %318 = vector.broadcast %317 : vector<1x1x5xi1> to vector<8x1x5xi1>
    %319 = vector.shape_cast %229 : vector<8x1x1xf32> to vector<8x1x1xf32>
    %320 = vector.broadcast %319 : vector<8x1x1xf32> to vector<8x1x5xf32>
    %321 = arith.select %318, %320, %303 : vector<8x1x5xi1>, vector<8x1x5xf32>
    %cst_84 = arith.constant 0.000000e+00 : f32
    %322 = vector.broadcast %cst_84 : f32 to vector<8x15x5xf32>
    %323 = arith.subf %322, %314 : vector<8x15x5xf32>
    %cst_85 = arith.constant 2.000000e-02 : f32
    %324 = vector.broadcast %cst_85 : f32 to vector<8x15x5xf32>
    %325 = arith.mulf %324, %323 : vector<8x15x5xf32>
    %cst_86 = arith.constant 1.000000e+00 : f32
    %326 = vector.broadcast %cst_86 : f32 to vector<8x15x5xf32>
    %327 = arith.addf %326, %325 : vector<8x15x5xf32>
    %cst_87 = arith.constant 0.00999999977 : f32
    %328 = vector.broadcast %cst_87 : f32 to vector<8x1x5xf32>
    %329 = arith.mulf %328, %321 : vector<8x1x5xf32>
    %330 = vector.broadcast %329 : vector<8x1x5xf32> to vector<8x15x5xf32>
    %331 = arith.addf %327, %330 : vector<8x15x5xf32>
    %cst_88 = arith.constant 0.00999999977 : f32
    %332 = vector.broadcast %cst_88 : f32 to vector<8x15x1xf32>
    %333 = arith.mulf %332, %65 : vector<8x15x1xf32>
    %cst_89 = arith.constant 1.000000e+00 : f32
    %334 = vector.broadcast %cst_89 : f32 to vector<8x15x1xf32>
    %335 = arith.subf %334, %333 : vector<8x15x1xf32>
    %cst_90 = arith.constant 2.000000e-02 : f32
    %336 = vector.broadcast %cst_90 : f32 to vector<8x15x5xf32>
    %337 = arith.mulf %336, %323 : vector<8x15x5xf32>
    %cst_91 = arith.constant 1.000000e+00 : f32
    %338 = vector.broadcast %cst_91 : f32 to vector<8x15x5xf32>
    %339 = arith.addf %338, %337 : vector<8x15x5xf32>
    %cst_92 = arith.constant 9.99999974E-5 : f32
    %340 = vector.broadcast %cst_92 : f32 to vector<8x15x1xf32>
    %341 = arith.mulf %340, %65 : vector<8x15x1xf32>
    %342 = vector.broadcast %341 : vector<8x15x1xf32> to vector<8x15x5xf32>
    %343 = vector.broadcast %321 : vector<8x1x5xf32> to vector<8x15x5xf32>
    %344 = arith.mulf %342, %343 : vector<8x15x5xf32>
    %345 = arith.addf %339, %344 : vector<8x15x5xf32>
    %346 = arith.mulf %331, %331 : vector<8x15x5xf32>
    %347 = vector.broadcast %65 : vector<8x15x1xf32> to vector<8x15x5xf32>
    %348 = arith.mulf %346, %347 : vector<8x15x5xf32>
    %cst_93 = arith.constant 2.000000e+00 : f32
    %349 = vector.broadcast %cst_93 : f32 to vector<8x15x5xf32>
    %350 = arith.mulf %349, %331 : vector<8x15x5xf32>
    %351 = vector.broadcast %335 : vector<8x15x1xf32> to vector<8x15x5xf32>
    %352 = arith.mulf %350, %351 : vector<8x15x5xf32>
    %353 = arith.mulf %352, %323 : vector<8x15x5xf32>
    %354 = arith.addf %348, %353 : vector<8x15x5xf32>
    %355 = arith.mulf %335, %335 : vector<8x15x1xf32>
    %356 = vector.broadcast %355 : vector<8x15x1xf32> to vector<8x15x5xf32>
    %357 = vector.broadcast %321 : vector<8x1x5xf32> to vector<8x15x5xf32>
    %358 = arith.mulf %356, %357 : vector<8x15x5xf32>
    %359 = arith.addf %354, %358 : vector<8x15x5xf32>
    %cst_94 = arith.constant 0.000000e+00 : f32
    %360 = vector.broadcast %cst_94 : f32 to vector<8x15x5xf32>
    %361 = arith.maximumf %359, %360 : vector<8x15x5xf32>
    %362 = math.sqrt %361 : vector<8x15x5xf32>
    %cst_95 = arith.constant 9.99999974E-6 : f32
    %363 = vector.broadcast %cst_95 : f32 to vector<8x15x5xf32>
    %364 = arith.addf %345, %363 : vector<8x15x5xf32>
    %365 = arith.divf %362, %364 : vector<8x15x5xf32>
    %cst_96 = arith.constant 1.000000e-01 : f32
    %366 = vector.broadcast %cst_96 : f32 to vector<8x15x5xf32>
    %367 = arith.mulf %366, %365 : vector<8x15x5xf32>
    %cst_97 = arith.constant 0.999989986 : f32
    %368 = vector.broadcast %cst_97 : f32 to vector<8x15x5xf32>
    %369 = arith.minimumf %367, %368 : vector<8x15x5xf32>
    %cst_98 = arith.constant 1.000000e+00 : f32
    %370 = vector.broadcast %cst_98 : f32 to vector<8x15x5xf32>
    %371 = arith.addf %370, %369 : vector<8x15x5xf32>
    %cst_99 = arith.constant 1.000000e+00 : f32
    %372 = vector.broadcast %cst_99 : f32 to vector<8x15x5xf32>
    %373 = arith.subf %372, %369 : vector<8x15x5xf32>
    %374 = arith.divf %371, %373 : vector<8x15x5xf32>
    %375 = math.log %374 : vector<8x15x5xf32>
    %cst_100 = arith.constant 1.000000e+01 : f32
    %376 = vector.broadcast %cst_100 : f32 to vector<8x15x5xf32>
    %377 = arith.mulf %376, %375 : vector<8x15x5xf32>
    %cst_101 = arith.constant 1.000000e+00 : f32
    %378 = vector.broadcast %cst_101 : f32 to vector<8x15x5xf32>
    %379 = arith.mulf %377, %378 : vector<8x15x5xf32>
    %cst_102 = arith.constant dense<0x7F800000> : vector<8x15xf32>
    %380 = vector.multi_reduction <minimumf>, %379, %cst_102 [2] : vector<8x15x5xf32> to vector<8x15xf32>
    %381 = vector.shape_cast %380 : vector<8x15xf32> to vector<8x15x1xf32>
    %382 = vector.broadcast %381 : vector<8x15x1xf32> to vector<8x15x5xf32>
    %383 = arith.cmpf ole, %379, %382 : vector<8x15x5xf32>
    %cst_103 = arith.constant 5.000000e+00 : f32
    %384 = vector.shape_cast %1 : vector<15x5xf32> to vector<1x15x5xf32>
    %385 = vector.broadcast %384 : vector<1x15x5xf32> to vector<8x15x5xf32>
    %386 = vector.broadcast %cst_103 : f32 to vector<8x15x5xf32>
    %387 = arith.select %383, %385, %386 : vector<8x15x5xi1>, vector<8x15x5xf32>
    %cst_104 = arith.constant dense<0x7F800000> : vector<8x15xf32>
    %388 = vector.multi_reduction <minimumf>, %387, %cst_104 [2] : vector<8x15x5xf32> to vector<8x15xf32>
    %389 = vector.shape_cast %388 : vector<8x15xf32> to vector<8x15x1xf32>
    %cst_105 = arith.constant 0.000000e+00 : f32
    %390 = vector.broadcast %cst_105 : f32 to vector<8x15x1xf32>
    %391 = arith.cmpf oeq, %389, %390 : vector<8x15x1xf32>
    %392 = arith.extui %391 : vector<8x15x1xi1> to vector<8x15x1xi32>
    %393 = arith.sitofp %392 : vector<8x15x1xi32> to vector<8x15x1xf32>
    %394 = vector.broadcast %393 : vector<8x15x1xf32> to vector<8x15x64xf32>
    %395 = arith.mulf %394, %99 : vector<8x15x64xf32>
    %cst_106 = arith.constant dense<0.000000e+00> : vector<8x64xf32>
    %396 = vector.multi_reduction <add>, %395, %cst_106 [1] : vector<8x15x64xf32> to vector<8x64xf32>
    %397 = vector.shape_cast %396 : vector<8x64xf32> to vector<8x1x64xf32>
    %398 = arith.addf %105, %397 : vector<8x1x64xf32>
    %399 = arith.mulf %393, %97 : vector<8x15x1xf32>
    %cst_107 = arith.constant dense<0.000000e+00> : vector<8x1xf32>
    %400 = vector.multi_reduction <add>, %399, %cst_107 [1] : vector<8x15x1xf32> to vector<8x1xf32>
    %401 = vector.shape_cast %400 : vector<8x1xf32> to vector<8x1x1xf32>
    %402 = arith.addf %107, %401 : vector<8x1x1xf32>
    %403 = vector.broadcast %402 : vector<8x1x1xf32> to vector<8x1x64xf32>
    %404 = arith.divf %398, %403 : vector<8x1x64xf32>
    %405 = arith.mulf %404, %404 : vector<8x1x64xf32>
    %cst_108 = arith.constant dense<0.000000e+00> : vector<8x1xf32>
    %406 = vector.multi_reduction <add>, %405, %cst_108 [2] : vector<8x1x64xf32> to vector<8x1xf32>
    %407 = vector.shape_cast %406 : vector<8x1xf32> to vector<8x1x1xf32>
    %cst_109 = arith.constant 0.00999999977 : f32
    %408 = vector.broadcast %cst_109 : f32 to vector<8x1x1xf32>
    %409 = arith.mulf %408, %407 : vector<8x1x1xf32>
    %cst_110 = arith.constant 1.000000e+00 : f32
    %410 = vector.broadcast %cst_110 : f32 to vector<8x1x1xf32>
    %411 = arith.subf %410, %409 : vector<8x1x1xf32>
    %412 = math.sqrt %411 : vector<8x1x1xf32>
    %cst_111 = arith.constant 1.000000e+00 : f32
    %413 = vector.broadcast %cst_111 : f32 to vector<8x1x1xf32>
    %414 = arith.addf %413, %412 : vector<8x1x1xf32>
    %cst_112 = arith.constant 1.000000e+00 : f32
    %415 = vector.broadcast %cst_112 : f32 to vector<8x1x1xf32>
    %416 = arith.divf %415, %414 : vector<8x1x1xf32>
    %417 = vector.broadcast %416 : vector<8x1x1xf32> to vector<8x1x64xf32>
    %418 = arith.mulf %404, %417 : vector<8x1x64xf32>
    %419 = arith.mulf %416, %416 : vector<8x1x1xf32>
    %420 = arith.mulf %407, %419 : vector<8x1x1xf32>
    %cst_113 = arith.constant 1.000000e+00 : f32
    %421 = vector.broadcast %cst_113 : f32 to vector<8x15x1xf32>
    %422 = arith.cmpf oeq, %389, %421 : vector<8x15x1xf32>
    %423 = arith.extui %422 : vector<8x15x1xi1> to vector<8x15x1xi32>
    %424 = arith.sitofp %423 : vector<8x15x1xi32> to vector<8x15x1xf32>
    %425 = vector.broadcast %424 : vector<8x15x1xf32> to vector<8x15x64xf32>
    %426 = arith.mulf %425, %99 : vector<8x15x64xf32>
    %cst_114 = arith.constant dense<0.000000e+00> : vector<8x64xf32>
    %427 = vector.multi_reduction <add>, %426, %cst_114 [1] : vector<8x15x64xf32> to vector<8x64xf32>
    %428 = vector.shape_cast %427 : vector<8x64xf32> to vector<8x1x64xf32>
    %429 = arith.addf %131, %428 : vector<8x1x64xf32>
    %430 = arith.mulf %424, %97 : vector<8x15x1xf32>
    %cst_115 = arith.constant dense<0.000000e+00> : vector<8x1xf32>
    %431 = vector.multi_reduction <add>, %430, %cst_115 [1] : vector<8x15x1xf32> to vector<8x1xf32>
    %432 = vector.shape_cast %431 : vector<8x1xf32> to vector<8x1x1xf32>
    %433 = arith.addf %133, %432 : vector<8x1x1xf32>
    %434 = vector.broadcast %433 : vector<8x1x1xf32> to vector<8x1x64xf32>
    %435 = arith.divf %429, %434 : vector<8x1x64xf32>
    %436 = arith.mulf %435, %435 : vector<8x1x64xf32>
    %cst_116 = arith.constant dense<0.000000e+00> : vector<8x1xf32>
    %437 = vector.multi_reduction <add>, %436, %cst_116 [2] : vector<8x1x64xf32> to vector<8x1xf32>
    %438 = vector.shape_cast %437 : vector<8x1xf32> to vector<8x1x1xf32>
    %cst_117 = arith.constant 0.00999999977 : f32
    %439 = vector.broadcast %cst_117 : f32 to vector<8x1x1xf32>
    %440 = arith.mulf %439, %438 : vector<8x1x1xf32>
    %cst_118 = arith.constant 1.000000e+00 : f32
    %441 = vector.broadcast %cst_118 : f32 to vector<8x1x1xf32>
    %442 = arith.subf %441, %440 : vector<8x1x1xf32>
    %443 = math.sqrt %442 : vector<8x1x1xf32>
    %cst_119 = arith.constant 1.000000e+00 : f32
    %444 = vector.broadcast %cst_119 : f32 to vector<8x1x1xf32>
    %445 = arith.addf %444, %443 : vector<8x1x1xf32>
    %cst_120 = arith.constant 1.000000e+00 : f32
    %446 = vector.broadcast %cst_120 : f32 to vector<8x1x1xf32>
    %447 = arith.divf %446, %445 : vector<8x1x1xf32>
    %448 = vector.broadcast %447 : vector<8x1x1xf32> to vector<8x1x64xf32>
    %449 = arith.mulf %435, %448 : vector<8x1x64xf32>
    %450 = arith.mulf %447, %447 : vector<8x1x1xf32>
    %451 = arith.mulf %438, %450 : vector<8x1x1xf32>
    %cst_121 = arith.constant 2.000000e+00 : f32
    %452 = vector.broadcast %cst_121 : f32 to vector<8x15x1xf32>
    %453 = arith.cmpf oeq, %389, %452 : vector<8x15x1xf32>
    %454 = arith.extui %453 : vector<8x15x1xi1> to vector<8x15x1xi32>
    %455 = arith.sitofp %454 : vector<8x15x1xi32> to vector<8x15x1xf32>
    %456 = vector.broadcast %455 : vector<8x15x1xf32> to vector<8x15x64xf32>
    %457 = arith.mulf %456, %99 : vector<8x15x64xf32>
    %cst_122 = arith.constant dense<0.000000e+00> : vector<8x64xf32>
    %458 = vector.multi_reduction <add>, %457, %cst_122 [1] : vector<8x15x64xf32> to vector<8x64xf32>
    %459 = vector.shape_cast %458 : vector<8x64xf32> to vector<8x1x64xf32>
    %460 = arith.addf %157, %459 : vector<8x1x64xf32>
    %461 = arith.mulf %455, %97 : vector<8x15x1xf32>
    %cst_123 = arith.constant dense<0.000000e+00> : vector<8x1xf32>
    %462 = vector.multi_reduction <add>, %461, %cst_123 [1] : vector<8x15x1xf32> to vector<8x1xf32>
    %463 = vector.shape_cast %462 : vector<8x1xf32> to vector<8x1x1xf32>
    %464 = arith.addf %159, %463 : vector<8x1x1xf32>
    %465 = vector.broadcast %464 : vector<8x1x1xf32> to vector<8x1x64xf32>
    %466 = arith.divf %460, %465 : vector<8x1x64xf32>
    %467 = arith.mulf %466, %466 : vector<8x1x64xf32>
    %cst_124 = arith.constant dense<0.000000e+00> : vector<8x1xf32>
    %468 = vector.multi_reduction <add>, %467, %cst_124 [2] : vector<8x1x64xf32> to vector<8x1xf32>
    %469 = vector.shape_cast %468 : vector<8x1xf32> to vector<8x1x1xf32>
    %cst_125 = arith.constant 0.00999999977 : f32
    %470 = vector.broadcast %cst_125 : f32 to vector<8x1x1xf32>
    %471 = arith.mulf %470, %469 : vector<8x1x1xf32>
    %cst_126 = arith.constant 1.000000e+00 : f32
    %472 = vector.broadcast %cst_126 : f32 to vector<8x1x1xf32>
    %473 = arith.subf %472, %471 : vector<8x1x1xf32>
    %474 = math.sqrt %473 : vector<8x1x1xf32>
    %cst_127 = arith.constant 1.000000e+00 : f32
    %475 = vector.broadcast %cst_127 : f32 to vector<8x1x1xf32>
    %476 = arith.addf %475, %474 : vector<8x1x1xf32>
    %cst_128 = arith.constant 1.000000e+00 : f32
    %477 = vector.broadcast %cst_128 : f32 to vector<8x1x1xf32>
    %478 = arith.divf %477, %476 : vector<8x1x1xf32>
    %479 = vector.broadcast %478 : vector<8x1x1xf32> to vector<8x1x64xf32>
    %480 = arith.mulf %466, %479 : vector<8x1x64xf32>
    %481 = arith.mulf %478, %478 : vector<8x1x1xf32>
    %482 = arith.mulf %469, %481 : vector<8x1x1xf32>
    %cst_129 = arith.constant 3.000000e+00 : f32
    %483 = vector.broadcast %cst_129 : f32 to vector<8x15x1xf32>
    %484 = arith.cmpf oeq, %389, %483 : vector<8x15x1xf32>
    %485 = arith.extui %484 : vector<8x15x1xi1> to vector<8x15x1xi32>
    %486 = arith.sitofp %485 : vector<8x15x1xi32> to vector<8x15x1xf32>
    %487 = vector.broadcast %486 : vector<8x15x1xf32> to vector<8x15x64xf32>
    %488 = arith.mulf %487, %99 : vector<8x15x64xf32>
    %cst_130 = arith.constant dense<0.000000e+00> : vector<8x64xf32>
    %489 = vector.multi_reduction <add>, %488, %cst_130 [1] : vector<8x15x64xf32> to vector<8x64xf32>
    %490 = vector.shape_cast %489 : vector<8x64xf32> to vector<8x1x64xf32>
    %491 = arith.addf %183, %490 : vector<8x1x64xf32>
    %492 = arith.mulf %486, %97 : vector<8x15x1xf32>
    %cst_131 = arith.constant dense<0.000000e+00> : vector<8x1xf32>
    %493 = vector.multi_reduction <add>, %492, %cst_131 [1] : vector<8x15x1xf32> to vector<8x1xf32>
    %494 = vector.shape_cast %493 : vector<8x1xf32> to vector<8x1x1xf32>
    %495 = arith.addf %185, %494 : vector<8x1x1xf32>
    %496 = vector.broadcast %495 : vector<8x1x1xf32> to vector<8x1x64xf32>
    %497 = arith.divf %491, %496 : vector<8x1x64xf32>
    %498 = arith.mulf %497, %497 : vector<8x1x64xf32>
    %cst_132 = arith.constant dense<0.000000e+00> : vector<8x1xf32>
    %499 = vector.multi_reduction <add>, %498, %cst_132 [2] : vector<8x1x64xf32> to vector<8x1xf32>
    %500 = vector.shape_cast %499 : vector<8x1xf32> to vector<8x1x1xf32>
    %cst_133 = arith.constant 0.00999999977 : f32
    %501 = vector.broadcast %cst_133 : f32 to vector<8x1x1xf32>
    %502 = arith.mulf %501, %500 : vector<8x1x1xf32>
    %cst_134 = arith.constant 1.000000e+00 : f32
    %503 = vector.broadcast %cst_134 : f32 to vector<8x1x1xf32>
    %504 = arith.subf %503, %502 : vector<8x1x1xf32>
    %505 = math.sqrt %504 : vector<8x1x1xf32>
    %cst_135 = arith.constant 1.000000e+00 : f32
    %506 = vector.broadcast %cst_135 : f32 to vector<8x1x1xf32>
    %507 = arith.addf %506, %505 : vector<8x1x1xf32>
    %cst_136 = arith.constant 1.000000e+00 : f32
    %508 = vector.broadcast %cst_136 : f32 to vector<8x1x1xf32>
    %509 = arith.divf %508, %507 : vector<8x1x1xf32>
    %510 = vector.broadcast %509 : vector<8x1x1xf32> to vector<8x1x64xf32>
    %511 = arith.mulf %497, %510 : vector<8x1x64xf32>
    %512 = arith.mulf %509, %509 : vector<8x1x1xf32>
    %513 = arith.mulf %500, %512 : vector<8x1x1xf32>
    %cst_137 = arith.constant 4.000000e+00 : f32
    %514 = vector.broadcast %cst_137 : f32 to vector<8x15x1xf32>
    %515 = arith.cmpf oeq, %389, %514 : vector<8x15x1xf32>
    %516 = arith.extui %515 : vector<8x15x1xi1> to vector<8x15x1xi32>
    %517 = arith.sitofp %516 : vector<8x15x1xi32> to vector<8x15x1xf32>
    %518 = vector.broadcast %517 : vector<8x15x1xf32> to vector<8x15x64xf32>
    %519 = arith.mulf %518, %99 : vector<8x15x64xf32>
    %cst_138 = arith.constant dense<0.000000e+00> : vector<8x64xf32>
    %520 = vector.multi_reduction <add>, %519, %cst_138 [1] : vector<8x15x64xf32> to vector<8x64xf32>
    %521 = vector.shape_cast %520 : vector<8x64xf32> to vector<8x1x64xf32>
    %522 = arith.addf %209, %521 : vector<8x1x64xf32>
    %523 = arith.mulf %517, %97 : vector<8x15x1xf32>
    %cst_139 = arith.constant dense<0.000000e+00> : vector<8x1xf32>
    %524 = vector.multi_reduction <add>, %523, %cst_139 [1] : vector<8x15x1xf32> to vector<8x1xf32>
    %525 = vector.shape_cast %524 : vector<8x1xf32> to vector<8x1x1xf32>
    %526 = arith.addf %211, %525 : vector<8x1x1xf32>
    %527 = vector.broadcast %526 : vector<8x1x1xf32> to vector<8x1x64xf32>
    %528 = arith.divf %522, %527 : vector<8x1x64xf32>
    %529 = arith.mulf %528, %528 : vector<8x1x64xf32>
    %cst_140 = arith.constant dense<0.000000e+00> : vector<8x1xf32>
    %530 = vector.multi_reduction <add>, %529, %cst_140 [2] : vector<8x1x64xf32> to vector<8x1xf32>
    %531 = vector.shape_cast %530 : vector<8x1xf32> to vector<8x1x1xf32>
    %cst_141 = arith.constant 0.00999999977 : f32
    %532 = vector.broadcast %cst_141 : f32 to vector<8x1x1xf32>
    %533 = arith.mulf %532, %531 : vector<8x1x1xf32>
    %cst_142 = arith.constant 1.000000e+00 : f32
    %534 = vector.broadcast %cst_142 : f32 to vector<8x1x1xf32>
    %535 = arith.subf %534, %533 : vector<8x1x1xf32>
    %536 = math.sqrt %535 : vector<8x1x1xf32>
    %cst_143 = arith.constant 1.000000e+00 : f32
    %537 = vector.broadcast %cst_143 : f32 to vector<8x1x1xf32>
    %538 = arith.addf %537, %536 : vector<8x1x1xf32>
    %cst_144 = arith.constant 1.000000e+00 : f32
    %539 = vector.broadcast %cst_144 : f32 to vector<8x1x1xf32>
    %540 = arith.divf %539, %538 : vector<8x1x1xf32>
    %541 = vector.broadcast %540 : vector<8x1x1xf32> to vector<8x1x64xf32>
    %542 = arith.mulf %528, %541 : vector<8x1x64xf32>
    %543 = arith.mulf %540, %540 : vector<8x1x1xf32>
    %544 = arith.mulf %531, %543 : vector<8x1x1xf32>
    %cst_145 = arith.constant 0.000000e+00 : f32
    %545 = vector.broadcast %cst_145 : f32 to vector<8x15x5xf32>
    %cst_146 = arith.constant 0.000000e+00 : f32
    %546 = vector.broadcast %cst_146 : f32 to vector<8x1x5xf32>
    %c0_i32_147 = arith.constant 0 : i32
    %547 = vector.broadcast %c0_i32_147 : i32 to vector<15x5xi32>
    %548 = arith.cmpi eq, %0, %547 : vector<15x5xi32>
    %549 = vector.broadcast %418 : vector<8x1x64xf32> to vector<8x15x64xf32>
    %550 = arith.mulf %59, %549 : vector<8x15x64xf32>
    %cst_148 = arith.constant dense<0.000000e+00> : vector<8x15xf32>
    %551 = vector.multi_reduction <add>, %550, %cst_148 [2] : vector<8x15x64xf32> to vector<8x15xf32>
    %552 = vector.shape_cast %551 : vector<8x15xf32> to vector<8x15x1xf32>
    %553 = vector.shape_cast %548 : vector<15x5xi1> to vector<1x15x5xi1>
    %554 = vector.broadcast %553 : vector<1x15x5xi1> to vector<8x15x5xi1>
    %555 = vector.shape_cast %552 : vector<8x15x1xf32> to vector<8x15x1xf32>
    %556 = vector.broadcast %555 : vector<8x15x1xf32> to vector<8x15x5xf32>
    %557 = arith.select %554, %556, %545 : vector<8x15x5xi1>, vector<8x15x5xf32>
    %c0_i32_149 = arith.constant 0 : i32
    %558 = vector.broadcast %c0_i32_149 : i32 to vector<1x5xi32>
    %559 = arith.cmpi eq, %2, %558 : vector<1x5xi32>
    %560 = vector.shape_cast %559 : vector<1x5xi1> to vector<1x1x5xi1>
    %561 = vector.broadcast %560 : vector<1x1x5xi1> to vector<8x1x5xi1>
    %562 = vector.shape_cast %420 : vector<8x1x1xf32> to vector<8x1x1xf32>
    %563 = vector.broadcast %562 : vector<8x1x1xf32> to vector<8x1x5xf32>
    %564 = arith.select %561, %563, %546 : vector<8x1x5xi1>, vector<8x1x5xf32>
    %c1_i32_150 = arith.constant 1 : i32
    %565 = vector.broadcast %c1_i32_150 : i32 to vector<15x5xi32>
    %566 = arith.cmpi eq, %0, %565 : vector<15x5xi32>
    %567 = vector.broadcast %449 : vector<8x1x64xf32> to vector<8x15x64xf32>
    %568 = arith.mulf %59, %567 : vector<8x15x64xf32>
    %cst_151 = arith.constant dense<0.000000e+00> : vector<8x15xf32>
    %569 = vector.multi_reduction <add>, %568, %cst_151 [2] : vector<8x15x64xf32> to vector<8x15xf32>
    %570 = vector.shape_cast %569 : vector<8x15xf32> to vector<8x15x1xf32>
    %571 = vector.shape_cast %566 : vector<15x5xi1> to vector<1x15x5xi1>
    %572 = vector.broadcast %571 : vector<1x15x5xi1> to vector<8x15x5xi1>
    %573 = vector.shape_cast %570 : vector<8x15x1xf32> to vector<8x15x1xf32>
    %574 = vector.broadcast %573 : vector<8x15x1xf32> to vector<8x15x5xf32>
    %575 = arith.select %572, %574, %557 : vector<8x15x5xi1>, vector<8x15x5xf32>
    %c1_i32_152 = arith.constant 1 : i32
    %576 = vector.broadcast %c1_i32_152 : i32 to vector<1x5xi32>
    %577 = arith.cmpi eq, %2, %576 : vector<1x5xi32>
    %578 = vector.shape_cast %577 : vector<1x5xi1> to vector<1x1x5xi1>
    %579 = vector.broadcast %578 : vector<1x1x5xi1> to vector<8x1x5xi1>
    %580 = vector.shape_cast %451 : vector<8x1x1xf32> to vector<8x1x1xf32>
    %581 = vector.broadcast %580 : vector<8x1x1xf32> to vector<8x1x5xf32>
    %582 = arith.select %579, %581, %564 : vector<8x1x5xi1>, vector<8x1x5xf32>
    %c2_i32_153 = arith.constant 2 : i32
    %583 = vector.broadcast %c2_i32_153 : i32 to vector<15x5xi32>
    %584 = arith.cmpi eq, %0, %583 : vector<15x5xi32>
    %585 = vector.broadcast %480 : vector<8x1x64xf32> to vector<8x15x64xf32>
    %586 = arith.mulf %59, %585 : vector<8x15x64xf32>
    %cst_154 = arith.constant dense<0.000000e+00> : vector<8x15xf32>
    %587 = vector.multi_reduction <add>, %586, %cst_154 [2] : vector<8x15x64xf32> to vector<8x15xf32>
    %588 = vector.shape_cast %587 : vector<8x15xf32> to vector<8x15x1xf32>
    %589 = vector.shape_cast %584 : vector<15x5xi1> to vector<1x15x5xi1>
    %590 = vector.broadcast %589 : vector<1x15x5xi1> to vector<8x15x5xi1>
    %591 = vector.shape_cast %588 : vector<8x15x1xf32> to vector<8x15x1xf32>
    %592 = vector.broadcast %591 : vector<8x15x1xf32> to vector<8x15x5xf32>
    %593 = arith.select %590, %592, %575 : vector<8x15x5xi1>, vector<8x15x5xf32>
    %c2_i32_155 = arith.constant 2 : i32
    %594 = vector.broadcast %c2_i32_155 : i32 to vector<1x5xi32>
    %595 = arith.cmpi eq, %2, %594 : vector<1x5xi32>
    %596 = vector.shape_cast %595 : vector<1x5xi1> to vector<1x1x5xi1>
    %597 = vector.broadcast %596 : vector<1x1x5xi1> to vector<8x1x5xi1>
    %598 = vector.shape_cast %482 : vector<8x1x1xf32> to vector<8x1x1xf32>
    %599 = vector.broadcast %598 : vector<8x1x1xf32> to vector<8x1x5xf32>
    %600 = arith.select %597, %599, %582 : vector<8x1x5xi1>, vector<8x1x5xf32>
    %c3_i32_156 = arith.constant 3 : i32
    %601 = vector.broadcast %c3_i32_156 : i32 to vector<15x5xi32>
    %602 = arith.cmpi eq, %0, %601 : vector<15x5xi32>
    %603 = vector.broadcast %511 : vector<8x1x64xf32> to vector<8x15x64xf32>
    %604 = arith.mulf %59, %603 : vector<8x15x64xf32>
    %cst_157 = arith.constant dense<0.000000e+00> : vector<8x15xf32>
    %605 = vector.multi_reduction <add>, %604, %cst_157 [2] : vector<8x15x64xf32> to vector<8x15xf32>
    %606 = vector.shape_cast %605 : vector<8x15xf32> to vector<8x15x1xf32>
    %607 = vector.shape_cast %602 : vector<15x5xi1> to vector<1x15x5xi1>
    %608 = vector.broadcast %607 : vector<1x15x5xi1> to vector<8x15x5xi1>
    %609 = vector.shape_cast %606 : vector<8x15x1xf32> to vector<8x15x1xf32>
    %610 = vector.broadcast %609 : vector<8x15x1xf32> to vector<8x15x5xf32>
    %611 = arith.select %608, %610, %593 : vector<8x15x5xi1>, vector<8x15x5xf32>
    %c3_i32_158 = arith.constant 3 : i32
    %612 = vector.broadcast %c3_i32_158 : i32 to vector<1x5xi32>
    %613 = arith.cmpi eq, %2, %612 : vector<1x5xi32>
    %614 = vector.shape_cast %613 : vector<1x5xi1> to vector<1x1x5xi1>
    %615 = vector.broadcast %614 : vector<1x1x5xi1> to vector<8x1x5xi1>
    %616 = vector.shape_cast %513 : vector<8x1x1xf32> to vector<8x1x1xf32>
    %617 = vector.broadcast %616 : vector<8x1x1xf32> to vector<8x1x5xf32>
    %618 = arith.select %615, %617, %600 : vector<8x1x5xi1>, vector<8x1x5xf32>
    %c4_i32_159 = arith.constant 4 : i32
    %619 = vector.broadcast %c4_i32_159 : i32 to vector<15x5xi32>
    %620 = arith.cmpi eq, %0, %619 : vector<15x5xi32>
    %621 = vector.broadcast %542 : vector<8x1x64xf32> to vector<8x15x64xf32>
    %622 = arith.mulf %59, %621 : vector<8x15x64xf32>
    %cst_160 = arith.constant dense<0.000000e+00> : vector<8x15xf32>
    %623 = vector.multi_reduction <add>, %622, %cst_160 [2] : vector<8x15x64xf32> to vector<8x15xf32>
    %624 = vector.shape_cast %623 : vector<8x15xf32> to vector<8x15x1xf32>
    %625 = vector.shape_cast %620 : vector<15x5xi1> to vector<1x15x5xi1>
    %626 = vector.broadcast %625 : vector<1x15x5xi1> to vector<8x15x5xi1>
    %627 = vector.shape_cast %624 : vector<8x15x1xf32> to vector<8x15x1xf32>
    %628 = vector.broadcast %627 : vector<8x15x1xf32> to vector<8x15x5xf32>
    %629 = arith.select %626, %628, %611 : vector<8x15x5xi1>, vector<8x15x5xf32>
    %c4_i32_161 = arith.constant 4 : i32
    %630 = vector.broadcast %c4_i32_161 : i32 to vector<1x5xi32>
    %631 = arith.cmpi eq, %2, %630 : vector<1x5xi32>
    %632 = vector.shape_cast %631 : vector<1x5xi1> to vector<1x1x5xi1>
    %633 = vector.broadcast %632 : vector<1x1x5xi1> to vector<8x1x5xi1>
    %634 = vector.shape_cast %544 : vector<8x1x1xf32> to vector<8x1x1xf32>
    %635 = vector.broadcast %634 : vector<8x1x1xf32> to vector<8x1x5xf32>
    %636 = arith.select %633, %635, %618 : vector<8x1x5xi1>, vector<8x1x5xf32>
    %cst_162 = arith.constant 0.000000e+00 : f32
    %637 = vector.broadcast %cst_162 : f32 to vector<8x15x5xf32>
    %638 = arith.subf %637, %629 : vector<8x15x5xf32>
    %cst_163 = arith.constant 2.000000e-02 : f32
    %639 = vector.broadcast %cst_163 : f32 to vector<8x15x5xf32>
    %640 = arith.mulf %639, %638 : vector<8x15x5xf32>
    %cst_164 = arith.constant 1.000000e+00 : f32
    %641 = vector.broadcast %cst_164 : f32 to vector<8x15x5xf32>
    %642 = arith.addf %641, %640 : vector<8x15x5xf32>
    %cst_165 = arith.constant 0.00999999977 : f32
    %643 = vector.broadcast %cst_165 : f32 to vector<8x1x5xf32>
    %644 = arith.mulf %643, %636 : vector<8x1x5xf32>
    %645 = vector.broadcast %644 : vector<8x1x5xf32> to vector<8x15x5xf32>
    %646 = arith.addf %642, %645 : vector<8x15x5xf32>
    %cst_166 = arith.constant 0.00999999977 : f32
    %647 = vector.broadcast %cst_166 : f32 to vector<8x15x1xf32>
    %648 = arith.mulf %647, %65 : vector<8x15x1xf32>
    %cst_167 = arith.constant 1.000000e+00 : f32
    %649 = vector.broadcast %cst_167 : f32 to vector<8x15x1xf32>
    %650 = arith.subf %649, %648 : vector<8x15x1xf32>
    %cst_168 = arith.constant 2.000000e-02 : f32
    %651 = vector.broadcast %cst_168 : f32 to vector<8x15x5xf32>
    %652 = arith.mulf %651, %638 : vector<8x15x5xf32>
    %cst_169 = arith.constant 1.000000e+00 : f32
    %653 = vector.broadcast %cst_169 : f32 to vector<8x15x5xf32>
    %654 = arith.addf %653, %652 : vector<8x15x5xf32>
    %cst_170 = arith.constant 9.99999974E-5 : f32
    %655 = vector.broadcast %cst_170 : f32 to vector<8x15x1xf32>
    %656 = arith.mulf %655, %65 : vector<8x15x1xf32>
    %657 = vector.broadcast %656 : vector<8x15x1xf32> to vector<8x15x5xf32>
    %658 = vector.broadcast %636 : vector<8x1x5xf32> to vector<8x15x5xf32>
    %659 = arith.mulf %657, %658 : vector<8x15x5xf32>
    %660 = arith.addf %654, %659 : vector<8x15x5xf32>
    %661 = arith.mulf %646, %646 : vector<8x15x5xf32>
    %662 = vector.broadcast %65 : vector<8x15x1xf32> to vector<8x15x5xf32>
    %663 = arith.mulf %661, %662 : vector<8x15x5xf32>
    %cst_171 = arith.constant 2.000000e+00 : f32
    %664 = vector.broadcast %cst_171 : f32 to vector<8x15x5xf32>
    %665 = arith.mulf %664, %646 : vector<8x15x5xf32>
    %666 = vector.broadcast %650 : vector<8x15x1xf32> to vector<8x15x5xf32>
    %667 = arith.mulf %665, %666 : vector<8x15x5xf32>
    %668 = arith.mulf %667, %638 : vector<8x15x5xf32>
    %669 = arith.addf %663, %668 : vector<8x15x5xf32>
    %670 = arith.mulf %650, %650 : vector<8x15x1xf32>
    %671 = vector.broadcast %670 : vector<8x15x1xf32> to vector<8x15x5xf32>
    %672 = vector.broadcast %636 : vector<8x1x5xf32> to vector<8x15x5xf32>
    %673 = arith.mulf %671, %672 : vector<8x15x5xf32>
    %674 = arith.addf %669, %673 : vector<8x15x5xf32>
    %cst_172 = arith.constant 0.000000e+00 : f32
    %675 = vector.broadcast %cst_172 : f32 to vector<8x15x5xf32>
    %676 = arith.maximumf %674, %675 : vector<8x15x5xf32>
    %677 = math.sqrt %676 : vector<8x15x5xf32>
    %cst_173 = arith.constant 9.99999974E-6 : f32
    %678 = vector.broadcast %cst_173 : f32 to vector<8x15x5xf32>
    %679 = arith.addf %660, %678 : vector<8x15x5xf32>
    %680 = arith.divf %677, %679 : vector<8x15x5xf32>
    %cst_174 = arith.constant 1.000000e-01 : f32
    %681 = vector.broadcast %cst_174 : f32 to vector<8x15x5xf32>
    %682 = arith.mulf %681, %680 : vector<8x15x5xf32>
    %cst_175 = arith.constant 0.999989986 : f32
    %683 = vector.broadcast %cst_175 : f32 to vector<8x15x5xf32>
    %684 = arith.minimumf %682, %683 : vector<8x15x5xf32>
    %cst_176 = arith.constant 1.000000e+00 : f32
    %685 = vector.broadcast %cst_176 : f32 to vector<8x15x5xf32>
    %686 = arith.addf %685, %684 : vector<8x15x5xf32>
    %cst_177 = arith.constant 1.000000e+00 : f32
    %687 = vector.broadcast %cst_177 : f32 to vector<8x15x5xf32>
    %688 = arith.subf %687, %684 : vector<8x15x5xf32>
    %689 = arith.divf %686, %688 : vector<8x15x5xf32>
    %690 = math.log %689 : vector<8x15x5xf32>
    %cst_178 = arith.constant 1.000000e+01 : f32
    %691 = vector.broadcast %cst_178 : f32 to vector<8x15x5xf32>
    %692 = arith.mulf %691, %690 : vector<8x15x5xf32>
    %cst_179 = arith.constant 1.000000e+00 : f32
    %693 = vector.broadcast %cst_179 : f32 to vector<8x15x5xf32>
    %694 = arith.mulf %692, %693 : vector<8x15x5xf32>
    %cst_180 = arith.constant 0.000000e+00 : f32
    %695 = vector.broadcast %cst_180 : f32 to vector<8x15x5xf32>
    %696 = arith.subf %695, %694 : vector<8x15x5xf32>
    %cst_181 = arith.constant dense<0xFF800000> : vector<8x15xf32>
    %697 = vector.multi_reduction <maximumf>, %696, %cst_181 [2] : vector<8x15x5xf32> to vector<8x15xf32>
    %698 = vector.shape_cast %697 : vector<8x15xf32> to vector<8x15x1xf32>
    %699 = vector.broadcast %698 : vector<8x15x1xf32> to vector<8x15x5xf32>
    %700 = arith.subf %696, %699 : vector<8x15x5xf32>
    %701 = math.exp %700 : vector<8x15x5xf32>
    %cst_182 = arith.constant dense<0.000000e+00> : vector<8x15xf32>
    %702 = vector.multi_reduction <add>, %701, %cst_182 [2] : vector<8x15x5xf32> to vector<8x15xf32>
    %703 = vector.shape_cast %702 : vector<8x15xf32> to vector<8x15x1xf32>
    %704 = tpu.reciprocal %703 {approx = true} : vector<8x15x1xf32> -> vector<8x15x1xf32>
    %705 = vector.broadcast %704 : vector<8x15x1xf32> to vector<8x15x5xf32>
    %706 = arith.mulf %701, %705 : vector<8x15x5xf32>
    %c0_183 = arith.constant 0 : index
    %c0_184 = arith.constant 0 : index
    %c0_185 = arith.constant 0 : index
    %707 = vector.load %arg4[%c0_183, %c0_184, %c0_185] : memref<8x15x5xf32, #tpu.memory_space<vmem>>, vector<8x15x5xf32>
    tpu.vector_store %arg4[%c0_183, %c0_184, %c0_185], %706 {strides = array<i32>} : memref<8x15x5xf32, #tpu.memory_space<vmem>>, vector<8x15x5xf32>,
    %cst_186 = arith.constant 0.000000e+00 : f32
    %708 = vector.broadcast %cst_186 : f32 to vector<8x15x5xf32>
    %709 = arith.subf %708, %379 : vector<8x15x5xf32>
    %cst_187 = arith.constant dense<0xFF800000> : vector<8x15xf32>
    %710 = vector.multi_reduction <maximumf>, %709, %cst_187 [2] : vector<8x15x5xf32> to vector<8x15xf32>
    %711 = vector.shape_cast %710 : vector<8x15xf32> to vector<8x15x1xf32>
    %712 = vector.broadcast %711 : vector<8x15x1xf32> to vector<8x15x5xf32>
    %713 = arith.subf %709, %712 : vector<8x15x5xf32>
    %714 = math.exp %713 : vector<8x15x5xf32>
    %cst_188 = arith.constant dense<0.000000e+00> : vector<8x15xf32>
    %715 = vector.multi_reduction <add>, %714, %cst_188 [2] : vector<8x15x5xf32> to vector<8x15xf32>
    %716 = vector.shape_cast %715 : vector<8x15xf32> to vector<8x15x1xf32>
    %717 = math.log %716 : vector<8x15x1xf32>
    %718 = arith.addf %711, %717 : vector<8x15x1xf32>
    %719 = vector.broadcast %718 : vector<8x15x1xf32> to vector<8x15x5xf32>
    %720 = arith.subf %709, %719 : vector<8x15x5xf32>
    %cst_189 = arith.constant dense<0xFF800000> : vector<8x15xf32>
    %721 = vector.multi_reduction <maximumf>, %720, %cst_189 [2] : vector<8x15x5xf32> to vector<8x15xf32>
    %722 = vector.shape_cast %721 : vector<8x15xf32> to vector<8x15x1xf32>
    %723 = vector.broadcast %722 : vector<8x15x1xf32> to vector<8x15x5xf32>
    %724 = arith.subf %720, %723 : vector<8x15x5xf32>
    %725 = math.exp %724 : vector<8x15x5xf32>
    %cst_190 = arith.constant dense<0.000000e+00> : vector<8x15xf32>
    %726 = vector.multi_reduction <add>, %725, %cst_190 [2] : vector<8x15x5xf32> to vector<8x15xf32>
    %727 = vector.shape_cast %726 : vector<8x15xf32> to vector<8x15x1xf32>
    %728 = math.log %727 : vector<8x15x1xf32>
    %729 = arith.addf %722, %728 : vector<8x15x1xf32>
    %730 = vector.shape_cast %0 : vector<15x5xi32> to vector<1x15x5xi32>
    %731 = vector.broadcast %730 : vector<1x15x5xi32> to vector<8x15x5xi32>
    %732 = vector.broadcast %5 : vector<8x15x1xi32> to vector<8x15x5xi32>
    %733 = arith.cmpi eq, %731, %732 : vector<8x15x5xi32>
    %cst_191 = arith.constant 0.000000e+00 : f32
    %734 = vector.broadcast %cst_191 : f32 to vector<8x15x5xf32>
    %735 = arith.select %733, %720, %734 : vector<8x15x5xi1>, vector<8x15x5xf32>
    %cst_192 = arith.constant dense<0.000000e+00> : vector<8x15xf32>
    %736 = vector.multi_reduction <add>, %735, %cst_192 [2] : vector<8x15x5xf32> to vector<8x15xf32>
    %737 = vector.shape_cast %736 : vector<8x15xf32> to vector<8x15x1xf32>
    %738 = arith.subf %729, %737 : vector<8x15x1xf32>
    %cst_193 = arith.constant dense<0.000000e+00> : vector<8x1xf32>
    %739 = vector.multi_reduction <add>, %738, %cst_193 [1] : vector<8x15x1xf32> to vector<8x1xf32>
    %740 = vector.shape_cast %739 : vector<8x1xf32> to vector<8x1x1xf32>
    %cst_194 = arith.constant 0.0666666701 : f32
    %741 = vector.broadcast %cst_194 : f32 to vector<8x1x1xf32>
    %742 = arith.mulf %740, %741 : vector<8x1x1xf32>
    %c0_195 = arith.constant 0 : index
    %c0_196 = arith.constant 0 : index
    %c0_197 = arith.constant 0 : index
    %743 = vector.load %arg5[%c0_195, %c0_196, %c0_197] : memref<8x1x1xf32, #tpu.memory_space<vmem>>, vector<8x1x1xf32>
    tpu.vector_store %arg5[%c0_195, %c0_196, %c0_197], %742 {strides = array<i32>} : memref<8x1x1xf32, #tpu.memory_space<vmem>>, vector<8x1x1xf32>,
    return
  }
  func.func @transform_0(%arg0: i32) -> (i32, i32, i32) {
    %c0_i32 = arith.constant 0 : i32
    %c0_i32_0 = arith.constant 0 : i32
    %c0_i32_1 = arith.constant 0 : i32
    return %arg0, %c0_i32, %c0_i32_0 : i32, i32, i32
  }
  func.func @transform_1(%arg0: i32) -> (i32, i32, i32) {
    %c0_i32 = arith.constant 0 : i32
    %c0_i32_0 = arith.constant 0 : i32
    %c0_i32_1 = arith.constant 0 : i32
    return %arg0, %c0_i32, %c0_i32_0 : i32, i32, i32
  }
  func.func @transform_2(%arg0: i32) -> (i32, i32, i32) {
    %c0_i32 = arith.constant 0 : i32
    %c0_i32_0 = arith.constant 0 : i32
    %c0_i32_1 = arith.constant 0 : i32
    return %arg0, %c0_i32, %c0_i32_0 : i32, i32, i32
  }
  func.func @transform_3(%arg0: i32) -> (i32, i32, i32) {
    %c0_i32 = arith.constant 0 : i32
    %c0_i32_0 = arith.constant 0 : i32
    %c0_i32_1 = arith.constant 0 : i32
    return %arg0, %c0_i32, %c0_i32_0 : i32, i32, i32
  }
  func.func @transform_4(%arg0: i32) -> (i32, i32, i32) {
    %c0_i32 = arith.constant 0 : i32
    %c0_i32_0 = arith.constant 0 : i32
    %c0_i32_1 = arith.constant 0 : i32
    return %arg0, %c0_i32, %c0_i32_0 : i32, i32, i32
  }
}

</mosaic_0001>

<llo_original>
// kernel: hpr_d_forward_batched.1
$region0: #{hpr_d_forward_batched.1}
  #allocation0 [shape = 'u32[]', space=smem, size = 0x4, offset = 0x4, fixed_abs, tag = 'smem constant byte address 0x4 - core index']
  #allocation1 [shape = 'u32[72,128]{1,0:T(1,128)}', space=vmem, size = 0x9000, scoped, tag = 'internal scratch']
  %s0 = inlined_call_operand.vmem [shape: f32[8,5,64], index: 0, kind: input, shape index: {}]
  %s1 = inlined_call_operand.vmem [shape: f32[8,15,64], index: 1, kind: input, shape index: {}]
  %s2 = inlined_call_operand.vmem [shape: s32[8,15,1], index: 2, kind: input, shape index: {}]
  %s3 = inlined_call_operand.vmem [shape: f32[8,15,5], index: 3, kind: output, shape index: {0}]
  %s4 = inlined_call_operand.vmem [shape: f32[8,1,1], index: 4, kind: output, shape index: {1}]
  %5 = xla_tuple %s3, %s4
  %s6 = sld [smem:[#allocation0]]
  $region30: #{hpr_d_forward_batched.1} parent=0
    _
  %s8 = ssub.s32 1, %s6
  %s9 = scalar_select 0, %s8, %s6
  // Predicated region
  $region2: #{hpr_d_forward_batched.1} parent=0 // pred_check
    _
  $region3: #{hpr_d_forward_batched.1} parent=0 // pred_check_branch
    %11 = sbr.rel (0) target = $region5
  $region4: #{hpr_d_forward_batched.1} parent=0 // pred_region
    _
  $region5: #{hpr_d_forward_batched.1} parent=0 // pred_fallthru
    _
  // Predicated region
  $region6: #{hpr_d_forward_batched.1} parent=0 // pred_check
    _
  $region7: #{hpr_d_forward_batched.1} parent=0 // pred_check_branch
    %13 = sbr.rel (0) target = $region9
  $region8: #{hpr_d_forward_batched.1} parent=0 // pred_region
    _
  $region9: #{hpr_d_forward_batched.1} parent=0 // pred_fallthru
    _
  // Predicated region
  $region10: #{hpr_d_forward_batched.1} parent=0 // pred_check
    _
  $region11: #{hpr_d_forward_batched.1} parent=0 // pred_check_branch
    %15 = sbr.rel (0) target = $region13
  $region12: #{hpr_d_forward_batched.1} parent=0 // pred_region
    _
  $region13: #{hpr_d_forward_batched.1} parent=0 // pred_fallthru
    _
  %v16 = vlaneseq
  %v17 = vand.u32 %v16, 127
  %v18 = vcvt.s32.f32 %v17
  %v19 = vld [vmem:[%s0] sm:$0x1f]
  %v20 = vld [vmem:[%s0 + $0x8] sm:$0x1f]
  %v21 = vld [vmem:[%s0 + $0x10] sm:$0x1f]
  %v22 = vld [vmem:[%s0 + $0x18] sm:$0x1f]
  %v23 = vld [vmem:[%s0 + $0x20] sm:$0x1f]
  %v24 = vld [vmem:[%s0 + $0x28] sm:$0x1f]
  %v25 = vld [vmem:[%s0 + $0x30] sm:$0x1f]
  %v26 = vld [vmem:[%s0 + $0x38] sm:$0x1f]
  %v27 = vld [vmem:[%s1] sm:$0xff]
  %v28 = vld [vmem:[%s1 + $0x8] sm:$0x7f]
  %v29 = vld [vmem:[%s1 + $0x10] sm:$0xff]
  %v30 = vld [vmem:[%s1 + $0x18] sm:$0x7f]
  %v31 = vld [vmem:[%s1 + $0x20] sm:$0xff]
  %v32 = vld [vmem:[%s1 + $0x28] sm:$0x7f]
  %v33 = vld [vmem:[%s1 + $0x30] sm:$0xff]
  %v34 = vld [vmem:[%s1 + $0x38] sm:$0x7f]
  %v35 = vld [vmem:[%s1 + $0x40] sm:$0xff]
  %v36 = vld [vmem:[%s1 + $0x48] sm:$0x7f]
  %v37 = vld [vmem:[%s1 + $0x50] sm:$0xff]
  %v38 = vld [vmem:[%s1 + $0x58] sm:$0x7f]
  %v39 = vld [vmem:[%s1 + $0x60] sm:$0xff]
  %v40 = vld [vmem:[%s1 + $0x68] sm:$0x7f]
  %v41 = vld [vmem:[%s1 + $0x70] sm:$0xff]
  %v42 = vld [vmem:[%s1 + $0x78] sm:$0x7f]
  %v43 = vld [vmem:[%s2] sm:$0xff]
  %v44 = vld [vmem:[%s2 + $0x8] sm:$0x7f]
  %v45 = vld [vmem:[%s2 + $0x10] sm:$0xff]
  %v46 = vld [vmem:[%s2 + $0x18] sm:$0x7f]
  %v47 = vld [vmem:[%s2 + $0x20] sm:$0xff]
  %v48 = vld [vmem:[%s2 + $0x28] sm:$0x7f]
  %v49 = vld [vmem:[%s2 + $0x30] sm:$0xff]
  %v50 = vld [vmem:[%s2 + $0x38] sm:$0x7f]
  %v51 = vld [vmem:[%s2 + $0x40] sm:$0xff]
  %v52 = vld [vmem:[%s2 + $0x48] sm:$0x7f]
  %v53 = vld [vmem:[%s2 + $0x50] sm:$0xff]
  %v54 = vld [vmem:[%s2 + $0x58] sm:$0x7f]
  %v55 = vld [vmem:[%s2 + $0x60] sm:$0xff]
  %v56 = vld [vmem:[%s2 + $0x68] sm:$0x7f]
  %v57 = vld [vmem:[%s2 + $0x70] sm:$0xff]
  %v58 = vld [vmem:[%s2 + $0x78] sm:$0x7f]
  %v59 = vmul.f32 %v19, %v19
  %v60 = vmul.f32 %v20, %v20
  %v61 = vmul.f32 %v21, %v21
  %v62 = vmul.f32 %v22, %v22
  %v63 = vmul.f32 %v23, %v23
  %v64 = vmul.f32 %v24, %v24
  %v65 = vmul.f32 %v25, %v25
  %v66 = vmul.f32 %v26, %v26
  %vm67 = vcmask 520192
  %v68 = vsel %vm67, %v59, 0.0
  %69 = vadd.xlane.f32.xlu0 %v68
  %v70 = vpop.xlane.xlu0 %69
  %v71 = vsel %vm67, %v60, 0.0
  %72 = vadd.xlane.f32.xlu0 %v71
  %v73 = vpop.xlane.xlu0 %72
  %v74 = vsel %vm67, %v61, 0.0
  %75 = vadd.xlane.f32.xlu0 %v74
  %v76 = vpop.xlane.xlu0 %75
  %v77 = vsel %vm67, %v62, 0.0
  %78 = vadd.xlane.f32.xlu0 %v77
  %v79 = vpop.xlane.xlu0 %78
  %v80 = vsel %vm67, %v63, 0.0
  %81 = vadd.xlane.f32.xlu0 %v80
  %v82 = vpop.xlane.xlu0 %81
  %v83 = vsel %vm67, %v64, 0.0
  %84 = vadd.xlane.f32.xlu0 %v83
  %v85 = vpop.xlane.xlu0 %84
  %v86 = vsel %vm67, %v65, 0.0
  %87 = vadd.xlane.f32.xlu0 %v86
  %v88 = vpop.xlane.xlu0 %87
  %v89 = vsel %vm67, %v66, 0.0
  %90 = vadd.xlane.f32.xlu0 %v89
  %v91 = vpop.xlane.xlu0 %90
  %v92 = vrsqrt.pop %v70
  %v93 = vmul.f32 %v92, %v70
  %v94 = vmul.f32 %v93, %v92
  %v95 = vmul.f32 0.5, %v94
  %v96 = vsub.f32 1.5, %v95
  %v97 = vmul.f32 %v92, %v96
  %v98 = vmul.f32 %v70, %v97
  %vm99 = vcmp.eq.f32.partialorder %v70, inf
  %v100 = vsel %vm99, %v70, %v98
  %vm101 = vcmp.eq.f32.partialorder %v70, 0.0
  %v102 = vand.u32 %v70, 2147483648
  %v103 = vsel %vm101, %v102, %v100
  %v104 = vrsqrt.pop %v73
  %v105 = vmul.f32 %v104, %v73
  %v106 = vmul.f32 %v105, %v104
  %v107 = vmul.f32 0.5, %v106
  %v108 = vsub.f32 1.5, %v107
  %v109 = vmul.f32 %v104, %v108
  %v110 = vmul.f32 %v73, %v109
  %vm111 = vcmp.eq.f32.partialorder %v73, inf
  %v112 = vsel %vm111, %v73, %v110
  %vm113 = vcmp.eq.f32.partialorder %v73, 0.0
  %v114 = vand.u32 %v73, 2147483648
  %v115 = vsel %vm113, %v114, %v112
  %v116 = vrsqrt.pop %v76
  %v117 = vmul.f32 %v116, %v76
  %v118 = vmul.f32 %v117, %v116
  %v119 = vmul.f32 0.5, %v118
  %v120 = vsub.f32 1.5, %v119
  %v121 = vmul.f32 %v116, %v120
  %v122 = vmul.f32 %v76, %v121
  %vm123 = vcmp.eq.f32.partialorder %v76, inf
  %v124 = vsel %vm123, %v76, %v122
  %vm125 = vcmp.eq.f32.partialorder %v76, 0.0
  %v126 = vand.u32 %v76, 2147483648
  %v127 = vsel %vm125, %v126, %v124
  %v128 = vrsqrt.pop %v79
  %v129 = vmul.f32 %v128, %v79
  %v130 = vmul.f32 %v129, %v128
  %v131 = vmul.f32 0.5, %v130
  %v132 = vsub.f32 1.5, %v131
  %v133 = vmul.f32 %v128, %v132
  %v134 = vmul.f32 %v79, %v133
  %vm135 = vcmp.eq.f32.partialorder %v79, inf
  %v136 = vsel %vm135, %v79, %v134
  %vm137 = vcmp.eq.f32.partialorder %v79, 0.0
  %v138 = vand.u32 %v79, 2147483648
  %v139 = vsel %vm137, %v138, %v136
  %v140 = vrsqrt.pop %v82
  %v141 = vmul.f32 %v140, %v82
  %v142 = vmul.f32 %v141, %v140
  %v143 = vmul.f32 0.5, %v142
  %v144 = vsub.f32 1.5, %v143
  %v145 = vmul.f32 %v140, %v144
  %v146 = vmul.f32 %v82, %v145
  %vm147 = vcmp.eq.f32.partialorder %v82, inf
  %v148 = vsel %vm147, %v82, %v146
  %vm149 = vcmp.eq.f32.partialorder %v82, 0.0
  %v150 = vand.u32 %v82, 2147483648
  %v151 = vsel %vm149, %v150, %v148
  %v152 = vrsqrt.pop %v85
  %v153 = vmul.f32 %v152, %v85
  %v154 = vmul.f32 %v153, %v152
  %v155 = vmul.f32 0.5, %v154
  %v156 = vsub.f32 1.5, %v155
  %v157 = vmul.f32 %v152, %v156
  %v158 = vmul.f32 %v85, %v157
  %vm159 = vcmp.eq.f32.partialorder %v85, inf
  %v160 = vsel %vm159, %v85, %v158
  %vm161 = vcmp.eq.f32.partialorder %v85, 0.0
  %v162 = vand.u32 %v85, 2147483648
  %v163 = vsel %vm161, %v162, %v160
  %v164 = vrsqrt.pop %v88
  %v165 = vmul.f32 %v164, %v88
  %v166 = vmul.f32 %v165, %v164
  %v167 = vmul.f32 0.5, %v166
  %v168 = vsub.f32 1.5, %v167
  %v169 = vmul.f32 %v164, %v168
  %v170 = vmul.f32 %v88, %v169
  %vm171 = vcmp.eq.f32.partialorder %v88, inf
  %v172 = vsel %vm171, %v88, %v170
  %vm173 = vcmp.eq.f32.partialorder %v88, 0.0
  %v174 = vand.u32 %v88, 2147483648
  %v175 = vsel %vm173, %v174, %v172
  %v176 = vrsqrt.pop %v91
  %v177 = vmul.f32 %v176, %v91
  %v178 = vmul.f32 %v177, %v176
  %v179 = vmul.f32 0.5, %v178
  %v180 = vsub.f32 1.5, %v179
  %v181 = vmul.f32 %v176, %v180
  %v182 = vmul.f32 %v91, %v181
  %vm183 = vcmp.eq.f32.partialorder %v91, inf
  %v184 = vsel %vm183, %v91, %v182
  %vm185 = vcmp.eq.f32.partialorder %v91, 0.0
  %v186 = vand.u32 %v91, 2147483648
  %v187 = vsel %vm185, %v186, %v184
  %v188 = vmax.f32 %v103, 1e-05
  %v189 = vmax.f32 %v115, 1e-05
  %v190 = vmax.f32 %v127, 1e-05
  %v191 = vmax.f32 %v139, 1e-05
  %v192 = vmax.f32 %v151, 1e-05
  %v193 = vmax.f32 %v163, 1e-05
  %v194 = vmax.f32 %v175, 1e-05
  %v195 = vmax.f32 %v187, 1e-05
  %v196 = vmul.f32 %v188, 0.1
  %v197 = vmul.f32 %v189, 0.1
  %v198 = vmul.f32 %v190, 0.1
  %v199 = vmul.f32 %v191, 0.1
  %v200 = vmul.f32 %v192, 0.1
  %v201 = vmul.f32 %v193, 0.1
  %v202 = vmul.f32 %v194, 0.1
  %v203 = vmul.f32 %v195, 0.1
  %v204 = vtanh.pop %v196
  %v205 = vtanh.pop %v197
  %v206 = vtanh.pop %v198
  %v207 = vtanh.pop %v199
  %v208 = vtanh.pop %v200
  %v209 = vtanh.pop %v201
  %v210 = vtanh.pop %v202
  %v211 = vtanh.pop %v203
  %v212 = vrcp.pop %v196
  %v213 = vmul.f32 %v196, %v212
  %v214 = vsub.f32 1.0, %v213
  %v215 = vmul.f32 %v212, %v214
  %v216 = vadd.f32 %v212, %v215
  %vm217 = vweird.f32 %v196
  %vm218 = vweird.f32 %v212
  %vm219 = vmor %vm217, %vm218
  %v220 = vsel %vm219, %v212, %v216
  %v221 = vand.u32 2147483647, %v196
  %vm222 = vcmp.eq.f32.partialorder %v221, 8.507059e+37
  %v223 = vand.u32 %v196, 2147483648
  %v224 = vor.u32 1.1754944e-38, %v223
  %v225 = vsel %vm222, %v224, %v220
  %v226 = vmul.f32 %v204, %v225
  %v227 = vrcp.pop %v197
  %v228 = vmul.f32 %v197, %v227
  %v229 = vsub.f32 1.0, %v228
  %v230 = vmul.f32 %v227, %v229
  %v231 = vadd.f32 %v227, %v230
  %vm232 = vweird.f32 %v197
  %vm233 = vweird.f32 %v227
  %vm234 = vmor %vm232, %vm233
  %v235 = vsel %vm234, %v227, %v231
  %v236 = vand.u32 2147483647, %v197
  %vm237 = vcmp.eq.f32.partialorder %v236, 8.507059e+37
  %v238 = vand.u32 %v197, 2147483648
  %v239 = vor.u32 1.1754944e-38, %v238
  %v240 = vsel %vm237, %v239, %v235
  %v241 = vmul.f32 %v205, %v240
  %v242 = vrcp.pop %v198
  %v243 = vmul.f32 %v198, %v242
  %v244 = vsub.f32 1.0, %v243
  %v245 = vmul.f32 %v242, %v244
  %v246 = vadd.f32 %v242, %v245
  %vm247 = vweird.f32 %v198
  %vm248 = vweird.f32 %v242
  %vm249 = vmor %vm247, %vm248
  %v250 = vsel %vm249, %v242, %v246
  %v251 = vand.u32 2147483647, %v198
  %vm252 = vcmp.eq.f32.partialorder %v251, 8.507059e+37
  %v253 = vand.u32 %v198, 2147483648
  %v254 = vor.u32 1.1754944e-38, %v253
  %v255 = vsel %vm252, %v254, %v250
  %v256 = vmul.f32 %v206, %v255
  %v257 = vrcp.pop %v199
  %v258 = vmul.f32 %v199, %v257
  %v259 = vsub.f32 1.0, %v258
  %v260 = vmul.f32 %v257, %v259
  %v261 = vadd.f32 %v257, %v260
  %vm262 = vweird.f32 %v199
  %vm263 = vweird.f32 %v257
  %vm264 = vmor %vm262, %vm263
  %v265 = vsel %vm264, %v257, %v261
  %v266 = vand.u32 2147483647, %v199
  %vm267 = vcmp.eq.f32.partialorder %v266, 8.507059e+37
  %v268 = vand.u32 %v199, 2147483648
  %v269 = vor.u32 1.1754944e-38, %v268
  %v270 = vsel %vm267, %v269, %v265
  %v271 = vmul.f32 %v207, %v270
  %v272 = vrcp.pop %v200
  %v273 = vmul.f32 %v200, %v272
  %v274 = vsub.f32 1.0, %v273
  %v275 = vmul.f32 %v272, %v274
  %v276 = vadd.f32 %v272, %v275
  %vm277 = vweird.f32 %v200
  %vm278 = vweird.f32 %v272
  %vm279 = vmor %vm277, %vm278
  %v280 = vsel %vm279, %v272, %v276
  %v281 = vand.u32 2147483647, %v200
  %vm282 = vcmp.eq.f32.partialorder %v281, 8.507059e+37
  %v283 = vand.u32 %v200, 2147483648
  %v284 = vor.u32 1.1754944e-38, %v283
  %v285 = vsel %vm282, %v284, %v280
  %v286 = vmul.f32 %v208, %v285
  %v287 = vrcp.pop %v201
  %v288 = vmul.f32 %v201, %v287
  %v289 = vsub.f32 1.0, %v288
  %v290 = vmul.f32 %v287, %v289
  %v291 = vadd.f32 %v287, %v290
  %vm292 = vweird.f32 %v201
  %vm293 = vweird.f32 %v287
  %vm294 = vmor %vm292, %vm293
  %v295 = vsel %vm294, %v287, %v291
  %v296 = vand.u32 2147483647, %v201
  %vm297 = vcmp.eq.f32.partialorder %v296, 8.507059e+37
  %v298 = vand.u32 %v201, 2147483648
  %v299 = vor.u32 1.1754944e-38, %v298
  %v300 = vsel %vm297, %v299, %v295
  %v301 = vmul.f32 %v209, %v300
  %v302 = vrcp.pop %v202
  %v303 = vmul.f32 %v202, %v302
  %v304 = vsub.f32 1.0, %v303
  %v305 = vmul.f32 %v302, %v304
  %v306 = vadd.f32 %v302, %v305
  %vm307 = vweird.f32 %v202
  %vm308 = vweird.f32 %v302
  %vm309 = vmor %vm307, %vm308
  %v310 = vsel %vm309, %v302, %v306
  %v311 = vand.u32 2147483647, %v202
  %vm312 = vcmp.eq.f32.partialorder %v311, 8.507059e+37
  %v313 = vand.u32 %v202, 2147483648
  %v314 = vor.u32 1.1754944e-38, %v313
  %v315 = vsel %vm312, %v314, %v310
  %v316 = vmul.f32 %v210, %v315
  %v317 = vrcp.pop %v203
  %v318 = vmul.f32 %v203, %v317
  %v319 = vsub.f32 1.0, %v318
  %v320 = vmul.f32 %v317, %v319
  %v321 = vadd.f32 %v317, %v320
  %vm322 = vweird.f32 %v203
  %vm323 = vweird.f32 %v317
  %vm324 = vmor %vm322, %vm323
  %v325 = vsel %vm324, %v317, %v321
  %v326 = vand.u32 2147483647, %v203
  %vm327 = vcmp.eq.f32.partialorder %v326, 8.507059e+37
  %v328 = vand.u32 %v203, 2147483648
  %v329 = vor.u32 1.1754944e-38, %v328
  %v330 = vsel %vm327, %v329, %v325
  %v331 = vmul.f32 %v211, %v330
  %v332 = vmul.f32 %v226, %v19
  %v333 = vmul.f32 %v241, %v20
  %v334 = vmul.f32 %v256, %v21
  %v335 = vmul.f32 %v271, %v22
  %v336 = vmul.f32 %v286, %v23
  %v337 = vmul.f32 %v301, %v24
  %v338 = vmul.f32 %v316, %v25
  %v339 = vmul.f32 %v331, %v26
  %v340 = vmul.f32 %v204, 10.0
  %v341 = vmul.f32 %v205, 10.0
  %v342 = vmul.f32 %v206, 10.0
  %v343 = vmul.f32 %v207, 10.0
  %v344 = vmul.f32 %v208, 10.0
  %v345 = vmul.f32 %v209, 10.0
  %v346 = vmul.f32 %v210, 10.0
  %v347 = vmul.f32 %v211, 10.0
  %v348 = vmax.f32 %v340, 1e-05
  %v349 = vmax.f32 %v341, 1e-05
  %v350 = vmax.f32 %v342, 1e-05
  %v351 = vmax.f32 %v343, 1e-05
  %v352 = vmax.f32 %v344, 1e-05
  %v353 = vmax.f32 %v345, 1e-05
  %v354 = vmax.f32 %v346, 1e-05
  %v355 = vmax.f32 %v347, 1e-05
  %vm356 = vcmp.gt.f32.partialorder %v348, 9.99
  %vm357 = vcmp.gt.f32.partialorder %v349, 9.99
  %vm358 = vcmp.gt.f32.partialorder %v350, 9.99
  %vm359 = vcmp.gt.f32.partialorder %v351, 9.99
  %vm360 = vcmp.gt.f32.partialorder %v352, 9.99
  %vm361 = vcmp.gt.f32.partialorder %v353, 9.99
  %vm362 = vcmp.gt.f32.partialorder %v354, 9.99
  %vm363 = vcmp.gt.f32.partialorder %v355, 9.99
  %v364 = vrcp.pop %v348
  %v365 = vmul.f32 %v348, %v364
  %v366 = vsub.f32 1.0, %v365
  %v367 = vmul.f32 %v364, %v366
  %v368 = vadd.f32 %v364, %v367
  %vm369 = vweird.f32 %v348
  %vm370 = vweird.f32 %v364
  %vm371 = vmor %vm369, %vm370
  %v372 = vsel %vm371, %v364, %v368
  %v373 = vand.u32 2147483647, %v348
  %vm374 = vcmp.eq.f32.partialorder %v373, 8.507059e+37
  %v375 = vand.u32 %v348, 2147483648
  %v376 = vor.u32 1.1754944e-38, %v375
  %v377 = vsel %vm374, %v376, %v372
  %v378 = vmul.f32 9.99, %v377
  %v379 = vrcp.pop %v349
  %v380 = vmul.f32 %v349, %v379
  %v381 = vsub.f32 1.0, %v380
  %v382 = vmul.f32 %v379, %v381
  %v383 = vadd.f32 %v379, %v382
  %vm384 = vweird.f32 %v349
  %vm385 = vweird.f32 %v379
  %vm386 = vmor %vm384, %vm385
  %v387 = vsel %vm386, %v379, %v383
  %v388 = vand.u32 2147483647, %v349
  %vm389 = vcmp.eq.f32.partialorder %v388, 8.507059e+37
  %v390 = vand.u32 %v349, 2147483648
  %v391 = vor.u32 1.1754944e-38, %v390
  %v392 = vsel %vm389, %v391, %v387
  %v393 = vmul.f32 9.99, %v392
  %v394 = vrcp.pop %v350
  %v395 = vmul.f32 %v350, %v394
  %v396 = vsub.f32 1.0, %v395
  %v397 = vmul.f32 %v394, %v396
  %v398 = vadd.f32 %v394, %v397
  %vm399 = vweird.f32 %v350
  %vm400 = vweird.f32 %v394
  %vm401 = vmor %vm399, %vm400
  %v402 = vsel %vm401, %v394, %v398
  %v403 = vand.u32 2147483647, %v350
  %vm404 = vcmp.eq.f32.partialorder %v403, 8.507059e+37
  %v405 = vand.u32 %v350, 2147483648
  %v406 = vor.u32 1.1754944e-38, %v405
  %v407 = vsel %vm404, %v406, %v402
  %v408 = vmul.f32 9.99, %v407
  %v409 = vrcp.pop %v351
  %v410 = vmul.f32 %v351, %v409
  %v411 = vsub.f32 1.0, %v410
  %v412 = vmul.f32 %v409, %v411
  %v413 = vadd.f32 %v409, %v412
  %vm414 = vweird.f32 %v351
  %vm415 = vweird.f32 %v409
  %vm416 = vmor %vm414, %vm415
  %v417 = vsel %vm416, %v409, %v413
  %v418 = vand.u32 2147483647, %v351
  %vm419 = vcmp.eq.f32.partialorder %v418, 8.507059e+37
  %v420 = vand.u32 %v351, 2147483648
  %v421 = vor.u32 1.1754944e-38, %v420
  %v422 = vsel %vm419, %v421, %v417
  %v423 = vmul.f32 9.99, %v422
  %v424 = vrcp.pop %v352
  %v425 = vmul.f32 %v352, %v424
  %v426 = vsub.f32 1.0, %v425
  %v427 = vmul.f32 %v424, %v426
  %v428 = vadd.f32 %v424, %v427
  %vm429 = vweird.f32 %v352
  %vm430 = vweird.f32 %v424
  %vm431 = vmor %vm429, %vm430
  %v432 = vsel %vm431, %v424, %v428
  %v433 = vand.u32 2147483647, %v352
  %vm434 = vcmp.eq.f32.partialorder %v433, 8.507059e+37
  %v435 = vand.u32 %v352, 2147483648
  %v436 = vor.u32 1.1754944e-38, %v435
  %v437 = vsel %vm434, %v436, %v432
  %v438 = vmul.f32 9.99, %v437
  %v439 = vrcp.pop %v353
  %v440 = vmul.f32 %v353, %v439
  %v441 = vsub.f32 1.0, %v440
  %v442 = vmul.f32 %v439, %v441
  %v443 = vadd.f32 %v439, %v442
  %vm444 = vweird.f32 %v353
  %vm445 = vweird.f32 %v439
  %vm446 = vmor %vm444, %vm445
  %v447 = vsel %vm446, %v439, %v443
  %v448 = vand.u32 2147483647, %v353
  %vm449 = vcmp.eq.f32.partialorder %v448, 8.507059e+37
  %v450 = vand.u32 %v353, 2147483648
  %v451 = vor.u32 1.1754944e-38, %v450
  %v452 = vsel %vm449, %v451, %v447
  %v453 = vmul.f32 9.99, %v452
  %v454 = vrcp.pop %v354
  %v455 = vmul.f32 %v354, %v454
  %v456 = vsub.f32 1.0, %v455
  %v457 = vmul.f32 %v454, %v456
  %v458 = vadd.f32 %v454, %v457
  %vm459 = vweird.f32 %v354
  %vm460 = vweird.f32 %v454
  %vm461 = vmor %vm459, %vm460
  %v462 = vsel %vm461, %v454, %v458
  %v463 = vand.u32 2147483647, %v354
  %vm464 = vcmp.eq.f32.partialorder %v463, 8.507059e+37
  %v465 = vand.u32 %v354, 2147483648
  %v466 = vor.u32 1.1754944e-38, %v465
  %v467 = vsel %vm464, %v466, %v462
  %v468 = vmul.f32 9.99, %v467
  %v469 = vrcp.pop %v355
  %v470 = vmul.f32 %v355, %v469
  %v471 = vsub.f32 1.0, %v470
  %v472 = vmul.f32 %v469, %v471
  %v473 = vadd.f32 %v469, %v472
  %vm474 = vweird.f32 %v355
  %vm475 = vweird.f32 %v469
  %vm476 = vmor %vm474, %vm475
  %v477 = vsel %vm476, %v469, %v473
  %v478 = vand.u32 2147483647, %v355
  %vm479 = vcmp.eq.f32.partialorder %v478, 8.507059e+37
  %v480 = vand.u32 %v355, 2147483648
  %v481 = vor.u32 1.1754944e-38, %v480
  %v482 = vsel %vm479, %v481, %v477
  %v483 = vmul.f32 9.99, %v482
  %v484 = vmul.f32 %v332, %v378
  %v485 = vmul.f32 %v333, %v393
  %v486 = vmul.f32 %v334, %v408
  %v487 = vmul.f32 %v335, %v423
  %v488 = vmul.f32 %v336, %v438
  %v489 = vmul.f32 %v337, %v453
  %v490 = vmul.f32 %v338, %v468
  %v491 = vmul.f32 %v339, %v483
  %v492 = vsel %vm356, 1, 0
  %v493 = vsel %vm357, 1, 0
  %v494 = vsel %vm358, 1, 0
  %v495 = vsel %vm359, 1, 0
  %v496 = vsel %vm360, 1, 0
  %v497 = vsel %vm361, 1, 0
  %v498 = vsel %vm362, 1, 0
  %v499 = vsel %vm363, 1, 0
  %vm500 = vcmp.eq.s32.totalorder %v492, 1
  %vm501 = vcmp.eq.s32.totalorder %v493, 1
  %vm502 = vcmp.eq.s32.totalorder %v494, 1
  %vm503 = vcmp.eq.s32.totalorder %v495, 1
  %vm504 = vcmp.eq.s32.totalorder %v496, 1
  %vm505 = vcmp.eq.s32.totalorder %v497, 1
  %vm506 = vcmp.eq.s32.totalorder %v498, 1
  %vm507 = vcmp.eq.s32.totalorder %v499, 1
  %v508 = vsel %vm500, %v484, %v332
  %v509 = vsel %vm501, %v485, %v333
  %v510 = vsel %vm502, %v486, %v334
  %v511 = vsel %vm503, %v487, %v335
  %v512 = vsel %vm504, %v488, %v336
  %v513 = vsel %vm505, %v489, %v337
  %v514 = vsel %vm506, %v490, %v338
  %v515 = vsel %vm507, %v491, %v339
  %v516 = vmul.f32 %v27, %v27
  %v517 = vmul.f32 %v28, %v28
  %v518 = vmul.f32 %v29, %v29
  %v519 = vmul.f32 %v30, %v30
  %v520 = vmul.f32 %v31, %v31
  %v521 = vmul.f32 %v32, %v32
  %v522 = vmul.f32 %v33, %v33
  %v523 = vmul.f32 %v34, %v34
  %v524 = vmul.f32 %v35, %v35
  %v525 = vmul.f32 %v36, %v36
  %v526 = vmul.f32 %v37, %v37
  %v527 = vmul.f32 %v38, %v38
  %v528 = vmul.f32 %v39, %v39
  %v529 = vmul.f32 %v40, %v40
  %v530 = vmul.f32 %v41, %v41
  %v531 = vmul.f32 %v42, %v42
  %vm532 = vcmask 523264
  %v533 = vsel %vm532, %v516, 0.0
  %534 = vadd.xlane.f32.xlu0 %v533
  %v535 = vpop.xlane.xlu0 %534
  %vm536 = vcmask 522240
  %v537 = vsel %vm536, %v517, 0.0
  %538 = vadd.xlane.f32.xlu0 %v537
  %v539 = vpop.xlane.xlu0 %538
  %v540 = vsel %vm532, %v518, 0.0
  %541 = vadd.xlane.f32.xlu0 %v540
  %v542 = vpop.xlane.xlu0 %541
  %v543 = vsel %vm536, %v519, 0.0
  %544 = vadd.xlane.f32.xlu0 %v543
  %v545 = vpop.xlane.xlu0 %544
  %v546 = vsel %vm532, %v520, 0.0
  %547 = vadd.xlane.f32.xlu0 %v546
  %v548 = vpop.xlane.xlu0 %547
  %v549 = vsel %vm536, %v521, 0.0
  %550 = vadd.xlane.f32.xlu0 %v549
  %v551 = vpop.xlane.xlu0 %550
  %v552 = vsel %vm532, %v522, 0.0
  %553 = vadd.xlane.f32.xlu0 %v552
  %v554 = vpop.xlane.xlu0 %553
  %v555 = vsel %vm536, %v523, 0.0
  %556 = vadd.xlane.f32.xlu0 %v555
  %v557 = vpop.xlane.xlu0 %556
  %v558 = vsel %vm532, %v524, 0.0
  %559 = vadd.xlane.f32.xlu0 %v558
  %v560 = vpop.xlane.xlu0 %559
  %v561 = vsel %vm536, %v525, 0.0
  %562 = vadd.xlane.f32.xlu0 %v561
  %v563 = vpop.xlane.xlu0 %562
  %v564 = vsel %vm532, %v526, 0.0
  %565 = vadd.xlane.f32.xlu0 %v564
  %v566 = vpop.xlane.xlu0 %565
  %v567 = vsel %vm536, %v527, 0.0
  %568 = vadd.xlane.f32.xlu0 %v567
  %v569 = vpop.xlane.xlu0 %568
  %v570 = vsel %vm532, %v528, 0.0
  %571 = vadd.xlane.f32.xlu0 %v570
  %v572 = vpop.xlane.xlu0 %571
  %v573 = vsel %vm536, %v529, 0.0
  %574 = vadd.xlane.f32.xlu0 %v573
  %v575 = vpop.xlane.xlu0 %574
  %v576 = vsel %vm532, %v530, 0.0
  %577 = vadd.xlane.f32.xlu0 %v576
  %v578 = vpop.xlane.xlu0 %577
  %v579 = vsel %vm536, %v531, 0.0
  %580 = vadd.xlane.f32.xlu0 %v579
  %v581 = vpop.xlane.xlu0 %580
  %v582 = vrsqrt.pop %v535
  %v583 = vmul.f32 %v582, %v535
  %v584 = vmul.f32 %v583, %v582
  %v585 = vmul.f32 0.5, %v584
  %v586 = vsub.f32 1.5, %v585
  %v587 = vmul.f32 %v582, %v586
  %v588 = vmul.f32 %v535, %v587
  %vm589 = vcmp.eq.f32.partialorder %v535, inf
  %v590 = vsel %vm589, %v535, %v588
  %vm591 = vcmp.eq.f32.partialorder %v535, 0.0
  %v592 = vand.u32 %v535, 2147483648
  %v593 = vsel %vm591, %v592, %v590
  %v594 = vrsqrt.pop %v539
  %v595 = vmul.f32 %v594, %v539
  %v596 = vmul.f32 %v595, %v594
  %v597 = vmul.f32 0.5, %v596
  %v598 = vsub.f32 1.5, %v597
  %v599 = vmul.f32 %v594, %v598
  %v600 = vmul.f32 %v539, %v599
  %vm601 = vcmp.eq.f32.partialorder %v539, inf
  %v602 = vsel %vm601, %v539, %v600
  %vm603 = vcmp.eq.f32.partialorder %v539, 0.0
  %v604 = vand.u32 %v539, 2147483648
  %v605 = vsel %vm603, %v604, %v602
  %v606 = vrsqrt.pop %v542
  %v607 = vmul.f32 %v606, %v542
  %v608 = vmul.f32 %v607, %v606
  %v609 = vmul.f32 0.5, %v608
  %v610 = vsub.f32 1.5, %v609
  %v611 = vmul.f32 %v606, %v610
  %v612 = vmul.f32 %v542, %v611
  %vm613 = vcmp.eq.f32.partialorder %v542, inf
  %v614 = vsel %vm613, %v542, %v612
  %vm615 = vcmp.eq.f32.partialorder %v542, 0.0
  %v616 = vand.u32 %v542, 2147483648
  %v617 = vsel %vm615, %v616, %v614
  %v618 = vrsqrt.pop %v545
  %v619 = vmul.f32 %v618, %v545
  %v620 = vmul.f32 %v619, %v618
  %v621 = vmul.f32 0.5, %v620
  %v622 = vsub.f32 1.5, %v621
  %v623 = vmul.f32 %v618, %v622
  %v624 = vmul.f32 %v545, %v623
  %vm625 = vcmp.eq.f32.partialorder %v545, inf
  %v626 = vsel %vm625, %v545, %v624
  %vm627 = vcmp.eq.f32.partialorder %v545, 0.0
  %v628 = vand.u32 %v545, 2147483648
  %v629 = vsel %vm627, %v628, %v626
  %v630 = vrsqrt.pop %v548
  %v631 = vmul.f32 %v630, %v548
  %v632 = vmul.f32 %v631, %v630
  %v633 = vmul.f32 0.5, %v632
  %v634 = vsub.f32 1.5, %v633
  %v635 = vmul.f32 %v630, %v634
  %v636 = vmul.f32 %v548, %v635
  %vm637 = vcmp.eq.f32.partialorder %v548, inf
  %v638 = vsel %vm637, %v548, %v636
  %vm639 = vcmp.eq.f32.partialorder %v548, 0.0
  %v640 = vand.u32 %v548, 2147483648
  %v641 = vsel %vm639, %v640, %v638
  %v642 = vrsqrt.pop %v551
  %v643 = vmul.f32 %v642, %v551
  %v644 = vmul.f32 %v643, %v642
  %v645 = vmul.f32 0.5, %v644
  %v646 = vsub.f32 1.5, %v645
  %v647 = vmul.f32 %v642, %v646
  %v648 = vmul.f32 %v551, %v647
  %vm649 = vcmp.eq.f32.partialorder %v551, inf
  %v650 = vsel %vm649, %v551, %v648
  %vm651 = vcmp.eq.f32.partialorder %v551, 0.0
  %v652 = vand.u32 %v551, 2147483648
  %v653 = vsel %vm651, %v652, %v650
  %v654 = vrsqrt.pop %v554
  %v655 = vmul.f32 %v654, %v554
  %v656 = vmul.f32 %v655, %v654
  %v657 = vmul.f32 0.5, %v656
  %v658 = vsub.f32 1.5, %v657
  %v659 = vmul.f32 %v654, %v658
  %v660 = vmul.f32 %v554, %v659
  %vm661 = vcmp.eq.f32.partialorder %v554, inf
  %v662 = vsel %vm661, %v554, %v660
  %vm663 = vcmp.eq.f32.partialorder %v554, 0.0
  %v664 = vand.u32 %v554, 2147483648
  %v665 = vsel %vm663, %v664, %v662
  %v666 = vrsqrt.pop %v557
  %v667 = vmul.f32 %v666, %v557
  %v668 = vmul.f32 %v667, %v666
  %v669 = vmul.f32 0.5, %v668
  %v670 = vsub.f32 1.5, %v669
  %v671 = vmul.f32 %v666, %v670
  %v672 = vmul.f32 %v557, %v671
  %vm673 = vcmp.eq.f32.partialorder %v557, inf
  %v674 = vsel %vm673, %v557, %v672
  %vm675 = vcmp.eq.f32.partialorder %v557, 0.0
  %v676 = vand.u32 %v557, 2147483648
  %v677 = vsel %vm675, %v676, %v674
  %v678 = vrsqrt.pop %v560
  %v679 = vmul.f32 %v678, %v560
  %v680 = vmul.f32 %v679, %v678
  %v681 = vmul.f32 0.5, %v680
  %v682 = vsub.f32 1.5, %v681
  %v683 = vmul.f32 %v678, %v682
  %v684 = vmul.f32 %v560, %v683
  %vm685 = vcmp.eq.f32.partialorder %v560, inf
  %v686 = vsel %vm685, %v560, %v684
  %vm687 = vcmp.eq.f32.partialorder %v560, 0.0
  %v688 = vand.u32 %v560, 2147483648
  %v689 = vsel %vm687, %v688, %v686
  %v690 = vrsqrt.pop %v563
  %v691 = vmul.f32 %v690, %v563
  %v692 = vmul.f32 %v691, %v690
  %v693 = vmul.f32 0.5, %v692
  %v694 = vsub.f32 1.5, %v693
  %v695 = vmul.f32 %v690, %v694
  %v696 = vmul.f32 %v563, %v695
  %vm697 = vcmp.eq.f32.partialorder %v563, inf
  %v698 = vsel %vm697, %v563, %v696
  %vm699 = vcmp.eq.f32.partialorder %v563, 0.0
  %v700 = vand.u32 %v563, 2147483648
  %v701 = vsel %vm699, %v700, %v698
  %v702 = vrsqrt.pop %v566
  %v703 = vmul.f32 %v702, %v566
  %v704 = vmul.f32 %v703, %v702
  %v705 = vmul.f32 0.5, %v704
  %v706 = vsub.f32 1.5, %v705
  %v707 = vmul.f32 %v702, %v706
  %v708 = vmul.f32 %v566, %v707
  %vm709 = vcmp.eq.f32.partialorder %v566, inf
  %v710 = vsel %vm709, %v566, %v708
  %vm711 = vcmp.eq.f32.partialorder %v566, 0.0
  %v712 = vand.u32 %v566, 2147483648
  %v713 = vsel %vm711, %v712, %v710
  %v714 = vrsqrt.pop %v569
  %v715 = vmul.f32 %v714, %v569
  %v716 = vmul.f32 %v715, %v714
  %v717 = vmul.f32 0.5, %v716
  %v718 = vsub.f32 1.5, %v717
  %v719 = vmul.f32 %v714, %v718
  %v720 = vmul.f32 %v569, %v719
  %vm721 = vcmp.eq.f32.partialorder %v569, inf
  %v722 = vsel %vm721, %v569, %v720
  %vm723 = vcmp.eq.f32.partialorder %v569, 0.0
  %v724 = vand.u32 %v569, 2147483648
  %v725 = vsel %vm723, %v724, %v722
  %v726 = vrsqrt.pop %v572
  %v727 = vmul.f32 %v726, %v572
  %v728 = vmul.f32 %v727, %v726
  %v729 = vmul.f32 0.5, %v728
  %v730 = vsub.f32 1.5, %v729
  %v731 = vmul.f32 %v726, %v730
  %v732 = vmul.f32 %v572, %v731
  %vm733 = vcmp.eq.f32.partialorder %v572, inf
  %v734 = vsel %vm733, %v572, %v732
  %vm735 = vcmp.eq.f32.partialorder %v572, 0.0
  %v736 = vand.u32 %v572, 2147483648
  %v737 = vsel %vm735, %v736, %v734
  %v738 = vrsqrt.pop %v575
  %v739 = vmul.f32 %v738, %v575
  %v740 = vmul.f32 %v739, %v738
  %v741 = vmul.f32 0.5, %v740
  %v742 = vsub.f32 1.5, %v741
  %v743 = vmul.f32 %v738, %v742
  %v744 = vmul.f32 %v575, %v743
  %vm745 = vcmp.eq.f32.partialorder %v575, inf
  %v746 = vsel %vm745, %v575, %v744
  %vm747 = vcmp.eq.f32.partialorder %v575, 0.0
  %v748 = vand.u32 %v575, 2147483648
  %v749 = vsel %vm747, %v748, %v746
  %v750 = vrsqrt.pop %v578
  %v751 = vmul.f32 %v750, %v578
  %v752 = vmul.f32 %v751, %v750
  %v753 = vmul.f32 0.5, %v752
  %v754 = vsub.f32 1.5, %v753
  %v755 = vmul.f32 %v750, %v754
  %v756 = vmul.f32 %v578, %v755
  %vm757 = vcmp.eq.f32.partialorder %v578, inf
  %v758 = vsel %vm757, %v578, %v756
  %vm759 = vcmp.eq.f32.partialorder %v578, 0.0
  %v760 = vand.u32 %v578, 2147483648
  %v761 = vsel %vm759, %v760, %v758
  %v762 = vrsqrt.pop %v581
  %v763 = vmul.f32 %v762, %v581
  %v764 = vmul.f32 %v763, %v762
  %v765 = vmul.f32 0.5, %v764
  %v766 = vsub.f32 1.5, %v765
  %v767 = vmul.f32 %v762, %v766
  %v768 = vmul.f32 %v581, %v767
  %vm769 = vcmp.eq.f32.partialorder %v581, inf
  %v770 = vsel %vm769, %v581, %v768
  %vm771 = vcmp.eq.f32.partialorder %v581, 0.0
  %v772 = vand.u32 %v581, 2147483648
  %v773 = vsel %vm771, %v772, %v770
  %v774 = vmax.f32 %v593, 1e-05
  %v775 = vmax.f32 %v605, 1e-05
  %v776 = vmax.f32 %v617, 1e-05
  %v777 = vmax.f32 %v629, 1e-05
  %v778 = vmax.f32 %v641, 1e-05
  %v779 = vmax.f32 %v653, 1e-05
  %v780 = vmax.f32 %v665, 1e-05
  %v781 = vmax.f32 %v677, 1e-05
  %v782 = vmax.f32 %v689, 1e-05
  %v783 = vmax.f32 %v701, 1e-05
  %v784 = vmax.f32 %v713, 1e-05
  %v785 = vmax.f32 %v725, 1e-05
  %v786 = vmax.f32 %v737, 1e-05
  %v787 = vmax.f32 %v749, 1e-05
  %v788 = vmax.f32 %v761, 1e-05
  %v789 = vmax.f32 %v773, 1e-05
  %v790 = vmul.f32 %v774, 0.1
  %v791 = vmul.f32 %v775, 0.1
  %v792 = vmul.f32 %v776, 0.1
  %v793 = vmul.f32 %v777, 0.1
  %v794 = vmul.f32 %v778, 0.1
  %v795 = vmul.f32 %v779, 0.1
  %v796 = vmul.f32 %v780, 0.1
  %v797 = vmul.f32 %v781, 0.1
  %v798 = vmul.f32 %v782, 0.1
  %v799 = vmul.f32 %v783, 0.1
  %v800 = vmul.f32 %v784, 0.1
  %v801 = vmul.f32 %v785, 0.1
  %v802 = vmul.f32 %v786, 0.1
  %v803 = vmul.f32 %v787, 0.1
  %v804 = vmul.f32 %v788, 0.1
  %v805 = vmul.f32 %v789, 0.1
  %v806 = vtanh.pop %v790
  %v807 = vtanh.pop %v791
  %v808 = vtanh.pop %v792
  %v809 = vtanh.pop %v793
  %v810 = vtanh.pop %v794
  %v811 = vtanh.pop %v795
  %v812 = vtanh.pop %v796
  %v813 = vtanh.pop %v797
  %v814 = vtanh.pop %v798
  %v815 = vtanh.pop %v799
  %v816 = vtanh.pop %v800
  %v817 = vtanh.pop %v801
  %v818 = vtanh.pop %v802
  %v819 = vtanh.pop %v803
  %v820 = vtanh.pop %v804
  %v821 = vtanh.pop %v805
  %v822 = vrcp.pop %v790
  %v823 = vmul.f32 %v790, %v822
  %v824 = vsub.f32 1.0, %v823
  %v825 = vmul.f32 %v822, %v824
  %v826 = vadd.f32 %v822, %v825
  %vm827 = vweird.f32 %v790
  %vm828 = vweird.f32 %v822
  %vm829 = vmor %vm827, %vm828
  %v830 = vsel %vm829, %v822, %v826
  %v831 = vand.u32 2147483647, %v790
  %vm832 = vcmp.eq.f32.partialorder %v831, 8.507059e+37
  %v833 = vand.u32 %v790, 2147483648
  %v834 = vor.u32 1.1754944e-38, %v833
  %v835 = vsel %vm832, %v834, %v830
  %v836 = vmul.f32 %v806, %v835
  %v837 = vrcp.pop %v791
  %v838 = vmul.f32 %v791, %v837
  %v839 = vsub.f32 1.0, %v838
  %v840 = vmul.f32 %v837, %v839
  %v841 = vadd.f32 %v837, %v840
  %vm842 = vweird.f32 %v791
  %vm843 = vweird.f32 %v837
  %vm844 = vmor %vm842, %vm843
  %v845 = vsel %vm844, %v837, %v841
  %v846 = vand.u32 2147483647, %v791
  %vm847 = vcmp.eq.f32.partialorder %v846, 8.507059e+37
  %v848 = vand.u32 %v791, 2147483648
  %v849 = vor.u32 1.1754944e-38, %v848
  %v850 = vsel %vm847, %v849, %v845
  %v851 = vmul.f32 %v807, %v850
  %v852 = vrcp.pop %v792
  %v853 = vmul.f32 %v792, %v852
  %v854 = vsub.f32 1.0, %v853
  %v855 = vmul.f32 %v852, %v854
  %v856 = vadd.f32 %v852, %v855
  %vm857 = vweird.f32 %v792
  %vm858 = vweird.f32 %v852
  %vm859 = vmor %vm857, %vm858
  %v860 = vsel %vm859, %v852, %v856
  %v861 = vand.u32 2147483647, %v792
  %vm862 = vcmp.eq.f32.partialorder %v861, 8.507059e+37
  %v863 = vand.u32 %v792, 2147483648
  %v864 = vor.u32 1.1754944e-38, %v863
  %v865 = vsel %vm862, %v864, %v860
  %v866 = vmul.f32 %v808, %v865
  %v867 = vrcp.pop %v793
  %v868 = vmul.f32 %v793, %v867
  %v869 = vsub.f32 1.0, %v868
  %v870 = vmul.f32 %v867, %v869
  %v871 = vadd.f32 %v867, %v870
  %vm872 = vweird.f32 %v793
  %vm873 = vweird.f32 %v867
  %vm874 = vmor %vm872, %vm873
  %v875 = vsel %vm874, %v867, %v871
  %v876 = vand.u32 2147483647, %v793
  %vm877 = vcmp.eq.f32.partialorder %v876, 8.507059e+37
  %v878 = vand.u32 %v793, 2147483648
  %v879 = vor.u32 1.1754944e-38, %v878
  %v880 = vsel %vm877, %v879, %v875
  %v881 = vmul.f32 %v809, %v880
  %v882 = vrcp.pop %v794
  %v883 = vmul.f32 %v794, %v882
  %v884 = vsub.f32 1.0, %v883
  %v885 = vmul.f32 %v882, %v884
  %v886 = vadd.f32 %v882, %v885
  %vm887 = vweird.f32 %v794
  %vm888 = vweird.f32 %v882
  %vm889 = vmor %vm887, %vm888
  %v890 = vsel %vm889, %v882, %v886
  %v891 = vand.u32 2147483647, %v794
  %vm892 = vcmp.eq.f32.partialorder %v891, 8.507059e+37
  %v893 = vand.u32 %v794, 2147483648
  %v894 = vor.u32 1.1754944e-38, %v893
  %v895 = vsel %vm892, %v894, %v890
  %v896 = vmul.f32 %v810, %v895
  %v897 = vrcp.pop %v795
  %v898 = vmul.f32 %v795, %v897
  %v899 = vsub.f32 1.0, %v898
  %v900 = vmul.f32 %v897, %v899
  %v901 = vadd.f32 %v897, %v900
  %vm902 = vweird.f32 %v795
  %vm903 = vweird.f32 %v897
  %vm904 = vmor %vm902, %vm903
  %v905 = vsel %vm904, %v897, %v901
  %v906 = vand.u32 2147483647, %v795
  %vm907 = vcmp.eq.f32.partialorder %v906, 8.507059e+37
  %v908 = vand.u32 %v795, 2147483648
  %v909 = vor.u32 1.1754944e-38, %v908
  %v910 = vsel %vm907, %v909, %v905
  %v911 = vmul.f32 %v811, %v910
  %v912 = vrcp.pop %v796
  %v913 = vmul.f32 %v796, %v912
  %v914 = vsub.f32 1.0, %v913
  %v915 = vmul.f32 %v912, %v914
  %v916 = vadd.f32 %v912, %v915
  %vm917 = vweird.f32 %v796
  %vm918 = vweird.f32 %v912
  %vm919 = vmor %vm917, %vm918
  %v920 = vsel %vm919, %v912, %v916
  %v921 = vand.u32 2147483647, %v796
  %vm922 = vcmp.eq.f32.partialorder %v921, 8.507059e+37
  %v923 = vand.u32 %v796, 2147483648
  %v924 = vor.u32 1.1754944e-38, %v923
  %v925 = vsel %vm922, %v924, %v920
  %v926 = vmul.f32 %v812, %v925
  %v927 = vrcp.pop %v797
  %v928 = vmul.f32 %v797, %v927
  %v929 = vsub.f32 1.0, %v928
  %v930 = vmul.f32 %v927, %v929
  %v931 = vadd.f32 %v927, %v930
  %vm932 = vweird.f32 %v797
  %vm933 = vweird.f32 %v927
  %vm934 = vmor %vm932, %vm933
  %v935 = vsel %vm934, %v927, %v931
  %v936 = vand.u32 2147483647, %v797
  %vm937 = vcmp.eq.f32.partialorder %v936, 8.507059e+37
  %v938 = vand.u32 %v797, 2147483648
  %v939 = vor.u32 1.1754944e-38, %v938
  %v940 = vsel %vm937, %v939, %v935
  %v941 = vmul.f32 %v813, %v940
  %v942 = vrcp.pop %v798
  %v943 = vmul.f32 %v798, %v942
  %v944 = vsub.f32 1.0, %v943
  %v945 = vmul.f32 %v942, %v944
  %v946 = vadd.f32 %v942, %v945
  %vm947 = vweird.f32 %v798
  %vm948 = vweird.f32 %v942
  %vm949 = vmor %vm947, %vm948
  %v950 = vsel %vm949, %v942, %v946
  %v951 = vand.u32 2147483647, %v798
  %vm952 = vcmp.eq.f32.partialorder %v951, 8.507059e+37
  %v953 = vand.u32 %v798, 2147483648
  %v954 = vor.u32 1.1754944e-38, %v953
  %v955 = vsel %vm952, %v954, %v950
  %v956 = vmul.f32 %v814, %v955
  %v957 = vrcp.pop %v799
  %v958 = vmul.f32 %v799, %v957
  %v959 = vsub.f32 1.0, %v958
  %v960 = vmul.f32 %v957, %v959
  %v961 = vadd.f32 %v957, %v960
  %vm962 = vweird.f32 %v799
  %vm963 = vweird.f32 %v957
  %vm964 = vmor %vm962, %vm963
  %v965 = vsel %vm964, %v957, %v961
  %v966 = vand.u32 2147483647, %v799
  %vm967 = vcmp.eq.f32.partialorder %v966, 8.507059e+37
  %v968 = vand.u32 %v799, 2147483648
  %v969 = vor.u32 1.1754944e-38, %v968
  %v970 = vsel %vm967, %v969, %v965
  %v971 = vmul.f32 %v815, %v970
  %v972 = vrcp.pop %v800
  %v973 = vmul.f32 %v800, %v972
  %v974 = vsub.f32 1.0, %v973
  %v975 = vmul.f32 %v972, %v974
  %v976 = vadd.f32 %v972, %v975
  %vm977 = vweird.f32 %v800
  %vm978 = vweird.f32 %v972
  %vm979 = vmor %vm977, %vm978
  %v980 = vsel %vm979, %v972, %v976
  %v981 = vand.u32 2147483647, %v800
  %vm982 = vcmp.eq.f32.partialorder %v981, 8.507059e+37
  %v983 = vand.u32 %v800, 2147483648
  %v984 = vor.u32 1.1754944e-38, %v983
  %v985 = vsel %vm982, %v984, %v980
  %v986 = vmul.f32 %v816, %v985
  %v987 = vrcp.pop %v801
  %v988 = vmul.f32 %v801, %v987
  %v989 = vsub.f32 1.0, %v988
  %v990 = vmul.f32 %v987, %v989
  %v991 = vadd.f32 %v987, %v990
  %vm992 = vweird.f32 %v801
  %vm993 = vweird.f32 %v987
  %vm994 = vmor %vm992, %vm993
  %v995 = vsel %vm994, %v987, %v991
  %v996 = vand.u32 2147483647, %v801
  %vm997 = vcmp.eq.f32.partialorder %v996, 8.507059e+37
  %v998 = vand.u32 %v801, 2147483648
  %v999 = vor.u32 1.1754944e-38, %v998
  %v1000 = vsel %vm997, %v999, %v995
  %v1001 = vmul.f32 %v817, %v1000
  %v1002 = vrcp.pop %v802
  %v1003 = vmul.f32 %v802, %v1002
  %v1004 = vsub.f32 1.0, %v1003
  %v1005 = vmul.f32 %v1002, %v1004
  %v1006 = vadd.f32 %v1002, %v1005
  %vm1007 = vweird.f32 %v802
  %vm1008 = vweird.f32 %v1002
  %vm1009 = vmor %vm1007, %vm1008
  %v1010 = vsel %vm1009, %v1002, %v1006
  %v1011 = vand.u32 2147483647, %v802
  %vm1012 = vcmp.eq.f32.partialorder %v1011, 8.507059e+37
  %v1013 = vand.u32 %v802, 2147483648
  %v1014 = vor.u32 1.1754944e-38, %v1013
  %v1015 = vsel %vm1012, %v1014, %v1010
  %v1016 = vmul.f32 %v818, %v1015
  %v1017 = vrcp.pop %v803
  %v1018 = vmul.f32 %v803, %v1017
  %v1019 = vsub.f32 1.0, %v1018
  %v1020 = vmul.f32 %v1017, %v1019
  %v1021 = vadd.f32 %v1017, %v1020
  %vm1022 = vweird.f32 %v803
  %vm1023 = vweird.f32 %v1017
  %vm1024 = vmor %vm1022, %vm1023
  %v1025 = vsel %vm1024, %v1017, %v1021
  %v1026 = vand.u32 2147483647, %v803
  %vm1027 = vcmp.eq.f32.partialorder %v1026, 8.507059e+37
  %v1028 = vand.u32 %v803, 2147483648
  %v1029 = vor.u32 1.1754944e-38, %v1028
  %v1030 = vsel %vm1027, %v1029, %v1025
  %v1031 = vmul.f32 %v819, %v1030
  %v1032 = vrcp.pop %v804
  %v1033 = vmul.f32 %v804, %v1032
  %v1034 = vsub.f32 1.0, %v1033
  %v1035 = vmul.f32 %v1032, %v1034
  %v1036 = vadd.f32 %v1032, %v1035
  %vm1037 = vweird.f32 %v804
  %vm1038 = vweird.f32 %v1032
  %vm1039 = vmor %vm1037, %vm1038
  %v1040 = vsel %vm1039, %v1032, %v1036
  %v1041 = vand.u32 2147483647, %v804
  %vm1042 = vcmp.eq.f32.partialorder %v1041, 8.507059e+37
  %v1043 = vand.u32 %v804, 2147483648
  %v1044 = vor.u32 1.1754944e-38, %v1043
  %v1045 = vsel %vm1042, %v1044, %v1040
  %v1046 = vmul.f32 %v820, %v1045
  %v1047 = vrcp.pop %v805
  %v1048 = vmul.f32 %v805, %v1047
  %v1049 = vsub.f32 1.0, %v1048
  %v1050 = vmul.f32 %v1047, %v1049
  %v1051 = vadd.f32 %v1047, %v1050
  %vm1052 = vweird.f32 %v805
  %vm1053 = vweird.f32 %v1047
  %vm1054 = vmor %vm1052, %vm1053
  %v1055 = vsel %vm1054, %v1047, %v1051
  %v1056 = vand.u32 2147483647, %v805
  %vm1057 = vcmp.eq.f32.partialorder %v1056, 8.507059e+37
  %v1058 = vand.u32 %v805, 2147483648
  %v1059 = vor.u32 1.1754944e-38, %v1058
  %v1060 = vsel %vm1057, %v1059, %v1055
  %v1061 = vmul.f32 %v821, %v1060
  %v1062 = vmul.f32 %v836, %v27
  %v1063 = vmul.f32 %v851, %v28
  %v1064 = vmul.f32 %v866, %v29
  %v1065 = vmul.f32 %v881, %v30
  %v1066 = vmul.f32 %v896, %v31
  %v1067 = vmul.f32 %v911, %v32
  %v1068 = vmul.f32 %v926, %v33
  %v1069 = vmul.f32 %v941, %v34
  %v1070 = vmul.f32 %v956, %v35
  %v1071 = vmul.f32 %v971, %v36
  %v1072 = vmul.f32 %v986, %v37
  %v1073 = vmul.f32 %v1001, %v38
  %v1074 = vmul.f32 %v1016, %v39
  %v1075 = vmul.f32 %v1031, %v40
  %v1076 = vmul.f32 %v1046, %v41
  %v1077 = vmul.f32 %v1061, %v42
  %v1078 = vmul.f32 %v806, 10.0
  %v1079 = vmul.f32 %v807, 10.0
  %v1080 = vmul.f32 %v808, 10.0
  %v1081 = vmul.f32 %v809, 10.0
  %v1082 = vmul.f32 %v810, 10.0
  %v1083 = vmul.f32 %v811, 10.0
  %v1084 = vmul.f32 %v812, 10.0
  %v1085 = vmul.f32 %v813, 10.0
  %v1086 = vmul.f32 %v814, 10.0
  %v1087 = vmul.f32 %v815, 10.0
  %v1088 = vmul.f32 %v816, 10.0
  %v1089 = vmul.f32 %v817, 10.0
  %v1090 = vmul.f32 %v818, 10.0
  %v1091 = vmul.f32 %v819, 10.0
  %v1092 = vmul.f32 %v820, 10.0
  %v1093 = vmul.f32 %v821, 10.0
  %v1094 = vmax.f32 %v1078, 1e-05
  %v1095 = vmax.f32 %v1079, 1e-05
  %v1096 = vmax.f32 %v1080, 1e-05
  %v1097 = vmax.f32 %v1081, 1e-05
  %v1098 = vmax.f32 %v1082, 1e-05
  %v1099 = vmax.f32 %v1083, 1e-05
  %v1100 = vmax.f32 %v1084, 1e-05
  %v1101 = vmax.f32 %v1085, 1e-05
  %v1102 = vmax.f32 %v1086, 1e-05
  %v1103 = vmax.f32 %v1087, 1e-05
  %v1104 = vmax.f32 %v1088, 1e-05
  %v1105 = vmax.f32 %v1089, 1e-05
  %v1106 = vmax.f32 %v1090, 1e-05
  %v1107 = vmax.f32 %v1091, 1e-05
  %v1108 = vmax.f32 %v1092, 1e-05
  %v1109 = vmax.f32 %v1093, 1e-05
  %vm1110 = vcmp.gt.f32.partialorder %v1094, 9.99
  %vm1111 = vcmp.gt.f32.partialorder %v1095, 9.99
  %vm1112 = vcmp.gt.f32.partialorder %v1096, 9.99
  %vm1113 = vcmp.gt.f32.partialorder %v1097, 9.99
  %vm1114 = vcmp.gt.f32.partialorder %v1098, 9.99
  %vm1115 = vcmp.gt.f32.partialorder %v1099, 9.99
  %vm1116 = vcmp.gt.f32.partialorder %v1100, 9.99
  %vm1117 = vcmp.gt.f32.partialorder %v1101, 9.99
  %vm1118 = vcmp.gt.f32.partialorder %v1102, 9.99
  %vm1119 = vcmp.gt.f32.partialorder %v1103, 9.99
  %vm1120 = vcmp.gt.f32.partialorder %v1104, 9.99
  %vm1121 = vcmp.gt.f32.partialorder %v1105, 9.99
  %vm1122 = vcmp.gt.f32.partialorder %v1106, 9.99
  %vm1123 = vcmp.gt.f32.partialorder %v1107, 9.99
  %vm1124 = vcmp.gt.f32.partialorder %v1108, 9.99
  %vm1125 = vcmp.gt.f32.partialorder %v1109, 9.99
  %v1126 = vrcp.pop %v1094
  %v1127 = vmul.f32 %v1094, %v1126
  %v1128 = vsub.f32 1.0, %v1127
  %v1129 = vmul.f32 %v1126, %v1128
  %v1130 = vadd.f32 %v1126, %v1129
  %vm1131 = vweird.f32 %v1094
  %vm1132 = vweird.f32 %v1126
  %vm1133 = vmor %vm1131, %vm1132
  %v1134 = vsel %vm1133, %v1126, %v1130
  %v1135 = vand.u32 2147483647, %v1094
  %vm1136 = vcmp.eq.f32.partialorder %v1135, 8.507059e+37
  %v1137 = vand.u32 %v1094, 2147483648
  %v1138 = vor.u32 1.1754944e-38, %v1137
  %v1139 = vsel %vm1136, %v1138, %v1134
  %v1140 = vmul.f32 9.99, %v1139
  %v1141 = vrcp.pop %v1095
  %v1142 = vmul.f32 %v1095, %v1141
  %v1143 = vsub.f32 1.0, %v1142
  %v1144 = vmul.f32 %v1141, %v1143
  %v1145 = vadd.f32 %v1141, %v1144
  %vm1146 = vweird.f32 %v1095
  %vm1147 = vweird.f32 %v1141
  %vm1148 = vmor %vm1146, %vm1147
  %v1149 = vsel %vm1148, %v1141, %v1145
  %v1150 = vand.u32 2147483647, %v1095
  %vm1151 = vcmp.eq.f32.partialorder %v1150, 8.507059e+37
  %v1152 = vand.u32 %v1095, 2147483648
  %v1153 = vor.u32 1.1754944e-38, %v1152
  %v1154 = vsel %vm1151, %v1153, %v1149
  %v1155 = vmul.f32 9.99, %v1154
  %v1156 = vrcp.pop %v1096
  %v1157 = vmul.f32 %v1096, %v1156
  %v1158 = vsub.f32 1.0, %v1157
  %v1159 = vmul.f32 %v1156, %v1158
  %v1160 = vadd.f32 %v1156, %v1159
  %vm1161 = vweird.f32 %v1096
  %vm1162 = vweird.f32 %v1156
  %vm1163 = vmor %vm1161, %vm1162
  %v1164 = vsel %vm1163, %v1156, %v1160
  %v1165 = vand.u32 2147483647, %v1096
  %vm1166 = vcmp.eq.f32.partialorder %v1165, 8.507059e+37
  %v1167 = vand.u32 %v1096, 2147483648
  %v1168 = vor.u32 1.1754944e-38, %v1167
  %v1169 = vsel %vm1166, %v1168, %v1164
  %v1170 = vmul.f32 9.99, %v1169
  %v1171 = vrcp.pop %v1097
  %v1172 = vmul.f32 %v1097, %v1171
  %v1173 = vsub.f32 1.0, %v1172
  %v1174 = vmul.f32 %v1171, %v1173
  %v1175 = vadd.f32 %v1171, %v1174
  %vm1176 = vweird.f32 %v1097
  %vm1177 = vweird.f32 %v1171
  %vm1178 = vmor %vm1176, %vm1177
  %v1179 = vsel %vm1178, %v1171, %v1175
  %v1180 = vand.u32 2147483647, %v1097
  %vm1181 = vcmp.eq.f32.partialorder %v1180, 8.507059e+37
  %v1182 = vand.u32 %v1097, 2147483648
  %v1183 = vor.u32 1.1754944e-38, %v1182
  %v1184 = vsel %vm1181, %v1183, %v1179
  %v1185 = vmul.f32 9.99, %v1184
  %v1186 = vrcp.pop %v1098
  %v1187 = vmul.f32 %v1098, %v1186
  %v1188 = vsub.f32 1.0, %v1187
  %v1189 = vmul.f32 %v1186, %v1188
  %v1190 = vadd.f32 %v1186, %v1189
  %vm1191 = vweird.f32 %v1098
  %vm1192 = vweird.f32 %v1186
  %vm1193 = vmor %vm1191, %vm1192
  %v1194 = vsel %vm1193, %v1186, %v1190
  %v1195 = vand.u32 2147483647, %v1098
  %vm1196 = vcmp.eq.f32.partialorder %v1195, 8.507059e+37
  %v1197 = vand.u32 %v1098, 2147483648
  %v1198 = vor.u32 1.1754944e-38, %v1197
  %v1199 = vsel %vm1196, %v1198, %v1194
  %v1200 = vmul.f32 9.99, %v1199
  %v1201 = vrcp.pop %v1099
  %v1202 = vmul.f32 %v1099, %v1201
  %v1203 = vsub.f32 1.0, %v1202
  %v1204 = vmul.f32 %v1201, %v1203
  %v1205 = vadd.f32 %v1201, %v1204
  %vm1206 = vweird.f32 %v1099
  %vm1207 = vweird.f32 %v1201
  %vm1208 = vmor %vm1206, %vm1207
  %v1209 = vsel %vm1208, %v1201, %v1205
  %v1210 = vand.u32 2147483647, %v1099
  %vm1211 = vcmp.eq.f32.partialorder %v1210, 8.507059e+37
  %v1212 = vand.u32 %v1099, 2147483648
  %v1213 = vor.u32 1.1754944e-38, %v1212
  %v1214 = vsel %vm1211, %v1213, %v1209
  %v1215 = vmul.f32 9.99, %v1214
  %v1216 = vrcp.pop %v1100
  %v1217 = vmul.f32 %v1100, %v1216
  %v1218 = vsub.f32 1.0, %v1217
  %v1219 = vmul.f32 %v1216, %v1218
  %v1220 = vadd.f32 %v1216, %v1219
  %vm1221 = vweird.f32 %v1100
  %vm1222 = vweird.f32 %v1216
  %vm1223 = vmor %vm1221, %vm1222
  %v1224 = vsel %vm1223, %v1216, %v1220
  %v1225 = vand.u32 2147483647, %v1100
  %vm1226 = vcmp.eq.f32.partialorder %v1225, 8.507059e+37
  %v1227 = vand.u32 %v1100, 2147483648
  %v1228 = vor.u32 1.1754944e-38, %v1227
  %v1229 = vsel %vm1226, %v1228, %v1224
  %v1230 = vmul.f32 9.99, %v1229
  %v1231 = vrcp.pop %v1101
  %v1232 = vmul.f32 %v1101, %v1231
  %v1233 = vsub.f32 1.0, %v1232
  %v1234 = vmul.f32 %v1231, %v1233
  %v1235 = vadd.f32 %v1231, %v1234
  %vm1236 = vweird.f32 %v1101
  %vm1237 = vweird.f32 %v1231
  %vm1238 = vmor %vm1236, %vm1237
  %v1239 = vsel %vm1238, %v1231, %v1235
  %v1240 = vand.u32 2147483647, %v1101
  %vm1241 = vcmp.eq.f32.partialorder %v1240, 8.507059e+37
  %v1242 = vand.u32 %v1101, 2147483648
  %v1243 = vor.u32 1.1754944e-38, %v1242
  %v1244 = vsel %vm1241, %v1243, %v1239
  %v1245 = vmul.f32 9.99, %v1244
  %v1246 = vrcp.pop %v1102
  %v1247 = vmul.f32 %v1102, %v1246
  %v1248 = vsub.f32 1.0, %v1247
  %v1249 = vmul.f32 %v1246, %v1248
  %v1250 = vadd.f32 %v1246, %v1249
  %vm1251 = vweird.f32 %v1102
  %vm1252 = vweird.f32 %v1246
  %vm1253 = vmor %vm1251, %vm1252
  %v1254 = vsel %vm1253, %v1246, %v1250
  %v1255 = vand.u32 2147483647, %v1102
  %vm1256 = vcmp.eq.f32.partialorder %v1255, 8.507059e+37
  %v1257 = vand.u32 %v1102, 2147483648
  %v1258 = vor.u32 1.1754944e-38, %v1257
  %v1259 = vsel %vm1256, %v1258, %v1254
  %v1260 = vmul.f32 9.99, %v1259
  %v1261 = vrcp.pop %v1103
  %v1262 = vmul.f32 %v1103, %v1261
  %v1263 = vsub.f32 1.0, %v1262
  %v1264 = vmul.f32 %v1261, %v1263
  %v1265 = vadd.f32 %v1261, %v1264
  %vm1266 = vweird.f32 %v1103
  %vm1267 = vweird.f32 %v1261
  %vm1268 = vmor %vm1266, %vm1267
  %v1269 = vsel %vm1268, %v1261, %v1265
  %v1270 = vand.u32 2147483647, %v1103
  %vm1271 = vcmp.eq.f32.partialorder %v1270, 8.507059e+37
  %v1272 = vand.u32 %v1103, 2147483648
  %v1273 = vor.u32 1.1754944e-38, %v1272
  %v1274 = vsel %vm1271, %v1273, %v1269
  %v1275 = vmul.f32 9.99, %v1274
  %v1276 = vrcp.pop %v1104
  %v1277 = vmul.f32 %v1104, %v1276
  %v1278 = vsub.f32 1.0, %v1277
  %v1279 = vmul.f32 %v1276, %v1278
  %v1280 = vadd.f32 %v1276, %v1279
  %vm1281 = vweird.f32 %v1104
  %vm1282 = vweird.f32 %v1276
  %vm1283 = vmor %vm1281, %vm1282
  %v1284 = vsel %vm1283, %v1276, %v1280
  %v1285 = vand.u32 2147483647, %v1104
  %vm1286 = vcmp.eq.f32.partialorder %v1285, 8.507059e+37
  %v1287 = vand.u32 %v1104, 2147483648
  %v1288 = vor.u32 1.1754944e-38, %v1287
  %v1289 = vsel %vm1286, %v1288, %v1284
  %v1290 = vmul.f32 9.99, %v1289
  %v1291 = vrcp.pop %v1105
  %v1292 = vmul.f32 %v1105, %v1291
  %v1293 = vsub.f32 1.0, %v1292
  %v1294 = vmul.f32 %v1291, %v1293
  %v1295 = vadd.f32 %v1291, %v1294
  %vm1296 = vweird.f32 %v1105
  %vm1297 = vweird.f32 %v1291
  %vm1298 = vmor %vm1296, %vm1297
  %v1299 = vsel %vm1298, %v1291, %v1295
  %v1300 = vand.u32 2147483647, %v1105
  %vm1301 = vcmp.eq.f32.partialorder %v1300, 8.507059e+37
  %v1302 = vand.u32 %v1105, 2147483648
  %v1303 = vor.u32 1.1754944e-38, %v1302
  %v1304 = vsel %vm1301, %v1303, %v1299
  %v1305 = vmul.f32 9.99, %v1304
  %v1306 = vrcp.pop %v1106
  %v1307 = vmul.f32 %v1106, %v1306
  %v1308 = vsub.f32 1.0, %v1307
  %v1309 = vmul.f32 %v1306, %v1308
  %v1310 = vadd.f32 %v1306, %v1309
  %vm1311 = vweird.f32 %v1106
  %vm1312 = vweird.f32 %v1306
  %vm1313 = vmor %vm1311, %vm1312
  %v1314 = vsel %vm1313, %v1306, %v1310
  %v1315 = vand.u32 2147483647, %v1106
  %vm1316 = vcmp.eq.f32.partialorder %v1315, 8.507059e+37
  %v1317 = vand.u32 %v1106, 2147483648
  %v1318 = vor.u32 1.1754944e-38, %v1317
  %v1319 = vsel %vm1316, %v1318, %v1314
  %v1320 = vmul.f32 9.99, %v1319
  %v1321 = vrcp.pop %v1107
  %v1322 = vmul.f32 %v1107, %v1321
  %v1323 = vsub.f32 1.0, %v1322
  %v1324 = vmul.f32 %v1321, %v1323
  %v1325 = vadd.f32 %v1321, %v1324
  %vm1326 = vweird.f32 %v1107
  %vm1327 = vweird.f32 %v1321
  %vm1328 = vmor %vm1326, %vm1327
  %v1329 = vsel %vm1328, %v1321, %v1325
  %v1330 = vand.u32 2147483647, %v1107
  %vm1331 = vcmp.eq.f32.partialorder %v1330, 8.507059e+37
  %v1332 = vand.u32 %v1107, 2147483648
  %v1333 = vor.u32 1.1754944e-38, %v1332
  %v1334 = vsel %vm1331, %v1333, %v1329
  %v1335 = vmul.f32 9.99, %v1334
  %v1336 = vrcp.pop %v1108
  %v1337 = vmul.f32 %v1108, %v1336
  %v1338 = vsub.f32 1.0, %v1337
  %v1339 = vmul.f32 %v1336, %v1338
  %v1340 = vadd.f32 %v1336, %v1339
  %vm1341 = vweird.f32 %v1108
  %vm1342 = vweird.f32 %v1336
  %vm1343 = vmor %vm1341, %vm1342
  %v1344 = vsel %vm1343, %v1336, %v1340
  %v1345 = vand.u32 2147483647, %v1108
  %vm1346 = vcmp.eq.f32.partialorder %v1345, 8.507059e+37
  %v1347 = vand.u32 %v1108, 2147483648
  %v1348 = vor.u32 1.1754944e-38, %v1347
  %v1349 = vsel %vm1346, %v1348, %v1344
  %v1350 = vmul.f32 9.99, %v1349
  %v1351 = vrcp.pop %v1109
  %v1352 = vmul.f32 %v1109, %v1351
  %v1353 = vsub.f32 1.0, %v1352
  %v1354 = vmul.f32 %v1351, %v1353
  %v1355 = vadd.f32 %v1351, %v1354
  %vm1356 = vweird.f32 %v1109
  %vm1357 = vweird.f32 %v1351
  %vm1358 = vmor %vm1356, %vm1357
  %v1359 = vsel %vm1358, %v1351, %v1355
  %v1360 = vand.u32 2147483647, %v1109
  %vm1361 = vcmp.eq.f32.partialorder %v1360, 8.507059e+37
  %v1362 = vand.u32 %v1109, 2147483648
  %v1363 = vor.u32 1.1754944e-38, %v1362
  %v1364 = vsel %vm1361, %v1363, %v1359
  %v1365 = vmul.f32 9.99, %v1364
  %v1366 = vmul.f32 %v1062, %v1140
  %v1367 = vmul.f32 %v1063, %v1155
  %v1368 = vmul.f32 %v1064, %v1170
  %v1369 = vmul.f32 %v1065, %v1185
  %v1370 = vmul.f32 %v1066, %v1200
  %v1371 = vmul.f32 %v1067, %v1215
  %v1372 = vmul.f32 %v1068, %v1230
  %v1373 = vmul.f32 %v1069, %v1245
  %v1374 = vmul.f32 %v1070, %v1260
  %v1375 = vmul.f32 %v1071, %v1275
  %v1376 = vmul.f32 %v1072, %v1290
  %v1377 = vmul.f32 %v1073, %v1305
  %v1378 = vmul.f32 %v1074, %v1320
  %v1379 = vmul.f32 %v1075, %v1335
  %v1380 = vmul.f32 %v1076, %v1350
  %v1381 = vmul.f32 %v1077, %v1365
  %v1382 = vsel %vm1110, 1, 0
  %v1383 = vsel %vm1111, 1, 0
  %v1384 = vsel %vm1112, 1, 0
  %v1385 = vsel %vm1113, 1, 0
  %v1386 = vsel %vm1114, 1, 0
  %v1387 = vsel %vm1115, 1, 0
  %v1388 = vsel %vm1116, 1, 0
  %v1389 = vsel %vm1117, 1, 0
  %v1390 = vsel %vm1118, 1, 0
  %v1391 = vsel %vm1119, 1, 0
  %v1392 = vsel %vm1120, 1, 0
  %v1393 = vsel %vm1121, 1, 0
  %v1394 = vsel %vm1122, 1, 0
  %v1395 = vsel %vm1123, 1, 0
  %v1396 = vsel %vm1124, 1, 0
  %v1397 = vsel %vm1125, 1, 0
  %vm1398 = vcmp.eq.s32.totalorder %v1382, 1
  %vm1399 = vcmp.eq.s32.totalorder %v1383, 1
  %vm1400 = vcmp.eq.s32.totalorder %v1384, 1
  %vm1401 = vcmp.eq.s32.totalorder %v1385, 1
  %vm1402 = vcmp.eq.s32.totalorder %v1386, 1
  %vm1403 = vcmp.eq.s32.totalorder %v1387, 1
  %vm1404 = vcmp.eq.s32.totalorder %v1388, 1
  %vm1405 = vcmp.eq.s32.totalorder %v1389, 1
  %vm1406 = vcmp.eq.s32.totalorder %v1390, 1
  %vm1407 = vcmp.eq.s32.totalorder %v1391, 1
  %vm1408 = vcmp.eq.s32.totalorder %v1392, 1
  %vm1409 = vcmp.eq.s32.totalorder %v1393, 1
  %vm1410 = vcmp.eq.s32.totalorder %v1394, 1
  %vm1411 = vcmp.eq.s32.totalorder %v1395, 1
  %vm1412 = vcmp.eq.s32.totalorder %v1396, 1
  %vm1413 = vcmp.eq.s32.totalorder %v1397, 1
  %v1414 = vsel %vm1398, %v1366, %v1062
  %v1415 = vsel %vm1399, %v1367, %v1063
  %v1416 = vsel %vm1400, %v1368, %v1064
  %v1417 = vsel %vm1401, %v1369, %v1065
  %v1418 = vsel %vm1402, %v1370, %v1066
  %v1419 = vsel %vm1403, %v1371, %v1067
  %v1420 = vsel %vm1404, %v1372, %v1068
  %v1421 = vsel %vm1405, %v1373, %v1069
  %v1422 = vsel %vm1406, %v1374, %v1070
  %v1423 = vsel %vm1407, %v1375, %v1071
  %v1424 = vsel %vm1408, %v1376, %v1072
  %v1425 = vsel %vm1409, %v1377, %v1073
  %v1426 = vsel %vm1410, %v1378, %v1074
  %v1427 = vsel %vm1411, %v1379, %v1075
  %v1428 = vsel %vm1412, %v1380, %v1076
  %v1429 = vsel %vm1413, %v1381, %v1077
  %v1430 = vmul.f32 %v508, %v508
  %v1431 = vmul.f32 %v509, %v509
  %v1432 = vmul.f32 %v510, %v510
  %v1433 = vmul.f32 %v511, %v511
  %v1434 = vmul.f32 %v512, %v512
  %v1435 = vmul.f32 %v513, %v513
  %v1436 = vmul.f32 %v514, %v514
  %v1437 = vmul.f32 %v515, %v515
  %v1438 = vsel %vm67, %v1430, 0.0
  %1439 = vadd.xlane.f32.xlu0 %v1438
  %v1440 = vpop.xlane.xlu0 %1439
  %v1441 = vsel %vm67, %v1431, 0.0
  %1442 = vadd.xlane.f32.xlu0 %v1441
  %v1443 = vpop.xlane.xlu0 %1442
  %v1444 = vsel %vm67, %v1432, 0.0
  %1445 = vadd.xlane.f32.xlu0 %v1444
  %v1446 = vpop.xlane.xlu0 %1445
  %v1447 = vsel %vm67, %v1433, 0.0
  %1448 = vadd.xlane.f32.xlu0 %v1447
  %v1449 = vpop.xlane.xlu0 %1448
  %v1450 = vsel %vm67, %v1434, 0.0
  %1451 = vadd.xlane.f32.xlu0 %v1450
  %v1452 = vpop.xlane.xlu0 %1451
  %v1453 = vsel %vm67, %v1435, 0.0
  %1454 = vadd.xlane.f32.xlu0 %v1453
  %v1455 = vpop.xlane.xlu0 %1454
  %v1456 = vsel %vm67, %v1436, 0.0
  %1457 = vadd.xlane.f32.xlu0 %v1456
  %v1458 = vpop.xlane.xlu0 %1457
  %v1459 = vsel %vm67, %v1437, 0.0
  %1460 = vadd.xlane.f32.xlu0 %v1459
  %v1461 = vpop.xlane.xlu0 %1460
  %v1462 = vmul.f32 %v1414, %v1414
  %v1463 = vmul.f32 %v1415, %v1415
  %v1464 = vmul.f32 %v1416, %v1416
  %v1465 = vmul.f32 %v1417, %v1417
  %v1466 = vmul.f32 %v1418, %v1418
  %v1467 = vmul.f32 %v1419, %v1419
  %v1468 = vmul.f32 %v1420, %v1420
  %v1469 = vmul.f32 %v1421, %v1421
  %v1470 = vmul.f32 %v1422, %v1422
  %v1471 = vmul.f32 %v1423, %v1423
  %v1472 = vmul.f32 %v1424, %v1424
  %v1473 = vmul.f32 %v1425, %v1425
  %v1474 = vmul.f32 %v1426, %v1426
  %v1475 = vmul.f32 %v1427, %v1427
  %v1476 = vmul.f32 %v1428, %v1428
  %v1477 = vmul.f32 %v1429, %v1429
  %v1478 = vsel %vm532, %v1462, 0.0
  %1479 = vadd.xlane.f32.xlu0 %v1478
  %v1480 = vpop.xlane.xlu0 %1479
  %v1481 = vsel %vm536, %v1463, 0.0
  %1482 = vadd.xlane.f32.xlu0 %v1481
  %v1483 = vpop.xlane.xlu0 %1482
  %v1484 = vsel %vm532, %v1464, 0.0
  %1485 = vadd.xlane.f32.xlu0 %v1484
  %v1486 = vpop.xlane.xlu0 %1485
  %v1487 = vsel %vm536, %v1465, 0.0
  %1488 = vadd.xlane.f32.xlu0 %v1487
  %v1489 = vpop.xlane.xlu0 %1488
  %v1490 = vsel %vm532, %v1466, 0.0
  %1491 = vadd.xlane.f32.xlu0 %v1490
  %v1492 = vpop.xlane.xlu0 %1491
  %v1493 = vsel %vm536, %v1467, 0.0
  %1494 = vadd.xlane.f32.xlu0 %v1493
  %v1495 = vpop.xlane.xlu0 %1494
  %v1496 = vsel %vm532, %v1468, 0.0
  %1497 = vadd.xlane.f32.xlu0 %v1496
  %v1498 = vpop.xlane.xlu0 %1497
  %v1499 = vsel %vm536, %v1469, 0.0
  %1500 = vadd.xlane.f32.xlu0 %v1499
  %v1501 = vpop.xlane.xlu0 %1500
  %v1502 = vsel %vm532, %v1470, 0.0
  %1503 = vadd.xlane.f32.xlu0 %v1502
  %v1504 = vpop.xlane.xlu0 %1503
  %v1505 = vsel %vm536, %v1471, 0.0
  %1506 = vadd.xlane.f32.xlu0 %v1505
  %v1507 = vpop.xlane.xlu0 %1506
  %v1508 = vsel %vm532, %v1472, 0.0
  %1509 = vadd.xlane.f32.xlu0 %v1508
  %v1510 = vpop.xlane.xlu0 %1509
  %v1511 = vsel %vm536, %v1473, 0.0
  %1512 = vadd.xlane.f32.xlu0 %v1511
  %v1513 = vpop.xlane.xlu0 %1512
  %v1514 = vsel %vm532, %v1474, 0.0
  %1515 = vadd.xlane.f32.xlu0 %v1514
  %v1516 = vpop.xlane.xlu0 %1515
  %v1517 = vsel %vm536, %v1475, 0.0
  %1518 = vadd.xlane.f32.xlu0 %v1517
  %v1519 = vpop.xlane.xlu0 %1518
  %v1520 = vsel %vm532, %v1476, 0.0
  %1521 = vadd.xlane.f32.xlu0 %v1520
  %v1522 = vpop.xlane.xlu0 %1521
  %v1523 = vsel %vm536, %v1477, 0.0
  %1524 = vadd.xlane.f32.xlu0 %v1523
  %v1525 = vpop.xlane.xlu0 %1524
  %v1526 = vmul.f32 %v508, 2.0
  %v1527 = vmul.f32 %v509, 2.0
  %v1528 = vmul.f32 %v510, 2.0
  %v1529 = vmul.f32 %v511, 2.0
  %v1530 = vmul.f32 %v512, 2.0
  %v1531 = vmul.f32 %v513, 2.0
  %v1532 = vmul.f32 %v514, 2.0
  %v1533 = vmul.f32 %v515, 2.0
  %v1534 = vmul.f32 %v1440, 0.01
  %v1535 = vmul.f32 %v1443, 0.01
  %v1536 = vmul.f32 %v1446, 0.01
  %v1537 = vmul.f32 %v1449, 0.01
  %v1538 = vmul.f32 %v1452, 0.01
  %v1539 = vmul.f32 %v1455, 0.01
  %v1540 = vmul.f32 %v1458, 0.01
  %v1541 = vmul.f32 %v1461, 0.01
  %v1542 = vadd.f32 %v1534, 1.0
  %v1543 = vadd.f32 %v1535, 1.0
  %v1544 = vadd.f32 %v1536, 1.0
  %v1545 = vadd.f32 %v1537, 1.0
  %v1546 = vadd.f32 %v1538, 1.0
  %v1547 = vadd.f32 %v1539, 1.0
  %v1548 = vadd.f32 %v1540, 1.0
  %v1549 = vadd.f32 %v1541, 1.0
  %v1550 = vrcp.pop %v1542
  %v1551 = vmul.f32 %v1542, %v1550
  %v1552 = vsub.f32 1.0, %v1551
  %v1553 = vmul.f32 %v1550, %v1552
  %v1554 = vadd.f32 %v1550, %v1553
  %vm1555 = vweird.f32 %v1542
  %vm1556 = vweird.f32 %v1550
  %vm1557 = vmor %vm1555, %vm1556
  %v1558 = vsel %vm1557, %v1550, %v1554
  %v1559 = vand.u32 2147483647, %v1542
  %vm1560 = vcmp.eq.f32.partialorder %v1559, 8.507059e+37
  %v1561 = vand.u32 %v1542, 2147483648
  %v1562 = vor.u32 1.1754944e-38, %v1561
  %v1563 = vsel %vm1560, %v1562, %v1558
  %v1564 = vmul.f32 %v1526, %v1563
  %v1565 = vrcp.pop %v1543
  %v1566 = vmul.f32 %v1543, %v1565
  %v1567 = vsub.f32 1.0, %v1566
  %v1568 = vmul.f32 %v1565, %v1567
  %v1569 = vadd.f32 %v1565, %v1568
  %vm1570 = vweird.f32 %v1543
  %vm1571 = vweird.f32 %v1565
  %vm1572 = vmor %vm1570, %vm1571
  %v1573 = vsel %vm1572, %v1565, %v1569
  %v1574 = vand.u32 2147483647, %v1543
  %vm1575 = vcmp.eq.f32.partialorder %v1574, 8.507059e+37
  %v1576 = vand.u32 %v1543, 2147483648
  %v1577 = vor.u32 1.1754944e-38, %v1576
  %v1578 = vsel %vm1575, %v1577, %v1573
  %v1579 = vmul.f32 %v1527, %v1578
  %v1580 = vrcp.pop %v1544
  %v1581 = vmul.f32 %v1544, %v1580
  %v1582 = vsub.f32 1.0, %v1581
  %v1583 = vmul.f32 %v1580, %v1582
  %v1584 = vadd.f32 %v1580, %v1583
  %vm1585 = vweird.f32 %v1544
  %vm1586 = vweird.f32 %v1580
  %vm1587 = vmor %vm1585, %vm1586
  %v1588 = vsel %vm1587, %v1580, %v1584
  %v1589 = vand.u32 2147483647, %v1544
  %vm1590 = vcmp.eq.f32.partialorder %v1589, 8.507059e+37
  %v1591 = vand.u32 %v1544, 2147483648
  %v1592 = vor.u32 1.1754944e-38, %v1591
  %v1593 = vsel %vm1590, %v1592, %v1588
  %v1594 = vmul.f32 %v1528, %v1593
  %v1595 = vrcp.pop %v1545
  %v1596 = vmul.f32 %v1545, %v1595
  %v1597 = vsub.f32 1.0, %v1596
  %v1598 = vmul.f32 %v1595, %v1597
  %v1599 = vadd.f32 %v1595, %v1598
  %vm1600 = vweird.f32 %v1545
  %vm1601 = vweird.f32 %v1595
  %vm1602 = vmor %vm1600, %vm1601
  %v1603 = vsel %vm1602, %v1595, %v1599
  %v1604 = vand.u32 2147483647, %v1545
  %vm1605 = vcmp.eq.f32.partialorder %v1604, 8.507059e+37
  %v1606 = vand.u32 %v1545, 2147483648
  %v1607 = vor.u32 1.1754944e-38, %v1606
  %v1608 = vsel %vm1605, %v1607, %v1603
  %v1609 = vmul.f32 %v1529, %v1608
  %v1610 = vrcp.pop %v1546
  %v1611 = vmul.f32 %v1546, %v1610
  %v1612 = vsub.f32 1.0, %v1611
  %v1613 = vmul.f32 %v1610, %v1612
  %v1614 = vadd.f32 %v1610, %v1613
  %vm1615 = vweird.f32 %v1546
  %vm1616 = vweird.f32 %v1610
  %vm1617 = vmor %vm1615, %vm1616
  %v1618 = vsel %vm1617, %v1610, %v1614
  %v1619 = vand.u32 2147483647, %v1546
  %vm1620 = vcmp.eq.f32.partialorder %v1619, 8.507059e+37
  %v1621 = vand.u32 %v1546, 2147483648
  %v1622 = vor.u32 1.1754944e-38, %v1621
  %v1623 = vsel %vm1620, %v1622, %v1618
  %v1624 = vmul.f32 %v1530, %v1623
  %v1625 = vrcp.pop %v1547
  %v1626 = vmul.f32 %v1547, %v1625
  %v1627 = vsub.f32 1.0, %v1626
  %v1628 = vmul.f32 %v1625, %v1627
  %v1629 = vadd.f32 %v1625, %v1628
  %vm1630 = vweird.f32 %v1547
  %vm1631 = vweird.f32 %v1625
  %vm1632 = vmor %vm1630, %vm1631
  %v1633 = vsel %vm1632, %v1625, %v1629
  %v1634 = vand.u32 2147483647, %v1547
  %vm1635 = vcmp.eq.f32.partialorder %v1634, 8.507059e+37
  %v1636 = vand.u32 %v1547, 2147483648
  %v1637 = vor.u32 1.1754944e-38, %v1636
  %v1638 = vsel %vm1635, %v1637, %v1633
  %v1639 = vmul.f32 %v1531, %v1638
  %v1640 = vrcp.pop %v1548
  %v1641 = vmul.f32 %v1548, %v1640
  %v1642 = vsub.f32 1.0, %v1641
  %v1643 = vmul.f32 %v1640, %v1642
  %v1644 = vadd.f32 %v1640, %v1643
  %vm1645 = vweird.f32 %v1548
  %vm1646 = vweird.f32 %v1640
  %vm1647 = vmor %vm1645, %vm1646
  %v1648 = vsel %vm1647, %v1640, %v1644
  %v1649 = vand.u32 2147483647, %v1548
  %vm1650 = vcmp.eq.f32.partialorder %v1649, 8.507059e+37
  %v1651 = vand.u32 %v1548, 2147483648
  %v1652 = vor.u32 1.1754944e-38, %v1651
  %v1653 = vsel %vm1650, %v1652, %v1648
  %v1654 = vmul.f32 %v1532, %v1653
  %v1655 = vrcp.pop %v1549
  %v1656 = vmul.f32 %v1549, %v1655
  %v1657 = vsub.f32 1.0, %v1656
  %v1658 = vmul.f32 %v1655, %v1657
  %v1659 = vadd.f32 %v1655, %v1658
  %vm1660 = vweird.f32 %v1549
  %vm1661 = vweird.f32 %v1655
  %vm1662 = vmor %vm1660, %vm1661
  %v1663 = vsel %vm1662, %v1655, %v1659
  %v1664 = vand.u32 2147483647, %v1549
  %vm1665 = vcmp.eq.f32.partialorder %v1664, 8.507059e+37
  %v1666 = vand.u32 %v1549, 2147483648
  %v1667 = vor.u32 1.1754944e-38, %v1666
  %v1668 = vsel %vm1665, %v1667, %v1663
  %v1669 = vmul.f32 %v1533, %v1668
  %v1670 = vmul.f32 %v1414, 2.0
  %v1671 = vmul.f32 %v1415, 2.0
  %v1672 = vmul.f32 %v1416, 2.0
  %v1673 = vmul.f32 %v1417, 2.0
  %v1674 = vmul.f32 %v1418, 2.0
  %v1675 = vmul.f32 %v1419, 2.0
  %v1676 = vmul.f32 %v1420, 2.0
  %v1677 = vmul.f32 %v1421, 2.0
  %v1678 = vmul.f32 %v1422, 2.0
  %v1679 = vmul.f32 %v1423, 2.0
  %v1680 = vmul.f32 %v1424, 2.0
  %v1681 = vmul.f32 %v1425, 2.0
  %v1682 = vmul.f32 %v1426, 2.0
  %v1683 = vmul.f32 %v1427, 2.0
  %v1684 = vmul.f32 %v1428, 2.0
  %v1685 = vmul.f32 %v1429, 2.0
  %v1686 = vmul.f32 %v1480, 0.01
  %v1687 = vmul.f32 %v1483, 0.01
  %v1688 = vmul.f32 %v1486, 0.01
  %v1689 = vmul.f32 %v1489, 0.01
  %v1690 = vmul.f32 %v1492, 0.01
  %v1691 = vmul.f32 %v1495, 0.01
  %v1692 = vmul.f32 %v1498, 0.01
  %v1693 = vmul.f32 %v1501, 0.01
  %v1694 = vmul.f32 %v1504, 0.01
  %v1695 = vmul.f32 %v1507, 0.01
  %v1696 = vmul.f32 %v1510, 0.01
  %v1697 = vmul.f32 %v1513, 0.01
  %v1698 = vmul.f32 %v1516, 0.01
  %v1699 = vmul.f32 %v1519, 0.01
  %v1700 = vmul.f32 %v1522, 0.01
  %v1701 = vmul.f32 %v1525, 0.01
  %v1702 = vadd.f32 %v1686, 1.0
  %v1703 = vadd.f32 %v1687, 1.0
  %v1704 = vadd.f32 %v1688, 1.0
  %v1705 = vadd.f32 %v1689, 1.0
  %v1706 = vadd.f32 %v1690, 1.0
  %v1707 = vadd.f32 %v1691, 1.0
  %v1708 = vadd.f32 %v1692, 1.0
  %v1709 = vadd.f32 %v1693, 1.0
  %v1710 = vadd.f32 %v1694, 1.0
  %v1711 = vadd.f32 %v1695, 1.0
  %v1712 = vadd.f32 %v1696, 1.0
  %v1713 = vadd.f32 %v1697, 1.0
  %v1714 = vadd.f32 %v1698, 1.0
  %v1715 = vadd.f32 %v1699, 1.0
  %v1716 = vadd.f32 %v1700, 1.0
  %v1717 = vadd.f32 %v1701, 1.0
  %v1718 = vrcp.pop %v1702
  %v1719 = vmul.f32 %v1702, %v1718
  %v1720 = vsub.f32 1.0, %v1719
  %v1721 = vmul.f32 %v1718, %v1720
  %v1722 = vadd.f32 %v1718, %v1721
  %vm1723 = vweird.f32 %v1702
  %vm1724 = vweird.f32 %v1718
  %vm1725 = vmor %vm1723, %vm1724
  %v1726 = vsel %vm1725, %v1718, %v1722
  %v1727 = vand.u32 2147483647, %v1702
  %vm1728 = vcmp.eq.f32.partialorder %v1727, 8.507059e+37
  %v1729 = vand.u32 %v1702, 2147483648
  %v1730 = vor.u32 1.1754944e-38, %v1729
  %v1731 = vsel %vm1728, %v1730, %v1726
  %v1732 = vmul.f32 %v1670, %v1731
  %v1733 = vrcp.pop %v1703
  %v1734 = vmul.f32 %v1703, %v1733
  %v1735 = vsub.f32 1.0, %v1734
  %v1736 = vmul.f32 %v1733, %v1735
  %v1737 = vadd.f32 %v1733, %v1736
  %vm1738 = vweird.f32 %v1703
  %vm1739 = vweird.f32 %v1733
  %vm1740 = vmor %vm1738, %vm1739
  %v1741 = vsel %vm1740, %v1733, %v1737
  %v1742 = vand.u32 2147483647, %v1703
  %vm1743 = vcmp.eq.f32.partialorder %v1742, 8.507059e+37
  %v1744 = vand.u32 %v1703, 2147483648
  %v1745 = vor.u32 1.1754944e-38, %v1744
  %v1746 = vsel %vm1743, %v1745, %v1741
  %v1747 = vmul.f32 %v1671, %v1746
  %v1748 = vrcp.pop %v1704
  %v1749 = vmul.f32 %v1704, %v1748
  %v1750 = vsub.f32 1.0, %v1749
  %v1751 = vmul.f32 %v1748, %v1750
  %v1752 = vadd.f32 %v1748, %v1751
  %vm1753 = vweird.f32 %v1704
  %vm1754 = vweird.f32 %v1748
  %vm1755 = vmor %vm1753, %vm1754
  %v1756 = vsel %vm1755, %v1748, %v1752
  %v1757 = vand.u32 2147483647, %v1704
  %vm1758 = vcmp.eq.f32.partialorder %v1757, 8.507059e+37
  %v1759 = vand.u32 %v1704, 2147483648
  %v1760 = vor.u32 1.1754944e-38, %v1759
  %v1761 = vsel %vm1758, %v1760, %v1756
  %v1762 = vmul.f32 %v1672, %v1761
  %v1763 = vrcp.pop %v1705
  %v1764 = vmul.f32 %v1705, %v1763
  %v1765 = vsub.f32 1.0, %v1764
  %v1766 = vmul.f32 %v1763, %v1765
  %v1767 = vadd.f32 %v1763, %v1766
  %vm1768 = vweird.f32 %v1705
  %vm1769 = vweird.f32 %v1763
  %vm1770 = vmor %vm1768, %vm1769
  %v1771 = vsel %vm1770, %v1763, %v1767
  %v1772 = vand.u32 2147483647, %v1705
  %vm1773 = vcmp.eq.f32.partialorder %v1772, 8.507059e+37
  %v1774 = vand.u32 %v1705, 2147483648
  %v1775 = vor.u32 1.1754944e-38, %v1774
  %v1776 = vsel %vm1773, %v1775, %v1771
  %v1777 = vmul.f32 %v1673, %v1776
  %v1778 = vrcp.pop %v1706
  %v1779 = vmul.f32 %v1706, %v1778
  %v1780 = vsub.f32 1.0, %v1779
  %v1781 = vmul.f32 %v1778, %v1780
  %v1782 = vadd.f32 %v1778, %v1781
  %vm1783 = vweird.f32 %v1706
  %vm1784 = vweird.f32 %v1778
  %vm1785 = vmor %vm1783, %vm1784
  %v1786 = vsel %vm1785, %v1778, %v1782
  %v1787 = vand.u32 2147483647, %v1706
  %vm1788 = vcmp.eq.f32.partialorder %v1787, 8.507059e+37
  %v1789 = vand.u32 %v1706, 2147483648
  %v1790 = vor.u32 1.1754944e-38, %v1789
  %v1791 = vsel %vm1788, %v1790, %v1786
  %v1792 = vmul.f32 %v1674, %v1791
  %v1793 = vrcp.pop %v1707
  %v1794 = vmul.f32 %v1707, %v1793
  %v1795 = vsub.f32 1.0, %v1794
  %v1796 = vmul.f32 %v1793, %v1795
  %v1797 = vadd.f32 %v1793, %v1796
  %vm1798 = vweird.f32 %v1707
  %vm1799 = vweird.f32 %v1793
  %vm1800 = vmor %vm1798, %vm1799
  %v1801 = vsel %vm1800, %v1793, %v1797
  %v1802 = vand.u32 2147483647, %v1707
  %vm1803 = vcmp.eq.f32.partialorder %v1802, 8.507059e+37
  %v1804 = vand.u32 %v1707, 2147483648
  %v1805 = vor.u32 1.1754944e-38, %v1804
  %v1806 = vsel %vm1803, %v1805, %v1801
  %v1807 = vmul.f32 %v1675, %v1806
  %v1808 = vrcp.pop %v1708
  %v1809 = vmul.f32 %v1708, %v1808
  %v1810 = vsub.f32 1.0, %v1809
  %v1811 = vmul.f32 %v1808, %v1810
  %v1812 = vadd.f32 %v1808, %v1811
  %vm1813 = vweird.f32 %v1708
  %vm1814 = vweird.f32 %v1808
  %vm1815 = vmor %vm1813, %vm1814
  %v1816 = vsel %vm1815, %v1808, %v1812
  %v1817 = vand.u32 2147483647, %v1708
  %vm1818 = vcmp.eq.f32.partialorder %v1817, 8.507059e+37
  %v1819 = vand.u32 %v1708, 2147483648
  %v1820 = vor.u32 1.1754944e-38, %v1819
  %v1821 = vsel %vm1818, %v1820, %v1816
  %v1822 = vmul.f32 %v1676, %v1821
  %v1823 = vrcp.pop %v1709
  %v1824 = vmul.f32 %v1709, %v1823
  %v1825 = vsub.f32 1.0, %v1824
  %v1826 = vmul.f32 %v1823, %v1825
  %v1827 = vadd.f32 %v1823, %v1826
  %vm1828 = vweird.f32 %v1709
  %vm1829 = vweird.f32 %v1823
  %vm1830 = vmor %vm1828, %vm1829
  %v1831 = vsel %vm1830, %v1823, %v1827
  %v1832 = vand.u32 2147483647, %v1709
  %vm1833 = vcmp.eq.f32.partialorder %v1832, 8.507059e+37
  %v1834 = vand.u32 %v1709, 2147483648
  %v1835 = vor.u32 1.1754944e-38, %v1834
  %v1836 = vsel %vm1833, %v1835, %v1831
  %v1837 = vmul.f32 %v1677, %v1836
  %v1838 = vrcp.pop %v1710
  %v1839 = vmul.f32 %v1710, %v1838
  %v1840 = vsub.f32 1.0, %v1839
  %v1841 = vmul.f32 %v1838, %v1840
  %v1842 = vadd.f32 %v1838, %v1841
  %vm1843 = vweird.f32 %v1710
  %vm1844 = vweird.f32 %v1838
  %vm1845 = vmor %vm1843, %vm1844
  %v1846 = vsel %vm1845, %v1838, %v1842
  %v1847 = vand.u32 2147483647, %v1710
  %vm1848 = vcmp.eq.f32.partialorder %v1847, 8.507059e+37
  %v1849 = vand.u32 %v1710, 2147483648
  %v1850 = vor.u32 1.1754944e-38, %v1849
  %v1851 = vsel %vm1848, %v1850, %v1846
  %v1852 = vmul.f32 %v1678, %v1851
  %v1853 = vrcp.pop %v1711
  %v1854 = vmul.f32 %v1711, %v1853
  %v1855 = vsub.f32 1.0, %v1854
  %v1856 = vmul.f32 %v1853, %v1855
  %v1857 = vadd.f32 %v1853, %v1856
  %vm1858 = vweird.f32 %v1711
  %vm1859 = vweird.f32 %v1853
  %vm1860 = vmor %vm1858, %vm1859
  %v1861 = vsel %vm1860, %v1853, %v1857
  %v1862 = vand.u32 2147483647, %v1711
  %vm1863 = vcmp.eq.f32.partialorder %v1862, 8.507059e+37
  %v1864 = vand.u32 %v1711, 2147483648
  %v1865 = vor.u32 1.1754944e-38, %v1864
  %v1866 = vsel %vm1863, %v1865, %v1861
  %v1867 = vmul.f32 %v1679, %v1866
  %v1868 = vrcp.pop %v1712
  %v1869 = vmul.f32 %v1712, %v1868
  %v1870 = vsub.f32 1.0, %v1869
  %v1871 = vmul.f32 %v1868, %v1870
  %v1872 = vadd.f32 %v1868, %v1871
  %vm1873 = vweird.f32 %v1712
  %vm1874 = vweird.f32 %v1868
  %vm1875 = vmor %vm1873, %vm1874
  %v1876 = vsel %vm1875, %v1868, %v1872
  %v1877 = vand.u32 2147483647, %v1712
  %vm1878 = vcmp.eq.f32.partialorder %v1877, 8.507059e+37
  %v1879 = vand.u32 %v1712, 2147483648
  %v1880 = vor.u32 1.1754944e-38, %v1879
  %v1881 = vsel %vm1878, %v1880, %v1876
  %v1882 = vmul.f32 %v1680, %v1881
  %v1883 = vrcp.pop %v1713
  %v1884 = vmul.f32 %v1713, %v1883
  %v1885 = vsub.f32 1.0, %v1884
  %v1886 = vmul.f32 %v1883, %v1885
  %v1887 = vadd.f32 %v1883, %v1886
  %vm1888 = vweird.f32 %v1713
  %vm1889 = vweird.f32 %v1883
  %vm1890 = vmor %vm1888, %vm1889
  %v1891 = vsel %vm1890, %v1883, %v1887
  %v1892 = vand.u32 2147483647, %v1713
  %vm1893 = vcmp.eq.f32.partialorder %v1892, 8.507059e+37
  %v1894 = vand.u32 %v1713, 2147483648
  %v1895 = vor.u32 1.1754944e-38, %v1894
  %v1896 = vsel %vm1893, %v1895, %v1891
  %v1897 = vmul.f32 %v1681, %v1896
  %v1898 = vrcp.pop %v1714
  %v1899 = vmul.f32 %v1714, %v1898
  %v1900 = vsub.f32 1.0, %v1899
  %v1901 = vmul.f32 %v1898, %v1900
  %v1902 = vadd.f32 %v1898, %v1901
  %vm1903 = vweird.f32 %v1714
  %vm1904 = vweird.f32 %v1898
  %vm1905 = vmor %vm1903, %vm1904
  %v1906 = vsel %vm1905, %v1898, %v1902
  %v1907 = vand.u32 2147483647, %v1714
  %vm1908 = vcmp.eq.f32.partialorder %v1907, 8.507059e+37
  %v1909 = vand.u32 %v1714, 2147483648
  %v1910 = vor.u32 1.1754944e-38, %v1909
  %v1911 = vsel %vm1908, %v1910, %v1906
  %v1912 = vmul.f32 %v1682, %v1911
  %v1913 = vrcp.pop %v1715
  %v1914 = vmul.f32 %v1715, %v1913
  %v1915 = vsub.f32 1.0, %v1914
  %v1916 = vmul.f32 %v1913, %v1915
  %v1917 = vadd.f32 %v1913, %v1916
  %vm1918 = vweird.f32 %v1715
  %vm1919 = vweird.f32 %v1913
  %vm1920 = vmor %vm1918, %vm1919
  %v1921 = vsel %vm1920, %v1913, %v1917
  %v1922 = vand.u32 2147483647, %v1715
  %vm1923 = vcmp.eq.f32.partialorder %v1922, 8.507059e+37
  %v1924 = vand.u32 %v1715, 2147483648
  %v1925 = vor.u32 1.1754944e-38, %v1924
  %v1926 = vsel %vm1923, %v1925, %v1921
  %v1927 = vmul.f32 %v1683, %v1926
  %v1928 = vrcp.pop %v1716
  %v1929 = vmul.f32 %v1716, %v1928
  %v1930 = vsub.f32 1.0, %v1929
  %v1931 = vmul.f32 %v1928, %v1930
  %v1932 = vadd.f32 %v1928, %v1931
  %vm1933 = vweird.f32 %v1716
  %vm1934 = vweird.f32 %v1928
  %vm1935 = vmor %vm1933, %vm1934
  %v1936 = vsel %vm1935, %v1928, %v1932
  %v1937 = vand.u32 2147483647, %v1716
  %vm1938 = vcmp.eq.f32.partialorder %v1937, 8.507059e+37
  %v1939 = vand.u32 %v1716, 2147483648
  %v1940 = vor.u32 1.1754944e-38, %v1939
  %v1941 = vsel %vm1938, %v1940, %v1936
  %v1942 = vmul.f32 %v1684, %v1941
  %v1943 = vrcp.pop %v1717
  %v1944 = vmul.f32 %v1717, %v1943
  %v1945 = vsub.f32 1.0, %v1944
  %v1946 = vmul.f32 %v1943, %v1945
  %v1947 = vadd.f32 %v1943, %v1946
  %vm1948 = vweird.f32 %v1717
  %vm1949 = vweird.f32 %v1943
  %vm1950 = vmor %vm1948, %vm1949
  %v1951 = vsel %vm1950, %v1943, %v1947
  %v1952 = vand.u32 2147483647, %v1717
  %vm1953 = vcmp.eq.f32.partialorder %v1952, 8.507059e+37
  %v1954 = vand.u32 %v1717, 2147483648
  %v1955 = vor.u32 1.1754944e-38, %v1954
  %v1956 = vsel %vm1953, %v1955, %v1951
  %v1957 = vmul.f32 %v1685, %v1956
  %v1958 = vmul.f32 %v1564, %v1564
  %v1959 = vmul.f32 %v1579, %v1579
  %v1960 = vmul.f32 %v1594, %v1594
  %v1961 = vmul.f32 %v1609, %v1609
  %v1962 = vmul.f32 %v1624, %v1624
  %v1963 = vmul.f32 %v1639, %v1639
  %v1964 = vmul.f32 %v1654, %v1654
  %v1965 = vmul.f32 %v1669, %v1669
  %v1966 = vsel %vm67, %v1958, 0.0
  %1967 = vadd.xlane.f32.xlu0 %v1966
  %v1968 = vpop.xlane.xlu0 %1967
  %v1969 = vsel %vm67, %v1959, 0.0
  %1970 = vadd.xlane.f32.xlu0 %v1969
  %v1971 = vpop.xlane.xlu0 %1970
  %v1972 = vsel %vm67, %v1960, 0.0
  %1973 = vadd.xlane.f32.xlu0 %v1972
  %v1974 = vpop.xlane.xlu0 %1973
  %v1975 = vsel %vm67, %v1961, 0.0
  %1976 = vadd.xlane.f32.xlu0 %v1975
  %v1977 = vpop.xlane.xlu0 %1976
  %v1978 = vsel %vm67, %v1962, 0.0
  %1979 = vadd.xlane.f32.xlu0 %v1978
  %v1980 = vpop.xlane.xlu0 %1979
  %v1981 = vsel %vm67, %v1963, 0.0
  %1982 = vadd.xlane.f32.xlu0 %v1981
  %v1983 = vpop.xlane.xlu0 %1982
  %v1984 = vsel %vm67, %v1964, 0.0
  %1985 = vadd.xlane.f32.xlu0 %v1984
  %v1986 = vpop.xlane.xlu0 %1985
  %v1987 = vsel %vm67, %v1965, 0.0
  %1988 = vadd.xlane.f32.xlu0 %v1987
  %v1989 = vpop.xlane.xlu0 %1988
  %v1990 = vmul.f32 %v1968, 0.01
  %v1991 = vmul.f32 %v1971, 0.01
  %v1992 = vmul.f32 %v1974, 0.01
  %v1993 = vmul.f32 %v1977, 0.01
  %v1994 = vmul.f32 %v1980, 0.01
  %v1995 = vmul.f32 %v1983, 0.01
  %v1996 = vmul.f32 %v1986, 0.01
  %v1997 = vmul.f32 %v1989, 0.01
  %v1998 = vsub.f32 1.0, %v1990
  %v1999 = vsub.f32 1.0, %v1991
  %v2000 = vsub.f32 1.0, %v1992
  %v2001 = vsub.f32 1.0, %v1993
  %v2002 = vsub.f32 1.0, %v1994
  %v2003 = vsub.f32 1.0, %v1995
  %v2004 = vsub.f32 1.0, %v1996
  %v2005 = vsub.f32 1.0, %v1997
  %v2006 = vrsqrt.pop %v1998
  %v2007 = vmul.f32 %v2006, %v1998
  %v2008 = vmul.f32 %v2007, %v2006
  %v2009 = vmul.f32 0.5, %v2008
  %v2010 = vsub.f32 1.5, %v2009
  %v2011 = vmul.f32 %v2006, %v2010
  %vm2012 = vweird.f32 %v1998
  %vm2013 = vweird.f32 %v2006
  %vm2014 = vmor %vm2012, %vm2013
  %v2015 = vsel %vm2014, %v2006, %v2011
  %v2016 = vrsqrt.pop %v1999
  %v2017 = vmul.f32 %v2016, %v1999
  %v2018 = vmul.f32 %v2017, %v2016
  %v2019 = vmul.f32 0.5, %v2018
  %v2020 = vsub.f32 1.5, %v2019
  %v2021 = vmul.f32 %v2016, %v2020
  %vm2022 = vweird.f32 %v1999
  %vm2023 = vweird.f32 %v2016
  %vm2024 = vmor %vm2022, %vm2023
  %v2025 = vsel %vm2024, %v2016, %v2021
  %v2026 = vrsqrt.pop %v2000
  %v2027 = vmul.f32 %v2026, %v2000
  %v2028 = vmul.f32 %v2027, %v2026
  %v2029 = vmul.f32 0.5, %v2028
  %v2030 = vsub.f32 1.5, %v2029
  %v2031 = vmul.f32 %v2026, %v2030
  %vm2032 = vweird.f32 %v2000
  %vm2033 = vweird.f32 %v2026
  %vm2034 = vmor %vm2032, %vm2033
  %v2035 = vsel %vm2034, %v2026, %v2031
  %v2036 = vrsqrt.pop %v2001
  %v2037 = vmul.f32 %v2036, %v2001
  %v2038 = vmul.f32 %v2037, %v2036
  %v2039 = vmul.f32 0.5, %v2038
  %v2040 = vsub.f32 1.5, %v2039
  %v2041 = vmul.f32 %v2036, %v2040
  %vm2042 = vweird.f32 %v2001
  %vm2043 = vweird.f32 %v2036
  %vm2044 = vmor %vm2042, %vm2043
  %v2045 = vsel %vm2044, %v2036, %v2041
  %v2046 = vrsqrt.pop %v2002
  %v2047 = vmul.f32 %v2046, %v2002
  %v2048 = vmul.f32 %v2047, %v2046
  %v2049 = vmul.f32 0.5, %v2048
  %v2050 = vsub.f32 1.5, %v2049
  %v2051 = vmul.f32 %v2046, %v2050
  %vm2052 = vweird.f32 %v2002
  %vm2053 = vweird.f32 %v2046
  %vm2054 = vmor %vm2052, %vm2053
  %v2055 = vsel %vm2054, %v2046, %v2051
  %v2056 = vrsqrt.pop %v2003
  %v2057 = vmul.f32 %v2056, %v2003
  %v2058 = vmul.f32 %v2057, %v2056
  %v2059 = vmul.f32 0.5, %v2058
  %v2060 = vsub.f32 1.5, %v2059
  %v2061 = vmul.f32 %v2056, %v2060
  %vm2062 = vweird.f32 %v2003
  %vm2063 = vweird.f32 %v2056
  %vm2064 = vmor %vm2062, %vm2063
  %v2065 = vsel %vm2064, %v2056, %v2061
  %v2066 = vrsqrt.pop %v2004
  %v2067 = vmul.f32 %v2066, %v2004
  %v2068 = vmul.f32 %v2067, %v2066
  %v2069 = vmul.f32 0.5, %v2068
  %v2070 = vsub.f32 1.5, %v2069
  %v2071 = vmul.f32 %v2066, %v2070
  %vm2072 = vweird.f32 %v2004
  %vm2073 = vweird.f32 %v2066
  %vm2074 = vmor %vm2072, %vm2073
  %v2075 = vsel %vm2074, %v2066, %v2071
  %v2076 = vrsqrt.pop %v2005
  %v2077 = vmul.f32 %v2076, %v2005
  %v2078 = vmul.f32 %v2077, %v2076
  %v2079 = vmul.f32 0.5, %v2078
  %v2080 = vsub.f32 1.5, %v2079
  %v2081 = vmul.f32 %v2076, %v2080
  %vm2082 = vweird.f32 %v2005
  %vm2083 = vweird.f32 %v2076
  %vm2084 = vmor %vm2082, %vm2083
  %v2085 = vsel %vm2084, %v2076, %v2081
  %v2086 = vmul.f32 %v1732, %v1732
  %v2087 = vmul.f32 %v1747, %v1747
  %v2088 = vmul.f32 %v1762, %v1762
  %v2089 = vmul.f32 %v1777, %v1777
  %v2090 = vmul.f32 %v1792, %v1792
  %v2091 = vmul.f32 %v1807, %v1807
  %v2092 = vmul.f32 %v1822, %v1822
  %v2093 = vmul.f32 %v1837, %v1837
  %v2094 = vmul.f32 %v1852, %v1852
  %v2095 = vmul.f32 %v1867, %v1867
  %v2096 = vmul.f32 %v1882, %v1882
  %v2097 = vmul.f32 %v1897, %v1897
  %v2098 = vmul.f32 %v1912, %v1912
  %v2099 = vmul.f32 %v1927, %v1927
  %v2100 = vmul.f32 %v1942, %v1942
  %v2101 = vmul.f32 %v1957, %v1957
  %v2102 = vsel %vm532, %v2086, 0.0
  %2103 = vadd.xlane.f32.xlu0 %v2102
  %v2104 = vpop.xlane.xlu0 %2103
  %v2105 = vsel %vm536, %v2087, 0.0
  %2106 = vadd.xlane.f32.xlu0 %v2105
  %v2107 = vpop.xlane.xlu0 %2106
  %v2108 = vsel %vm532, %v2088, 0.0
  %2109 = vadd.xlane.f32.xlu0 %v2108
  %v2110 = vpop.xlane.xlu0 %2109
  %v2111 = vsel %vm536, %v2089, 0.0
  %2112 = vadd.xlane.f32.xlu0 %v2111
  %v2113 = vpop.xlane.xlu0 %2112
  %v2114 = vsel %vm532, %v2090, 0.0
  %2115 = vadd.xlane.f32.xlu0 %v2114
  %v2116 = vpop.xlane.xlu0 %2115
  %v2117 = vsel %vm536, %v2091, 0.0
  %2118 = vadd.xlane.f32.xlu0 %v2117
  %v2119 = vpop.xlane.xlu0 %2118
  %v2120 = vsel %vm532, %v2092, 0.0
  %2121 = vadd.xlane.f32.xlu0 %v2120
  %v2122 = vpop.xlane.xlu0 %2121
  %v2123 = vsel %vm536, %v2093, 0.0
  %2124 = vadd.xlane.f32.xlu0 %v2123
  %v2125 = vpop.xlane.xlu0 %2124
  %v2126 = vsel %vm532, %v2094, 0.0
  %2127 = vadd.xlane.f32.xlu0 %v2126
  %v2128 = vpop.xlane.xlu0 %2127
  %v2129 = vsel %vm536, %v2095, 0.0
  %2130 = vadd.xlane.f32.xlu0 %v2129
  %v2131 = vpop.xlane.xlu0 %2130
  %v2132 = vsel %vm532, %v2096, 0.0
  %2133 = vadd.xlane.f32.xlu0 %v2132
  %v2134 = vpop.xlane.xlu0 %2133
  %v2135 = vsel %vm536, %v2097, 0.0
  %2136 = vadd.xlane.f32.xlu0 %v2135
  %v2137 = vpop.xlane.xlu0 %2136
  %v2138 = vsel %vm532, %v2098, 0.0
  %2139 = vadd.xlane.f32.xlu0 %v2138
  %v2140 = vpop.xlane.xlu0 %2139
  %v2141 = vsel %vm536, %v2099, 0.0
  %2142 = vadd.xlane.f32.xlu0 %v2141
  %v2143 = vpop.xlane.xlu0 %2142
  %v2144 = vsel %vm532, %v2100, 0.0
  %2145 = vadd.xlane.f32.xlu0 %v2144
  %v2146 = vpop.xlane.xlu0 %2145
  %v2147 = vsel %vm536, %v2101, 0.0
  %2148 = vadd.xlane.f32.xlu0 %v2147
  %v2149 = vpop.xlane.xlu0 %2148
  %v2150 = vmul.f32 %v2104, 0.01
  %v2151 = vmul.f32 %v2107, 0.01
  %v2152 = vmul.f32 %v2110, 0.01
  %v2153 = vmul.f32 %v2113, 0.01
  %v2154 = vmul.f32 %v2116, 0.01
  %v2155 = vmul.f32 %v2119, 0.01
  %v2156 = vmul.f32 %v2122, 0.01
  %v2157 = vmul.f32 %v2125, 0.01
  %v2158 = vmul.f32 %v2128, 0.01
  %v2159 = vmul.f32 %v2131, 0.01
  %v2160 = vmul.f32 %v2134, 0.01
  %v2161 = vmul.f32 %v2137, 0.01
  %v2162 = vmul.f32 %v2140, 0.01
  %v2163 = vmul.f32 %v2143, 0.01
  %v2164 = vmul.f32 %v2146, 0.01
  %v2165 = vmul.f32 %v2149, 0.01
  %v2166 = vsub.f32 1.0, %v2150
  %v2167 = vsub.f32 1.0, %v2151
  %v2168 = vsub.f32 1.0, %v2152
  %v2169 = vsub.f32 1.0, %v2153
  %v2170 = vsub.f32 1.0, %v2154
  %v2171 = vsub.f32 1.0, %v2155
  %v2172 = vsub.f32 1.0, %v2156
  %v2173 = vsub.f32 1.0, %v2157
  %v2174 = vsub.f32 1.0, %v2158
  %v2175 = vsub.f32 1.0, %v2159
  %v2176 = vsub.f32 1.0, %v2160
  %v2177 = vsub.f32 1.0, %v2161
  %v2178 = vsub.f32 1.0, %v2162
  %v2179 = vsub.f32 1.0, %v2163
  %v2180 = vsub.f32 1.0, %v2164
  %v2181 = vsub.f32 1.0, %v2165
  %v2182 = vrsqrt.pop %v2166
  %v2183 = vmul.f32 %v2182, %v2166
  %v2184 = vmul.f32 %v2183, %v2182
  %v2185 = vmul.f32 0.5, %v2184
  %v2186 = vsub.f32 1.5, %v2185
  %v2187 = vmul.f32 %v2182, %v2186
  %vm2188 = vweird.f32 %v2166
  %vm2189 = vweird.f32 %v2182
  %vm2190 = vmor %vm2188, %vm2189
  %v2191 = vsel %vm2190, %v2182, %v2187
  %v2192 = vrsqrt.pop %v2167
  %v2193 = vmul.f32 %v2192, %v2167
  %v2194 = vmul.f32 %v2193, %v2192
  %v2195 = vmul.f32 0.5, %v2194
  %v2196 = vsub.f32 1.5, %v2195
  %v2197 = vmul.f32 %v2192, %v2196
  %vm2198 = vweird.f32 %v2167
  %vm2199 = vweird.f32 %v2192
  %vm2200 = vmor %vm2198, %vm2199
  %v2201 = vsel %vm2200, %v2192, %v2197
  %v2202 = vrsqrt.pop %v2168
  %v2203 = vmul.f32 %v2202, %v2168
  %v2204 = vmul.f32 %v2203, %v2202
  %v2205 = vmul.f32 0.5, %v2204
  %v2206 = vsub.f32 1.5, %v2205
  %v2207 = vmul.f32 %v2202, %v2206
  %vm2208 = vweird.f32 %v2168
  %vm2209 = vweird.f32 %v2202
  %vm2210 = vmor %vm2208, %vm2209
  %v2211 = vsel %vm2210, %v2202, %v2207
  %v2212 = vrsqrt.pop %v2169
  %v2213 = vmul.f32 %v2212, %v2169
  %v2214 = vmul.f32 %v2213, %v2212
  %v2215 = vmul.f32 0.5, %v2214
  %v2216 = vsub.f32 1.5, %v2215
  %v2217 = vmul.f32 %v2212, %v2216
  %vm2218 = vweird.f32 %v2169
  %vm2219 = vweird.f32 %v2212
  %vm2220 = vmor %vm2218, %vm2219
  %v2221 = vsel %vm2220, %v2212, %v2217
  %v2222 = vrsqrt.pop %v2170
  %v2223 = vmul.f32 %v2222, %v2170
  %v2224 = vmul.f32 %v2223, %v2222
  %v2225 = vmul.f32 0.5, %v2224
  %v2226 = vsub.f32 1.5, %v2225
  %v2227 = vmul.f32 %v2222, %v2226
  %vm2228 = vweird.f32 %v2170
  %vm2229 = vweird.f32 %v2222
  %vm2230 = vmor %vm2228, %vm2229
  %v2231 = vsel %vm2230, %v2222, %v2227
  %v2232 = vrsqrt.pop %v2171
  %v2233 = vmul.f32 %v2232, %v2171
  %v2234 = vmul.f32 %v2233, %v2232
  %v2235 = vmul.f32 0.5, %v2234
  %v2236 = vsub.f32 1.5, %v2235
  %v2237 = vmul.f32 %v2232, %v2236
  %vm2238 = vweird.f32 %v2171
  %vm2239 = vweird.f32 %v2232
  %vm2240 = vmor %vm2238, %vm2239
  %v2241 = vsel %vm2240, %v2232, %v2237
  %v2242 = vrsqrt.pop %v2172
  %v2243 = vmul.f32 %v2242, %v2172
  %v2244 = vmul.f32 %v2243, %v2242
  %v2245 = vmul.f32 0.5, %v2244
  %v2246 = vsub.f32 1.5, %v2245
  %v2247 = vmul.f32 %v2242, %v2246
  %vm2248 = vweird.f32 %v2172
  %vm2249 = vweird.f32 %v2242
  %vm2250 = vmor %vm2248, %vm2249
  %v2251 = vsel %vm2250, %v2242, %v2247
  %v2252 = vrsqrt.pop %v2173
  %v2253 = vmul.f32 %v2252, %v2173
  %v2254 = vmul.f32 %v2253, %v2252
  %v2255 = vmul.f32 0.5, %v2254
  %v2256 = vsub.f32 1.5, %v2255
  %v2257 = vmul.f32 %v2252, %v2256
  %vm2258 = vweird.f32 %v2173
  %vm2259 = vweird.f32 %v2252
  %vm2260 = vmor %vm2258, %vm2259
  %v2261 = vsel %vm2260, %v2252, %v2257
  %v2262 = vrsqrt.pop %v2174
  %v2263 = vmul.f32 %v2262, %v2174
  %v2264 = vmul.f32 %v2263, %v2262
  %v2265 = vmul.f32 0.5, %v2264
  %v2266 = vsub.f32 1.5, %v2265
  %v2267 = vmul.f32 %v2262, %v2266
  %vm2268 = vweird.f32 %v2174
  %vm2269 = vweird.f32 %v2262
  %vm2270 = vmor %vm2268, %vm2269
  %v2271 = vsel %vm2270, %v2262, %v2267
  %v2272 = vrsqrt.pop %v2175
  %v2273 = vmul.f32 %v2272, %v2175
  %v2274 = vmul.f32 %v2273, %v2272
  %v2275 = vmul.f32 0.5, %v2274
  %v2276 = vsub.f32 1.5, %v2275
  %v2277 = vmul.f32 %v2272, %v2276
  %vm2278 = vweird.f32 %v2175
  %vm2279 = vweird.f32 %v2272
  %vm2280 = vmor %vm2278, %vm2279
  %v2281 = vsel %vm2280, %v2272, %v2277
  %v2282 = vrsqrt.pop %v2176
  %v2283 = vmul.f32 %v2282, %v2176
  %v2284 = vmul.f32 %v2283, %v2282
  %v2285 = vmul.f32 0.5, %v2284
  %v2286 = vsub.f32 1.5, %v2285
  %v2287 = vmul.f32 %v2282, %v2286
  %vm2288 = vweird.f32 %v2176
  %vm2289 = vweird.f32 %v2282
  %vm2290 = vmor %vm2288, %vm2289
  %v2291 = vsel %vm2290, %v2282, %v2287
  %v2292 = vrsqrt.pop %v2177
  %v2293 = vmul.f32 %v2292, %v2177
  %v2294 = vmul.f32 %v2293, %v2292
  %v2295 = vmul.f32 0.5, %v2294
  %v2296 = vsub.f32 1.5, %v2295
  %v2297 = vmul.f32 %v2292, %v2296
  %vm2298 = vweird.f32 %v2177
  %vm2299 = vweird.f32 %v2292
  %vm2300 = vmor %vm2298, %vm2299
  %v2301 = vsel %vm2300, %v2292, %v2297
  %v2302 = vrsqrt.pop %v2178
  %v2303 = vmul.f32 %v2302, %v2178
  %v2304 = vmul.f32 %v2303, %v2302
  %v2305 = vmul.f32 0.5, %v2304
  %v2306 = vsub.f32 1.5, %v2305
  %v2307 = vmul.f32 %v2302, %v2306
  %vm2308 = vweird.f32 %v2178
  %vm2309 = vweird.f32 %v2302
  %vm2310 = vmor %vm2308, %vm2309
  %v2311 = vsel %vm2310, %v2302, %v2307
  %v2312 = vrsqrt.pop %v2179
  %v2313 = vmul.f32 %v2312, %v2179
  %v2314 = vmul.f32 %v2313, %v2312
  %v2315 = vmul.f32 0.5, %v2314
  %v2316 = vsub.f32 1.5, %v2315
  %v2317 = vmul.f32 %v2312, %v2316
  %vm2318 = vweird.f32 %v2179
  %vm2319 = vweird.f32 %v2312
  %vm2320 = vmor %vm2318, %vm2319
  %v2321 = vsel %vm2320, %v2312, %v2317
  %v2322 = vrsqrt.pop %v2180
  %v2323 = vmul.f32 %v2322, %v2180
  %v2324 = vmul.f32 %v2323, %v2322
  %v2325 = vmul.f32 0.5, %v2324
  %v2326 = vsub.f32 1.5, %v2325
  %v2327 = vmul.f32 %v2322, %v2326
  %vm2328 = vweird.f32 %v2180
  %vm2329 = vweird.f32 %v2322
  %vm2330 = vmor %vm2328, %vm2329
  %v2331 = vsel %vm2330, %v2322, %v2327
  %v2332 = vrsqrt.pop %v2181
  %v2333 = vmul.f32 %v2332, %v2181
  %v2334 = vmul.f32 %v2333, %v2332
  %v2335 = vmul.f32 0.5, %v2334
  %v2336 = vsub.f32 1.5, %v2335
  %v2337 = vmul.f32 %v2332, %v2336
  %vm2338 = vweird.f32 %v2181
  %vm2339 = vweird.f32 %v2332
  %vm2340 = vmor %vm2338, %vm2339
  %v2341 = vsel %vm2340, %v2332, %v2337
  %v2342 = vmul.f32 %v2191, %v1732
  %v2343 = vmul.f32 %v2201, %v1747
  %v2344 = vmul.f32 %v2211, %v1762
  %v2345 = vmul.f32 %v2221, %v1777
  %v2346 = vmul.f32 %v2231, %v1792
  %v2347 = vmul.f32 %v2241, %v1807
  %v2348 = vmul.f32 %v2251, %v1822
  %v2349 = vmul.f32 %v2261, %v1837
  %v2350 = vmul.f32 %v2271, %v1852
  %v2351 = vmul.f32 %v2281, %v1867
  %v2352 = vmul.f32 %v2291, %v1882
  %v2353 = vmul.f32 %v2301, %v1897
  %v2354 = vmul.f32 %v2311, %v1912
  %v2355 = vmul.f32 %v2321, %v1927
  %v2356 = vmul.f32 %v2331, %v1942
  %v2357 = vmul.f32 %v2341, %v1957
  %v2358 = vmul.f32 %v2015, %v1564
  %v2359 = vmul.f32 %v2025, %v1579
  %v2360 = vmul.f32 %v2035, %v1594
  %v2361 = vmul.f32 %v2045, %v1609
  %v2362 = vmul.f32 %v2055, %v1624
  %v2363 = vmul.f32 %v2065, %v1639
  %v2364 = vmul.f32 %v2075, %v1654
  %v2365 = vmul.f32 %v2085, %v1669
  %v2366 = vadd.f32 %v2358, 0.0
  %v2367 = vadd.f32 %v2359, 0.0
  %v2368 = vadd.f32 %v2360, 0.0
  %v2369 = vadd.f32 %v2361, 0.0
  %v2370 = vadd.f32 %v2362, 0.0
  %v2371 = vadd.f32 %v2363, 0.0
  %v2372 = vadd.f32 %v2364, 0.0
  %v2373 = vadd.f32 %v2365, 0.0
  %v2374 = vadd.f32 %v2015, 0.0
  %v2375 = vadd.f32 %v2025, 0.0
  %v2376 = vadd.f32 %v2035, 0.0
  %v2377 = vadd.f32 %v2045, 0.0
  %v2378 = vadd.f32 %v2055, 0.0
  %v2379 = vadd.f32 %v2065, 0.0
  %v2380 = vadd.f32 %v2075, 0.0
  %v2381 = vadd.f32 %v2085, 0.0
  %v2382 = vrcp.pop %v2374
  %v2383 = vmul.f32 %v2374, %v2382
  %v2384 = vsub.f32 1.0, %v2383
  %v2385 = vmul.f32 %v2382, %v2384
  %v2386 = vadd.f32 %v2382, %v2385
  %vm2387 = vweird.f32 %v2374
  %vm2388 = vweird.f32 %v2382
  %vm2389 = vmor %vm2387, %vm2388
  %v2390 = vsel %vm2389, %v2382, %v2386
  %v2391 = vand.u32 2147483647, %v2374
  %vm2392 = vcmp.eq.f32.partialorder %v2391, 8.507059e+37
  %v2393 = vand.u32 %v2374, 2147483648
  %v2394 = vor.u32 1.1754944e-38, %v2393
  %v2395 = vsel %vm2392, %v2394, %v2390
  %v2396 = vmul.f32 %v2366, %v2395
  %v2397 = vrcp.pop %v2375
  %v2398 = vmul.f32 %v2375, %v2397
  %v2399 = vsub.f32 1.0, %v2398
  %v2400 = vmul.f32 %v2397, %v2399
  %v2401 = vadd.f32 %v2397, %v2400
  %vm2402 = vweird.f32 %v2375
  %vm2403 = vweird.f32 %v2397
  %vm2404 = vmor %vm2402, %vm2403
  %v2405 = vsel %vm2404, %v2397, %v2401
  %v2406 = vand.u32 2147483647, %v2375
  %vm2407 = vcmp.eq.f32.partialorder %v2406, 8.507059e+37
  %v2408 = vand.u32 %v2375, 2147483648
  %v2409 = vor.u32 1.1754944e-38, %v2408
  %v2410 = vsel %vm2407, %v2409, %v2405
  %v2411 = vmul.f32 %v2367, %v2410
  %v2412 = vrcp.pop %v2376
  %v2413 = vmul.f32 %v2376, %v2412
  %v2414 = vsub.f32 1.0, %v2413
  %v2415 = vmul.f32 %v2412, %v2414
  %v2416 = vadd.f32 %v2412, %v2415
  %vm2417 = vweird.f32 %v2376
  %vm2418 = vweird.f32 %v2412
  %vm2419 = vmor %vm2417, %vm2418
  %v2420 = vsel %vm2419, %v2412, %v2416
  %v2421 = vand.u32 2147483647, %v2376
  %vm2422 = vcmp.eq.f32.partialorder %v2421, 8.507059e+37
  %v2423 = vand.u32 %v2376, 2147483648
  %v2424 = vor.u32 1.1754944e-38, %v2423
  %v2425 = vsel %vm2422, %v2424, %v2420
  %v2426 = vmul.f32 %v2368, %v2425
  %v2427 = vrcp.pop %v2377
  %v2428 = vmul.f32 %v2377, %v2427
  %v2429 = vsub.f32 1.0, %v2428
  %v2430 = vmul.f32 %v2427, %v2429
  %v2431 = vadd.f32 %v2427, %v2430
  %vm2432 = vweird.f32 %v2377
  %vm2433 = vweird.f32 %v2427
  %vm2434 = vmor %vm2432, %vm2433
  %v2435 = vsel %vm2434, %v2427, %v2431
  %v2436 = vand.u32 2147483647, %v2377
  %vm2437 = vcmp.eq.f32.partialorder %v2436, 8.507059e+37
  %v2438 = vand.u32 %v2377, 2147483648
  %v2439 = vor.u32 1.1754944e-38, %v2438
  %v2440 = vsel %vm2437, %v2439, %v2435
  %v2441 = vmul.f32 %v2369, %v2440
  %v2442 = vrcp.pop %v2378
  %v2443 = vmul.f32 %v2378, %v2442
  %v2444 = vsub.f32 1.0, %v2443
  %v2445 = vmul.f32 %v2442, %v2444
  %v2446 = vadd.f32 %v2442, %v2445
  %vm2447 = vweird.f32 %v2378
  %vm2448 = vweird.f32 %v2442
  %vm2449 = vmor %vm2447, %vm2448
  %v2450 = vsel %vm2449, %v2442, %v2446
  %v2451 = vand.u32 2147483647, %v2378
  %vm2452 = vcmp.eq.f32.partialorder %v2451, 8.507059e+37
  %v2453 = vand.u32 %v2378, 2147483648
  %v2454 = vor.u32 1.1754944e-38, %v2453
  %v2455 = vsel %vm2452, %v2454, %v2450
  %v2456 = vmul.f32 %v2370, %v2455
  %v2457 = vrcp.pop %v2379
  %v2458 = vmul.f32 %v2379, %v2457
  %v2459 = vsub.f32 1.0, %v2458
  %v2460 = vmul.f32 %v2457, %v2459
  %v2461 = vadd.f32 %v2457, %v2460
  %vm2462 = vweird.f32 %v2379
  %vm2463 = vweird.f32 %v2457
  %vm2464 = vmor %vm2462, %vm2463
  %v2465 = vsel %vm2464, %v2457, %v2461
  %v2466 = vand.u32 2147483647, %v2379
  %vm2467 = vcmp.eq.f32.partialorder %v2466, 8.507059e+37
  %v2468 = vand.u32 %v2379, 2147483648
  %v2469 = vor.u32 1.1754944e-38, %v2468
  %v2470 = vsel %vm2467, %v2469, %v2465
  %v2471 = vmul.f32 %v2371, %v2470
  %v2472 = vrcp.pop %v2380
  %v2473 = vmul.f32 %v2380, %v2472
  %v2474 = vsub.f32 1.0, %v2473
  %v2475 = vmul.f32 %v2472, %v2474
  %v2476 = vadd.f32 %v2472, %v2475
  %vm2477 = vweird.f32 %v2380
  %vm2478 = vweird.f32 %v2472
  %vm2479 = vmor %vm2477, %vm2478
  %v2480 = vsel %vm2479, %v2472, %v2476
  %v2481 = vand.u32 2147483647, %v2380
  %vm2482 = vcmp.eq.f32.partialorder %v2481, 8.507059e+37
  %v2483 = vand.u32 %v2380, 2147483648
  %v2484 = vor.u32 1.1754944e-38, %v2483
  %v2485 = vsel %vm2482, %v2484, %v2480
  %v2486 = vmul.f32 %v2372, %v2485
  %v2487 = vrcp.pop %v2381
  %v2488 = vmul.f32 %v2381, %v2487
  %v2489 = vsub.f32 1.0, %v2488
  %v2490 = vmul.f32 %v2487, %v2489
  %v2491 = vadd.f32 %v2487, %v2490
  %vm2492 = vweird.f32 %v2381
  %vm2493 = vweird.f32 %v2487
  %vm2494 = vmor %vm2492, %vm2493
  %v2495 = vsel %vm2494, %v2487, %v2491
  %v2496 = vand.u32 2147483647, %v2381
  %vm2497 = vcmp.eq.f32.partialorder %v2496, 8.507059e+37
  %v2498 = vand.u32 %v2381, 2147483648
  %v2499 = vor.u32 1.1754944e-38, %v2498
  %v2500 = vsel %vm2497, %v2499, %v2495
  %v2501 = vmul.f32 %v2373, %v2500
  %v2502 = vmul.f32 %v2396, %v2396
  %v2503 = vmul.f32 %v2411, %v2411
  %v2504 = vmul.f32 %v2426, %v2426
  %v2505 = vmul.f32 %v2441, %v2441
  %v2506 = vmul.f32 %v2456, %v2456
  %v2507 = vmul.f32 %v2471, %v2471
  %v2508 = vmul.f32 %v2486, %v2486
  %v2509 = vmul.f32 %v2501, %v2501
  %vm2510 = vcmask 516096
  %v2511 = vsel %vm2510, %v2502, 0.0
  %2512 = vadd.xlane.f32.xlu0 %v2511
  %v2513 = vpop.xlane.xlu0 %2512
  %v2514 = vsel %vm2510, %v2503, 0.0
  %2515 = vadd.xlane.f32.xlu0 %v2514
  %v2516 = vpop.xlane.xlu0 %2515
  %v2517 = vsel %vm2510, %v2504, 0.0
  %2518 = vadd.xlane.f32.xlu0 %v2517
  %v2519 = vpop.xlane.xlu0 %2518
  %v2520 = vsel %vm2510, %v2505, 0.0
  %2521 = vadd.xlane.f32.xlu0 %v2520
  %v2522 = vpop.xlane.xlu0 %2521
  %v2523 = vsel %vm2510, %v2506, 0.0
  %2524 = vadd.xlane.f32.xlu0 %v2523
  %v2525 = vpop.xlane.xlu0 %2524
  %v2526 = vsel %vm2510, %v2507, 0.0
  %2527 = vadd.xlane.f32.xlu0 %v2526
  %v2528 = vpop.xlane.xlu0 %2527
  %v2529 = vsel %vm2510, %v2508, 0.0
  %2530 = vadd.xlane.f32.xlu0 %v2529
  %v2531 = vpop.xlane.xlu0 %2530
  %v2532 = vsel %vm2510, %v2509, 0.0
  %2533 = vadd.xlane.f32.xlu0 %v2532
  %v2534 = vpop.xlane.xlu0 %2533
  %v2535 = vmul.f32 %v2513, 0.01
  %v2536 = vmul.f32 %v2516, 0.01
  %v2537 = vmul.f32 %v2519, 0.01
  %v2538 = vmul.f32 %v2522, 0.01
  %v2539 = vmul.f32 %v2525, 0.01
  %v2540 = vmul.f32 %v2528, 0.01
  %v2541 = vmul.f32 %v2531, 0.01
  %v2542 = vmul.f32 %v2534, 0.01
  %v2543 = vsub.f32 1.0, %v2535
  %v2544 = vsub.f32 1.0, %v2536
  %v2545 = vsub.f32 1.0, %v2537
  %v2546 = vsub.f32 1.0, %v2538
  %v2547 = vsub.f32 1.0, %v2539
  %v2548 = vsub.f32 1.0, %v2540
  %v2549 = vsub.f32 1.0, %v2541
  %v2550 = vsub.f32 1.0, %v2542
  %v2551 = vrsqrt.pop %v2543
  %v2552 = vmul.f32 %v2551, %v2543
  %v2553 = vmul.f32 %v2552, %v2551
  %v2554 = vmul.f32 0.5, %v2553
  %v2555 = vsub.f32 1.5, %v2554
  %v2556 = vmul.f32 %v2551, %v2555
  %v2557 = vmul.f32 %v2543, %v2556
  %vm2558 = vcmp.eq.f32.partialorder %v2543, inf
  %v2559 = vsel %vm2558, %v2543, %v2557
  %vm2560 = vcmp.eq.f32.partialorder %v2543, 0.0
  %v2561 = vand.u32 %v2543, 2147483648
  %v2562 = vsel %vm2560, %v2561, %v2559
  %v2563 = vrsqrt.pop %v2544
  %v2564 = vmul.f32 %v2563, %v2544
  %v2565 = vmul.f32 %v2564, %v2563
  %v2566 = vmul.f32 0.5, %v2565
  %v2567 = vsub.f32 1.5, %v2566
  %v2568 = vmul.f32 %v2563, %v2567
  %v2569 = vmul.f32 %v2544, %v2568
  %vm2570 = vcmp.eq.f32.partialorder %v2544, inf
  %v2571 = vsel %vm2570, %v2544, %v2569
  %vm2572 = vcmp.eq.f32.partialorder %v2544, 0.0
  %v2573 = vand.u32 %v2544, 2147483648
  %v2574 = vsel %vm2572, %v2573, %v2571
  %v2575 = vrsqrt.pop %v2545
  %v2576 = vmul.f32 %v2575, %v2545
  %v2577 = vmul.f32 %v2576, %v2575
  %v2578 = vmul.f32 0.5, %v2577
  %v2579 = vsub.f32 1.5, %v2578
  %v2580 = vmul.f32 %v2575, %v2579
  %v2581 = vmul.f32 %v2545, %v2580
  %vm2582 = vcmp.eq.f32.partialorder %v2545, inf
  %v2583 = vsel %vm2582, %v2545, %v2581
  %vm2584 = vcmp.eq.f32.partialorder %v2545, 0.0
  %v2585 = vand.u32 %v2545, 2147483648
  %v2586 = vsel %vm2584, %v2585, %v2583
  %v2587 = vrsqrt.pop %v2546
  %v2588 = vmul.f32 %v2587, %v2546
  %v2589 = vmul.f32 %v2588, %v2587
  %v2590 = vmul.f32 0.5, %v2589
  %v2591 = vsub.f32 1.5, %v2590
  %v2592 = vmul.f32 %v2587, %v2591
  %v2593 = vmul.f32 %v2546, %v2592
  %vm2594 = vcmp.eq.f32.partialorder %v2546, inf
  %v2595 = vsel %vm2594, %v2546, %v2593
  %vm2596 = vcmp.eq.f32.partialorder %v2546, 0.0
  %v2597 = vand.u32 %v2546, 2147483648
  %v2598 = vsel %vm2596, %v2597, %v2595
  %v2599 = vrsqrt.pop %v2547
  %v2600 = vmul.f32 %v2599, %v2547
  %v2601 = vmul.f32 %v2600, %v2599
  %v2602 = vmul.f32 0.5, %v2601
  %v2603 = vsub.f32 1.5, %v2602
  %v2604 = vmul.f32 %v2599, %v2603
  %v2605 = vmul.f32 %v2547, %v2604
  %vm2606 = vcmp.eq.f32.partialorder %v2547, inf
  %v2607 = vsel %vm2606, %v2547, %v2605
  %vm2608 = vcmp.eq.f32.partialorder %v2547, 0.0
  %v2609 = vand.u32 %v2547, 2147483648
  %v2610 = vsel %vm2608, %v2609, %v2607
  %v2611 = vrsqrt.pop %v2548
  %v2612 = vmul.f32 %v2611, %v2548
  %v2613 = vmul.f32 %v2612, %v2611
  %v2614 = vmul.f32 0.5, %v2613
  %v2615 = vsub.f32 1.5, %v2614
  %v2616 = vmul.f32 %v2611, %v2615
  %v2617 = vmul.f32 %v2548, %v2616
  %vm2618 = vcmp.eq.f32.partialorder %v2548, inf
  %v2619 = vsel %vm2618, %v2548, %v2617
  %vm2620 = vcmp.eq.f32.partialorder %v2548, 0.0
  %v2621 = vand.u32 %v2548, 2147483648
  %v2622 = vsel %vm2620, %v2621, %v2619
  %v2623 = vrsqrt.pop %v2549
  %v2624 = vmul.f32 %v2623, %v2549
  %v2625 = vmul.f32 %v2624, %v2623
  %v2626 = vmul.f32 0.5, %v2625
  %v2627 = vsub.f32 1.5, %v2626
  %v2628 = vmul.f32 %v2623, %v2627
  %v2629 = vmul.f32 %v2549, %v2628
  %vm2630 = vcmp.eq.f32.partialorder %v2549, inf
  %v2631 = vsel %vm2630, %v2549, %v2629
  %vm2632 = vcmp.eq.f32.partialorder %v2549, 0.0
  %v2633 = vand.u32 %v2549, 2147483648
  %v2634 = vsel %vm2632, %v2633, %v2631
  %v2635 = vrsqrt.pop %v2550
  %v2636 = vmul.f32 %v2635, %v2550
  %v2637 = vmul.f32 %v2636, %v2635
  %v2638 = vmul.f32 0.5, %v2637
  %v2639 = vsub.f32 1.5, %v2638
  %v2640 = vmul.f32 %v2635, %v2639
  %v2641 = vmul.f32 %v2550, %v2640
  %vm2642 = vcmp.eq.f32.partialorder %v2550, inf
  %v2643 = vsel %vm2642, %v2550, %v2641
  %vm2644 = vcmp.eq.f32.partialorder %v2550, 0.0
  %v2645 = vand.u32 %v2550, 2147483648
  %v2646 = vsel %vm2644, %v2645, %v2643
  %v2647 = vadd.f32 %v2562, 1.0
  %v2648 = vadd.f32 %v2574, 1.0
  %v2649 = vadd.f32 %v2586, 1.0
  %v2650 = vadd.f32 %v2598, 1.0
  %v2651 = vadd.f32 %v2610, 1.0
  %v2652 = vadd.f32 %v2622, 1.0
  %v2653 = vadd.f32 %v2634, 1.0
  %v2654 = vadd.f32 %v2646, 1.0
  %v2655 = vrcp.pop %v2647
  %v2656 = vmul.f32 %v2647, %v2655
  %v2657 = vsub.f32 1.0, %v2656
  %v2658 = vmul.f32 %v2655, %v2657
  %v2659 = vadd.f32 %v2655, %v2658
  %vm2660 = vweird.f32 %v2647
  %vm2661 = vweird.f32 %v2655
  %vm2662 = vmor %vm2660, %vm2661
  %v2663 = vsel %vm2662, %v2655, %v2659
  %v2664 = vand.u32 2147483647, %v2647
  %vm2665 = vcmp.eq.f32.partialorder %v2664, 8.507059e+37
  %v2666 = vand.u32 %v2647, 2147483648
  %v2667 = vor.u32 1.1754944e-38, %v2666
  %v2668 = vsel %vm2665, %v2667, %v2663
  %v2669 = vmul.f32 1.0, %v2668
  %v2670 = vrcp.pop %v2648
  %v2671 = vmul.f32 %v2648, %v2670
  %v2672 = vsub.f32 1.0, %v2671
  %v2673 = vmul.f32 %v2670, %v2672
  %v2674 = vadd.f32 %v2670, %v2673
  %vm2675 = vweird.f32 %v2648
  %vm2676 = vweird.f32 %v2670
  %vm2677 = vmor %vm2675, %vm2676
  %v2678 = vsel %vm2677, %v2670, %v2674
  %v2679 = vand.u32 2147483647, %v2648
  %vm2680 = vcmp.eq.f32.partialorder %v2679, 8.507059e+37
  %v2681 = vand.u32 %v2648, 2147483648
  %v2682 = vor.u32 1.1754944e-38, %v2681
  %v2683 = vsel %vm2680, %v2682, %v2678
  %v2684 = vmul.f32 1.0, %v2683
  %v2685 = vrcp.pop %v2649
  %v2686 = vmul.f32 %v2649, %v2685
  %v2687 = vsub.f32 1.0, %v2686
  %v2688 = vmul.f32 %v2685, %v2687
  %v2689 = vadd.f32 %v2685, %v2688
  %vm2690 = vweird.f32 %v2649
  %vm2691 = vweird.f32 %v2685
  %vm2692 = vmor %vm2690, %vm2691
  %v2693 = vsel %vm2692, %v2685, %v2689
  %v2694 = vand.u32 2147483647, %v2649
  %vm2695 = vcmp.eq.f32.partialorder %v2694, 8.507059e+37
  %v2696 = vand.u32 %v2649, 2147483648
  %v2697 = vor.u32 1.1754944e-38, %v2696
  %v2698 = vsel %vm2695, %v2697, %v2693
  %v2699 = vmul.f32 1.0, %v2698
  %v2700 = vrcp.pop %v2650
  %v2701 = vmul.f32 %v2650, %v2700
  %v2702 = vsub.f32 1.0, %v2701
  %v2703 = vmul.f32 %v2700, %v2702
  %v2704 = vadd.f32 %v2700, %v2703
  %vm2705 = vweird.f32 %v2650
  %vm2706 = vweird.f32 %v2700
  %vm2707 = vmor %vm2705, %vm2706
  %v2708 = vsel %vm2707, %v2700, %v2704
  %v2709 = vand.u32 2147483647, %v2650
  %vm2710 = vcmp.eq.f32.partialorder %v2709, 8.507059e+37
  %v2711 = vand.u32 %v2650, 2147483648
  %v2712 = vor.u32 1.1754944e-38, %v2711
  %v2713 = vsel %vm2710, %v2712, %v2708
  %v2714 = vmul.f32 1.0, %v2713
  %v2715 = vrcp.pop %v2651
  %v2716 = vmul.f32 %v2651, %v2715
  %v2717 = vsub.f32 1.0, %v2716
  %v2718 = vmul.f32 %v2715, %v2717
  %v2719 = vadd.f32 %v2715, %v2718
  %vm2720 = vweird.f32 %v2651
  %vm2721 = vweird.f32 %v2715
  %vm2722 = vmor %vm2720, %vm2721
  %v2723 = vsel %vm2722, %v2715, %v2719
  %v2724 = vand.u32 2147483647, %v2651
  %vm2725 = vcmp.eq.f32.partialorder %v2724, 8.507059e+37
  %v2726 = vand.u32 %v2651, 2147483648
  %v2727 = vor.u32 1.1754944e-38, %v2726
  %v2728 = vsel %vm2725, %v2727, %v2723
  %v2729 = vmul.f32 1.0, %v2728
  %v2730 = vrcp.pop %v2652
  %v2731 = vmul.f32 %v2652, %v2730
  %v2732 = vsub.f32 1.0, %v2731
  %v2733 = vmul.f32 %v2730, %v2732
  %v2734 = vadd.f32 %v2730, %v2733
  %vm2735 = vweird.f32 %v2652
  %vm2736 = vweird.f32 %v2730
  %vm2737 = vmor %vm2735, %vm2736
  %v2738 = vsel %vm2737, %v2730, %v2734
  %v2739 = vand.u32 2147483647, %v2652
  %vm2740 = vcmp.eq.f32.partialorder %v2739, 8.507059e+37
  %v2741 = vand.u32 %v2652, 2147483648
  %v2742 = vor.u32 1.1754944e-38, %v2741
  %v2743 = vsel %vm2740, %v2742, %v2738
  %v2744 = vmul.f32 1.0, %v2743
  %v2745 = vrcp.pop %v2653
  %v2746 = vmul.f32 %v2653, %v2745
  %v2747 = vsub.f32 1.0, %v2746
  %v2748 = vmul.f32 %v2745, %v2747
  %v2749 = vadd.f32 %v2745, %v2748
  %vm2750 = vweird.f32 %v2653
  %vm2751 = vweird.f32 %v2745
  %vm2752 = vmor %vm2750, %vm2751
  %v2753 = vsel %vm2752, %v2745, %v2749
  %v2754 = vand.u32 2147483647, %v2653
  %vm2755 = vcmp.eq.f32.partialorder %v2754, 8.507059e+37
  %v2756 = vand.u32 %v2653, 2147483648
  %v2757 = vor.u32 1.1754944e-38, %v2756
  %v2758 = vsel %vm2755, %v2757, %v2753
  %v2759 = vmul.f32 1.0, %v2758
  %v2760 = vrcp.pop %v2654
  %v2761 = vmul.f32 %v2654, %v2760
  %v2762 = vsub.f32 1.0, %v2761
  %v2763 = vmul.f32 %v2760, %v2762
  %v2764 = vadd.f32 %v2760, %v2763
  %vm2765 = vweird.f32 %v2654
  %vm2766 = vweird.f32 %v2760
  %vm2767 = vmor %vm2765, %vm2766
  %v2768 = vsel %vm2767, %v2760, %v2764
  %v2769 = vand.u32 2147483647, %v2654
  %vm2770 = vcmp.eq.f32.partialorder %v2769, 8.507059e+37
  %v2771 = vand.u32 %v2654, 2147483648
  %v2772 = vor.u32 1.1754944e-38, %v2771
  %v2773 = vsel %vm2770, %v2772, %v2768
  %v2774 = vmul.f32 1.0, %v2773
  %v2775 = vmul.f32 %v2396, %v2669
  %v2776 = vmul.f32 %v2411, %v2684
  %v2777 = vmul.f32 %v2426, %v2699
  %v2778 = vmul.f32 %v2441, %v2714
  %v2779 = vmul.f32 %v2456, %v2729
  %v2780 = vmul.f32 %v2471, %v2744
  %v2781 = vmul.f32 %v2486, %v2759
  %v2782 = vmul.f32 %v2501, %v2774
  %v2783 = vmul.f32 %v2669, %v2669
  %v2784 = vmul.f32 %v2684, %v2684
  %v2785 = vmul.f32 %v2699, %v2699
  %v2786 = vmul.f32 %v2714, %v2714
  %v2787 = vmul.f32 %v2729, %v2729
  %v2788 = vmul.f32 %v2744, %v2744
  %v2789 = vmul.f32 %v2759, %v2759
  %v2790 = vmul.f32 %v2774, %v2774
  %v2791 = vmul.f32 %v2513, %v2783
  %v2792 = vmul.f32 %v2516, %v2784
  %v2793 = vmul.f32 %v2519, %v2785
  %v2794 = vmul.f32 %v2522, %v2786
  %v2795 = vmul.f32 %v2525, %v2787
  %v2796 = vmul.f32 %v2528, %v2788
  %v2797 = vmul.f32 %v2531, %v2789
  %v2798 = vmul.f32 %v2534, %v2790
  %vm2799 = vcmask 517121
  %v2800 = vsel %vm2799, %v2502, 0.0
  %2801 = vadd.xlane.f32.xlu0 %v2800
  %v2802 = vpop.xlane.xlu0 %2801
  %v2803 = vsel %vm2799, %v2503, 0.0
  %2804 = vadd.xlane.f32.xlu0 %v2803
  %v2805 = vpop.xlane.xlu0 %2804
  %v2806 = vsel %vm2799, %v2504, 0.0
  %2807 = vadd.xlane.f32.xlu0 %v2806
  %v2808 = vpop.xlane.xlu0 %2807
  %v2809 = vsel %vm2799, %v2505, 0.0
  %2810 = vadd.xlane.f32.xlu0 %v2809
  %v2811 = vpop.xlane.xlu0 %2810
  %v2812 = vsel %vm2799, %v2506, 0.0
  %2813 = vadd.xlane.f32.xlu0 %v2812
  %v2814 = vpop.xlane.xlu0 %2813
  %v2815 = vsel %vm2799, %v2507, 0.0
  %2816 = vadd.xlane.f32.xlu0 %v2815
  %v2817 = vpop.xlane.xlu0 %2816
  %v2818 = vsel %vm2799, %v2508, 0.0
  %2819 = vadd.xlane.f32.xlu0 %v2818
  %v2820 = vpop.xlane.xlu0 %2819
  %v2821 = vsel %vm2799, %v2509, 0.0
  %2822 = vadd.xlane.f32.xlu0 %v2821
  %v2823 = vpop.xlane.xlu0 %2822
  %v2824 = vmul.f32 %v2802, 0.01
  %v2825 = vmul.f32 %v2805, 0.01
  %v2826 = vmul.f32 %v2808, 0.01
  %v2827 = vmul.f32 %v2811, 0.01
  %v2828 = vmul.f32 %v2814, 0.01
  %v2829 = vmul.f32 %v2817, 0.01
  %v2830 = vmul.f32 %v2820, 0.01
  %v2831 = vmul.f32 %v2823, 0.01
  %v2832 = vsub.f32 1.0, %v2824
  %v2833 = vsub.f32 1.0, %v2825
  %v2834 = vsub.f32 1.0, %v2826
  %v2835 = vsub.f32 1.0, %v2827
  %v2836 = vsub.f32 1.0, %v2828
  %v2837 = vsub.f32 1.0, %v2829
  %v2838 = vsub.f32 1.0, %v2830
  %v2839 = vsub.f32 1.0, %v2831
  %v2840 = vrsqrt.pop %v2832
  %v2841 = vmul.f32 %v2840, %v2832
  %v2842 = vmul.f32 %v2841, %v2840
  %v2843 = vmul.f32 0.5, %v2842
  %v2844 = vsub.f32 1.5, %v2843
  %v2845 = vmul.f32 %v2840, %v2844
  %v2846 = vmul.f32 %v2832, %v2845
  %vm2847 = vcmp.eq.f32.partialorder %v2832, inf
  %v2848 = vsel %vm2847, %v2832, %v2846
  %vm2849 = vcmp.eq.f32.partialorder %v2832, 0.0
  %v2850 = vand.u32 %v2832, 2147483648
  %v2851 = vsel %vm2849, %v2850, %v2848
  %v2852 = vrsqrt.pop %v2833
  %v2853 = vmul.f32 %v2852, %v2833
  %v2854 = vmul.f32 %v2853, %v2852
  %v2855 = vmul.f32 0.5, %v2854
  %v2856 = vsub.f32 1.5, %v2855
  %v2857 = vmul.f32 %v2852, %v2856
  %v2858 = vmul.f32 %v2833, %v2857
  %vm2859 = vcmp.eq.f32.partialorder %v2833, inf
  %v2860 = vsel %vm2859, %v2833, %v2858
  %vm2861 = vcmp.eq.f32.partialorder %v2833, 0.0
  %v2862 = vand.u32 %v2833, 2147483648
  %v2863 = vsel %vm2861, %v2862, %v2860
  %v2864 = vrsqrt.pop %v2834
  %v2865 = vmul.f32 %v2864, %v2834
  %v2866 = vmul.f32 %v2865, %v2864
  %v2867 = vmul.f32 0.5, %v2866
  %v2868 = vsub.f32 1.5, %v2867
  %v2869 = vmul.f32 %v2864, %v2868
  %v2870 = vmul.f32 %v2834, %v2869
  %vm2871 = vcmp.eq.f32.partialorder %v2834, inf
  %v2872 = vsel %vm2871, %v2834, %v2870
  %vm2873 = vcmp.eq.f32.partialorder %v2834, 0.0
  %v2874 = vand.u32 %v2834, 2147483648
  %v2875 = vsel %vm2873, %v2874, %v2872
  %v2876 = vrsqrt.pop %v2835
  %v2877 = vmul.f32 %v2876, %v2835
  %v2878 = vmul.f32 %v2877, %v2876
  %v2879 = vmul.f32 0.5, %v2878
  %v2880 = vsub.f32 1.5, %v2879
  %v2881 = vmul.f32 %v2876, %v2880
  %v2882 = vmul.f32 %v2835, %v2881
  %vm2883 = vcmp.eq.f32.partialorder %v2835, inf
  %v2884 = vsel %vm2883, %v2835, %v2882
  %vm2885 = vcmp.eq.f32.partialorder %v2835, 0.0
  %v2886 = vand.u32 %v2835, 2147483648
  %v2887 = vsel %vm2885, %v2886, %v2884
  %v2888 = vrsqrt.pop %v2836
  %v2889 = vmul.f32 %v2888, %v2836
  %v2890 = vmul.f32 %v2889, %v2888
  %v2891 = vmul.f32 0.5, %v2890
  %v2892 = vsub.f32 1.5, %v2891
  %v2893 = vmul.f32 %v2888, %v2892
  %v2894 = vmul.f32 %v2836, %v2893
  %vm2895 = vcmp.eq.f32.partialorder %v2836, inf
  %v2896 = vsel %vm2895, %v2836, %v2894
  %vm2897 = vcmp.eq.f32.partialorder %v2836, 0.0
  %v2898 = vand.u32 %v2836, 2147483648
  %v2899 = vsel %vm2897, %v2898, %v2896
  %v2900 = vrsqrt.pop %v2837
  %v2901 = vmul.f32 %v2900, %v2837
  %v2902 = vmul.f32 %v2901, %v2900
  %v2903 = vmul.f32 0.5, %v2902
  %v2904 = vsub.f32 1.5, %v2903
  %v2905 = vmul.f32 %v2900, %v2904
  %v2906 = vmul.f32 %v2837, %v2905
  %vm2907 = vcmp.eq.f32.partialorder %v2837, inf
  %v2908 = vsel %vm2907, %v2837, %v2906
  %vm2909 = vcmp.eq.f32.partialorder %v2837, 0.0
  %v2910 = vand.u32 %v2837, 2147483648
  %v2911 = vsel %vm2909, %v2910, %v2908
  %v2912 = vrsqrt.pop %v2838
  %v2913 = vmul.f32 %v2912, %v2838
  %v2914 = vmul.f32 %v2913, %v2912
  %v2915 = vmul.f32 0.5, %v2914
  %v2916 = vsub.f32 1.5, %v2915
  %v2917 = vmul.f32 %v2912, %v2916
  %v2918 = vmul.f32 %v2838, %v2917
  %vm2919 = vcmp.eq.f32.partialorder %v2838, inf
  %v2920 = vsel %vm2919, %v2838, %v2918
  %vm2921 = vcmp.eq.f32.partialorder %v2838, 0.0
  %v2922 = vand.u32 %v2838, 2147483648
  %v2923 = vsel %vm2921, %v2922, %v2920
  %v2924 = vrsqrt.pop %v2839
  %v2925 = vmul.f32 %v2924, %v2839
  %v2926 = vmul.f32 %v2925, %v2924
  %v2927 = vmul.f32 0.5, %v2926
  %v2928 = vsub.f32 1.5, %v2927
  %v2929 = vmul.f32 %v2924, %v2928
  %v2930 = vmul.f32 %v2839, %v2929
  %vm2931 = vcmp.eq.f32.partialorder %v2839, inf
  %v2932 = vsel %vm2931, %v2839, %v2930
  %vm2933 = vcmp.eq.f32.partialorder %v2839, 0.0
  %v2934 = vand.u32 %v2839, 2147483648
  %v2935 = vsel %vm2933, %v2934, %v2932
  %v2936 = vadd.f32 %v2851, 1.0
  %v2937 = vadd.f32 %v2863, 1.0
  %v2938 = vadd.f32 %v2875, 1.0
  %v2939 = vadd.f32 %v2887, 1.0
  %v2940 = vadd.f32 %v2899, 1.0
  %v2941 = vadd.f32 %v2911, 1.0
  %v2942 = vadd.f32 %v2923, 1.0
  %v2943 = vadd.f32 %v2935, 1.0
  %v2944 = vrcp.pop %v2936
  %v2945 = vmul.f32 %v2936, %v2944
  %v2946 = vsub.f32 1.0, %v2945
  %v2947 = vmul.f32 %v2944, %v2946
  %v2948 = vadd.f32 %v2944, %v2947
  %vm2949 = vweird.f32 %v2936
  %vm2950 = vweird.f32 %v2944
  %vm2951 = vmor %vm2949, %vm2950
  %v2952 = vsel %vm2951, %v2944, %v2948
  %v2953 = vand.u32 2147483647, %v2936
  %vm2954 = vcmp.eq.f32.partialorder %v2953, 8.507059e+37
  %v2955 = vand.u32 %v2936, 2147483648
  %v2956 = vor.u32 1.1754944e-38, %v2955
  %v2957 = vsel %vm2954, %v2956, %v2952
  %v2958 = vmul.f32 1.0, %v2957
  %v2959 = vrcp.pop %v2937
  %v2960 = vmul.f32 %v2937, %v2959
  %v2961 = vsub.f32 1.0, %v2960
  %v2962 = vmul.f32 %v2959, %v2961
  %v2963 = vadd.f32 %v2959, %v2962
  %vm2964 = vweird.f32 %v2937
  %vm2965 = vweird.f32 %v2959
  %vm2966 = vmor %vm2964, %vm2965
  %v2967 = vsel %vm2966, %v2959, %v2963
  %v2968 = vand.u32 2147483647, %v2937
  %vm2969 = vcmp.eq.f32.partialorder %v2968, 8.507059e+37
  %v2970 = vand.u32 %v2937, 2147483648
  %v2971 = vor.u32 1.1754944e-38, %v2970
  %v2972 = vsel %vm2969, %v2971, %v2967
  %v2973 = vmul.f32 1.0, %v2972
  %v2974 = vrcp.pop %v2938
  %v2975 = vmul.f32 %v2938, %v2974
  %v2976 = vsub.f32 1.0, %v2975
  %v2977 = vmul.f32 %v2974, %v2976
  %v2978 = vadd.f32 %v2974, %v2977
  %vm2979 = vweird.f32 %v2938
  %vm2980 = vweird.f32 %v2974
  %vm2981 = vmor %vm2979, %vm2980
  %v2982 = vsel %vm2981, %v2974, %v2978
  %v2983 = vand.u32 2147483647, %v2938
  %vm2984 = vcmp.eq.f32.partialorder %v2983, 8.507059e+37
  %v2985 = vand.u32 %v2938, 2147483648
  %v2986 = vor.u32 1.1754944e-38, %v2985
  %v2987 = vsel %vm2984, %v2986, %v2982
  %v2988 = vmul.f32 1.0, %v2987
  %v2989 = vrcp.pop %v2939
  %v2990 = vmul.f32 %v2939, %v2989
  %v2991 = vsub.f32 1.0, %v2990
  %v2992 = vmul.f32 %v2989, %v2991
  %v2993 = vadd.f32 %v2989, %v2992
  %vm2994 = vweird.f32 %v2939
  %vm2995 = vweird.f32 %v2989
  %vm2996 = vmor %vm2994, %vm2995
  %v2997 = vsel %vm2996, %v2989, %v2993
  %v2998 = vand.u32 2147483647, %v2939
  %vm2999 = vcmp.eq.f32.partialorder %v2998, 8.507059e+37
  %v3000 = vand.u32 %v2939, 2147483648
  %v3001 = vor.u32 1.1754944e-38, %v3000
  %v3002 = vsel %vm2999, %v3001, %v2997
  %v3003 = vmul.f32 1.0, %v3002
  %v3004 = vrcp.pop %v2940
  %v3005 = vmul.f32 %v2940, %v3004
  %v3006 = vsub.f32 1.0, %v3005
  %v3007 = vmul.f32 %v3004, %v3006
  %v3008 = vadd.f32 %v3004, %v3007
  %vm3009 = vweird.f32 %v2940
  %vm3010 = vweird.f32 %v3004
  %vm3011 = vmor %vm3009, %vm3010
  %v3012 = vsel %vm3011, %v3004, %v3008
  %v3013 = vand.u32 2147483647, %v2940
  %vm3014 = vcmp.eq.f32.partialorder %v3013, 8.507059e+37
  %v3015 = vand.u32 %v2940, 2147483648
  %v3016 = vor.u32 1.1754944e-38, %v3015
  %v3017 = vsel %vm3014, %v3016, %v3012
  %v3018 = vmul.f32 1.0, %v3017
  %v3019 = vrcp.pop %v2941
  %v3020 = vmul.f32 %v2941, %v3019
  %v3021 = vsub.f32 1.0, %v3020
  %v3022 = vmul.f32 %v3019, %v3021
  %v3023 = vadd.f32 %v3019, %v3022
  %vm3024 = vweird.f32 %v2941
  %vm3025 = vweird.f32 %v3019
  %vm3026 = vmor %vm3024, %vm3025
  %v3027 = vsel %vm3026, %v3019, %v3023
  %v3028 = vand.u32 2147483647, %v2941
  %vm3029 = vcmp.eq.f32.partialorder %v3028, 8.507059e+37
  %v3030 = vand.u32 %v2941, 2147483648
  %v3031 = vor.u32 1.1754944e-38, %v3030
  %v3032 = vsel %vm3029, %v3031, %v3027
  %v3033 = vmul.f32 1.0, %v3032
  %v3034 = vrcp.pop %v2942
  %v3035 = vmul.f32 %v2942, %v3034
  %v3036 = vsub.f32 1.0, %v3035
  %v3037 = vmul.f32 %v3034, %v3036
  %v3038 = vadd.f32 %v3034, %v3037
  %vm3039 = vweird.f32 %v2942
  %vm3040 = vweird.f32 %v3034
  %vm3041 = vmor %vm3039, %vm3040
  %v3042 = vsel %vm3041, %v3034, %v3038
  %v3043 = vand.u32 2147483647, %v2942
  %vm3044 = vcmp.eq.f32.partialorder %v3043, 8.507059e+37
  %v3045 = vand.u32 %v2942, 2147483648
  %v3046 = vor.u32 1.1754944e-38, %v3045
  %v3047 = vsel %vm3044, %v3046, %v3042
  %v3048 = vmul.f32 1.0, %v3047
  %v3049 = vrcp.pop %v2943
  %v3050 = vmul.f32 %v2943, %v3049
  %v3051 = vsub.f32 1.0, %v3050
  %v3052 = vmul.f32 %v3049, %v3051
  %v3053 = vadd.f32 %v3049, %v3052
  %vm3054 = vweird.f32 %v2943
  %vm3055 = vweird.f32 %v3049
  %vm3056 = vmor %vm3054, %vm3055
  %v3057 = vsel %vm3056, %v3049, %v3053
  %v3058 = vand.u32 2147483647, %v2943
  %vm3059 = vcmp.eq.f32.partialorder %v3058, 8.507059e+37
  %v3060 = vand.u32 %v2943, 2147483648
  %v3061 = vor.u32 1.1754944e-38, %v3060
  %v3062 = vsel %vm3059, %v3061, %v3057
  %v3063 = vmul.f32 1.0, %v3062
  %v3064 = vmul.f32 %v2396, %v2958
  %v3065 = vmul.f32 %v2411, %v2973
  %v3066 = vmul.f32 %v2426, %v2988
  %v3067 = vmul.f32 %v2441, %v3003
  %v3068 = vmul.f32 %v2456, %v3018
  %v3069 = vmul.f32 %v2471, %v3033
  %v3070 = vmul.f32 %v2486, %v3048
  %v3071 = vmul.f32 %v2501, %v3063
  %v3072 = vmul.f32 %v2958, %v2958
  %v3073 = vmul.f32 %v2973, %v2973
  %v3074 = vmul.f32 %v2988, %v2988
  %v3075 = vmul.f32 %v3003, %v3003
  %v3076 = vmul.f32 %v3018, %v3018
  %v3077 = vmul.f32 %v3033, %v3033
  %v3078 = vmul.f32 %v3048, %v3048
  %v3079 = vmul.f32 %v3063, %v3063
  %v3080 = vmul.f32 %v2802, %v3072
  %v3081 = vmul.f32 %v2805, %v3073
  %v3082 = vmul.f32 %v2808, %v3074
  %v3083 = vmul.f32 %v2811, %v3075
  %v3084 = vmul.f32 %v2814, %v3076
  %v3085 = vmul.f32 %v2817, %v3077
  %v3086 = vmul.f32 %v2820, %v3078
  %v3087 = vmul.f32 %v2823, %v3079
  %vm3088 = vcmask 518146
  %v3089 = vsel %vm3088, %v2502, 0.0
  %3090 = vadd.xlane.f32.xlu0 %v3089
  %v3091 = vpop.xlane.xlu0 %3090
  %v3092 = vsel %vm3088, %v2503, 0.0
  %3093 = vadd.xlane.f32.xlu0 %v3092
  %v3094 = vpop.xlane.xlu0 %3093
  %v3095 = vsel %vm3088, %v2504, 0.0
  %3096 = vadd.xlane.f32.xlu0 %v3095
  %v3097 = vpop.xlane.xlu0 %3096
  %v3098 = vsel %vm3088, %v2505, 0.0
  %3099 = vadd.xlane.f32.xlu0 %v3098
  %v3100 = vpop.xlane.xlu0 %3099
  %v3101 = vsel %vm3088, %v2506, 0.0
  %3102 = vadd.xlane.f32.xlu0 %v3101
  %v3103 = vpop.xlane.xlu0 %3102
  %v3104 = vsel %vm3088, %v2507, 0.0
  %3105 = vadd.xlane.f32.xlu0 %v3104
  %v3106 = vpop.xlane.xlu0 %3105
  %v3107 = vsel %vm3088, %v2508, 0.0
  %3108 = vadd.xlane.f32.xlu0 %v3107
  %v3109 = vpop.xlane.xlu0 %3108
  %v3110 = vsel %vm3088, %v2509, 0.0
  %3111 = vadd.xlane.f32.xlu0 %v3110
  %v3112 = vpop.xlane.xlu0 %3111
  %v3113 = vmul.f32 %v3091, 0.01
  %v3114 = vmul.f32 %v3094, 0.01
  %v3115 = vmul.f32 %v3097, 0.01
  %v3116 = vmul.f32 %v3100, 0.01
  %v3117 = vmul.f32 %v3103, 0.01
  %v3118 = vmul.f32 %v3106, 0.01
  %v3119 = vmul.f32 %v3109, 0.01
  %v3120 = vmul.f32 %v3112, 0.01
  %v3121 = vsub.f32 1.0, %v3113
  %v3122 = vsub.f32 1.0, %v3114
  %v3123 = vsub.f32 1.0, %v3115
  %v3124 = vsub.f32 1.0, %v3116
  %v3125 = vsub.f32 1.0, %v3117
  %v3126 = vsub.f32 1.0, %v3118
  %v3127 = vsub.f32 1.0, %v3119
  %v3128 = vsub.f32 1.0, %v3120
  %v3129 = vrsqrt.pop %v3121
  %v3130 = vmul.f32 %v3129, %v3121
  %v3131 = vmul.f32 %v3130, %v3129
  %v3132 = vmul.f32 0.5, %v3131
  %v3133 = vsub.f32 1.5, %v3132
  %v3134 = vmul.f32 %v3129, %v3133
  %v3135 = vmul.f32 %v3121, %v3134
  %vm3136 = vcmp.eq.f32.partialorder %v3121, inf
  %v3137 = vsel %vm3136, %v3121, %v3135
  %vm3138 = vcmp.eq.f32.partialorder %v3121, 0.0
  %v3139 = vand.u32 %v3121, 2147483648
  %v3140 = vsel %vm3138, %v3139, %v3137
  %v3141 = vrsqrt.pop %v3122
  %v3142 = vmul.f32 %v3141, %v3122
  %v3143 = vmul.f32 %v3142, %v3141
  %v3144 = vmul.f32 0.5, %v3143
  %v3145 = vsub.f32 1.5, %v3144
  %v3146 = vmul.f32 %v3141, %v3145
  %v3147 = vmul.f32 %v3122, %v3146
  %vm3148 = vcmp.eq.f32.partialorder %v3122, inf
  %v3149 = vsel %vm3148, %v3122, %v3147
  %vm3150 = vcmp.eq.f32.partialorder %v3122, 0.0
  %v3151 = vand.u32 %v3122, 2147483648
  %v3152 = vsel %vm3150, %v3151, %v3149
  %v3153 = vrsqrt.pop %v3123
  %v3154 = vmul.f32 %v3153, %v3123
  %v3155 = vmul.f32 %v3154, %v3153
  %v3156 = vmul.f32 0.5, %v3155
  %v3157 = vsub.f32 1.5, %v3156
  %v3158 = vmul.f32 %v3153, %v3157
  %v3159 = vmul.f32 %v3123, %v3158
  %vm3160 = vcmp.eq.f32.partialorder %v3123, inf
  %v3161 = vsel %vm3160, %v3123, %v3159
  %vm3162 = vcmp.eq.f32.partialorder %v3123, 0.0
  %v3163 = vand.u32 %v3123, 2147483648
  %v3164 = vsel %vm3162, %v3163, %v3161
  %v3165 = vrsqrt.pop %v3124
  %v3166 = vmul.f32 %v3165, %v3124
  %v3167 = vmul.f32 %v3166, %v3165
  %v3168 = vmul.f32 0.5, %v3167
  %v3169 = vsub.f32 1.5, %v3168
  %v3170 = vmul.f32 %v3165, %v3169
  %v3171 = vmul.f32 %v3124, %v3170
  %vm3172 = vcmp.eq.f32.partialorder %v3124, inf
  %v3173 = vsel %vm3172, %v3124, %v3171
  %vm3174 = vcmp.eq.f32.partialorder %v3124, 0.0
  %v3175 = vand.u32 %v3124, 2147483648
  %v3176 = vsel %vm3174, %v3175, %v3173
  %v3177 = vrsqrt.pop %v3125
  %v3178 = vmul.f32 %v3177, %v3125
  %v3179 = vmul.f32 %v3178, %v3177
  %v3180 = vmul.f32 0.5, %v3179
  %v3181 = vsub.f32 1.5, %v3180
  %v3182 = vmul.f32 %v3177, %v3181
  %v3183 = vmul.f32 %v3125, %v3182
  %vm3184 = vcmp.eq.f32.partialorder %v3125, inf
  %v3185 = vsel %vm3184, %v3125, %v3183
  %vm3186 = vcmp.eq.f32.partialorder %v3125, 0.0
  %v3187 = vand.u32 %v3125, 2147483648
  %v3188 = vsel %vm3186, %v3187, %v3185
  %v3189 = vrsqrt.pop %v3126
  %v3190 = vmul.f32 %v3189, %v3126
  %v3191 = vmul.f32 %v3190, %v3189
  %v3192 = vmul.f32 0.5, %v3191
  %v3193 = vsub.f32 1.5, %v3192
  %v3194 = vmul.f32 %v3189, %v3193
  %v3195 = vmul.f32 %v3126, %v3194
  %vm3196 = vcmp.eq.f32.partialorder %v3126, inf
  %v3197 = vsel %vm3196, %v3126, %v3195
  %vm3198 = vcmp.eq.f32.partialorder %v3126, 0.0
  %v3199 = vand.u32 %v3126, 2147483648
  %v3200 = vsel %vm3198, %v3199, %v3197
  %v3201 = vrsqrt.pop %v3127
  %v3202 = vmul.f32 %v3201, %v3127
  %v3203 = vmul.f32 %v3202, %v3201
  %v3204 = vmul.f32 0.5, %v3203
  %v3205 = vsub.f32 1.5, %v3204
  %v3206 = vmul.f32 %v3201, %v3205
  %v3207 = vmul.f32 %v3127, %v3206
  %vm3208 = vcmp.eq.f32.partialorder %v3127, inf
  %v3209 = vsel %vm3208, %v3127, %v3207
  %vm3210 = vcmp.eq.f32.partialorder %v3127, 0.0
  %v3211 = vand.u32 %v3127, 2147483648
  %v3212 = vsel %vm3210, %v3211, %v3209
  %v3213 = vrsqrt.pop %v3128
  %v3214 = vmul.f32 %v3213, %v3128
  %v3215 = vmul.f32 %v3214, %v3213
  %v3216 = vmul.f32 0.5, %v3215
  %v3217 = vsub.f32 1.5, %v3216
  %v3218 = vmul.f32 %v3213, %v3217
  %v3219 = vmul.f32 %v3128, %v3218
  %vm3220 = vcmp.eq.f32.partialorder %v3128, inf
  %v3221 = vsel %vm3220, %v3128, %v3219
  %vm3222 = vcmp.eq.f32.partialorder %v3128, 0.0
  %v3223 = vand.u32 %v3128, 2147483648
  %v3224 = vsel %vm3222, %v3223, %v3221
  %v3225 = vadd.f32 %v3140, 1.0
  %v3226 = vadd.f32 %v3152, 1.0
  %v3227 = vadd.f32 %v3164, 1.0
  %v3228 = vadd.f32 %v3176, 1.0
  %v3229 = vadd.f32 %v3188, 1.0
  %v3230 = vadd.f32 %v3200, 1.0
  %v3231 = vadd.f32 %v3212, 1.0
  %v3232 = vadd.f32 %v3224, 1.0
  %v3233 = vrcp.pop %v3225
  %v3234 = vmul.f32 %v3225, %v3233
  %v3235 = vsub.f32 1.0, %v3234
  %v3236 = vmul.f32 %v3233, %v3235
  %v3237 = vadd.f32 %v3233, %v3236
  %vm3238 = vweird.f32 %v3225
  %vm3239 = vweird.f32 %v3233
  %vm3240 = vmor %vm3238, %vm3239
  %v3241 = vsel %vm3240, %v3233, %v3237
  %v3242 = vand.u32 2147483647, %v3225
  %vm3243 = vcmp.eq.f32.partialorder %v3242, 8.507059e+37
  %v3244 = vand.u32 %v3225, 2147483648
  %v3245 = vor.u32 1.1754944e-38, %v3244
  %v3246 = vsel %vm3243, %v3245, %v3241
  %v3247 = vmul.f32 1.0, %v3246
  %v3248 = vrcp.pop %v3226
  %v3249 = vmul.f32 %v3226, %v3248
  %v3250 = vsub.f32 1.0, %v3249
  %v3251 = vmul.f32 %v3248, %v3250
  %v3252 = vadd.f32 %v3248, %v3251
  %vm3253 = vweird.f32 %v3226
  %vm3254 = vweird.f32 %v3248
  %vm3255 = vmor %vm3253, %vm3254
  %v3256 = vsel %vm3255, %v3248, %v3252
  %v3257 = vand.u32 2147483647, %v3226
  %vm3258 = vcmp.eq.f32.partialorder %v3257, 8.507059e+37
  %v3259 = vand.u32 %v3226, 2147483648
  %v3260 = vor.u32 1.1754944e-38, %v3259
  %v3261 = vsel %vm3258, %v3260, %v3256
  %v3262 = vmul.f32 1.0, %v3261
  %v3263 = vrcp.pop %v3227
  %v3264 = vmul.f32 %v3227, %v3263
  %v3265 = vsub.f32 1.0, %v3264
  %v3266 = vmul.f32 %v3263, %v3265
  %v3267 = vadd.f32 %v3263, %v3266
  %vm3268 = vweird.f32 %v3227
  %vm3269 = vweird.f32 %v3263
  %vm3270 = vmor %vm3268, %vm3269
  %v3271 = vsel %vm3270, %v3263, %v3267
  %v3272 = vand.u32 2147483647, %v3227
  %vm3273 = vcmp.eq.f32.partialorder %v3272, 8.507059e+37
  %v3274 = vand.u32 %v3227, 2147483648
  %v3275 = vor.u32 1.1754944e-38, %v3274
  %v3276 = vsel %vm3273, %v3275, %v3271
  %v3277 = vmul.f32 1.0, %v3276
  %v3278 = vrcp.pop %v3228
  %v3279 = vmul.f32 %v3228, %v3278
  %v3280 = vsub.f32 1.0, %v3279
  %v3281 = vmul.f32 %v3278, %v3280
  %v3282 = vadd.f32 %v3278, %v3281
  %vm3283 = vweird.f32 %v3228
  %vm3284 = vweird.f32 %v3278
  %vm3285 = vmor %vm3283, %vm3284
  %v3286 = vsel %vm3285, %v3278, %v3282
  %v3287 = vand.u32 2147483647, %v3228
  %vm3288 = vcmp.eq.f32.partialorder %v3287, 8.507059e+37
  %v3289 = vand.u32 %v3228, 2147483648
  %v3290 = vor.u32 1.1754944e-38, %v3289
  %v3291 = vsel %vm3288, %v3290, %v3286
  %v3292 = vmul.f32 1.0, %v3291
  %v3293 = vrcp.pop %v3229
  %v3294 = vmul.f32 %v3229, %v3293
  %v3295 = vsub.f32 1.0, %v3294
  %v3296 = vmul.f32 %v3293, %v3295
  %v3297 = vadd.f32 %v3293, %v3296
  %vm3298 = vweird.f32 %v3229
  %vm3299 = vweird.f32 %v3293
  %vm3300 = vmor %vm3298, %vm3299
  %v3301 = vsel %vm3300, %v3293, %v3297
  %v3302 = vand.u32 2147483647, %v3229
  %vm3303 = vcmp.eq.f32.partialorder %v3302, 8.507059e+37
  %v3304 = vand.u32 %v3229, 2147483648
  %v3305 = vor.u32 1.1754944e-38, %v3304
  %v3306 = vsel %vm3303, %v3305, %v3301
  %v3307 = vmul.f32 1.0, %v3306
  %v3308 = vrcp.pop %v3230
  %v3309 = vmul.f32 %v3230, %v3308
  %v3310 = vsub.f32 1.0, %v3309
  %v3311 = vmul.f32 %v3308, %v3310
  %v3312 = vadd.f32 %v3308, %v3311
  %vm3313 = vweird.f32 %v3230
  %vm3314 = vweird.f32 %v3308
  %vm3315 = vmor %vm3313, %vm3314
  %v3316 = vsel %vm3315, %v3308, %v3312
  %v3317 = vand.u32 2147483647, %v3230
  %vm3318 = vcmp.eq.f32.partialorder %v3317, 8.507059e+37
  %v3319 = vand.u32 %v3230, 2147483648
  %v3320 = vor.u32 1.1754944e-38, %v3319
  %v3321 = vsel %vm3318, %v3320, %v3316
  %v3322 = vmul.f32 1.0, %v3321
  %v3323 = vrcp.pop %v3231
  %v3324 = vmul.f32 %v3231, %v3323
  %v3325 = vsub.f32 1.0, %v3324
  %v3326 = vmul.f32 %v3323, %v3325
  %v3327 = vadd.f32 %v3323, %v3326
  %vm3328 = vweird.f32 %v3231
  %vm3329 = vweird.f32 %v3323
  %vm3330 = vmor %vm3328, %vm3329
  %v3331 = vsel %vm3330, %v3323, %v3327
  %v3332 = vand.u32 2147483647, %v3231
  %vm3333 = vcmp.eq.f32.partialorder %v3332, 8.507059e+37
  %v3334 = vand.u32 %v3231, 2147483648
  %v3335 = vor.u32 1.1754944e-38, %v3334
  %v3336 = vsel %vm3333, %v3335, %v3331
  %v3337 = vmul.f32 1.0, %v3336
  %v3338 = vrcp.pop %v3232
  %v3339 = vmul.f32 %v3232, %v3338
  %v3340 = vsub.f32 1.0, %v3339
  %v3341 = vmul.f32 %v3338, %v3340
  %v3342 = vadd.f32 %v3338, %v3341
  %vm3343 = vweird.f32 %v3232
  %vm3344 = vweird.f32 %v3338
  %vm3345 = vmor %vm3343, %vm3344
  %v3346 = vsel %vm3345, %v3338, %v3342
  %v3347 = vand.u32 2147483647, %v3232
  %vm3348 = vcmp.eq.f32.partialorder %v3347, 8.507059e+37
  %v3349 = vand.u32 %v3232, 2147483648
  %v3350 = vor.u32 1.1754944e-38, %v3349
  %v3351 = vsel %vm3348, %v3350, %v3346
  %v3352 = vmul.f32 1.0, %v3351
  %v3353 = vmul.f32 %v2396, %v3247
  %v3354 = vmul.f32 %v2411, %v3262
  %v3355 = vmul.f32 %v2426, %v3277
  %v3356 = vmul.f32 %v2441, %v3292
  %v3357 = vmul.f32 %v2456, %v3307
  %v3358 = vmul.f32 %v2471, %v3322
  %v3359 = vmul.f32 %v2486, %v3337
  %v3360 = vmul.f32 %v2501, %v3352
  %v3361 = vmul.f32 %v3247, %v3247
  %v3362 = vmul.f32 %v3262, %v3262
  %v3363 = vmul.f32 %v3277, %v3277
  %v3364 = vmul.f32 %v3292, %v3292
  %v3365 = vmul.f32 %v3307, %v3307
  %v3366 = vmul.f32 %v3322, %v3322
  %v3367 = vmul.f32 %v3337, %v3337
  %v3368 = vmul.f32 %v3352, %v3352
  %v3369 = vmul.f32 %v3091, %v3361
  %v3370 = vmul.f32 %v3094, %v3362
  %v3371 = vmul.f32 %v3097, %v3363
  %v3372 = vmul.f32 %v3100, %v3364
  %v3373 = vmul.f32 %v3103, %v3365
  %v3374 = vmul.f32 %v3106, %v3366
  %v3375 = vmul.f32 %v3109, %v3367
  %v3376 = vmul.f32 %v3112, %v3368
  %vm3377 = vcmask 519171
  %v3378 = vsel %vm3377, %v2502, 0.0
  %3379 = vadd.xlane.f32.xlu0 %v3378
  %v3380 = vpop.xlane.xlu0 %3379
  %v3381 = vsel %vm3377, %v2503, 0.0
  %3382 = vadd.xlane.f32.xlu0 %v3381
  %v3383 = vpop.xlane.xlu0 %3382
  %v3384 = vsel %vm3377, %v2504, 0.0
  %3385 = vadd.xlane.f32.xlu0 %v3384
  %v3386 = vpop.xlane.xlu0 %3385
  %v3387 = vsel %vm3377, %v2505, 0.0
  %3388 = vadd.xlane.f32.xlu0 %v3387
  %v3389 = vpop.xlane.xlu0 %3388
  %v3390 = vsel %vm3377, %v2506, 0.0
  %3391 = vadd.xlane.f32.xlu0 %v3390
  %v3392 = vpop.xlane.xlu0 %3391
  %v3393 = vsel %vm3377, %v2507, 0.0
  %3394 = vadd.xlane.f32.xlu0 %v3393
  %v3395 = vpop.xlane.xlu0 %3394
  %v3396 = vsel %vm3377, %v2508, 0.0
  %3397 = vadd.xlane.f32.xlu0 %v3396
  %v3398 = vpop.xlane.xlu0 %3397
  %v3399 = vsel %vm3377, %v2509, 0.0
  %3400 = vadd.xlane.f32.xlu0 %v3399
  %v3401 = vpop.xlane.xlu0 %3400
  %v3402 = vmul.f32 %v3380, 0.01
  %v3403 = vmul.f32 %v3383, 0.01
  %v3404 = vmul.f32 %v3386, 0.01
  %v3405 = vmul.f32 %v3389, 0.01
  %v3406 = vmul.f32 %v3392, 0.01
  %v3407 = vmul.f32 %v3395, 0.01
  %v3408 = vmul.f32 %v3398, 0.01
  %v3409 = vmul.f32 %v3401, 0.01
  %v3410 = vsub.f32 1.0, %v3402
  %v3411 = vsub.f32 1.0, %v3403
  %v3412 = vsub.f32 1.0, %v3404
  %v3413 = vsub.f32 1.0, %v3405
  %v3414 = vsub.f32 1.0, %v3406
  %v3415 = vsub.f32 1.0, %v3407
  %v3416 = vsub.f32 1.0, %v3408
  %v3417 = vsub.f32 1.0, %v3409
  %v3418 = vrsqrt.pop %v3410
  %v3419 = vmul.f32 %v3418, %v3410
  %v3420 = vmul.f32 %v3419, %v3418
  %v3421 = vmul.f32 0.5, %v3420
  %v3422 = vsub.f32 1.5, %v3421
  %v3423 = vmul.f32 %v3418, %v3422
  %v3424 = vmul.f32 %v3410, %v3423
  %vm3425 = vcmp.eq.f32.partialorder %v3410, inf
  %v3426 = vsel %vm3425, %v3410, %v3424
  %vm3427 = vcmp.eq.f32.partialorder %v3410, 0.0
  %v3428 = vand.u32 %v3410, 2147483648
  %v3429 = vsel %vm3427, %v3428, %v3426
  %v3430 = vrsqrt.pop %v3411
  %v3431 = vmul.f32 %v3430, %v3411
  %v3432 = vmul.f32 %v3431, %v3430
  %v3433 = vmul.f32 0.5, %v3432
  %v3434 = vsub.f32 1.5, %v3433
  %v3435 = vmul.f32 %v3430, %v3434
  %v3436 = vmul.f32 %v3411, %v3435
  %vm3437 = vcmp.eq.f32.partialorder %v3411, inf
  %v3438 = vsel %vm3437, %v3411, %v3436
  %vm3439 = vcmp.eq.f32.partialorder %v3411, 0.0
  %v3440 = vand.u32 %v3411, 2147483648
  %v3441 = vsel %vm3439, %v3440, %v3438
  %v3442 = vrsqrt.pop %v3412
  %v3443 = vmul.f32 %v3442, %v3412
  %v3444 = vmul.f32 %v3443, %v3442
  %v3445 = vmul.f32 0.5, %v3444
  %v3446 = vsub.f32 1.5, %v3445
  %v3447 = vmul.f32 %v3442, %v3446
  %v3448 = vmul.f32 %v3412, %v3447
  %vm3449 = vcmp.eq.f32.partialorder %v3412, inf
  %v3450 = vsel %vm3449, %v3412, %v3448
  %vm3451 = vcmp.eq.f32.partialorder %v3412, 0.0
  %v3452 = vand.u32 %v3412, 2147483648
  %v3453 = vsel %vm3451, %v3452, %v3450
  %v3454 = vrsqrt.pop %v3413
  %v3455 = vmul.f32 %v3454, %v3413
  %v3456 = vmul.f32 %v3455, %v3454
  %v3457 = vmul.f32 0.5, %v3456
  %v3458 = vsub.f32 1.5, %v3457
  %v3459 = vmul.f32 %v3454, %v3458
  %v3460 = vmul.f32 %v3413, %v3459
  %vm3461 = vcmp.eq.f32.partialorder %v3413, inf
  %v3462 = vsel %vm3461, %v3413, %v3460
  %vm3463 = vcmp.eq.f32.partialorder %v3413, 0.0
  %v3464 = vand.u32 %v3413, 2147483648
  %v3465 = vsel %vm3463, %v3464, %v3462
  %v3466 = vrsqrt.pop %v3414
  %v3467 = vmul.f32 %v3466, %v3414
  %v3468 = vmul.f32 %v3467, %v3466
  %v3469 = vmul.f32 0.5, %v3468
  %v3470 = vsub.f32 1.5, %v3469
  %v3471 = vmul.f32 %v3466, %v3470
  %v3472 = vmul.f32 %v3414, %v3471
  %vm3473 = vcmp.eq.f32.partialorder %v3414, inf
  %v3474 = vsel %vm3473, %v3414, %v3472
  %vm3475 = vcmp.eq.f32.partialorder %v3414, 0.0
  %v3476 = vand.u32 %v3414, 2147483648
  %v3477 = vsel %vm3475, %v3476, %v3474
  %v3478 = vrsqrt.pop %v3415
  %v3479 = vmul.f32 %v3478, %v3415
  %v3480 = vmul.f32 %v3479, %v3478
  %v3481 = vmul.f32 0.5, %v3480
  %v3482 = vsub.f32 1.5, %v3481
  %v3483 = vmul.f32 %v3478, %v3482
  %v3484 = vmul.f32 %v3415, %v3483
  %vm3485 = vcmp.eq.f32.partialorder %v3415, inf
  %v3486 = vsel %vm3485, %v3415, %v3484
  %vm3487 = vcmp.eq.f32.partialorder %v3415, 0.0
  %v3488 = vand.u32 %v3415, 2147483648
  %v3489 = vsel %vm3487, %v3488, %v3486
  %v3490 = vrsqrt.pop %v3416
  %v3491 = vmul.f32 %v3490, %v3416
  %v3492 = vmul.f32 %v3491, %v3490
  %v3493 = vmul.f32 0.5, %v3492
  %v3494 = vsub.f32 1.5, %v3493
  %v3495 = vmul.f32 %v3490, %v3494
  %v3496 = vmul.f32 %v3416, %v3495
  %vm3497 = vcmp.eq.f32.partialorder %v3416, inf
  %v3498 = vsel %vm3497, %v3416, %v3496
  %vm3499 = vcmp.eq.f32.partialorder %v3416, 0.0
  %v3500 = vand.u32 %v3416, 2147483648
  %v3501 = vsel %vm3499, %v3500, %v3498
  %v3502 = vrsqrt.pop %v3417
  %v3503 = vmul.f32 %v3502, %v3417
  %v3504 = vmul.f32 %v3503, %v3502
  %v3505 = vmul.f32 0.5, %v3504
  %v3506 = vsub.f32 1.5, %v3505
  %v3507 = vmul.f32 %v3502, %v3506
  %v3508 = vmul.f32 %v3417, %v3507
  %vm3509 = vcmp.eq.f32.partialorder %v3417, inf
  %v3510 = vsel %vm3509, %v3417, %v3508
  %vm3511 = vcmp.eq.f32.partialorder %v3417, 0.0
  %v3512 = vand.u32 %v3417, 2147483648
  %v3513 = vsel %vm3511, %v3512, %v3510
  %v3514 = vadd.f32 %v3429, 1.0
  %v3515 = vadd.f32 %v3441, 1.0
  %v3516 = vadd.f32 %v3453, 1.0
  %v3517 = vadd.f32 %v3465, 1.0
  %v3518 = vadd.f32 %v3477, 1.0
  %v3519 = vadd.f32 %v3489, 1.0
  %v3520 = vadd.f32 %v3501, 1.0
  %v3521 = vadd.f32 %v3513, 1.0
  %v3522 = vrcp.pop %v3514
  %v3523 = vmul.f32 %v3514, %v3522
  %v3524 = vsub.f32 1.0, %v3523
  %v3525 = vmul.f32 %v3522, %v3524
  %v3526 = vadd.f32 %v3522, %v3525
  %vm3527 = vweird.f32 %v3514
  %vm3528 = vweird.f32 %v3522
  %vm3529 = vmor %vm3527, %vm3528
  %v3530 = vsel %vm3529, %v3522, %v3526
  %v3531 = vand.u32 2147483647, %v3514
  %vm3532 = vcmp.eq.f32.partialorder %v3531, 8.507059e+37
  %v3533 = vand.u32 %v3514, 2147483648
  %v3534 = vor.u32 1.1754944e-38, %v3533
  %v3535 = vsel %vm3532, %v3534, %v3530
  %v3536 = vmul.f32 1.0, %v3535
  %v3537 = vrcp.pop %v3515
  %v3538 = vmul.f32 %v3515, %v3537
  %v3539 = vsub.f32 1.0, %v3538
  %v3540 = vmul.f32 %v3537, %v3539
  %v3541 = vadd.f32 %v3537, %v3540
  %vm3542 = vweird.f32 %v3515
  %vm3543 = vweird.f32 %v3537
  %vm3544 = vmor %vm3542, %vm3543
  %v3545 = vsel %vm3544, %v3537, %v3541
  %v3546 = vand.u32 2147483647, %v3515
  %vm3547 = vcmp.eq.f32.partialorder %v3546, 8.507059e+37
  %v3548 = vand.u32 %v3515, 2147483648
  %v3549 = vor.u32 1.1754944e-38, %v3548
  %v3550 = vsel %vm3547, %v3549, %v3545
  %v3551 = vmul.f32 1.0, %v3550
  %v3552 = vrcp.pop %v3516
  %v3553 = vmul.f32 %v3516, %v3552
  %v3554 = vsub.f32 1.0, %v3553
  %v3555 = vmul.f32 %v3552, %v3554
  %v3556 = vadd.f32 %v3552, %v3555
  %vm3557 = vweird.f32 %v3516
  %vm3558 = vweird.f32 %v3552
  %vm3559 = vmor %vm3557, %vm3558
  %v3560 = vsel %vm3559, %v3552, %v3556
  %v3561 = vand.u32 2147483647, %v3516
  %vm3562 = vcmp.eq.f32.partialorder %v3561, 8.507059e+37
  %v3563 = vand.u32 %v3516, 2147483648
  %v3564 = vor.u32 1.1754944e-38, %v3563
  %v3565 = vsel %vm3562, %v3564, %v3560
  %v3566 = vmul.f32 1.0, %v3565
  %v3567 = vrcp.pop %v3517
  %v3568 = vmul.f32 %v3517, %v3567
  %v3569 = vsub.f32 1.0, %v3568
  %v3570 = vmul.f32 %v3567, %v3569
  %v3571 = vadd.f32 %v3567, %v3570
  %vm3572 = vweird.f32 %v3517
  %vm3573 = vweird.f32 %v3567
  %vm3574 = vmor %vm3572, %vm3573
  %v3575 = vsel %vm3574, %v3567, %v3571
  %v3576 = vand.u32 2147483647, %v3517
  %vm3577 = vcmp.eq.f32.partialorder %v3576, 8.507059e+37
  %v3578 = vand.u32 %v3517, 2147483648
  %v3579 = vor.u32 1.1754944e-38, %v3578
  %v3580 = vsel %vm3577, %v3579, %v3575
  %v3581 = vmul.f32 1.0, %v3580
  %v3582 = vrcp.pop %v3518
  %v3583 = vmul.f32 %v3518, %v3582
  %v3584 = vsub.f32 1.0, %v3583
  %v3585 = vmul.f32 %v3582, %v3584
  %v3586 = vadd.f32 %v3582, %v3585
  %vm3587 = vweird.f32 %v3518
  %vm3588 = vweird.f32 %v3582
  %vm3589 = vmor %vm3587, %vm3588
  %v3590 = vsel %vm3589, %v3582, %v3586
  %v3591 = vand.u32 2147483647, %v3518
  %vm3592 = vcmp.eq.f32.partialorder %v3591, 8.507059e+37
  %v3593 = vand.u32 %v3518, 2147483648
  %v3594 = vor.u32 1.1754944e-38, %v3593
  %v3595 = vsel %vm3592, %v3594, %v3590
  %v3596 = vmul.f32 1.0, %v3595
  %v3597 = vrcp.pop %v3519
  %v3598 = vmul.f32 %v3519, %v3597
  %v3599 = vsub.f32 1.0, %v3598
  %v3600 = vmul.f32 %v3597, %v3599
  %v3601 = vadd.f32 %v3597, %v3600
  %vm3602 = vweird.f32 %v3519
  %vm3603 = vweird.f32 %v3597
  %vm3604 = vmor %vm3602, %vm3603
  %v3605 = vsel %vm3604, %v3597, %v3601
  %v3606 = vand.u32 2147483647, %v3519
  %vm3607 = vcmp.eq.f32.partialorder %v3606, 8.507059e+37
  %v3608 = vand.u32 %v3519, 2147483648
  %v3609 = vor.u32 1.1754944e-38, %v3608
  %v3610 = vsel %vm3607, %v3609, %v3605
  %v3611 = vmul.f32 1.0, %v3610
  %v3612 = vrcp.pop %v3520
  %v3613 = vmul.f32 %v3520, %v3612
  %v3614 = vsub.f32 1.0, %v3613
  %v3615 = vmul.f32 %v3612, %v3614
  %v3616 = vadd.f32 %v3612, %v3615
  %vm3617 = vweird.f32 %v3520
  %vm3618 = vweird.f32 %v3612
  %vm3619 = vmor %vm3617, %vm3618
  %v3620 = vsel %vm3619, %v3612, %v3616
  %v3621 = vand.u32 2147483647, %v3520
  %vm3622 = vcmp.eq.f32.partialorder %v3621, 8.507059e+37
  %v3623 = vand.u32 %v3520, 2147483648
  %v3624 = vor.u32 1.1754944e-38, %v3623
  %v3625 = vsel %vm3622, %v3624, %v3620
  %v3626 = vmul.f32 1.0, %v3625
  %v3627 = vrcp.pop %v3521
  %v3628 = vmul.f32 %v3521, %v3627
  %v3629 = vsub.f32 1.0, %v3628
  %v3630 = vmul.f32 %v3627, %v3629
  %v3631 = vadd.f32 %v3627, %v3630
  %vm3632 = vweird.f32 %v3521
  %vm3633 = vweird.f32 %v3627
  %vm3634 = vmor %vm3632, %vm3633
  %v3635 = vsel %vm3634, %v3627, %v3631
  %v3636 = vand.u32 2147483647, %v3521
  %vm3637 = vcmp.eq.f32.partialorder %v3636, 8.507059e+37
  %v3638 = vand.u32 %v3521, 2147483648
  %v3639 = vor.u32 1.1754944e-38, %v3638
  %v3640 = vsel %vm3637, %v3639, %v3635
  %v3641 = vmul.f32 1.0, %v3640
  %v3642 = vmul.f32 %v2396, %v3536
  %v3643 = vmul.f32 %v2411, %v3551
  %v3644 = vmul.f32 %v2426, %v3566
  %v3645 = vmul.f32 %v2441, %v3581
  %v3646 = vmul.f32 %v2456, %v3596
  %v3647 = vmul.f32 %v2471, %v3611
  %v3648 = vmul.f32 %v2486, %v3626
  %v3649 = vmul.f32 %v2501, %v3641
  %v3650 = vmul.f32 %v3536, %v3536
  %v3651 = vmul.f32 %v3551, %v3551
  %v3652 = vmul.f32 %v3566, %v3566
  %v3653 = vmul.f32 %v3581, %v3581
  %v3654 = vmul.f32 %v3596, %v3596
  %v3655 = vmul.f32 %v3611, %v3611
  %v3656 = vmul.f32 %v3626, %v3626
  %v3657 = vmul.f32 %v3641, %v3641
  %v3658 = vmul.f32 %v3380, %v3650
  %v3659 = vmul.f32 %v3383, %v3651
  %v3660 = vmul.f32 %v3386, %v3652
  %v3661 = vmul.f32 %v3389, %v3653
  %v3662 = vmul.f32 %v3392, %v3654
  %v3663 = vmul.f32 %v3395, %v3655
  %v3664 = vmul.f32 %v3398, %v3656
  %v3665 = vmul.f32 %v3401, %v3657
  %vm3666 = vcmask 520196
  %v3667 = vsel %vm3666, %v2502, 0.0
  %3668 = vadd.xlane.f32.xlu0 %v3667
  %v3669 = vpop.xlane.xlu0 %3668
  %v3670 = vsel %vm3666, %v2503, 0.0
  %3671 = vadd.xlane.f32.xlu0 %v3670
  %v3672 = vpop.xlane.xlu0 %3671
  %v3673 = vsel %vm3666, %v2504, 0.0
  %3674 = vadd.xlane.f32.xlu0 %v3673
  %v3675 = vpop.xlane.xlu0 %3674
  %v3676 = vsel %vm3666, %v2505, 0.0
  %3677 = vadd.xlane.f32.xlu0 %v3676
  %v3678 = vpop.xlane.xlu0 %3677
  %v3679 = vsel %vm3666, %v2506, 0.0
  %3680 = vadd.xlane.f32.xlu0 %v3679
  %v3681 = vpop.xlane.xlu0 %3680
  %v3682 = vsel %vm3666, %v2507, 0.0
  %3683 = vadd.xlane.f32.xlu0 %v3682
  %v3684 = vpop.xlane.xlu0 %3683
  %v3685 = vsel %vm3666, %v2508, 0.0
  %3686 = vadd.xlane.f32.xlu0 %v3685
  %v3687 = vpop.xlane.xlu0 %3686
  %v3688 = vsel %vm3666, %v2509, 0.0
  %3689 = vadd.xlane.f32.xlu0 %v3688
  %v3690 = vpop.xlane.xlu0 %3689
  %v3691 = vmul.f32 %v3669, 0.01
  %v3692 = vmul.f32 %v3672, 0.01
  %v3693 = vmul.f32 %v3675, 0.01
  %v3694 = vmul.f32 %v3678, 0.01
  %v3695 = vmul.f32 %v3681, 0.01
  %v3696 = vmul.f32 %v3684, 0.01
  %v3697 = vmul.f32 %v3687, 0.01
  %v3698 = vmul.f32 %v3690, 0.01
  %v3699 = vsub.f32 1.0, %v3691
  %v3700 = vsub.f32 1.0, %v3692
  %v3701 = vsub.f32 1.0, %v3693
  %v3702 = vsub.f32 1.0, %v3694
  %v3703 = vsub.f32 1.0, %v3695
  %v3704 = vsub.f32 1.0, %v3696
  %v3705 = vsub.f32 1.0, %v3697
  %v3706 = vsub.f32 1.0, %v3698
  %v3707 = vrsqrt.pop %v3699
  %v3708 = vmul.f32 %v3707, %v3699
  %v3709 = vmul.f32 %v3708, %v3707
  %v3710 = vmul.f32 0.5, %v3709
  %v3711 = vsub.f32 1.5, %v3710
  %v3712 = vmul.f32 %v3707, %v3711
  %v3713 = vmul.f32 %v3699, %v3712
  %vm3714 = vcmp.eq.f32.partialorder %v3699, inf
  %v3715 = vsel %vm3714, %v3699, %v3713
  %vm3716 = vcmp.eq.f32.partialorder %v3699, 0.0
  %v3717 = vand.u32 %v3699, 2147483648
  %v3718 = vsel %vm3716, %v3717, %v3715
  %v3719 = vrsqrt.pop %v3700
  %v3720 = vmul.f32 %v3719, %v3700
  %v3721 = vmul.f32 %v3720, %v3719
  %v3722 = vmul.f32 0.5, %v3721
  %v3723 = vsub.f32 1.5, %v3722
  %v3724 = vmul.f32 %v3719, %v3723
  %v3725 = vmul.f32 %v3700, %v3724
  %vm3726 = vcmp.eq.f32.partialorder %v3700, inf
  %v3727 = vsel %vm3726, %v3700, %v3725
  %vm3728 = vcmp.eq.f32.partialorder %v3700, 0.0
  %v3729 = vand.u32 %v3700, 2147483648
  %v3730 = vsel %vm3728, %v3729, %v3727
  %v3731 = vrsqrt.pop %v3701
  %v3732 = vmul.f32 %v3731, %v3701
  %v3733 = vmul.f32 %v3732, %v3731
  %v3734 = vmul.f32 0.5, %v3733
  %v3735 = vsub.f32 1.5, %v3734
  %v3736 = vmul.f32 %v3731, %v3735
  %v3737 = vmul.f32 %v3701, %v3736
  %vm3738 = vcmp.eq.f32.partialorder %v3701, inf
  %v3739 = vsel %vm3738, %v3701, %v3737
  %vm3740 = vcmp.eq.f32.partialorder %v3701, 0.0
  %v3741 = vand.u32 %v3701, 2147483648
  %v3742 = vsel %vm3740, %v3741, %v3739
  %v3743 = vrsqrt.pop %v3702
  %v3744 = vmul.f32 %v3743, %v3702
  %v3745 = vmul.f32 %v3744, %v3743
  %v3746 = vmul.f32 0.5, %v3745
  %v3747 = vsub.f32 1.5, %v3746
  %v3748 = vmul.f32 %v3743, %v3747
  %v3749 = vmul.f32 %v3702, %v3748
  %vm3750 = vcmp.eq.f32.partialorder %v3702, inf
  %v3751 = vsel %vm3750, %v3702, %v3749
  %vm3752 = vcmp.eq.f32.partialorder %v3702, 0.0
  %v3753 = vand.u32 %v3702, 2147483648
  %v3754 = vsel %vm3752, %v3753, %v3751
  %v3755 = vrsqrt.pop %v3703
  %v3756 = vmul.f32 %v3755, %v3703
  %v3757 = vmul.f32 %v3756, %v3755
  %v3758 = vmul.f32 0.5, %v3757
  %v3759 = vsub.f32 1.5, %v3758
  %v3760 = vmul.f32 %v3755, %v3759
  %v3761 = vmul.f32 %v3703, %v3760
  %vm3762 = vcmp.eq.f32.partialorder %v3703, inf
  %v3763 = vsel %vm3762, %v3703, %v3761
  %vm3764 = vcmp.eq.f32.partialorder %v3703, 0.0
  %v3765 = vand.u32 %v3703, 2147483648
  %v3766 = vsel %vm3764, %v3765, %v3763
  %v3767 = vrsqrt.pop %v3704
  %v3768 = vmul.f32 %v3767, %v3704
  %v3769 = vmul.f32 %v3768, %v3767
  %v3770 = vmul.f32 0.5, %v3769
  %v3771 = vsub.f32 1.5, %v3770
  %v3772 = vmul.f32 %v3767, %v3771
  %v3773 = vmul.f32 %v3704, %v3772
  %vm3774 = vcmp.eq.f32.partialorder %v3704, inf
  %v3775 = vsel %vm3774, %v3704, %v3773
  %vm3776 = vcmp.eq.f32.partialorder %v3704, 0.0
  %v3777 = vand.u32 %v3704, 2147483648
  %v3778 = vsel %vm3776, %v3777, %v3775
  %v3779 = vrsqrt.pop %v3705
  %v3780 = vmul.f32 %v3779, %v3705
  %v3781 = vmul.f32 %v3780, %v3779
  %v3782 = vmul.f32 0.5, %v3781
  %v3783 = vsub.f32 1.5, %v3782
  %v3784 = vmul.f32 %v3779, %v3783
  %v3785 = vmul.f32 %v3705, %v3784
  %vm3786 = vcmp.eq.f32.partialorder %v3705, inf
  %v3787 = vsel %vm3786, %v3705, %v3785
  %vm3788 = vcmp.eq.f32.partialorder %v3705, 0.0
  %v3789 = vand.u32 %v3705, 2147483648
  %v3790 = vsel %vm3788, %v3789, %v3787
  %v3791 = vrsqrt.pop %v3706
  %v3792 = vmul.f32 %v3791, %v3706
  %v3793 = vmul.f32 %v3792, %v3791
  %v3794 = vmul.f32 0.5, %v3793
  %v3795 = vsub.f32 1.5, %v3794
  %v3796 = vmul.f32 %v3791, %v3795
  %v3797 = vmul.f32 %v3706, %v3796
  %vm3798 = vcmp.eq.f32.partialorder %v3706, inf
  %v3799 = vsel %vm3798, %v3706, %v3797
  %vm3800 = vcmp.eq.f32.partialorder %v3706, 0.0
  %v3801 = vand.u32 %v3706, 2147483648
  %v3802 = vsel %vm3800, %v3801, %v3799
  %v3803 = vadd.f32 %v3718, 1.0
  %v3804 = vadd.f32 %v3730, 1.0
  %v3805 = vadd.f32 %v3742, 1.0
  %v3806 = vadd.f32 %v3754, 1.0
  %v3807 = vadd.f32 %v3766, 1.0
  %v3808 = vadd.f32 %v3778, 1.0
  %v3809 = vadd.f32 %v3790, 1.0
  %v3810 = vadd.f32 %v3802, 1.0
  %v3811 = vrcp.pop %v3803
  %v3812 = vmul.f32 %v3803, %v3811
  %v3813 = vsub.f32 1.0, %v3812
  %v3814 = vmul.f32 %v3811, %v3813
  %v3815 = vadd.f32 %v3811, %v3814
  %vm3816 = vweird.f32 %v3803
  %vm3817 = vweird.f32 %v3811
  %vm3818 = vmor %vm3816, %vm3817
  %v3819 = vsel %vm3818, %v3811, %v3815
  %v3820 = vand.u32 2147483647, %v3803
  %vm3821 = vcmp.eq.f32.partialorder %v3820, 8.507059e+37
  %v3822 = vand.u32 %v3803, 2147483648
  %v3823 = vor.u32 1.1754944e-38, %v3822
  %v3824 = vsel %vm3821, %v3823, %v3819
  %v3825 = vmul.f32 1.0, %v3824
  %v3826 = vrcp.pop %v3804
  %v3827 = vmul.f32 %v3804, %v3826
  %v3828 = vsub.f32 1.0, %v3827
  %v3829 = vmul.f32 %v3826, %v3828
  %v3830 = vadd.f32 %v3826, %v3829
  %vm3831 = vweird.f32 %v3804
  %vm3832 = vweird.f32 %v3826
  %vm3833 = vmor %vm3831, %vm3832
  %v3834 = vsel %vm3833, %v3826, %v3830
  %v3835 = vand.u32 2147483647, %v3804
  %vm3836 = vcmp.eq.f32.partialorder %v3835, 8.507059e+37
  %v3837 = vand.u32 %v3804, 2147483648
  %v3838 = vor.u32 1.1754944e-38, %v3837
  %v3839 = vsel %vm3836, %v3838, %v3834
  %v3840 = vmul.f32 1.0, %v3839
  %v3841 = vrcp.pop %v3805
  %v3842 = vmul.f32 %v3805, %v3841
  %v3843 = vsub.f32 1.0, %v3842
  %v3844 = vmul.f32 %v3841, %v3843
  %v3845 = vadd.f32 %v3841, %v3844
  %vm3846 = vweird.f32 %v3805
  %vm3847 = vweird.f32 %v3841
  %vm3848 = vmor %vm3846, %vm3847
  %v3849 = vsel %vm3848, %v3841, %v3845
  %v3850 = vand.u32 2147483647, %v3805
  %vm3851 = vcmp.eq.f32.partialorder %v3850, 8.507059e+37
  %v3852 = vand.u32 %v3805, 2147483648
  %v3853 = vor.u32 1.1754944e-38, %v3852
  %v3854 = vsel %vm3851, %v3853, %v3849
  %v3855 = vmul.f32 1.0, %v3854
  %v3856 = vrcp.pop %v3806
  %v3857 = vmul.f32 %v3806, %v3856
  %v3858 = vsub.f32 1.0, %v3857
  %v3859 = vmul.f32 %v3856, %v3858
  %v3860 = vadd.f32 %v3856, %v3859
  %vm3861 = vweird.f32 %v3806
  %vm3862 = vweird.f32 %v3856
  %vm3863 = vmor %vm3861, %vm3862
  %v3864 = vsel %vm3863, %v3856, %v3860
  %v3865 = vand.u32 2147483647, %v3806
  %vm3866 = vcmp.eq.f32.partialorder %v3865, 8.507059e+37
  %v3867 = vand.u32 %v3806, 2147483648
  %v3868 = vor.u32 1.1754944e-38, %v3867
  %v3869 = vsel %vm3866, %v3868, %v3864
  %v3870 = vmul.f32 1.0, %v3869
  %v3871 = vrcp.pop %v3807
  %v3872 = vmul.f32 %v3807, %v3871
  %v3873 = vsub.f32 1.0, %v3872
  %v3874 = vmul.f32 %v3871, %v3873
  %v3875 = vadd.f32 %v3871, %v3874
  %vm3876 = vweird.f32 %v3807
  %vm3877 = vweird.f32 %v3871
  %vm3878 = vmor %vm3876, %vm3877
  %v3879 = vsel %vm3878, %v3871, %v3875
  %v3880 = vand.u32 2147483647, %v3807
  %vm3881 = vcmp.eq.f32.partialorder %v3880, 8.507059e+37
  %v3882 = vand.u32 %v3807, 2147483648
  %v3883 = vor.u32 1.1754944e-38, %v3882
  %v3884 = vsel %vm3881, %v3883, %v3879
  %v3885 = vmul.f32 1.0, %v3884
  %v3886 = vrcp.pop %v3808
  %v3887 = vmul.f32 %v3808, %v3886
  %v3888 = vsub.f32 1.0, %v3887
  %v3889 = vmul.f32 %v3886, %v3888
  %v3890 = vadd.f32 %v3886, %v3889
  %vm3891 = vweird.f32 %v3808
  %vm3892 = vweird.f32 %v3886
  %vm3893 = vmor %vm3891, %vm3892
  %v3894 = vsel %vm3893, %v3886, %v3890
  %v3895 = vand.u32 2147483647, %v3808
  %vm3896 = vcmp.eq.f32.partialorder %v3895, 8.507059e+37
  %v3897 = vand.u32 %v3808, 2147483648
  %v3898 = vor.u32 1.1754944e-38, %v3897
  %v3899 = vsel %vm3896, %v3898, %v3894
  %v3900 = vmul.f32 1.0, %v3899
  %v3901 = vrcp.pop %v3809
  %v3902 = vmul.f32 %v3809, %v3901
  %v3903 = vsub.f32 1.0, %v3902
  %v3904 = vmul.f32 %v3901, %v3903
  %v3905 = vadd.f32 %v3901, %v3904
  %vm3906 = vweird.f32 %v3809
  %vm3907 = vweird.f32 %v3901
  %vm3908 = vmor %vm3906, %vm3907
  %v3909 = vsel %vm3908, %v3901, %v3905
  %v3910 = vand.u32 2147483647, %v3809
  %vm3911 = vcmp.eq.f32.partialorder %v3910, 8.507059e+37
  %v3912 = vand.u32 %v3809, 2147483648
  %v3913 = vor.u32 1.1754944e-38, %v3912
  %v3914 = vsel %vm3911, %v3913, %v3909
  %v3915 = vmul.f32 1.0, %v3914
  %v3916 = vrcp.pop %v3810
  %v3917 = vmul.f32 %v3810, %v3916
  %v3918 = vsub.f32 1.0, %v3917
  %v3919 = vmul.f32 %v3916, %v3918
  %v3920 = vadd.f32 %v3916, %v3919
  %vm3921 = vweird.f32 %v3810
  %vm3922 = vweird.f32 %v3916
  %vm3923 = vmor %vm3921, %vm3922
  %v3924 = vsel %vm3923, %v3916, %v3920
  %v3925 = vand.u32 2147483647, %v3810
  %vm3926 = vcmp.eq.f32.partialorder %v3925, 8.507059e+37
  %v3927 = vand.u32 %v3810, 2147483648
  %v3928 = vor.u32 1.1754944e-38, %v3927
  %v3929 = vsel %vm3926, %v3928, %v3924
  %v3930 = vmul.f32 1.0, %v3929
  %v3931 = vmul.f32 %v2396, %v3825
  %v3932 = vmul.f32 %v2411, %v3840
  %v3933 = vmul.f32 %v2426, %v3855
  %v3934 = vmul.f32 %v2441, %v3870
  %v3935 = vmul.f32 %v2456, %v3885
  %v3936 = vmul.f32 %v2471, %v3900
  %v3937 = vmul.f32 %v2486, %v3915
  %v3938 = vmul.f32 %v2501, %v3930
  %v3939 = vmul.f32 %v3825, %v3825
  %v3940 = vmul.f32 %v3840, %v3840
  %v3941 = vmul.f32 %v3855, %v3855
  %v3942 = vmul.f32 %v3870, %v3870
  %v3943 = vmul.f32 %v3885, %v3885
  %v3944 = vmul.f32 %v3900, %v3900
  %v3945 = vmul.f32 %v3915, %v3915
  %v3946 = vmul.f32 %v3930, %v3930
  %v3947 = vmul.f32 %v3669, %v3939
  %v3948 = vmul.f32 %v3672, %v3940
  %v3949 = vmul.f32 %v3675, %v3941
  %v3950 = vmul.f32 %v3678, %v3942
  %v3951 = vmul.f32 %v3681, %v3943
  %v3952 = vmul.f32 %v3684, %v3944
  %v3953 = vmul.f32 %v3687, %v3945
  %v3954 = vmul.f32 %v3690, %v3946
  %vm3955 = vcmp.eq.s32.totalorder %v17, 0
  %v3956 = vperm.slane %v2775, 0
  %v3957 = vperm.slane %v2776, 0
  %v3958 = vperm.slane %v2777, 0
  %v3959 = vperm.slane %v2778, 0
  %v3960 = vperm.slane %v2779, 0
  %v3961 = vperm.slane %v2780, 0
  %v3962 = vperm.slane %v2781, 0
  %v3963 = vperm.slane %v2782, 0
  %v3964 = vmul.f32 %v1414, %v3956
  %v3965 = vmul.f32 %v1415, %v3956
  %v3966 = vmul.f32 %v1416, %v3957
  %v3967 = vmul.f32 %v1417, %v3957
  %v3968 = vmul.f32 %v1418, %v3958
  %v3969 = vmul.f32 %v1419, %v3958
  %v3970 = vmul.f32 %v1420, %v3959
  %v3971 = vmul.f32 %v1421, %v3959
  %v3972 = vmul.f32 %v1422, %v3960
  %v3973 = vmul.f32 %v1423, %v3960
  %v3974 = vmul.f32 %v1424, %v3961
  %v3975 = vmul.f32 %v1425, %v3961
  %v3976 = vmul.f32 %v1426, %v3962
  %v3977 = vmul.f32 %v1427, %v3962
  %v3978 = vmul.f32 %v1428, %v3963
  %v3979 = vmul.f32 %v1429, %v3963
  %v3980 = vsel %vm532, %v3964, 0.0
  %3981 = vadd.xlane.f32.xlu0 %v3980
  %v3982 = vpop.xlane.xlu0 %3981
  %v3983 = vsel %vm536, %v3965, 0.0
  %3984 = vadd.xlane.f32.xlu0 %v3983
  %v3985 = vpop.xlane.xlu0 %3984
  %v3986 = vsel %vm532, %v3966, 0.0
  %3987 = vadd.xlane.f32.xlu0 %v3986
  %v3988 = vpop.xlane.xlu0 %3987
  %v3989 = vsel %vm536, %v3967, 0.0
  %3990 = vadd.xlane.f32.xlu0 %v3989
  %v3991 = vpop.xlane.xlu0 %3990
  %v3992 = vsel %vm532, %v3968, 0.0
  %3993 = vadd.xlane.f32.xlu0 %v3992
  %v3994 = vpop.xlane.xlu0 %3993
  %v3995 = vsel %vm536, %v3969, 0.0
  %3996 = vadd.xlane.f32.xlu0 %v3995
  %v3997 = vpop.xlane.xlu0 %3996
  %v3998 = vsel %vm532, %v3970, 0.0
  %3999 = vadd.xlane.f32.xlu0 %v3998
  %v4000 = vpop.xlane.xlu0 %3999
  %v4001 = vsel %vm536, %v3971, 0.0
  %4002 = vadd.xlane.f32.xlu0 %v4001
  %v4003 = vpop.xlane.xlu0 %4002
  %v4004 = vsel %vm532, %v3972, 0.0
  %4005 = vadd.xlane.f32.xlu0 %v4004
  %v4006 = vpop.xlane.xlu0 %4005
  %v4007 = vsel %vm536, %v3973, 0.0
  %4008 = vadd.xlane.f32.xlu0 %v4007
  %v4009 = vpop.xlane.xlu0 %4008
  %v4010 = vsel %vm532, %v3974, 0.0
  %4011 = vadd.xlane.f32.xlu0 %v4010
  %v4012 = vpop.xlane.xlu0 %4011
  %v4013 = vsel %vm536, %v3975, 0.0
  %4014 = vadd.xlane.f32.xlu0 %v4013
  %v4015 = vpop.xlane.xlu0 %4014
  %v4016 = vsel %vm532, %v3976, 0.0
  %4017 = vadd.xlane.f32.xlu0 %v4016
  %v4018 = vpop.xlane.xlu0 %4017
  %v4019 = vsel %vm536, %v3977, 0.0
  %4020 = vadd.xlane.f32.xlu0 %v4019
  %v4021 = vpop.xlane.xlu0 %4020
  %v4022 = vsel %vm532, %v3978, 0.0
  %4023 = vadd.xlane.f32.xlu0 %v4022
  %v4024 = vpop.xlane.xlu0 %4023
  %v4025 = vsel %vm536, %v3979, 0.0
  %4026 = vadd.xlane.f32.xlu0 %v4025
  %v4027 = vpop.xlane.xlu0 %4026
  %v4028 = vsel %vm3955, 1, 0
  %vm4029 = vcmp.eq.s32.totalorder %v4028, 1
  %v4030 = vsel %vm4029, %v3982, 0.0
  %v4031 = vsel %vm4029, %v3985, 0.0
  %v4032 = vsel %vm4029, %v3988, 0.0
  %v4033 = vsel %vm4029, %v3991, 0.0
  %v4034 = vsel %vm4029, %v3994, 0.0
  %v4035 = vsel %vm4029, %v3997, 0.0
  %v4036 = vsel %vm4029, %v4000, 0.0
  %v4037 = vsel %vm4029, %v4003, 0.0
  %v4038 = vsel %vm4029, %v4006, 0.0
  %v4039 = vsel %vm4029, %v4009, 0.0
  %v4040 = vsel %vm4029, %v4012, 0.0
  %v4041 = vsel %vm4029, %v4015, 0.0
  %v4042 = vsel %vm4029, %v4018, 0.0
  %v4043 = vsel %vm4029, %v4021, 0.0
  %v4044 = vsel %vm4029, %v4024, 0.0
  %v4045 = vsel %vm4029, %v4027, 0.0
  %v4046 = vsel %vm4029, %v2791, 0.0
  %v4047 = vsel %vm4029, %v2792, 0.0
  %v4048 = vsel %vm4029, %v2793, 0.0
  %v4049 = vsel %vm4029, %v2794, 0.0
  %v4050 = vsel %vm4029, %v2795, 0.0
  %v4051 = vsel %vm4029, %v2796, 0.0
  %v4052 = vsel %vm4029, %v2797, 0.0
  %v4053 = vsel %vm4029, %v2798, 0.0
  %vm4054 = vcmp.eq.s32.totalorder %v17, 1
  %v4055 = vperm.slane %v3064, 1
  %v4056 = vperm.slane %v3065, 1
  %v4057 = vperm.slane %v3066, 1
  %v4058 = vperm.slane %v3067, 1
  %v4059 = vperm.slane %v3068, 1
  %v4060 = vperm.slane %v3069, 1
  %v4061 = vperm.slane %v3070, 1
  %v4062 = vperm.slane %v3071, 1
  %v4063 = vmul.f32 %v1414, %v4055
  %v4064 = vmul.f32 %v1415, %v4055
  %v4065 = vmul.f32 %v1416, %v4056
  %v4066 = vmul.f32 %v1417, %v4056
  %v4067 = vmul.f32 %v1418, %v4057
  %v4068 = vmul.f32 %v1419, %v4057
  %v4069 = vmul.f32 %v1420, %v4058
  %v4070 = vmul.f32 %v1421, %v4058
  %v4071 = vmul.f32 %v1422, %v4059
  %v4072 = vmul.f32 %v1423, %v4059
  %v4073 = vmul.f32 %v1424, %v4060
  %v4074 = vmul.f32 %v1425, %v4060
  %v4075 = vmul.f32 %v1426, %v4061
  %v4076 = vmul.f32 %v1427, %v4061
  %v4077 = vmul.f32 %v1428, %v4062
  %v4078 = vmul.f32 %v1429, %v4062
  %v4079 = vsel %vm532, %v4063, 0.0
  %4080 = vadd.xlane.f32.xlu0 %v4079
  %v4081 = vpop.xlane.xlu0 %4080
  %v4082 = vsel %vm536, %v4064, 0.0
  %4083 = vadd.xlane.f32.xlu0 %v4082
  %v4084 = vpop.xlane.xlu0 %4083
  %v4085 = vsel %vm532, %v4065, 0.0
  %4086 = vadd.xlane.f32.xlu0 %v4085
  %v4087 = vpop.xlane.xlu0 %4086
  %v4088 = vsel %vm536, %v4066, 0.0
  %4089 = vadd.xlane.f32.xlu0 %v4088
  %v4090 = vpop.xlane.xlu0 %4089
  %v4091 = vsel %vm532, %v4067, 0.0
  %4092 = vadd.xlane.f32.xlu0 %v4091
  %v4093 = vpop.xlane.xlu0 %4092
  %v4094 = vsel %vm536, %v4068, 0.0
  %4095 = vadd.xlane.f32.xlu0 %v4094
  %v4096 = vpop.xlane.xlu0 %4095
  %v4097 = vsel %vm532, %v4069, 0.0
  %4098 = vadd.xlane.f32.xlu0 %v4097
  %v4099 = vpop.xlane.xlu0 %4098
  %v4100 = vsel %vm536, %v4070, 0.0
  %4101 = vadd.xlane.f32.xlu0 %v4100
  %v4102 = vpop.xlane.xlu0 %4101
  %v4103 = vsel %vm532, %v4071, 0.0
  %4104 = vadd.xlane.f32.xlu0 %v4103
  %v4105 = vpop.xlane.xlu0 %4104
  %v4106 = vsel %vm536, %v4072, 0.0
  %4107 = vadd.xlane.f32.xlu0 %v4106
  %v4108 = vpop.xlane.xlu0 %4107
  %v4109 = vsel %vm532, %v4073, 0.0
  %4110 = vadd.xlane.f32.xlu0 %v4109
  %v4111 = vpop.xlane.xlu0 %4110
  %v4112 = vsel %vm536, %v4074, 0.0
  %4113 = vadd.xlane.f32.xlu0 %v4112
  %v4114 = vpop.xlane.xlu0 %4113
  %v4115 = vsel %vm532, %v4075, 0.0
  %4116 = vadd.xlane.f32.xlu0 %v4115
  %v4117 = vpop.xlane.xlu0 %4116
  %v4118 = vsel %vm536, %v4076, 0.0
  %4119 = vadd.xlane.f32.xlu0 %v4118
  %v4120 = vpop.xlane.xlu0 %4119
  %v4121 = vsel %vm532, %v4077, 0.0
  %4122 = vadd.xlane.f32.xlu0 %v4121
  %v4123 = vpop.xlane.xlu0 %4122
  %v4124 = vsel %vm536, %v4078, 0.0
  %4125 = vadd.xlane.f32.xlu0 %v4124
  %v4126 = vpop.xlane.xlu0 %4125
  %v4127 = vsel %vm4054, 1, 0
  %vm4128 = vcmp.eq.s32.totalorder %v4127, 1
  %v4129 = vsel %vm4128, %v4081, %v4030
  %v4130 = vsel %vm4128, %v4084, %v4031
  %v4131 = vsel %vm4128, %v4087, %v4032
  %v4132 = vsel %vm4128, %v4090, %v4033
  %v4133 = vsel %vm4128, %v4093, %v4034
  %v4134 = vsel %vm4128, %v4096, %v4035
  %v4135 = vsel %vm4128, %v4099, %v4036
  %v4136 = vsel %vm4128, %v4102, %v4037
  %v4137 = vsel %vm4128, %v4105, %v4038
  %v4138 = vsel %vm4128, %v4108, %v4039
  %v4139 = vsel %vm4128, %v4111, %v4040
  %v4140 = vsel %vm4128, %v4114, %v4041
  %v4141 = vsel %vm4128, %v4117, %v4042
  %v4142 = vsel %vm4128, %v4120, %v4043
  %v4143 = vsel %vm4128, %v4123, %v4044
  %v4144 = vsel %vm4128, %v4126, %v4045
  %v4153 = vrot.slane %v4046, 7
  %v4154 = vrot.slane %v4047, 7
  %v4155 = vrot.slane %v4048, 7
  %v4156 = vrot.slane %v4049, 7
  %v4157 = vrot.slane %v4050, 7
  %v4158 = vrot.slane %v4051, 7
  %v4159 = vrot.slane %v4052, 7
  %v4160 = vrot.slane %v4053, 7
  %v4169 = vsel %vm4128, %v3080, %v4153
  %v4170 = vsel %vm4128, %v3081, %v4154
  %v4171 = vsel %vm4128, %v3082, %v4155
  %v4172 = vsel %vm4128, %v3083, %v4156
  %v4173 = vsel %vm4128, %v3084, %v4157
  %v4174 = vsel %vm4128, %v3085, %v4158
  %v4175 = vsel %vm4128, %v3086, %v4159
  %v4176 = vsel %vm4128, %v3087, %v4160
  %vm4177 = vcmp.eq.s32.totalorder %v17, 2
  %v4178 = vperm.slane %v3353, 2
  %v4179 = vperm.slane %v3354, 2
  %v4180 = vperm.slane %v3355, 2
  %v4181 = vperm.slane %v3356, 2
  %v4182 = vperm.slane %v3357, 2
  %v4183 = vperm.slane %v3358, 2
  %v4184 = vperm.slane %v3359, 2
  %v4185 = vperm.slane %v3360, 2
  %v4186 = vmul.f32 %v1414, %v4178
  %v4187 = vmul.f32 %v1415, %v4178
  %v4188 = vmul.f32 %v1416, %v4179
  %v4189 = vmul.f32 %v1417, %v4179
  %v4190 = vmul.f32 %v1418, %v4180
  %v4191 = vmul.f32 %v1419, %v4180
  %v4192 = vmul.f32 %v1420, %v4181
  %v4193 = vmul.f32 %v1421, %v4181
  %v4194 = vmul.f32 %v1422, %v4182
  %v4195 = vmul.f32 %v1423, %v4182
  %v4196 = vmul.f32 %v1424, %v4183
  %v4197 = vmul.f32 %v1425, %v4183
  %v4198 = vmul.f32 %v1426, %v4184
  %v4199 = vmul.f32 %v1427, %v4184
  %v4200 = vmul.f32 %v1428, %v4185
  %v4201 = vmul.f32 %v1429, %v4185
  %v4202 = vsel %vm532, %v4186, 0.0
  %4203 = vadd.xlane.f32.xlu0 %v4202
  %v4204 = vpop.xlane.xlu0 %4203
  %v4205 = vsel %vm536, %v4187, 0.0
  %4206 = vadd.xlane.f32.xlu0 %v4205
  %v4207 = vpop.xlane.xlu0 %4206
  %v4208 = vsel %vm532, %v4188, 0.0
  %4209 = vadd.xlane.f32.xlu0 %v4208
  %v4210 = vpop.xlane.xlu0 %4209
  %v4211 = vsel %vm536, %v4189, 0.0
  %4212 = vadd.xlane.f32.xlu0 %v4211
  %v4213 = vpop.xlane.xlu0 %4212
  %v4214 = vsel %vm532, %v4190, 0.0
  %4215 = vadd.xlane.f32.xlu0 %v4214
  %v4216 = vpop.xlane.xlu0 %4215
  %v4217 = vsel %vm536, %v4191, 0.0
  %4218 = vadd.xlane.f32.xlu0 %v4217
  %v4219 = vpop.xlane.xlu0 %4218
  %v4220 = vsel %vm532, %v4192, 0.0
  %4221 = vadd.xlane.f32.xlu0 %v4220
  %v4222 = vpop.xlane.xlu0 %4221
  %v4223 = vsel %vm536, %v4193, 0.0
  %4224 = vadd.xlane.f32.xlu0 %v4223
  %v4225 = vpop.xlane.xlu0 %4224
  %v4226 = vsel %vm532, %v4194, 0.0
  %4227 = vadd.xlane.f32.xlu0 %v4226
  %v4228 = vpop.xlane.xlu0 %4227
  %v4229 = vsel %vm536, %v4195, 0.0
  %4230 = vadd.xlane.f32.xlu0 %v4229
  %v4231 = vpop.xlane.xlu0 %4230
  %v4232 = vsel %vm532, %v4196, 0.0
  %4233 = vadd.xlane.f32.xlu0 %v4232
  %v4234 = vpop.xlane.xlu0 %4233
  %v4235 = vsel %vm536, %v4197, 0.0
  %4236 = vadd.xlane.f32.xlu0 %v4235
  %v4237 = vpop.xlane.xlu0 %4236
  %v4238 = vsel %vm532, %v4198, 0.0
  %4239 = vadd.xlane.f32.xlu0 %v4238
  %v4240 = vpop.xlane.xlu0 %4239
  %v4241 = vsel %vm536, %v4199, 0.0
  %4242 = vadd.xlane.f32.xlu0 %v4241
  %v4243 = vpop.xlane.xlu0 %4242
  %v4244 = vsel %vm532, %v4200, 0.0
  %4245 = vadd.xlane.f32.xlu0 %v4244
  %v4246 = vpop.xlane.xlu0 %4245
  %v4247 = vsel %vm536, %v4201, 0.0
  %4248 = vadd.xlane.f32.xlu0 %v4247
  %v4249 = vpop.xlane.xlu0 %4248
  %v4250 = vsel %vm4177, 1, 0
  %vm4251 = vcmp.eq.s32.totalorder %v4250, 1
  %v4252 = vsel %vm4251, %v4204, %v4129
  %v4253 = vsel %vm4251, %v4207, %v4130
  %v4254 = vsel %vm4251, %v4210, %v4131
  %v4255 = vsel %vm4251, %v4213, %v4132
  %v4256 = vsel %vm4251, %v4216, %v4133
  %v4257 = vsel %vm4251, %v4219, %v4134
  %v4258 = vsel %vm4251, %v4222, %v4135
  %v4259 = vsel %vm4251, %v4225, %v4136
  %v4260 = vsel %vm4251, %v4228, %v4137
  %v4261 = vsel %vm4251, %v4231, %v4138
  %v4262 = vsel %vm4251, %v4234, %v4139
  %v4263 = vsel %vm4251, %v4237, %v4140
  %v4264 = vsel %vm4251, %v4240, %v4141
  %v4265 = vsel %vm4251, %v4243, %v4142
  %v4266 = vsel %vm4251, %v4246, %v4143
  %v4267 = vsel %vm4251, %v4249, %v4144
  %v4276 = vrot.slane %v4169, 7
  %v4277 = vrot.slane %v4170, 7
  %v4278 = vrot.slane %v4171, 7
  %v4279 = vrot.slane %v4172, 7
  %v4280 = vrot.slane %v4173, 7
  %v4281 = vrot.slane %v4174, 7
  %v4282 = vrot.slane %v4175, 7
  %v4283 = vrot.slane %v4176, 7
  %v4292 = vsel %vm4251, %v3369, %v4276
  %v4293 = vsel %vm4251, %v3370, %v4277
  %v4294 = vsel %vm4251, %v3371, %v4278
  %v4295 = vsel %vm4251, %v3372, %v4279
  %v4296 = vsel %vm4251, %v3373, %v4280
  %v4297 = vsel %vm4251, %v3374, %v4281
  %v4298 = vsel %vm4251, %v3375, %v4282
  %v4299 = vsel %vm4251, %v3376, %v4283
  %vm4300 = vcmp.eq.s32.totalorder %v17, 3
  %v4301 = vperm.slane %v3642, 3
  %v4302 = vperm.slane %v3643, 3
  %v4303 = vperm.slane %v3644, 3
  %v4304 = vperm.slane %v3645, 3
  %v4305 = vperm.slane %v3646, 3
  %v4306 = vperm.slane %v3647, 3
  %v4307 = vperm.slane %v3648, 3
  %v4308 = vperm.slane %v3649, 3
  %v4309 = vmul.f32 %v1414, %v4301
  %v4310 = vmul.f32 %v1415, %v4301
  %v4311 = vmul.f32 %v1416, %v4302
  %v4312 = vmul.f32 %v1417, %v4302
  %v4313 = vmul.f32 %v1418, %v4303
  %v4314 = vmul.f32 %v1419, %v4303
  %v4315 = vmul.f32 %v1420, %v4304
  %v4316 = vmul.f32 %v1421, %v4304
  %v4317 = vmul.f32 %v1422, %v4305
  %v4318 = vmul.f32 %v1423, %v4305
  %v4319 = vmul.f32 %v1424, %v4306
  %v4320 = vmul.f32 %v1425, %v4306
  %v4321 = vmul.f32 %v1426, %v4307
  %v4322 = vmul.f32 %v1427, %v4307
  %v4323 = vmul.f32 %v1428, %v4308
  %v4324 = vmul.f32 %v1429, %v4308
  %v4325 = vsel %vm532, %v4309, 0.0
  %4326 = vadd.xlane.f32.xlu0 %v4325
  %v4327 = vpop.xlane.xlu0 %4326
  %v4328 = vsel %vm536, %v4310, 0.0
  %4329 = vadd.xlane.f32.xlu0 %v4328
  %v4330 = vpop.xlane.xlu0 %4329
  %v4331 = vsel %vm532, %v4311, 0.0
  %4332 = vadd.xlane.f32.xlu0 %v4331
  %v4333 = vpop.xlane.xlu0 %4332
  %v4334 = vsel %vm536, %v4312, 0.0
  %4335 = vadd.xlane.f32.xlu0 %v4334
  %v4336 = vpop.xlane.xlu0 %4335
  %v4337 = vsel %vm532, %v4313, 0.0
  %4338 = vadd.xlane.f32.xlu0 %v4337
  %v4339 = vpop.xlane.xlu0 %4338
  %v4340 = vsel %vm536, %v4314, 0.0
  %4341 = vadd.xlane.f32.xlu0 %v4340
  %v4342 = vpop.xlane.xlu0 %4341
  %v4343 = vsel %vm532, %v4315, 0.0
  %4344 = vadd.xlane.f32.xlu0 %v4343
  %v4345 = vpop.xlane.xlu0 %4344
  %v4346 = vsel %vm536, %v4316, 0.0
  %4347 = vadd.xlane.f32.xlu0 %v4346
  %v4348 = vpop.xlane.xlu0 %4347
  %v4349 = vsel %vm532, %v4317, 0.0
  %4350 = vadd.xlane.f32.xlu0 %v4349
  %v4351 = vpop.xlane.xlu0 %4350
  %v4352 = vsel %vm536, %v4318, 0.0
  %4353 = vadd.xlane.f32.xlu0 %v4352
  %v4354 = vpop.xlane.xlu0 %4353
  %v4355 = vsel %vm532, %v4319, 0.0
  %4356 = vadd.xlane.f32.xlu0 %v4355
  %v4357 = vpop.xlane.xlu0 %4356
  %v4358 = vsel %vm536, %v4320, 0.0
  %4359 = vadd.xlane.f32.xlu0 %v4358
  %v4360 = vpop.xlane.xlu0 %4359
  %v4361 = vsel %vm532, %v4321, 0.0
  %4362 = vadd.xlane.f32.xlu0 %v4361
  %v4363 = vpop.xlane.xlu0 %4362
  %v4364 = vsel %vm536, %v4322, 0.0
  %4365 = vadd.xlane.f32.xlu0 %v4364
  %v4366 = vpop.xlane.xlu0 %4365
  %v4367 = vsel %vm532, %v4323, 0.0
  %4368 = vadd.xlane.f32.xlu0 %v4367
  %v4369 = vpop.xlane.xlu0 %4368
  %v4370 = vsel %vm536, %v4324, 0.0
  %4371 = vadd.xlane.f32.xlu0 %v4370
  %v4372 = vpop.xlane.xlu0 %4371
  %v4373 = vsel %vm4300, 1, 0
  %vm4374 = vcmp.eq.s32.totalorder %v4373, 1
  %v4375 = vsel %vm4374, %v4327, %v4252
  %v4376 = vsel %vm4374, %v4330, %v4253
  %v4377 = vsel %vm4374, %v4333, %v4254
  %v4378 = vsel %vm4374, %v4336, %v4255
  %v4379 = vsel %vm4374, %v4339, %v4256
  %v4380 = vsel %vm4374, %v4342, %v4257
  %v4381 = vsel %vm4374, %v4345, %v4258
  %v4382 = vsel %vm4374, %v4348, %v4259
  %v4383 = vsel %vm4374, %v4351, %v4260
  %v4384 = vsel %vm4374, %v4354, %v4261
  %v4385 = vsel %vm4374, %v4357, %v4262
  %v4386 = vsel %vm4374, %v4360, %v4263
  %v4387 = vsel %vm4374, %v4363, %v4264
  %v4388 = vsel %vm4374, %v4366, %v4265
  %v4389 = vsel %vm4374, %v4369, %v4266
  %v4390 = vsel %vm4374, %v4372, %v4267
  %v4399 = vrot.slane %v4292, 7
  %v4400 = vrot.slane %v4293, 7
  %v4401 = vrot.slane %v4294, 7
  %v4402 = vrot.slane %v4295, 7
  %v4403 = vrot.slane %v4296, 7
  %v4404 = vrot.slane %v4297, 7
  %v4405 = vrot.slane %v4298, 7
  %v4406 = vrot.slane %v4299, 7
  %v4415 = vsel %vm4374, %v3658, %v4399
  %v4416 = vsel %vm4374, %v3659, %v4400
  %v4417 = vsel %vm4374, %v3660, %v4401
  %v4418 = vsel %vm4374, %v3661, %v4402
  %v4419 = vsel %vm4374, %v3662, %v4403
  %v4420 = vsel %vm4374, %v3663, %v4404
  %v4421 = vsel %vm4374, %v3664, %v4405
  %v4422 = vsel %vm4374, %v3665, %v4406
  %vm4423 = vcmp.eq.s32.totalorder %v17, 4
  %v4424 = vperm.slane %v3931, 4
  %v4425 = vperm.slane %v3932, 4
  %v4426 = vperm.slane %v3933, 4
  %v4427 = vperm.slane %v3934, 4
  %v4428 = vperm.slane %v3935, 4
  %v4429 = vperm.slane %v3936, 4
  %v4430 = vperm.slane %v3937, 4
  %v4431 = vperm.slane %v3938, 4
  %v4432 = vmul.f32 %v1414, %v4424
  %v4433 = vmul.f32 %v1415, %v4424
  %v4434 = vmul.f32 %v1416, %v4425
  %v4435 = vmul.f32 %v1417, %v4425
  %v4436 = vmul.f32 %v1418, %v4426
  %v4437 = vmul.f32 %v1419, %v4426
  %v4438 = vmul.f32 %v1420, %v4427
  %v4439 = vmul.f32 %v1421, %v4427
  %v4440 = vmul.f32 %v1422, %v4428
  %v4441 = vmul.f32 %v1423, %v4428
  %v4442 = vmul.f32 %v1424, %v4429
  %v4443 = vmul.f32 %v1425, %v4429
  %v4444 = vmul.f32 %v1426, %v4430
  %v4445 = vmul.f32 %v1427, %v4430
  %v4446 = vmul.f32 %v1428, %v4431
  %v4447 = vmul.f32 %v1429, %v4431
  %v4448 = vsel %vm532, %v4432, 0.0
  %4449 = vadd.xlane.f32.xlu0 %v4448
  %v4450 = vpop.xlane.xlu0 %4449
  %v4451 = vsel %vm536, %v4433, 0.0
  %4452 = vadd.xlane.f32.xlu0 %v4451
  %v4453 = vpop.xlane.xlu0 %4452
  %v4454 = vsel %vm532, %v4434, 0.0
  %4455 = vadd.xlane.f32.xlu0 %v4454
  %v4456 = vpop.xlane.xlu0 %4455
  %v4457 = vsel %vm536, %v4435, 0.0
  %4458 = vadd.xlane.f32.xlu0 %v4457
  %v4459 = vpop.xlane.xlu0 %4458
  %v4460 = vsel %vm532, %v4436, 0.0
  %4461 = vadd.xlane.f32.xlu0 %v4460
  %v4462 = vpop.xlane.xlu0 %4461
  %v4463 = vsel %vm536, %v4437, 0.0
  %4464 = vadd.xlane.f32.xlu0 %v4463
  %v4465 = vpop.xlane.xlu0 %4464
  %v4466 = vsel %vm532, %v4438, 0.0
  %4467 = vadd.xlane.f32.xlu0 %v4466
  %v4468 = vpop.xlane.xlu0 %4467
  %v4469 = vsel %vm536, %v4439, 0.0
  %4470 = vadd.xlane.f32.xlu0 %v4469
  %v4471 = vpop.xlane.xlu0 %4470
  %v4472 = vsel %vm532, %v4440, 0.0
  %4473 = vadd.xlane.f32.xlu0 %v4472
  %v4474 = vpop.xlane.xlu0 %4473
  %v4475 = vsel %vm536, %v4441, 0.0
  %4476 = vadd.xlane.f32.xlu0 %v4475
  %v4477 = vpop.xlane.xlu0 %4476
  %v4478 = vsel %vm532, %v4442, 0.0
  %4479 = vadd.xlane.f32.xlu0 %v4478
  %v4480 = vpop.xlane.xlu0 %4479
  %v4481 = vsel %vm536, %v4443, 0.0
  %4482 = vadd.xlane.f32.xlu0 %v4481
  %v4483 = vpop.xlane.xlu0 %4482
  %v4484 = vsel %vm532, %v4444, 0.0
  %4485 = vadd.xlane.f32.xlu0 %v4484
  %v4486 = vpop.xlane.xlu0 %4485
  %v4487 = vsel %vm536, %v4445, 0.0
  %4488 = vadd.xlane.f32.xlu0 %v4487
  %v4489 = vpop.xlane.xlu0 %4488
  %v4490 = vsel %vm532, %v4446, 0.0
  %4491 = vadd.xlane.f32.xlu0 %v4490
  %v4492 = vpop.xlane.xlu0 %4491
  %v4493 = vsel %vm536, %v4447, 0.0
  %4494 = vadd.xlane.f32.xlu0 %v4493
  %v4495 = vpop.xlane.xlu0 %4494
  %v4496 = vsel %vm4423, 1, 0
  %vm4497 = vcmp.eq.s32.totalorder %v4496, 1
  %v4498 = vsel %vm4497, %v4450, %v4375
  %v4499 = vsel %vm4497, %v4453, %v4376
  %v4500 = vsel %vm4497, %v4456, %v4377
  %v4501 = vsel %vm4497, %v4459, %v4378
  %v4502 = vsel %vm4497, %v4462, %v4379
  %v4503 = vsel %vm4497, %v4465, %v4380
  %v4504 = vsel %vm4497, %v4468, %v4381
  %v4505 = vsel %vm4497, %v4471, %v4382
  %v4506 = vsel %vm4497, %v4474, %v4383
  %v4507 = vsel %vm4497, %v4477, %v4384
  %v4508 = vsel %vm4497, %v4480, %v4385
  %v4509 = vsel %vm4497, %v4483, %v4386
  %v4510 = vsel %vm4497, %v4486, %v4387
  %v4511 = vsel %vm4497, %v4489, %v4388
  %v4512 = vsel %vm4497, %v4492, %v4389
  %v4513 = vsel %vm4497, %v4495, %v4390
  %v4522 = vrot.slane %v4415, 7
  %v4523 = vrot.slane %v4416, 7
  %v4524 = vrot.slane %v4417, 7
  %v4525 = vrot.slane %v4418, 7
  %v4526 = vrot.slane %v4419, 7
  %v4527 = vrot.slane %v4420, 7
  %v4528 = vrot.slane %v4421, 7
  %v4529 = vrot.slane %v4422, 7
  %v4538 = vsel %vm4497, %v3947, %v4522
  %v4539 = vsel %vm4497, %v3948, %v4523
  %v4540 = vsel %vm4497, %v3949, %v4524
  %v4541 = vsel %vm4497, %v3950, %v4525
  %v4542 = vsel %vm4497, %v3951, %v4526
  %v4543 = vsel %vm4497, %v3952, %v4527
  %v4544 = vsel %vm4497, %v3953, %v4528
  %v4545 = vsel %vm4497, %v3954, %v4529
  %v4546 = vsub.f32 0.0, %v4498
  %v4547 = vsub.f32 0.0, %v4499
  %v4548 = vsub.f32 0.0, %v4500
  %v4549 = vsub.f32 0.0, %v4501
  %v4550 = vsub.f32 0.0, %v4502
  %v4551 = vsub.f32 0.0, %v4503
  %v4552 = vsub.f32 0.0, %v4504
  %v4553 = vsub.f32 0.0, %v4505
  %v4554 = vsub.f32 0.0, %v4506
  %v4555 = vsub.f32 0.0, %v4507
  %v4556 = vsub.f32 0.0, %v4508
  %v4557 = vsub.f32 0.0, %v4509
  %v4558 = vsub.f32 0.0, %v4510
  %v4559 = vsub.f32 0.0, %v4511
  %v4560 = vsub.f32 0.0, %v4512
  %v4561 = vsub.f32 0.0, %v4513
  %v4562 = vmul.f32 %v4546, 0.02
  %v4563 = vmul.f32 %v4547, 0.02
  %v4564 = vmul.f32 %v4548, 0.02
  %v4565 = vmul.f32 %v4549, 0.02
  %v4566 = vmul.f32 %v4550, 0.02
  %v4567 = vmul.f32 %v4551, 0.02
  %v4568 = vmul.f32 %v4552, 0.02
  %v4569 = vmul.f32 %v4553, 0.02
  %v4570 = vmul.f32 %v4554, 0.02
  %v4571 = vmul.f32 %v4555, 0.02
  %v4572 = vmul.f32 %v4556, 0.02
  %v4573 = vmul.f32 %v4557, 0.02
  %v4574 = vmul.f32 %v4558, 0.02
  %v4575 = vmul.f32 %v4559, 0.02
  %v4576 = vmul.f32 %v4560, 0.02
  %v4577 = vmul.f32 %v4561, 0.02
  %v4578 = vadd.f32 %v4562, 1.0
  %v4579 = vadd.f32 %v4563, 1.0
  %v4580 = vadd.f32 %v4564, 1.0
  %v4581 = vadd.f32 %v4565, 1.0
  %v4582 = vadd.f32 %v4566, 1.0
  %v4583 = vadd.f32 %v4567, 1.0
  %v4584 = vadd.f32 %v4568, 1.0
  %v4585 = vadd.f32 %v4569, 1.0
  %v4586 = vadd.f32 %v4570, 1.0
  %v4587 = vadd.f32 %v4571, 1.0
  %v4588 = vadd.f32 %v4572, 1.0
  %v4589 = vadd.f32 %v4573, 1.0
  %v4590 = vadd.f32 %v4574, 1.0
  %v4591 = vadd.f32 %v4575, 1.0
  %v4592 = vadd.f32 %v4576, 1.0
  %v4593 = vadd.f32 %v4577, 1.0
  %v4594 = vmul.f32 %v4538, 0.01
  %v4595 = vmul.f32 %v4539, 0.01
  %v4596 = vmul.f32 %v4540, 0.01
  %v4597 = vmul.f32 %v4541, 0.01
  %v4598 = vmul.f32 %v4542, 0.01
  %v4599 = vmul.f32 %v4543, 0.01
  %v4600 = vmul.f32 %v4544, 0.01
  %v4601 = vmul.f32 %v4545, 0.01
  %v4602 = vperm.slane %v4594, 4
  %v4603 = vperm.slane %v4595, 4
  %v4604 = vperm.slane %v4596, 4
  %v4605 = vperm.slane %v4597, 4
  %v4606 = vperm.slane %v4598, 4
  %v4607 = vperm.slane %v4599, 4
  %v4608 = vperm.slane %v4600, 4
  %v4609 = vperm.slane %v4601, 4
  %v4610 = vadd.f32 %v4578, %v4602
  %v4611 = vadd.f32 %v4579, %v4602
  %v4612 = vadd.f32 %v4580, %v4603
  %v4613 = vadd.f32 %v4581, %v4603
  %v4614 = vadd.f32 %v4582, %v4604
  %v4615 = vadd.f32 %v4583, %v4604
  %v4616 = vadd.f32 %v4584, %v4605
  %v4617 = vadd.f32 %v4585, %v4605
  %v4618 = vadd.f32 %v4586, %v4606
  %v4619 = vadd.f32 %v4587, %v4606
  %v4620 = vadd.f32 %v4588, %v4607
  %v4621 = vadd.f32 %v4589, %v4607
  %v4622 = vadd.f32 %v4590, %v4608
  %v4623 = vadd.f32 %v4591, %v4608
  %v4624 = vadd.f32 %v4592, %v4609
  %v4625 = vadd.f32 %v4593, %v4609
  %v4626 = vsub.f32 1.0, %v1686
  %v4627 = vsub.f32 1.0, %v1687
  %v4628 = vsub.f32 1.0, %v1688
  %v4629 = vsub.f32 1.0, %v1689
  %v4630 = vsub.f32 1.0, %v1690
  %v4631 = vsub.f32 1.0, %v1691
  %v4632 = vsub.f32 1.0, %v1692
  %v4633 = vsub.f32 1.0, %v1693
  %v4634 = vsub.f32 1.0, %v1694
  %v4635 = vsub.f32 1.0, %v1695
  %v4636 = vsub.f32 1.0, %v1696
  %v4637 = vsub.f32 1.0, %v1697
  %v4638 = vsub.f32 1.0, %v1698
  %v4639 = vsub.f32 1.0, %v1699
  %v4640 = vsub.f32 1.0, %v1700
  %v4641 = vsub.f32 1.0, %v1701
  %v4642 = vmul.f32 %v1480, 0.0001
  %v4643 = vmul.f32 %v1483, 0.0001
  %v4644 = vmul.f32 %v1486, 0.0001
  %v4645 = vmul.f32 %v1489, 0.0001
  %v4646 = vmul.f32 %v1492, 0.0001
  %v4647 = vmul.f32 %v1495, 0.0001
  %v4648 = vmul.f32 %v1498, 0.0001
  %v4649 = vmul.f32 %v1501, 0.0001
  %v4650 = vmul.f32 %v1504, 0.0001
  %v4651 = vmul.f32 %v1507, 0.0001
  %v4652 = vmul.f32 %v1510, 0.0001
  %v4653 = vmul.f32 %v1513, 0.0001
  %v4654 = vmul.f32 %v1516, 0.0001
  %v4655 = vmul.f32 %v1519, 0.0001
  %v4656 = vmul.f32 %v1522, 0.0001
  %v4657 = vmul.f32 %v1525, 0.0001
  %v4658 = vperm.slane %v4538, 4
  %v4659 = vperm.slane %v4539, 4
  %v4660 = vperm.slane %v4540, 4
  %v4661 = vperm.slane %v4541, 4
  %v4662 = vperm.slane %v4542, 4
  %v4663 = vperm.slane %v4543, 4
  %v4664 = vperm.slane %v4544, 4
  %v4665 = vperm.slane %v4545, 4
  %v4666 = vmul.f32 %v4642, %v4658
  %v4667 = vmul.f32 %v4643, %v4658
  %v4668 = vmul.f32 %v4644, %v4659
  %v4669 = vmul.f32 %v4645, %v4659
  %v4670 = vmul.f32 %v4646, %v4660
  %v4671 = vmul.f32 %v4647, %v4660
  %v4672 = vmul.f32 %v4648, %v4661
  %v4673 = vmul.f32 %v4649, %v4661
  %v4674 = vmul.f32 %v4650, %v4662
  %v4675 = vmul.f32 %v4651, %v4662
  %v4676 = vmul.f32 %v4652, %v4663
  %v4677 = vmul.f32 %v4653, %v4663
  %v4678 = vmul.f32 %v4654, %v4664
  %v4679 = vmul.f32 %v4655, %v4664
  %v4680 = vmul.f32 %v4656, %v4665
  %v4681 = vmul.f32 %v4657, %v4665
  %v4682 = vadd.f32 %v4578, %v4666
  %v4683 = vadd.f32 %v4579, %v4667
  %v4684 = vadd.f32 %v4580, %v4668
  %v4685 = vadd.f32 %v4581, %v4669
  %v4686 = vadd.f32 %v4582, %v4670
  %v4687 = vadd.f32 %v4583, %v4671
  %v4688 = vadd.f32 %v4584, %v4672
  %v4689 = vadd.f32 %v4585, %v4673
  %v4690 = vadd.f32 %v4586, %v4674
  %v4691 = vadd.f32 %v4587, %v4675
  %v4692 = vadd.f32 %v4588, %v4676
  %v4693 = vadd.f32 %v4589, %v4677
  %v4694 = vadd.f32 %v4590, %v4678
  %v4695 = vadd.f32 %v4591, %v4679
  %v4696 = vadd.f32 %v4592, %v4680
  %v4697 = vadd.f32 %v4593, %v4681
  %v4698 = vmul.f32 %v4610, %v4610
  %v4699 = vmul.f32 %v4611, %v4611
  %v4700 = vmul.f32 %v4612, %v4612
  %v4701 = vmul.f32 %v4613, %v4613
  %v4702 = vmul.f32 %v4614, %v4614
  %v4703 = vmul.f32 %v4615, %v4615
  %v4704 = vmul.f32 %v4616, %v4616
  %v4705 = vmul.f32 %v4617, %v4617
  %v4706 = vmul.f32 %v4618, %v4618
  %v4707 = vmul.f32 %v4619, %v4619
  %v4708 = vmul.f32 %v4620, %v4620
  %v4709 = vmul.f32 %v4621, %v4621
  %v4710 = vmul.f32 %v4622, %v4622
  %v4711 = vmul.f32 %v4623, %v4623
  %v4712 = vmul.f32 %v4624, %v4624
  %v4713 = vmul.f32 %v4625, %v4625
  %v4714 = vmul.f32 %v4698, %v1480
  %v4715 = vmul.f32 %v4699, %v1483
  %v4716 = vmul.f32 %v4700, %v1486
  %v4717 = vmul.f32 %v4701, %v1489
  %v4718 = vmul.f32 %v4702, %v1492
  %v4719 = vmul.f32 %v4703, %v1495
  %v4720 = vmul.f32 %v4704, %v1498
  %v4721 = vmul.f32 %v4705, %v1501
  %v4722 = vmul.f32 %v4706, %v1504
  %v4723 = vmul.f32 %v4707, %v1507
  %v4724 = vmul.f32 %v4708, %v1510
  %v4725 = vmul.f32 %v4709, %v1513
  %v4726 = vmul.f32 %v4710, %v1516
  %v4727 = vmul.f32 %v4711, %v1519
  %v4728 = vmul.f32 %v4712, %v1522
  %v4729 = vmul.f32 %v4713, %v1525
  %v4730 = vmul.f32 %v4610, 2.0
  %v4731 = vmul.f32 %v4611, 2.0
  %v4732 = vmul.f32 %v4612, 2.0
  %v4733 = vmul.f32 %v4613, 2.0
  %v4734 = vmul.f32 %v4614, 2.0
  %v4735 = vmul.f32 %v4615, 2.0
  %v4736 = vmul.f32 %v4616, 2.0
  %v4737 = vmul.f32 %v4617, 2.0
  %v4738 = vmul.f32 %v4618, 2.0
  %v4739 = vmul.f32 %v4619, 2.0
  %v4740 = vmul.f32 %v4620, 2.0
  %v4741 = vmul.f32 %v4621, 2.0
  %v4742 = vmul.f32 %v4622, 2.0
  %v4743 = vmul.f32 %v4623, 2.0
  %v4744 = vmul.f32 %v4624, 2.0
  %v4745 = vmul.f32 %v4625, 2.0
  %v4746 = vmul.f32 %v4730, %v4626
  %v4747 = vmul.f32 %v4731, %v4627
  %v4748 = vmul.f32 %v4732, %v4628
  %v4749 = vmul.f32 %v4733, %v4629
  %v4750 = vmul.f32 %v4734, %v4630
  %v4751 = vmul.f32 %v4735, %v4631
  %v4752 = vmul.f32 %v4736, %v4632
  %v4753 = vmul.f32 %v4737, %v4633
  %v4754 = vmul.f32 %v4738, %v4634
  %v4755 = vmul.f32 %v4739, %v4635
  %v4756 = vmul.f32 %v4740, %v4636
  %v4757 = vmul.f32 %v4741, %v4637
  %v4758 = vmul.f32 %v4742, %v4638
  %v4759 = vmul.f32 %v4743, %v4639
  %v4760 = vmul.f32 %v4744, %v4640
  %v4761 = vmul.f32 %v4745, %v4641
  %v4762 = vmul.f32 %v4746, %v4546
  %v4763 = vmul.f32 %v4747, %v4547
  %v4764 = vmul.f32 %v4748, %v4548
  %v4765 = vmul.f32 %v4749, %v4549
  %v4766 = vmul.f32 %v4750, %v4550
  %v4767 = vmul.f32 %v4751, %v4551
  %v4768 = vmul.f32 %v4752, %v4552
  %v4769 = vmul.f32 %v4753, %v4553
  %v4770 = vmul.f32 %v4754, %v4554
  %v4771 = vmul.f32 %v4755, %v4555
  %v4772 = vmul.f32 %v4756, %v4556
  %v4773 = vmul.f32 %v4757, %v4557
  %v4774 = vmul.f32 %v4758, %v4558
  %v4775 = vmul.f32 %v4759, %v4559
  %v4776 = vmul.f32 %v4760, %v4560
  %v4777 = vmul.f32 %v4761, %v4561
  %v4778 = vadd.f32 %v4714, %v4762
  %v4779 = vadd.f32 %v4715, %v4763
  %v4780 = vadd.f32 %v4716, %v4764
  %v4781 = vadd.f32 %v4717, %v4765
  %v4782 = vadd.f32 %v4718, %v4766
  %v4783 = vadd.f32 %v4719, %v4767
  %v4784 = vadd.f32 %v4720, %v4768
  %v4785 = vadd.f32 %v4721, %v4769
  %v4786 = vadd.f32 %v4722, %v4770
  %v4787 = vadd.f32 %v4723, %v4771
  %v4788 = vadd.f32 %v4724, %v4772
  %v4789 = vadd.f32 %v4725, %v4773
  %v4790 = vadd.f32 %v4726, %v4774
  %v4791 = vadd.f32 %v4727, %v4775
  %v4792 = vadd.f32 %v4728, %v4776
  %v4793 = vadd.f32 %v4729, %v4777
  %v4794 = vmul.f32 %v4626, %v4626
  %v4795 = vmul.f32 %v4627, %v4627
  %v4796 = vmul.f32 %v4628, %v4628
  %v4797 = vmul.f32 %v4629, %v4629
  %v4798 = vmul.f32 %v4630, %v4630
  %v4799 = vmul.f32 %v4631, %v4631
  %v4800 = vmul.f32 %v4632, %v4632
  %v4801 = vmul.f32 %v4633, %v4633
  %v4802 = vmul.f32 %v4634, %v4634
  %v4803 = vmul.f32 %v4635, %v4635
  %v4804 = vmul.f32 %v4636, %v4636
  %v4805 = vmul.f32 %v4637, %v4637
  %v4806 = vmul.f32 %v4638, %v4638
  %v4807 = vmul.f32 %v4639, %v4639
  %v4808 = vmul.f32 %v4640, %v4640
  %v4809 = vmul.f32 %v4641, %v4641
  %v4810 = vmul.f32 %v4794, %v4658
  %v4811 = vmul.f32 %v4795, %v4658
  %v4812 = vmul.f32 %v4796, %v4659
  %v4813 = vmul.f32 %v4797, %v4659
  %v4814 = vmul.f32 %v4798, %v4660
  %v4815 = vmul.f32 %v4799, %v4660
  %v4816 = vmul.f32 %v4800, %v4661
  %v4817 = vmul.f32 %v4801, %v4661
  %v4818 = vmul.f32 %v4802, %v4662
  %v4819 = vmul.f32 %v4803, %v4662
  %v4820 = vmul.f32 %v4804, %v4663
  %v4821 = vmul.f32 %v4805, %v4663
  %v4822 = vmul.f32 %v4806, %v4664
  %v4823 = vmul.f32 %v4807, %v4664
  %v4824 = vmul.f32 %v4808, %v4665
  %v4825 = vmul.f32 %v4809, %v4665
  %v4826 = vadd.f32 %v4778, %v4810
  %v4827 = vadd.f32 %v4779, %v4811
  %v4828 = vadd.f32 %v4780, %v4812
  %v4829 = vadd.f32 %v4781, %v4813
  %v4830 = vadd.f32 %v4782, %v4814
  %v4831 = vadd.f32 %v4783, %v4815
  %v4832 = vadd.f32 %v4784, %v4816
  %v4833 = vadd.f32 %v4785, %v4817
  %v4834 = vadd.f32 %v4786, %v4818
  %v4835 = vadd.f32 %v4787, %v4819
  %v4836 = vadd.f32 %v4788, %v4820
  %v4837 = vadd.f32 %v4789, %v4821
  %v4838 = vadd.f32 %v4790, %v4822
  %v4839 = vadd.f32 %v4791, %v4823
  %v4840 = vadd.f32 %v4792, %v4824
  %v4841 = vadd.f32 %v4793, %v4825
  %v4842 = vmax.f32 %v4826, 0.0
  %v4843 = vmax.f32 %v4827, 0.0
  %v4844 = vmax.f32 %v4828, 0.0
  %v4845 = vmax.f32 %v4829, 0.0
  %v4846 = vmax.f32 %v4830, 0.0
  %v4847 = vmax.f32 %v4831, 0.0
  %v4848 = vmax.f32 %v4832, 0.0
  %v4849 = vmax.f32 %v4833, 0.0
  %v4850 = vmax.f32 %v4834, 0.0
  %v4851 = vmax.f32 %v4835, 0.0
  %v4852 = vmax.f32 %v4836, 0.0
  %v4853 = vmax.f32 %v4837, 0.0
  %v4854 = vmax.f32 %v4838, 0.0
  %v4855 = vmax.f32 %v4839, 0.0
  %v4856 = vmax.f32 %v4840, 0.0
  %v4857 = vmax.f32 %v4841, 0.0
  %v4858 = vrsqrt.pop %v4842
  %v4859 = vmul.f32 %v4858, %v4842
  %v4860 = vmul.f32 %v4859, %v4858
  %v4861 = vmul.f32 0.5, %v4860
  %v4862 = vsub.f32 1.5, %v4861
  %v4863 = vmul.f32 %v4858, %v4862
  %v4864 = vmul.f32 %v4842, %v4863
  %vm4865 = vcmp.eq.f32.partialorder %v4842, inf
  %v4866 = vsel %vm4865, %v4842, %v4864
  %vm4867 = vcmp.eq.f32.partialorder %v4842, 0.0
  %v4868 = vand.u32 %v4842, 2147483648
  %v4869 = vsel %vm4867, %v4868, %v4866
  %v4870 = vrsqrt.pop %v4843
  %v4871 = vmul.f32 %v4870, %v4843
  %v4872 = vmul.f32 %v4871, %v4870
  %v4873 = vmul.f32 0.5, %v4872
  %v4874 = vsub.f32 1.5, %v4873
  %v4875 = vmul.f32 %v4870, %v4874
  %v4876 = vmul.f32 %v4843, %v4875
  %vm4877 = vcmp.eq.f32.partialorder %v4843, inf
  %v4878 = vsel %vm4877, %v4843, %v4876
  %vm4879 = vcmp.eq.f32.partialorder %v4843, 0.0
  %v4880 = vand.u32 %v4843, 2147483648
  %v4881 = vsel %vm4879, %v4880, %v4878
  %v4882 = vrsqrt.pop %v4844
  %v4883 = vmul.f32 %v4882, %v4844
  %v4884 = vmul.f32 %v4883, %v4882
  %v4885 = vmul.f32 0.5, %v4884
  %v4886 = vsub.f32 1.5, %v4885
  %v4887 = vmul.f32 %v4882, %v4886
  %v4888 = vmul.f32 %v4844, %v4887
  %vm4889 = vcmp.eq.f32.partialorder %v4844, inf
  %v4890 = vsel %vm4889, %v4844, %v4888
  %vm4891 = vcmp.eq.f32.partialorder %v4844, 0.0
  %v4892 = vand.u32 %v4844, 2147483648
  %v4893 = vsel %vm4891, %v4892, %v4890
  %v4894 = vrsqrt.pop %v4845
  %v4895 = vmul.f32 %v4894, %v4845
  %v4896 = vmul.f32 %v4895, %v4894
  %v4897 = vmul.f32 0.5, %v4896
  %v4898 = vsub.f32 1.5, %v4897
  %v4899 = vmul.f32 %v4894, %v4898
  %v4900 = vmul.f32 %v4845, %v4899
  %vm4901 = vcmp.eq.f32.partialorder %v4845, inf
  %v4902 = vsel %vm4901, %v4845, %v4900
  %vm4903 = vcmp.eq.f32.partialorder %v4845, 0.0
  %v4904 = vand.u32 %v4845, 2147483648
  %v4905 = vsel %vm4903, %v4904, %v4902
  %v4906 = vrsqrt.pop %v4846
  %v4907 = vmul.f32 %v4906, %v4846
  %v4908 = vmul.f32 %v4907, %v4906
  %v4909 = vmul.f32 0.5, %v4908
  %v4910 = vsub.f32 1.5, %v4909
  %v4911 = vmul.f32 %v4906, %v4910
  %v4912 = vmul.f32 %v4846, %v4911
  %vm4913 = vcmp.eq.f32.partialorder %v4846, inf
  %v4914 = vsel %vm4913, %v4846, %v4912
  %vm4915 = vcmp.eq.f32.partialorder %v4846, 0.0
  %v4916 = vand.u32 %v4846, 2147483648
  %v4917 = vsel %vm4915, %v4916, %v4914
  %v4918 = vrsqrt.pop %v4847
  %v4919 = vmul.f32 %v4918, %v4847
  %v4920 = vmul.f32 %v4919, %v4918
  %v4921 = vmul.f32 0.5, %v4920
  %v4922 = vsub.f32 1.5, %v4921
  %v4923 = vmul.f32 %v4918, %v4922
  %v4924 = vmul.f32 %v4847, %v4923
  %vm4925 = vcmp.eq.f32.partialorder %v4847, inf
  %v4926 = vsel %vm4925, %v4847, %v4924
  %vm4927 = vcmp.eq.f32.partialorder %v4847, 0.0
  %v4928 = vand.u32 %v4847, 2147483648
  %v4929 = vsel %vm4927, %v4928, %v4926
  %v4930 = vrsqrt.pop %v4848
  %v4931 = vmul.f32 %v4930, %v4848
  %v4932 = vmul.f32 %v4931, %v4930
  %v4933 = vmul.f32 0.5, %v4932
  %v4934 = vsub.f32 1.5, %v4933
  %v4935 = vmul.f32 %v4930, %v4934
  %v4936 = vmul.f32 %v4848, %v4935
  %vm4937 = vcmp.eq.f32.partialorder %v4848, inf
  %v4938 = vsel %vm4937, %v4848, %v4936
  %vm4939 = vcmp.eq.f32.partialorder %v4848, 0.0
  %v4940 = vand.u32 %v4848, 2147483648
  %v4941 = vsel %vm4939, %v4940, %v4938
  %v4942 = vrsqrt.pop %v4849
  %v4943 = vmul.f32 %v4942, %v4849
  %v4944 = vmul.f32 %v4943, %v4942
  %v4945 = vmul.f32 0.5, %v4944
  %v4946 = vsub.f32 1.5, %v4945
  %v4947 = vmul.f32 %v4942, %v4946
  %v4948 = vmul.f32 %v4849, %v4947
  %vm4949 = vcmp.eq.f32.partialorder %v4849, inf
  %v4950 = vsel %vm4949, %v4849, %v4948
  %vm4951 = vcmp.eq.f32.partialorder %v4849, 0.0
  %v4952 = vand.u32 %v4849, 2147483648
  %v4953 = vsel %vm4951, %v4952, %v4950
  %v4954 = vrsqrt.pop %v4850
  %v4955 = vmul.f32 %v4954, %v4850
  %v4956 = vmul.f32 %v4955, %v4954
  %v4957 = vmul.f32 0.5, %v4956
  %v4958 = vsub.f32 1.5, %v4957
  %v4959 = vmul.f32 %v4954, %v4958
  %v4960 = vmul.f32 %v4850, %v4959
  %vm4961 = vcmp.eq.f32.partialorder %v4850, inf
  %v4962 = vsel %vm4961, %v4850, %v4960
  %vm4963 = vcmp.eq.f32.partialorder %v4850, 0.0
  %v4964 = vand.u32 %v4850, 2147483648
  %v4965 = vsel %vm4963, %v4964, %v4962
  %v4966 = vrsqrt.pop %v4851
  %v4967 = vmul.f32 %v4966, %v4851
  %v4968 = vmul.f32 %v4967, %v4966
  %v4969 = vmul.f32 0.5, %v4968
  %v4970 = vsub.f32 1.5, %v4969
  %v4971 = vmul.f32 %v4966, %v4970
  %v4972 = vmul.f32 %v4851, %v4971
  %vm4973 = vcmp.eq.f32.partialorder %v4851, inf
  %v4974 = vsel %vm4973, %v4851, %v4972
  %vm4975 = vcmp.eq.f32.partialorder %v4851, 0.0
  %v4976 = vand.u32 %v4851, 2147483648
  %v4977 = vsel %vm4975, %v4976, %v4974
  %v4978 = vrsqrt.pop %v4852
  %v4979 = vmul.f32 %v4978, %v4852
  %v4980 = vmul.f32 %v4979, %v4978
  %v4981 = vmul.f32 0.5, %v4980
  %v4982 = vsub.f32 1.5, %v4981
  %v4983 = vmul.f32 %v4978, %v4982
  %v4984 = vmul.f32 %v4852, %v4983
  %vm4985 = vcmp.eq.f32.partialorder %v4852, inf
  %v4986 = vsel %vm4985, %v4852, %v4984
  %vm4987 = vcmp.eq.f32.partialorder %v4852, 0.0
  %v4988 = vand.u32 %v4852, 2147483648
  %v4989 = vsel %vm4987, %v4988, %v4986
  %v4990 = vrsqrt.pop %v4853
  %v4991 = vmul.f32 %v4990, %v4853
  %v4992 = vmul.f32 %v4991, %v4990
  %v4993 = vmul.f32 0.5, %v4992
  %v4994 = vsub.f32 1.5, %v4993
  %v4995 = vmul.f32 %v4990, %v4994
  %v4996 = vmul.f32 %v4853, %v4995
  %vm4997 = vcmp.eq.f32.partialorder %v4853, inf
  %v4998 = vsel %vm4997, %v4853, %v4996
  %vm4999 = vcmp.eq.f32.partialorder %v4853, 0.0
  %v5000 = vand.u32 %v4853, 2147483648
  %v5001 = vsel %vm4999, %v5000, %v4998
  %v5002 = vrsqrt.pop %v4854
  %v5003 = vmul.f32 %v5002, %v4854
  %v5004 = vmul.f32 %v5003, %v5002
  %v5005 = vmul.f32 0.5, %v5004
  %v5006 = vsub.f32 1.5, %v5005
  %v5007 = vmul.f32 %v5002, %v5006
  %v5008 = vmul.f32 %v4854, %v5007
  %vm5009 = vcmp.eq.f32.partialorder %v4854, inf
  %v5010 = vsel %vm5009, %v4854, %v5008
  %vm5011 = vcmp.eq.f32.partialorder %v4854, 0.0
  %v5012 = vand.u32 %v4854, 2147483648
  %v5013 = vsel %vm5011, %v5012, %v5010
  %v5014 = vrsqrt.pop %v4855
  %v5015 = vmul.f32 %v5014, %v4855
  %v5016 = vmul.f32 %v5015, %v5014
  %v5017 = vmul.f32 0.5, %v5016
  %v5018 = vsub.f32 1.5, %v5017
  %v5019 = vmul.f32 %v5014, %v5018
  %v5020 = vmul.f32 %v4855, %v5019
  %vm5021 = vcmp.eq.f32.partialorder %v4855, inf
  %v5022 = vsel %vm5021, %v4855, %v5020
  %vm5023 = vcmp.eq.f32.partialorder %v4855, 0.0
  %v5024 = vand.u32 %v4855, 2147483648
  %v5025 = vsel %vm5023, %v5024, %v5022
  %v5026 = vrsqrt.pop %v4856
  %v5027 = vmul.f32 %v5026, %v4856
  %v5028 = vmul.f32 %v5027, %v5026
  %v5029 = vmul.f32 0.5, %v5028
  %v5030 = vsub.f32 1.5, %v5029
  %v5031 = vmul.f32 %v5026, %v5030
  %v5032 = vmul.f32 %v4856, %v5031
  %vm5033 = vcmp.eq.f32.partialorder %v4856, inf
  %v5034 = vsel %vm5033, %v4856, %v5032
  %vm5035 = vcmp.eq.f32.partialorder %v4856, 0.0
  %v5036 = vand.u32 %v4856, 2147483648
  %v5037 = vsel %vm5035, %v5036, %v5034
  %v5038 = vrsqrt.pop %v4857
  %v5039 = vmul.f32 %v5038, %v4857
  %v5040 = vmul.f32 %v5039, %v5038
  %v5041 = vmul.f32 0.5, %v5040
  %v5042 = vsub.f32 1.5, %v5041
  %v5043 = vmul.f32 %v5038, %v5042
  %v5044 = vmul.f32 %v4857, %v5043
  %vm5045 = vcmp.eq.f32.partialorder %v4857, inf
  %v5046 = vsel %vm5045, %v4857, %v5044
  %vm5047 = vcmp.eq.f32.partialorder %v4857, 0.0
  %v5048 = vand.u32 %v4857, 2147483648
  %v5049 = vsel %vm5047, %v5048, %v5046
  %v5050 = vadd.f32 %v4682, 1e-05
  %v5051 = vadd.f32 %v4683, 1e-05
  %v5052 = vadd.f32 %v4684, 1e-05
  %v5053 = vadd.f32 %v4685, 1e-05
  %v5054 = vadd.f32 %v4686, 1e-05
  %v5055 = vadd.f32 %v4687, 1e-05
  %v5056 = vadd.f32 %v4688, 1e-05
  %v5057 = vadd.f32 %v4689, 1e-05
  %v5058 = vadd.f32 %v4690, 1e-05
  %v5059 = vadd.f32 %v4691, 1e-05
  %v5060 = vadd.f32 %v4692, 1e-05
  %v5061 = vadd.f32 %v4693, 1e-05
  %v5062 = vadd.f32 %v4694, 1e-05
  %v5063 = vadd.f32 %v4695, 1e-05
  %v5064 = vadd.f32 %v4696, 1e-05
  %v5065 = vadd.f32 %v4697, 1e-05
  %v5066 = vrcp.pop %v5050
  %v5067 = vmul.f32 %v5050, %v5066
  %v5068 = vsub.f32 1.0, %v5067
  %v5069 = vmul.f32 %v5066, %v5068
  %v5070 = vadd.f32 %v5066, %v5069
  %vm5071 = vweird.f32 %v5050
  %vm5072 = vweird.f32 %v5066
  %vm5073 = vmor %vm5071, %vm5072
  %v5074 = vsel %vm5073, %v5066, %v5070
  %v5075 = vand.u32 2147483647, %v5050
  %vm5076 = vcmp.eq.f32.partialorder %v5075, 8.507059e+37
  %v5077 = vand.u32 %v5050, 2147483648
  %v5078 = vor.u32 1.1754944e-38, %v5077
  %v5079 = vsel %vm5076, %v5078, %v5074
  %v5080 = vmul.f32 %v4869, %v5079
  %v5081 = vrcp.pop %v5051
  %v5082 = vmul.f32 %v5051, %v5081
  %v5083 = vsub.f32 1.0, %v5082
  %v5084 = vmul.f32 %v5081, %v5083
  %v5085 = vadd.f32 %v5081, %v5084
  %vm5086 = vweird.f32 %v5051
  %vm5087 = vweird.f32 %v5081
  %vm5088 = vmor %vm5086, %vm5087
  %v5089 = vsel %vm5088, %v5081, %v5085
  %v5090 = vand.u32 2147483647, %v5051
  %vm5091 = vcmp.eq.f32.partialorder %v5090, 8.507059e+37
  %v5092 = vand.u32 %v5051, 2147483648
  %v5093 = vor.u32 1.1754944e-38, %v5092
  %v5094 = vsel %vm5091, %v5093, %v5089
  %v5095 = vmul.f32 %v4881, %v5094
  %v5096 = vrcp.pop %v5052
  %v5097 = vmul.f32 %v5052, %v5096
  %v5098 = vsub.f32 1.0, %v5097
  %v5099 = vmul.f32 %v5096, %v5098
  %v5100 = vadd.f32 %v5096, %v5099
  %vm5101 = vweird.f32 %v5052
  %vm5102 = vweird.f32 %v5096
  %vm5103 = vmor %vm5101, %vm5102
  %v5104 = vsel %vm5103, %v5096, %v5100
  %v5105 = vand.u32 2147483647, %v5052
  %vm5106 = vcmp.eq.f32.partialorder %v5105, 8.507059e+37
  %v5107 = vand.u32 %v5052, 2147483648
  %v5108 = vor.u32 1.1754944e-38, %v5107
  %v5109 = vsel %vm5106, %v5108, %v5104
  %v5110 = vmul.f32 %v4893, %v5109
  %v5111 = vrcp.pop %v5053
  %v5112 = vmul.f32 %v5053, %v5111
  %v5113 = vsub.f32 1.0, %v5112
  %v5114 = vmul.f32 %v5111, %v5113
  %v5115 = vadd.f32 %v5111, %v5114
  %vm5116 = vweird.f32 %v5053
  %vm5117 = vweird.f32 %v5111
  %vm5118 = vmor %vm5116, %vm5117
  %v5119 = vsel %vm5118, %v5111, %v5115
  %v5120 = vand.u32 2147483647, %v5053
  %vm5121 = vcmp.eq.f32.partialorder %v5120, 8.507059e+37
  %v5122 = vand.u32 %v5053, 2147483648
  %v5123 = vor.u32 1.1754944e-38, %v5122
  %v5124 = vsel %vm5121, %v5123, %v5119
  %v5125 = vmul.f32 %v4905, %v5124
  %v5126 = vrcp.pop %v5054
  %v5127 = vmul.f32 %v5054, %v5126
  %v5128 = vsub.f32 1.0, %v5127
  %v5129 = vmul.f32 %v5126, %v5128
  %v5130 = vadd.f32 %v5126, %v5129
  %vm5131 = vweird.f32 %v5054
  %vm5132 = vweird.f32 %v5126
  %vm5133 = vmor %vm5131, %vm5132
  %v5134 = vsel %vm5133, %v5126, %v5130
  %v5135 = vand.u32 2147483647, %v5054
  %vm5136 = vcmp.eq.f32.partialorder %v5135, 8.507059e+37
  %v5137 = vand.u32 %v5054, 2147483648
  %v5138 = vor.u32 1.1754944e-38, %v5137
  %v5139 = vsel %vm5136, %v5138, %v5134
  %v5140 = vmul.f32 %v4917, %v5139
  %v5141 = vrcp.pop %v5055
  %v5142 = vmul.f32 %v5055, %v5141
  %v5143 = vsub.f32 1.0, %v5142
  %v5144 = vmul.f32 %v5141, %v5143
  %v5145 = vadd.f32 %v5141, %v5144
  %vm5146 = vweird.f32 %v5055
  %vm5147 = vweird.f32 %v5141
  %vm5148 = vmor %vm5146, %vm5147
  %v5149 = vsel %vm5148, %v5141, %v5145
  %v5150 = vand.u32 2147483647, %v5055
  %vm5151 = vcmp.eq.f32.partialorder %v5150, 8.507059e+37
  %v5152 = vand.u32 %v5055, 2147483648
  %v5153 = vor.u32 1.1754944e-38, %v5152
  %v5154 = vsel %vm5151, %v5153, %v5149
  %v5155 = vmul.f32 %v4929, %v5154
  %v5156 = vrcp.pop %v5056
  %v5157 = vmul.f32 %v5056, %v5156
  %v5158 = vsub.f32 1.0, %v5157
  %v5159 = vmul.f32 %v5156, %v5158
  %v5160 = vadd.f32 %v5156, %v5159
  %vm5161 = vweird.f32 %v5056
  %vm5162 = vweird.f32 %v5156
  %vm5163 = vmor %vm5161, %vm5162
  %v5164 = vsel %vm5163, %v5156, %v5160
  %v5165 = vand.u32 2147483647, %v5056
  %vm5166 = vcmp.eq.f32.partialorder %v5165, 8.507059e+37
  %v5167 = vand.u32 %v5056, 2147483648
  %v5168 = vor.u32 1.1754944e-38, %v5167
  %v5169 = vsel %vm5166, %v5168, %v5164
  %v5170 = vmul.f32 %v4941, %v5169
  %v5171 = vrcp.pop %v5057
  %v5172 = vmul.f32 %v5057, %v5171
  %v5173 = vsub.f32 1.0, %v5172
  %v5174 = vmul.f32 %v5171, %v5173
  %v5175 = vadd.f32 %v5171, %v5174
  %vm5176 = vweird.f32 %v5057
  %vm5177 = vweird.f32 %v5171
  %vm5178 = vmor %vm5176, %vm5177
  %v5179 = vsel %vm5178, %v5171, %v5175
  %v5180 = vand.u32 2147483647, %v5057
  %vm5181 = vcmp.eq.f32.partialorder %v5180, 8.507059e+37
  %v5182 = vand.u32 %v5057, 2147483648
  %v5183 = vor.u32 1.1754944e-38, %v5182
  %v5184 = vsel %vm5181, %v5183, %v5179
  %v5185 = vmul.f32 %v4953, %v5184
  %v5186 = vrcp.pop %v5058
  %v5187 = vmul.f32 %v5058, %v5186
  %v5188 = vsub.f32 1.0, %v5187
  %v5189 = vmul.f32 %v5186, %v5188
  %v5190 = vadd.f32 %v5186, %v5189
  %vm5191 = vweird.f32 %v5058
  %vm5192 = vweird.f32 %v5186
  %vm5193 = vmor %vm5191, %vm5192
  %v5194 = vsel %vm5193, %v5186, %v5190
  %v5195 = vand.u32 2147483647, %v5058
  %vm5196 = vcmp.eq.f32.partialorder %v5195, 8.507059e+37
  %v5197 = vand.u32 %v5058, 2147483648
  %v5198 = vor.u32 1.1754944e-38, %v5197
  %v5199 = vsel %vm5196, %v5198, %v5194
  %v5200 = vmul.f32 %v4965, %v5199
  %v5201 = vrcp.pop %v5059
  %v5202 = vmul.f32 %v5059, %v5201
  %v5203 = vsub.f32 1.0, %v5202
  %v5204 = vmul.f32 %v5201, %v5203
  %v5205 = vadd.f32 %v5201, %v5204
  %vm5206 = vweird.f32 %v5059
  %vm5207 = vweird.f32 %v5201
  %vm5208 = vmor %vm5206, %vm5207
  %v5209 = vsel %vm5208, %v5201, %v5205
  %v5210 = vand.u32 2147483647, %v5059
  %vm5211 = vcmp.eq.f32.partialorder %v5210, 8.507059e+37
  %v5212 = vand.u32 %v5059, 2147483648
  %v5213 = vor.u32 1.1754944e-38, %v5212
  %v5214 = vsel %vm5211, %v5213, %v5209
  %v5215 = vmul.f32 %v4977, %v5214
  %v5216 = vrcp.pop %v5060
  %v5217 = vmul.f32 %v5060, %v5216
  %v5218 = vsub.f32 1.0, %v5217
  %v5219 = vmul.f32 %v5216, %v5218
  %v5220 = vadd.f32 %v5216, %v5219
  %vm5221 = vweird.f32 %v5060
  %vm5222 = vweird.f32 %v5216
  %vm5223 = vmor %vm5221, %vm5222
  %v5224 = vsel %vm5223, %v5216, %v5220
  %v5225 = vand.u32 2147483647, %v5060
  %vm5226 = vcmp.eq.f32.partialorder %v5225, 8.507059e+37
  %v5227 = vand.u32 %v5060, 2147483648
  %v5228 = vor.u32 1.1754944e-38, %v5227
  %v5229 = vsel %vm5226, %v5228, %v5224
  %v5230 = vmul.f32 %v4989, %v5229
  %v5231 = vrcp.pop %v5061
  %v5232 = vmul.f32 %v5061, %v5231
  %v5233 = vsub.f32 1.0, %v5232
  %v5234 = vmul.f32 %v5231, %v5233
  %v5235 = vadd.f32 %v5231, %v5234
  %vm5236 = vweird.f32 %v5061
  %vm5237 = vweird.f32 %v5231
  %vm5238 = vmor %vm5236, %vm5237
  %v5239 = vsel %vm5238, %v5231, %v5235
  %v5240 = vand.u32 2147483647, %v5061
  %vm5241 = vcmp.eq.f32.partialorder %v5240, 8.507059e+37
  %v5242 = vand.u32 %v5061, 2147483648
  %v5243 = vor.u32 1.1754944e-38, %v5242
  %v5244 = vsel %vm5241, %v5243, %v5239
  %v5245 = vmul.f32 %v5001, %v5244
  %v5246 = vrcp.pop %v5062
  %v5247 = vmul.f32 %v5062, %v5246
  %v5248 = vsub.f32 1.0, %v5247
  %v5249 = vmul.f32 %v5246, %v5248
  %v5250 = vadd.f32 %v5246, %v5249
  %vm5251 = vweird.f32 %v5062
  %vm5252 = vweird.f32 %v5246
  %vm5253 = vmor %vm5251, %vm5252
  %v5254 = vsel %vm5253, %v5246, %v5250
  %v5255 = vand.u32 2147483647, %v5062
  %vm5256 = vcmp.eq.f32.partialorder %v5255, 8.507059e+37
  %v5257 = vand.u32 %v5062, 2147483648
  %v5258 = vor.u32 1.1754944e-38, %v5257
  %v5259 = vsel %vm5256, %v5258, %v5254
  %v5260 = vmul.f32 %v5013, %v5259
  %v5261 = vrcp.pop %v5063
  %v5262 = vmul.f32 %v5063, %v5261
  %v5263 = vsub.f32 1.0, %v5262
  %v5264 = vmul.f32 %v5261, %v5263
  %v5265 = vadd.f32 %v5261, %v5264
  %vm5266 = vweird.f32 %v5063
  %vm5267 = vweird.f32 %v5261
  %vm5268 = vmor %vm5266, %vm5267
  %v5269 = vsel %vm5268, %v5261, %v5265
  %v5270 = vand.u32 2147483647, %v5063
  %vm5271 = vcmp.eq.f32.partialorder %v5270, 8.507059e+37
  %v5272 = vand.u32 %v5063, 2147483648
  %v5273 = vor.u32 1.1754944e-38, %v5272
  %v5274 = vsel %vm5271, %v5273, %v5269
  %v5275 = vmul.f32 %v5025, %v5274
  %v5276 = vrcp.pop %v5064
  %v5277 = vmul.f32 %v5064, %v5276
  %v5278 = vsub.f32 1.0, %v5277
  %v5279 = vmul.f32 %v5276, %v5278
  %v5280 = vadd.f32 %v5276, %v5279
  %vm5281 = vweird.f32 %v5064
  %vm5282 = vweird.f32 %v5276
  %vm5283 = vmor %vm5281, %vm5282
  %v5284 = vsel %vm5283, %v5276, %v5280
  %v5285 = vand.u32 2147483647, %v5064
  %vm5286 = vcmp.eq.f32.partialorder %v5285, 8.507059e+37
  %v5287 = vand.u32 %v5064, 2147483648
  %v5288 = vor.u32 1.1754944e-38, %v5287
  %v5289 = vsel %vm5286, %v5288, %v5284
  %v5290 = vmul.f32 %v5037, %v5289
  %v5291 = vrcp.pop %v5065
  %v5292 = vmul.f32 %v5065, %v5291
  %v5293 = vsub.f32 1.0, %v5292
  %v5294 = vmul.f32 %v5291, %v5293
  %v5295 = vadd.f32 %v5291, %v5294
  %vm5296 = vweird.f32 %v5065
  %vm5297 = vweird.f32 %v5291
  %vm5298 = vmor %vm5296, %vm5297
  %v5299 = vsel %vm5298, %v5291, %v5295
  %v5300 = vand.u32 2147483647, %v5065
  %vm5301 = vcmp.eq.f32.partialorder %v5300, 8.507059e+37
  %v5302 = vand.u32 %v5065, 2147483648
  %v5303 = vor.u32 1.1754944e-38, %v5302
  %v5304 = vsel %vm5301, %v5303, %v5299
  %v5305 = vmul.f32 %v5049, %v5304
  %v5306 = vmul.f32 %v5080, 0.1
  %v5307 = vmul.f32 %v5095, 0.1
  %v5308 = vmul.f32 %v5110, 0.1
  %v5309 = vmul.f32 %v5125, 0.1
  %v5310 = vmul.f32 %v5140, 0.1
  %v5311 = vmul.f32 %v5155, 0.1
  %v5312 = vmul.f32 %v5170, 0.1
  %v5313 = vmul.f32 %v5185, 0.1
  %v5314 = vmul.f32 %v5200, 0.1
  %v5315 = vmul.f32 %v5215, 0.1
  %v5316 = vmul.f32 %v5230, 0.1
  %v5317 = vmul.f32 %v5245, 0.1
  %v5318 = vmul.f32 %v5260, 0.1
  %v5319 = vmul.f32 %v5275, 0.1
  %v5320 = vmul.f32 %v5290, 0.1
  %v5321 = vmul.f32 %v5305, 0.1
  %v5322 = vmin.f32 %v5306, 0.99999
  %v5323 = vmin.f32 %v5307, 0.99999
  %v5324 = vmin.f32 %v5308, 0.99999
  %v5325 = vmin.f32 %v5309, 0.99999
  %v5326 = vmin.f32 %v5310, 0.99999
  %v5327 = vmin.f32 %v5311, 0.99999
  %v5328 = vmin.f32 %v5312, 0.99999
  %v5329 = vmin.f32 %v5313, 0.99999
  %v5330 = vmin.f32 %v5314, 0.99999
  %v5331 = vmin.f32 %v5315, 0.99999
  %v5332 = vmin.f32 %v5316, 0.99999
  %v5333 = vmin.f32 %v5317, 0.99999
  %v5334 = vmin.f32 %v5318, 0.99999
  %v5335 = vmin.f32 %v5319, 0.99999
  %v5336 = vmin.f32 %v5320, 0.99999
  %v5337 = vmin.f32 %v5321, 0.99999
  %v5338 = vadd.f32 %v5322, 1.0
  %v5339 = vadd.f32 %v5323, 1.0
  %v5340 = vadd.f32 %v5324, 1.0
  %v5341 = vadd.f32 %v5325, 1.0
  %v5342 = vadd.f32 %v5326, 1.0
  %v5343 = vadd.f32 %v5327, 1.0
  %v5344 = vadd.f32 %v5328, 1.0
  %v5345 = vadd.f32 %v5329, 1.0
  %v5346 = vadd.f32 %v5330, 1.0
  %v5347 = vadd.f32 %v5331, 1.0
  %v5348 = vadd.f32 %v5332, 1.0
  %v5349 = vadd.f32 %v5333, 1.0
  %v5350 = vadd.f32 %v5334, 1.0
  %v5351 = vadd.f32 %v5335, 1.0
  %v5352 = vadd.f32 %v5336, 1.0
  %v5353 = vadd.f32 %v5337, 1.0
  %v5354 = vsub.f32 1.0, %v5322
  %v5355 = vsub.f32 1.0, %v5323
  %v5356 = vsub.f32 1.0, %v5324
  %v5357 = vsub.f32 1.0, %v5325
  %v5358 = vsub.f32 1.0, %v5326
  %v5359 = vsub.f32 1.0, %v5327
  %v5360 = vsub.f32 1.0, %v5328
  %v5361 = vsub.f32 1.0, %v5329
  %v5362 = vsub.f32 1.0, %v5330
  %v5363 = vsub.f32 1.0, %v5331
  %v5364 = vsub.f32 1.0, %v5332
  %v5365 = vsub.f32 1.0, %v5333
  %v5366 = vsub.f32 1.0, %v5334
  %v5367 = vsub.f32 1.0, %v5335
  %v5368 = vsub.f32 1.0, %v5336
  %v5369 = vsub.f32 1.0, %v5337
  %v5370 = vrcp.pop %v5354
  %v5371 = vmul.f32 %v5354, %v5370
  %v5372 = vsub.f32 1.0, %v5371
  %v5373 = vmul.f32 %v5370, %v5372
  %v5374 = vadd.f32 %v5370, %v5373
  %vm5375 = vweird.f32 %v5354
  %vm5376 = vweird.f32 %v5370
  %vm5377 = vmor %vm5375, %vm5376
  %v5378 = vsel %vm5377, %v5370, %v5374
  %v5379 = vand.u32 2147483647, %v5354
  %vm5380 = vcmp.eq.f32.partialorder %v5379, 8.507059e+37
  %v5381 = vand.u32 %v5354, 2147483648
  %v5382 = vor.u32 1.1754944e-38, %v5381
  %v5383 = vsel %vm5380, %v5382, %v5378
  %v5384 = vmul.f32 %v5338, %v5383
  %v5385 = vrcp.pop %v5355
  %v5386 = vmul.f32 %v5355, %v5385
  %v5387 = vsub.f32 1.0, %v5386
  %v5388 = vmul.f32 %v5385, %v5387
  %v5389 = vadd.f32 %v5385, %v5388
  %vm5390 = vweird.f32 %v5355
  %vm5391 = vweird.f32 %v5385
  %vm5392 = vmor %vm5390, %vm5391
  %v5393 = vsel %vm5392, %v5385, %v5389
  %v5394 = vand.u32 2147483647, %v5355
  %vm5395 = vcmp.eq.f32.partialorder %v5394, 8.507059e+37
  %v5396 = vand.u32 %v5355, 2147483648
  %v5397 = vor.u32 1.1754944e-38, %v5396
  %v5398 = vsel %vm5395, %v5397, %v5393
  %v5399 = vmul.f32 %v5339, %v5398
  %v5400 = vrcp.pop %v5356
  %v5401 = vmul.f32 %v5356, %v5400
  %v5402 = vsub.f32 1.0, %v5401
  %v5403 = vmul.f32 %v5400, %v5402
  %v5404 = vadd.f32 %v5400, %v5403
  %vm5405 = vweird.f32 %v5356
  %vm5406 = vweird.f32 %v5400
  %vm5407 = vmor %vm5405, %vm5406
  %v5408 = vsel %vm5407, %v5400, %v5404
  %v5409 = vand.u32 2147483647, %v5356
  %vm5410 = vcmp.eq.f32.partialorder %v5409, 8.507059e+37
  %v5411 = vand.u32 %v5356, 2147483648
  %v5412 = vor.u32 1.1754944e-38, %v5411
  %v5413 = vsel %vm5410, %v5412, %v5408
  %v5414 = vmul.f32 %v5340, %v5413
  %v5415 = vrcp.pop %v5357
  %v5416 = vmul.f32 %v5357, %v5415
  %v5417 = vsub.f32 1.0, %v5416
  %v5418 = vmul.f32 %v5415, %v5417
  %v5419 = vadd.f32 %v5415, %v5418
  %vm5420 = vweird.f32 %v5357
  %vm5421 = vweird.f32 %v5415
  %vm5422 = vmor %vm5420, %vm5421
  %v5423 = vsel %vm5422, %v5415, %v5419
  %v5424 = vand.u32 2147483647, %v5357
  %vm5425 = vcmp.eq.f32.partialorder %v5424, 8.507059e+37
  %v5426 = vand.u32 %v5357, 2147483648
  %v5427 = vor.u32 1.1754944e-38, %v5426
  %v5428 = vsel %vm5425, %v5427, %v5423
  %v5429 = vmul.f32 %v5341, %v5428
  %v5430 = vrcp.pop %v5358
  %v5431 = vmul.f32 %v5358, %v5430
  %v5432 = vsub.f32 1.0, %v5431
  %v5433 = vmul.f32 %v5430, %v5432
  %v5434 = vadd.f32 %v5430, %v5433
  %vm5435 = vweird.f32 %v5358
  %vm5436 = vweird.f32 %v5430
  %vm5437 = vmor %vm5435, %vm5436
  %v5438 = vsel %vm5437, %v5430, %v5434
  %v5439 = vand.u32 2147483647, %v5358
  %vm5440 = vcmp.eq.f32.partialorder %v5439, 8.507059e+37
  %v5441 = vand.u32 %v5358, 2147483648
  %v5442 = vor.u32 1.1754944e-38, %v5441
  %v5443 = vsel %vm5440, %v5442, %v5438
  %v5444 = vmul.f32 %v5342, %v5443
  %v5445 = vrcp.pop %v5359
  %v5446 = vmul.f32 %v5359, %v5445
  %v5447 = vsub.f32 1.0, %v5446
  %v5448 = vmul.f32 %v5445, %v5447
  %v5449 = vadd.f32 %v5445, %v5448
  %vm5450 = vweird.f32 %v5359
  %vm5451 = vweird.f32 %v5445
  %vm5452 = vmor %vm5450, %vm5451
  %v5453 = vsel %vm5452, %v5445, %v5449
  %v5454 = vand.u32 2147483647, %v5359
  %vm5455 = vcmp.eq.f32.partialorder %v5454, 8.507059e+37
  %v5456 = vand.u32 %v5359, 2147483648
  %v5457 = vor.u32 1.1754944e-38, %v5456
  %v5458 = vsel %vm5455, %v5457, %v5453
  %v5459 = vmul.f32 %v5343, %v5458
  %v5460 = vrcp.pop %v5360
  %v5461 = vmul.f32 %v5360, %v5460
  %v5462 = vsub.f32 1.0, %v5461
  %v5463 = vmul.f32 %v5460, %v5462
  %v5464 = vadd.f32 %v5460, %v5463
  %vm5465 = vweird.f32 %v5360
  %vm5466 = vweird.f32 %v5460
  %vm5467 = vmor %vm5465, %vm5466
  %v5468 = vsel %vm5467, %v5460, %v5464
  %v5469 = vand.u32 2147483647, %v5360
  %vm5470 = vcmp.eq.f32.partialorder %v5469, 8.507059e+37
  %v5471 = vand.u32 %v5360, 2147483648
  %v5472 = vor.u32 1.1754944e-38, %v5471
  %v5473 = vsel %vm5470, %v5472, %v5468
  %v5474 = vmul.f32 %v5344, %v5473
  %v5475 = vrcp.pop %v5361
  %v5476 = vmul.f32 %v5361, %v5475
  %v5477 = vsub.f32 1.0, %v5476
  %v5478 = vmul.f32 %v5475, %v5477
  %v5479 = vadd.f32 %v5475, %v5478
  %vm5480 = vweird.f32 %v5361
  %vm5481 = vweird.f32 %v5475
  %vm5482 = vmor %vm5480, %vm5481
  %v5483 = vsel %vm5482, %v5475, %v5479
  %v5484 = vand.u32 2147483647, %v5361
  %vm5485 = vcmp.eq.f32.partialorder %v5484, 8.507059e+37
  %v5486 = vand.u32 %v5361, 2147483648
  %v5487 = vor.u32 1.1754944e-38, %v5486
  %v5488 = vsel %vm5485, %v5487, %v5483
  %v5489 = vmul.f32 %v5345, %v5488
  %v5490 = vrcp.pop %v5362
  %v5491 = vmul.f32 %v5362, %v5490
  %v5492 = vsub.f32 1.0, %v5491
  %v5493 = vmul.f32 %v5490, %v5492
  %v5494 = vadd.f32 %v5490, %v5493
  %vm5495 = vweird.f32 %v5362
  %vm5496 = vweird.f32 %v5490
  %vm5497 = vmor %vm5495, %vm5496
  %v5498 = vsel %vm5497, %v5490, %v5494
  %v5499 = vand.u32 2147483647, %v5362
  %vm5500 = vcmp.eq.f32.partialorder %v5499, 8.507059e+37
  %v5501 = vand.u32 %v5362, 2147483648
  %v5502 = vor.u32 1.1754944e-38, %v5501
  %v5503 = vsel %vm5500, %v5502, %v5498
  %v5504 = vmul.f32 %v5346, %v5503
  %v5505 = vrcp.pop %v5363
  %v5506 = vmul.f32 %v5363, %v5505
  %v5507 = vsub.f32 1.0, %v5506
  %v5508 = vmul.f32 %v5505, %v5507
  %v5509 = vadd.f32 %v5505, %v5508
  %vm5510 = vweird.f32 %v5363
  %vm5511 = vweird.f32 %v5505
  %vm5512 = vmor %vm5510, %vm5511
  %v5513 = vsel %vm5512, %v5505, %v5509
  %v5514 = vand.u32 2147483647, %v5363
  %vm5515 = vcmp.eq.f32.partialorder %v5514, 8.507059e+37
  %v5516 = vand.u32 %v5363, 2147483648
  %v5517 = vor.u32 1.1754944e-38, %v5516
  %v5518 = vsel %vm5515, %v5517, %v5513
  %v5519 = vmul.f32 %v5347, %v5518
  %v5520 = vrcp.pop %v5364
  %v5521 = vmul.f32 %v5364, %v5520
  %v5522 = vsub.f32 1.0, %v5521
  %v5523 = vmul.f32 %v5520, %v5522
  %v5524 = vadd.f32 %v5520, %v5523
  %vm5525 = vweird.f32 %v5364
  %vm5526 = vweird.f32 %v5520
  %vm5527 = vmor %vm5525, %vm5526
  %v5528 = vsel %vm5527, %v5520, %v5524
  %v5529 = vand.u32 2147483647, %v5364
  %vm5530 = vcmp.eq.f32.partialorder %v5529, 8.507059e+37
  %v5531 = vand.u32 %v5364, 2147483648
  %v5532 = vor.u32 1.1754944e-38, %v5531
  %v5533 = vsel %vm5530, %v5532, %v5528
  %v5534 = vmul.f32 %v5348, %v5533
  %v5535 = vrcp.pop %v5365
  %v5536 = vmul.f32 %v5365, %v5535
  %v5537 = vsub.f32 1.0, %v5536
  %v5538 = vmul.f32 %v5535, %v5537
  %v5539 = vadd.f32 %v5535, %v5538
  %vm5540 = vweird.f32 %v5365
  %vm5541 = vweird.f32 %v5535
  %vm5542 = vmor %vm5540, %vm5541
  %v5543 = vsel %vm5542, %v5535, %v5539
  %v5544 = vand.u32 2147483647, %v5365
  %vm5545 = vcmp.eq.f32.partialorder %v5544, 8.507059e+37
  %v5546 = vand.u32 %v5365, 2147483648
  %v5547 = vor.u32 1.1754944e-38, %v5546
  %v5548 = vsel %vm5545, %v5547, %v5543
  %v5549 = vmul.f32 %v5349, %v5548
  %v5550 = vrcp.pop %v5366
  %v5551 = vmul.f32 %v5366, %v5550
  %v5552 = vsub.f32 1.0, %v5551
  %v5553 = vmul.f32 %v5550, %v5552
  %v5554 = vadd.f32 %v5550, %v5553
  %vm5555 = vweird.f32 %v5366
  %vm5556 = vweird.f32 %v5550
  %vm5557 = vmor %vm5555, %vm5556
  %v5558 = vsel %vm5557, %v5550, %v5554
  %v5559 = vand.u32 2147483647, %v5366
  %vm5560 = vcmp.eq.f32.partialorder %v5559, 8.507059e+37
  %v5561 = vand.u32 %v5366, 2147483648
  %v5562 = vor.u32 1.1754944e-38, %v5561
  %v5563 = vsel %vm5560, %v5562, %v5558
  %v5564 = vmul.f32 %v5350, %v5563
  %v5565 = vrcp.pop %v5367
  %v5566 = vmul.f32 %v5367, %v5565
  %v5567 = vsub.f32 1.0, %v5566
  %v5568 = vmul.f32 %v5565, %v5567
  %v5569 = vadd.f32 %v5565, %v5568
  %vm5570 = vweird.f32 %v5367
  %vm5571 = vweird.f32 %v5565
  %vm5572 = vmor %vm5570, %vm5571
  %v5573 = vsel %vm5572, %v5565, %v5569
  %v5574 = vand.u32 2147483647, %v5367
  %vm5575 = vcmp.eq.f32.partialorder %v5574, 8.507059e+37
  %v5576 = vand.u32 %v5367, 2147483648
  %v5577 = vor.u32 1.1754944e-38, %v5576
  %v5578 = vsel %vm5575, %v5577, %v5573
  %v5579 = vmul.f32 %v5351, %v5578
  %v5580 = vrcp.pop %v5368
  %v5581 = vmul.f32 %v5368, %v5580
  %v5582 = vsub.f32 1.0, %v5581
  %v5583 = vmul.f32 %v5580, %v5582
  %v5584 = vadd.f32 %v5580, %v5583
  %vm5585 = vweird.f32 %v5368
  %vm5586 = vweird.f32 %v5580
  %vm5587 = vmor %vm5585, %vm5586
  %v5588 = vsel %vm5587, %v5580, %v5584
  %v5589 = vand.u32 2147483647, %v5368
  %vm5590 = vcmp.eq.f32.partialorder %v5589, 8.507059e+37
  %v5591 = vand.u32 %v5368, 2147483648
  %v5592 = vor.u32 1.1754944e-38, %v5591
  %v5593 = vsel %vm5590, %v5592, %v5588
  %v5594 = vmul.f32 %v5352, %v5593
  %v5595 = vrcp.pop %v5369
  %v5596 = vmul.f32 %v5369, %v5595
  %v5597 = vsub.f32 1.0, %v5596
  %v5598 = vmul.f32 %v5595, %v5597
  %v5599 = vadd.f32 %v5595, %v5598
  %vm5600 = vweird.f32 %v5369
  %vm5601 = vweird.f32 %v5595
  %vm5602 = vmor %vm5600, %vm5601
  %v5603 = vsel %vm5602, %v5595, %v5599
  %v5604 = vand.u32 2147483647, %v5369
  %vm5605 = vcmp.eq.f32.partialorder %v5604, 8.507059e+37
  %v5606 = vand.u32 %v5369, 2147483648
  %v5607 = vor.u32 1.1754944e-38, %v5606
  %v5608 = vsel %vm5605, %v5607, %v5603
  %v5609 = vmul.f32 %v5353, %v5608
  %v5610 = vlog2.pop %v5384
  %v5611 = vmul.f32 %v5610, 0.6931472
  %v5612 = vlog2.pop %v5399
  %v5613 = vmul.f32 %v5612, 0.6931472
  %v5614 = vlog2.pop %v5414
  %v5615 = vmul.f32 %v5614, 0.6931472
  %v5616 = vlog2.pop %v5429
  %v5617 = vmul.f32 %v5616, 0.6931472
  %v5618 = vlog2.pop %v5444
  %v5619 = vmul.f32 %v5618, 0.6931472
  %v5620 = vlog2.pop %v5459
  %v5621 = vmul.f32 %v5620, 0.6931472
  %v5622 = vlog2.pop %v5474
  %v5623 = vmul.f32 %v5622, 0.6931472
  %v5624 = vlog2.pop %v5489
  %v5625 = vmul.f32 %v5624, 0.6931472
  %v5626 = vlog2.pop %v5504
  %v5627 = vmul.f32 %v5626, 0.6931472
  %v5628 = vlog2.pop %v5519
  %v5629 = vmul.f32 %v5628, 0.6931472
  %v5630 = vlog2.pop %v5534
  %v5631 = vmul.f32 %v5630, 0.6931472
  %v5632 = vlog2.pop %v5549
  %v5633 = vmul.f32 %v5632, 0.6931472
  %v5634 = vlog2.pop %v5564
  %v5635 = vmul.f32 %v5634, 0.6931472
  %v5636 = vlog2.pop %v5579
  %v5637 = vmul.f32 %v5636, 0.6931472
  %v5638 = vlog2.pop %v5594
  %v5639 = vmul.f32 %v5638, 0.6931472
  %v5640 = vlog2.pop %v5609
  %v5641 = vmul.f32 %v5640, 0.6931472
  %v5642 = vmul.f32 %v5611, 10.0
  %v5643 = vmul.f32 %v5613, 10.0
  %v5644 = vmul.f32 %v5615, 10.0
  %v5645 = vmul.f32 %v5617, 10.0
  %v5646 = vmul.f32 %v5619, 10.0
  %v5647 = vmul.f32 %v5621, 10.0
  %v5648 = vmul.f32 %v5623, 10.0
  %v5649 = vmul.f32 %v5625, 10.0
  %v5650 = vmul.f32 %v5627, 10.0
  %v5651 = vmul.f32 %v5629, 10.0
  %v5652 = vmul.f32 %v5631, 10.0
  %v5653 = vmul.f32 %v5633, 10.0
  %v5654 = vmul.f32 %v5635, 10.0
  %v5655 = vmul.f32 %v5637, 10.0
  %v5656 = vmul.f32 %v5639, 10.0
  %v5657 = vmul.f32 %v5641, 10.0
  %vm5658 = vcmask 39936
  %v5659 = vsel %vm5658, %v5642, inf
  %5660 = vmin.xlane.f32.xlu0 %v5659
  %v5661 = vpop.xlane.xlu0 %5660
  %vm5662 = vcmask 38912
  %v5663 = vsel %vm5662, %v5643, inf
  %5664 = vmin.xlane.f32.xlu0 %v5663
  %v5665 = vpop.xlane.xlu0 %5664
  %v5666 = vsel %vm5658, %v5644, inf
  %5667 = vmin.xlane.f32.xlu0 %v5666
  %v5668 = vpop.xlane.xlu0 %5667
  %v5669 = vsel %vm5662, %v5645, inf
  %5670 = vmin.xlane.f32.xlu0 %v5669
  %v5671 = vpop.xlane.xlu0 %5670
  %v5672 = vsel %vm5658, %v5646, inf
  %5673 = vmin.xlane.f32.xlu0 %v5672
  %v5674 = vpop.xlane.xlu0 %5673
  %v5675 = vsel %vm5662, %v5647, inf
  %5676 = vmin.xlane.f32.xlu0 %v5675
  %v5677 = vpop.xlane.xlu0 %5676
  %v5678 = vsel %vm5658, %v5648, inf
  %5679 = vmin.xlane.f32.xlu0 %v5678
  %v5680 = vpop.xlane.xlu0 %5679
  %v5681 = vsel %vm5662, %v5649, inf
  %5682 = vmin.xlane.f32.xlu0 %v5681
  %v5683 = vpop.xlane.xlu0 %5682
  %v5684 = vsel %vm5658, %v5650, inf
  %5685 = vmin.xlane.f32.xlu0 %v5684
  %v5686 = vpop.xlane.xlu0 %5685
  %v5687 = vsel %vm5662, %v5651, inf
  %5688 = vmin.xlane.f32.xlu0 %v5687
  %v5689 = vpop.xlane.xlu0 %5688
  %v5690 = vsel %vm5658, %v5652, inf
  %5691 = vmin.xlane.f32.xlu0 %v5690
  %v5692 = vpop.xlane.xlu0 %5691
  %v5693 = vsel %vm5662, %v5653, inf
  %5694 = vmin.xlane.f32.xlu0 %v5693
  %v5695 = vpop.xlane.xlu0 %5694
  %v5696 = vsel %vm5658, %v5654, inf
  %5697 = vmin.xlane.f32.xlu0 %v5696
  %v5698 = vpop.xlane.xlu0 %5697
  %v5699 = vsel %vm5662, %v5655, inf
  %5700 = vmin.xlane.f32.xlu0 %v5699
  %v5701 = vpop.xlane.xlu0 %5700
  %v5702 = vsel %vm5658, %v5656, inf
  %5703 = vmin.xlane.f32.xlu0 %v5702
  %v5704 = vpop.xlane.xlu0 %5703
  %v5705 = vsel %vm5662, %v5657, inf
  %5706 = vmin.xlane.f32.xlu0 %v5705
  %v5707 = vpop.xlane.xlu0 %5706
  %vm5708 = vcmp.le.f32.partialorder %v5642, %v5661
  %vm5709 = vcmp.le.f32.partialorder %v5643, %v5665
  %vm5710 = vcmp.le.f32.partialorder %v5644, %v5668
  %vm5711 = vcmp.le.f32.partialorder %v5645, %v5671
  %vm5712 = vcmp.le.f32.partialorder %v5646, %v5674
  %vm5713 = vcmp.le.f32.partialorder %v5647, %v5677
  %vm5714 = vcmp.le.f32.partialorder %v5648, %v5680
  %vm5715 = vcmp.le.f32.partialorder %v5649, %v5683
  %vm5716 = vcmp.le.f32.partialorder %v5650, %v5686
  %vm5717 = vcmp.le.f32.partialorder %v5651, %v5689
  %vm5718 = vcmp.le.f32.partialorder %v5652, %v5692
  %vm5719 = vcmp.le.f32.partialorder %v5653, %v5695
  %vm5720 = vcmp.le.f32.partialorder %v5654, %v5698
  %vm5721 = vcmp.le.f32.partialorder %v5655, %v5701
  %vm5722 = vcmp.le.f32.partialorder %v5656, %v5704
  %vm5723 = vcmp.le.f32.partialorder %v5657, %v5707
  %v5724 = vsel %vm5708, %v18, 5.0
  %v5725 = vsel %vm5709, %v18, 5.0
  %v5726 = vsel %vm5710, %v18, 5.0
  %v5727 = vsel %vm5711, %v18, 5.0
  %v5728 = vsel %vm5712, %v18, 5.0
  %v5729 = vsel %vm5713, %v18, 5.0
  %v5730 = vsel %vm5714, %v18, 5.0
  %v5731 = vsel %vm5715, %v18, 5.0
  %v5732 = vsel %vm5716, %v18, 5.0
  %v5733 = vsel %vm5717, %v18, 5.0
  %v5734 = vsel %vm5718, %v18, 5.0
  %v5735 = vsel %vm5719, %v18, 5.0
  %v5736 = vsel %vm5720, %v18, 5.0
  %v5737 = vsel %vm5721, %v18, 5.0
  %v5738 = vsel %vm5722, %v18, 5.0
  %v5739 = vsel %vm5723, %v18, 5.0
  %v5740 = vsel %vm5658, %v5724, inf
  %5741 = vmin.xlane.f32.xlu0 %v5740
  %v5742 = vpop.xlane.xlu0 %5741
  %v5743 = vsel %vm5662, %v5725, inf
  %5744 = vmin.xlane.f32.xlu0 %v5743
  %v5745 = vpop.xlane.xlu0 %5744
  %v5746 = vsel %vm5658, %v5726, inf
  %5747 = vmin.xlane.f32.xlu0 %v5746
  %v5748 = vpop.xlane.xlu0 %5747
  %v5749 = vsel %vm5662, %v5727, inf
  %5750 = vmin.xlane.f32.xlu0 %v5749
  %v5751 = vpop.xlane.xlu0 %5750
  %v5752 = vsel %vm5658, %v5728, inf
  %5753 = vmin.xlane.f32.xlu0 %v5752
  %v5754 = vpop.xlane.xlu0 %5753
  %v5755 = vsel %vm5662, %v5729, inf
  %5756 = vmin.xlane.f32.xlu0 %v5755
  %v5757 = vpop.xlane.xlu0 %5756
  %v5758 = vsel %vm5658, %v5730, inf
  %5759 = vmin.xlane.f32.xlu0 %v5758
  %v5760 = vpop.xlane.xlu0 %5759
  %v5761 = vsel %vm5662, %v5731, inf
  %5762 = vmin.xlane.f32.xlu0 %v5761
  %v5763 = vpop.xlane.xlu0 %5762
  %v5764 = vsel %vm5658, %v5732, inf
  %5765 = vmin.xlane.f32.xlu0 %v5764
  %v5766 = vpop.xlane.xlu0 %5765
  %v5767 = vsel %vm5662, %v5733, inf
  %5768 = vmin.xlane.f32.xlu0 %v5767
  %v5769 = vpop.xlane.xlu0 %5768
  %v5770 = vsel %vm5658, %v5734, inf
  %5771 = vmin.xlane.f32.xlu0 %v5770
  %v5772 = vpop.xlane.xlu0 %5771
  %v5773 = vsel %vm5662, %v5735, inf
  %5774 = vmin.xlane.f32.xlu0 %v5773
  %v5775 = vpop.xlane.xlu0 %5774
  %v5776 = vsel %vm5658, %v5736, inf
  %5777 = vmin.xlane.f32.xlu0 %v5776
  %v5778 = vpop.xlane.xlu0 %5777
  %v5779 = vsel %vm5662, %v5737, inf
  %5780 = vmin.xlane.f32.xlu0 %v5779
  %v5781 = vpop.xlane.xlu0 %5780
  %v5782 = vsel %vm5658, %v5738, inf
  %5783 = vmin.xlane.f32.xlu0 %v5782
  %v5784 = vpop.xlane.xlu0 %5783
  %v5785 = vsel %vm5662, %v5739, inf
  %5786 = vmin.xlane.f32.xlu0 %v5785
  %v5787 = vpop.xlane.xlu0 %5786
  %vm5788 = vcmp.eq.f32.partialorder %v5742, 0.0
  %vm5789 = vcmp.eq.f32.partialorder %v5745, 0.0
  %vm5790 = vcmp.eq.f32.partialorder %v5748, 0.0
  %vm5791 = vcmp.eq.f32.partialorder %v5751, 0.0
  %vm5792 = vcmp.eq.f32.partialorder %v5754, 0.0
  %vm5793 = vcmp.eq.f32.partialorder %v5757, 0.0
  %vm5794 = vcmp.eq.f32.partialorder %v5760, 0.0
  %vm5795 = vcmp.eq.f32.partialorder %v5763, 0.0
  %vm5796 = vcmp.eq.f32.partialorder %v5766, 0.0
  %vm5797 = vcmp.eq.f32.partialorder %v5769, 0.0
  %vm5798 = vcmp.eq.f32.partialorder %v5772, 0.0
  %vm5799 = vcmp.eq.f32.partialorder %v5775, 0.0
  %vm5800 = vcmp.eq.f32.partialorder %v5778, 0.0
  %vm5801 = vcmp.eq.f32.partialorder %v5781, 0.0
  %vm5802 = vcmp.eq.f32.partialorder %v5784, 0.0
  %vm5803 = vcmp.eq.f32.partialorder %v5787, 0.0
  %v5804 = vsel %vm5788, 1, 0
  %v5805 = vsel %vm5789, 1, 0
  %v5806 = vsel %vm5790, 1, 0
  %v5807 = vsel %vm5791, 1, 0
  %v5808 = vsel %vm5792, 1, 0
  %v5809 = vsel %vm5793, 1, 0
  %v5810 = vsel %vm5794, 1, 0
  %v5811 = vsel %vm5795, 1, 0
  %v5812 = vsel %vm5796, 1, 0
  %v5813 = vsel %vm5797, 1, 0
  %v5814 = vsel %vm5798, 1, 0
  %v5815 = vsel %vm5799, 1, 0
  %v5816 = vsel %vm5800, 1, 0
  %v5817 = vsel %vm5801, 1, 0
  %v5818 = vsel %vm5802, 1, 0
  %v5819 = vsel %vm5803, 1, 0
  %v5820 = vcvt.s32.f32 %v5804
  %v5821 = vcvt.s32.f32 %v5805
  %v5822 = vcvt.s32.f32 %v5806
  %v5823 = vcvt.s32.f32 %v5807
  %v5824 = vcvt.s32.f32 %v5808
  %v5825 = vcvt.s32.f32 %v5809
  %v5826 = vcvt.s32.f32 %v5810
  %v5827 = vcvt.s32.f32 %v5811
  %v5828 = vcvt.s32.f32 %v5812
  %v5829 = vcvt.s32.f32 %v5813
  %v5830 = vcvt.s32.f32 %v5814
  %v5831 = vcvt.s32.f32 %v5815
  %v5832 = vcvt.s32.f32 %v5816
  %v5833 = vcvt.s32.f32 %v5817
  %v5834 = vcvt.s32.f32 %v5818
  %v5835 = vcvt.s32.f32 %v5819
  %v5836 = vmul.f32 %v5820, %v2342
  %v5837 = vmul.f32 %v5821, %v2343
  %v5838 = vmul.f32 %v5822, %v2344
  %v5839 = vmul.f32 %v5823, %v2345
  %v5840 = vmul.f32 %v5824, %v2346
  %v5841 = vmul.f32 %v5825, %v2347
  %v5842 = vmul.f32 %v5826, %v2348
  %v5843 = vmul.f32 %v5827, %v2349
  %v5844 = vmul.f32 %v5828, %v2350
  %v5845 = vmul.f32 %v5829, %v2351
  %v5846 = vmul.f32 %v5830, %v2352
  %v5847 = vmul.f32 %v5831, %v2353
  %v5848 = vmul.f32 %v5832, %v2354
  %v5849 = vmul.f32 %v5833, %v2355
  %v5850 = vmul.f32 %v5834, %v2356
  %v5851 = vmul.f32 %v5835, %v2357
  %v5852 = vsel %vm532, %v5836, 0.0
  %v5853 = vsel %vm536, %v5837, 0.0
  %v5854 = vadd.f32 %v5852, %v5853
  %v5855 = vrot.slane %v5854, 4
  %v5856 = vadd.f32 %v5854, %v5855
  %v5857 = vrot.slane %v5856, 2
  %v5858 = vadd.f32 %v5856, %v5857
  %v5859 = vrot.slane %v5858, 1
  %v5860 = vadd.f32 %v5858, %v5859
  %v5861 = vsel %vm532, %v5838, 0.0
  %v5862 = vsel %vm536, %v5839, 0.0
  %v5863 = vadd.f32 %v5861, %v5862
  %v5864 = vrot.slane %v5863, 4
  %v5865 = vadd.f32 %v5863, %v5864
  %v5866 = vrot.slane %v5865, 2
  %v5867 = vadd.f32 %v5865, %v5866
  %v5868 = vrot.slane %v5867, 1
  %v5869 = vadd.f32 %v5867, %v5868
  %v5870 = vsel %vm532, %v5840, 0.0
  %v5871 = vsel %vm536, %v5841, 0.0
  %v5872 = vadd.f32 %v5870, %v5871
  %v5873 = vrot.slane %v5872, 4
  %v5874 = vadd.f32 %v5872, %v5873
  %v5875 = vrot.slane %v5874, 2
  %v5876 = vadd.f32 %v5874, %v5875
  %v5877 = vrot.slane %v5876, 1
  %v5878 = vadd.f32 %v5876, %v5877
  %v5879 = vsel %vm532, %v5842, 0.0
  %v5880 = vsel %vm536, %v5843, 0.0
  %v5881 = vadd.f32 %v5879, %v5880
  %v5882 = vrot.slane %v5881, 4
  %v5883 = vadd.f32 %v5881, %v5882
  %v5884 = vrot.slane %v5883, 2
  %v5885 = vadd.f32 %v5883, %v5884
  %v5886 = vrot.slane %v5885, 1
  %v5887 = vadd.f32 %v5885, %v5886
  %v5888 = vsel %vm532, %v5844, 0.0
  %v5889 = vsel %vm536, %v5845, 0.0
  %v5890 = vadd.f32 %v5888, %v5889
  %v5891 = vrot.slane %v5890, 4
  %v5892 = vadd.f32 %v5890, %v5891
  %v5893 = vrot.slane %v5892, 2
  %v5894 = vadd.f32 %v5892, %v5893
  %v5895 = vrot.slane %v5894, 1
  %v5896 = vadd.f32 %v5894, %v5895
  %v5897 = vsel %vm532, %v5846, 0.0
  %v5898 = vsel %vm536, %v5847, 0.0
  %v5899 = vadd.f32 %v5897, %v5898
  %v5900 = vrot.slane %v5899, 4
  %v5901 = vadd.f32 %v5899, %v5900
  %v5902 = vrot.slane %v5901, 2
  %v5903 = vadd.f32 %v5901, %v5902
  %v5904 = vrot.slane %v5903, 1
  %v5905 = vadd.f32 %v5903, %v5904
  %v5906 = vsel %vm532, %v5848, 0.0
  %v5907 = vsel %vm536, %v5849, 0.0
  %v5908 = vadd.f32 %v5906, %v5907
  %v5909 = vrot.slane %v5908, 4
  %v5910 = vadd.f32 %v5908, %v5909
  %v5911 = vrot.slane %v5910, 2
  %v5912 = vadd.f32 %v5910, %v5911
  %v5913 = vrot.slane %v5912, 1
  %v5914 = vadd.f32 %v5912, %v5913
  %v5915 = vsel %vm532, %v5850, 0.0
  %v5916 = vsel %vm536, %v5851, 0.0
  %v5917 = vadd.f32 %v5915, %v5916
  %v5918 = vrot.slane %v5917, 4
  %v5919 = vadd.f32 %v5917, %v5918
  %v5920 = vrot.slane %v5919, 2
  %v5921 = vadd.f32 %v5919, %v5920
  %v5922 = vrot.slane %v5921, 1
  %v5923 = vadd.f32 %v5921, %v5922
  %v5924 = vadd.f32 %v2366, %v5860
  %v5925 = vadd.f32 %v2367, %v5869
  %v5926 = vadd.f32 %v2368, %v5878
  %v5927 = vadd.f32 %v2369, %v5887
  %v5928 = vadd.f32 %v2370, %v5896
  %v5929 = vadd.f32 %v2371, %v5905
  %v5930 = vadd.f32 %v2372, %v5914
  %v5931 = vadd.f32 %v2373, %v5923
  %v5932 = vmul.f32 %v5820, %v2191
  %v5933 = vmul.f32 %v5821, %v2201
  %v5934 = vmul.f32 %v5822, %v2211
  %v5935 = vmul.f32 %v5823, %v2221
  %v5936 = vmul.f32 %v5824, %v2231
  %v5937 = vmul.f32 %v5825, %v2241
  %v5938 = vmul.f32 %v5826, %v2251
  %v5939 = vmul.f32 %v5827, %v2261
  %v5940 = vmul.f32 %v5828, %v2271
  %v5941 = vmul.f32 %v5829, %v2281
  %v5942 = vmul.f32 %v5830, %v2291
  %v5943 = vmul.f32 %v5831, %v2301
  %v5944 = vmul.f32 %v5832, %v2311
  %v5945 = vmul.f32 %v5833, %v2321
  %v5946 = vmul.f32 %v5834, %v2331
  %v5947 = vmul.f32 %v5835, %v2341
  %vm5948 = vcmask 1046528
  %v5949 = vsel %vm5948, %v5933, 0.0
  %v5950 = vadd.f32 %v5932, %v5949
  %v5951 = vrot.slane %v5950, 4
  %v5952 = vadd.f32 %v5950, %v5951
  %v5953 = vrot.slane %v5952, 2
  %v5954 = vadd.f32 %v5952, %v5953
  %v5955 = vrot.slane %v5954, 1
  %v5956 = vadd.f32 %v5954, %v5955
  %v5957 = vsel %vm5948, %v5935, 0.0
  %v5958 = vadd.f32 %v5934, %v5957
  %v5959 = vrot.slane %v5958, 4
  %v5960 = vadd.f32 %v5958, %v5959
  %v5961 = vrot.slane %v5960, 2
  %v5962 = vadd.f32 %v5960, %v5961
  %v5963 = vrot.slane %v5962, 1
  %v5964 = vadd.f32 %v5962, %v5963
  %v5965 = vsel %vm5948, %v5937, 0.0
  %v5966 = vadd.f32 %v5936, %v5965
  %v5967 = vrot.slane %v5966, 4
  %v5968 = vadd.f32 %v5966, %v5967
  %v5969 = vrot.slane %v5968, 2
  %v5970 = vadd.f32 %v5968, %v5969
  %v5971 = vrot.slane %v5970, 1
  %v5972 = vadd.f32 %v5970, %v5971
  %v5973 = vsel %vm5948, %v5939, 0.0
  %v5974 = vadd.f32 %v5938, %v5973
  %v5975 = vrot.slane %v5974, 4
  %v5976 = vadd.f32 %v5974, %v5975
  %v5977 = vrot.slane %v5976, 2
  %v5978 = vadd.f32 %v5976, %v5977
  %v5979 = vrot.slane %v5978, 1
  %v5980 = vadd.f32 %v5978, %v5979
  %v5981 = vsel %vm5948, %v5941, 0.0
  %v5982 = vadd.f32 %v5940, %v5981
  %v5983 = vrot.slane %v5982, 4
  %v5984 = vadd.f32 %v5982, %v5983
  %v5985 = vrot.slane %v5984, 2
  %v5986 = vadd.f32 %v5984, %v5985
  %v5987 = vrot.slane %v5986, 1
  %v5988 = vadd.f32 %v5986, %v5987
  %v5989 = vsel %vm5948, %v5943, 0.0
  %v5990 = vadd.f32 %v5942, %v5989
  %v5991 = vrot.slane %v5990, 4
  %v5992 = vadd.f32 %v5990, %v5991
  %v5993 = vrot.slane %v5992, 2
  %v5994 = vadd.f32 %v5992, %v5993
  %v5995 = vrot.slane %v5994, 1
  %v5996 = vadd.f32 %v5994, %v5995
  %v5997 = vsel %vm5948, %v5945, 0.0
  %v5998 = vadd.f32 %v5944, %v5997
  %v5999 = vrot.slane %v5998, 4
  %v6000 = vadd.f32 %v5998, %v5999
  %v6001 = vrot.slane %v6000, 2
  %v6002 = vadd.f32 %v6000, %v6001
  %v6003 = vrot.slane %v6002, 1
  %v6004 = vadd.f32 %v6002, %v6003
  %v6005 = vsel %vm5948, %v5947, 0.0
  %v6006 = vadd.f32 %v5946, %v6005
  %v6007 = vrot.slane %v6006, 4
  %v6008 = vadd.f32 %v6006, %v6007
  %v6009 = vrot.slane %v6008, 2
  %v6010 = vadd.f32 %v6008, %v6009
  %v6011 = vrot.slane %v6010, 1
  %v6012 = vadd.f32 %v6010, %v6011
  %v6013 = vadd.f32 %v2374, %v5956
  %v6014 = vadd.f32 %v2375, %v5964
  %v6015 = vadd.f32 %v2376, %v5972
  %v6016 = vadd.f32 %v2377, %v5980
  %v6017 = vadd.f32 %v2378, %v5988
  %v6018 = vadd.f32 %v2379, %v5996
  %v6019 = vadd.f32 %v2380, %v6004
  %v6020 = vadd.f32 %v2381, %v6012
  %v6021 = vrcp.pop %v6013
  %v6022 = vmul.f32 %v6013, %v6021
  %v6023 = vsub.f32 1.0, %v6022
  %v6024 = vmul.f32 %v6021, %v6023
  %v6025 = vadd.f32 %v6021, %v6024
  %vm6026 = vweird.f32 %v6013
  %vm6027 = vweird.f32 %v6021
  %vm6028 = vmor %vm6026, %vm6027
  %v6029 = vsel %vm6028, %v6021, %v6025
  %v6030 = vand.u32 2147483647, %v6013
  %vm6031 = vcmp.eq.f32.partialorder %v6030, 8.507059e+37
  %v6032 = vand.u32 %v6013, 2147483648
  %v6033 = vor.u32 1.1754944e-38, %v6032
  %v6034 = vsel %vm6031, %v6033, %v6029
  %v6035 = vmul.f32 %v5924, %v6034
  %v6036 = vrcp.pop %v6014
  %v6037 = vmul.f32 %v6014, %v6036
  %v6038 = vsub.f32 1.0, %v6037
  %v6039 = vmul.f32 %v6036, %v6038
  %v6040 = vadd.f32 %v6036, %v6039
  %vm6041 = vweird.f32 %v6014
  %vm6042 = vweird.f32 %v6036
  %vm6043 = vmor %vm6041, %vm6042
  %v6044 = vsel %vm6043, %v6036, %v6040
  %v6045 = vand.u32 2147483647, %v6014
  %vm6046 = vcmp.eq.f32.partialorder %v6045, 8.507059e+37
  %v6047 = vand.u32 %v6014, 2147483648
  %v6048 = vor.u32 1.1754944e-38, %v6047
  %v6049 = vsel %vm6046, %v6048, %v6044
  %v6050 = vmul.f32 %v5925, %v6049
  %v6051 = vrcp.pop %v6015
  %v6052 = vmul.f32 %v6015, %v6051
  %v6053 = vsub.f32 1.0, %v6052
  %v6054 = vmul.f32 %v6051, %v6053
  %v6055 = vadd.f32 %v6051, %v6054
  %vm6056 = vweird.f32 %v6015
  %vm6057 = vweird.f32 %v6051
  %vm6058 = vmor %vm6056, %vm6057
  %v6059 = vsel %vm6058, %v6051, %v6055
  %v6060 = vand.u32 2147483647, %v6015
  %vm6061 = vcmp.eq.f32.partialorder %v6060, 8.507059e+37
  %v6062 = vand.u32 %v6015, 2147483648
  %v6063 = vor.u32 1.1754944e-38, %v6062
  %v6064 = vsel %vm6061, %v6063, %v6059
  %v6065 = vmul.f32 %v5926, %v6064
  %v6066 = vrcp.pop %v6016
  %v6067 = vmul.f32 %v6016, %v6066
  %v6068 = vsub.f32 1.0, %v6067
  %v6069 = vmul.f32 %v6066, %v6068
  %v6070 = vadd.f32 %v6066, %v6069
  %vm6071 = vweird.f32 %v6016
  %vm6072 = vweird.f32 %v6066
  %vm6073 = vmor %vm6071, %vm6072
  %v6074 = vsel %vm6073, %v6066, %v6070
  %v6075 = vand.u32 2147483647, %v6016
  %vm6076 = vcmp.eq.f32.partialorder %v6075, 8.507059e+37
  %v6077 = vand.u32 %v6016, 2147483648
  %v6078 = vor.u32 1.1754944e-38, %v6077
  %v6079 = vsel %vm6076, %v6078, %v6074
  %v6080 = vmul.f32 %v5927, %v6079
  %v6081 = vrcp.pop %v6017
  %v6082 = vmul.f32 %v6017, %v6081
  %v6083 = vsub.f32 1.0, %v6082
  %v6084 = vmul.f32 %v6081, %v6083
  %v6085 = vadd.f32 %v6081, %v6084
  %vm6086 = vweird.f32 %v6017
  %vm6087 = vweird.f32 %v6081
  %vm6088 = vmor %vm6086, %vm6087
  %v6089 = vsel %vm6088, %v6081, %v6085
  %v6090 = vand.u32 2147483647, %v6017
  %vm6091 = vcmp.eq.f32.partialorder %v6090, 8.507059e+37
  %v6092 = vand.u32 %v6017, 2147483648
  %v6093 = vor.u32 1.1754944e-38, %v6092
  %v6094 = vsel %vm6091, %v6093, %v6089
  %v6095 = vmul.f32 %v5928, %v6094
  %v6096 = vrcp.pop %v6018
  %v6097 = vmul.f32 %v6018, %v6096
  %v6098 = vsub.f32 1.0, %v6097
  %v6099 = vmul.f32 %v6096, %v6098
  %v6100 = vadd.f32 %v6096, %v6099
  %vm6101 = vweird.f32 %v6018
  %vm6102 = vweird.f32 %v6096
  %vm6103 = vmor %vm6101, %vm6102
  %v6104 = vsel %vm6103, %v6096, %v6100
  %v6105 = vand.u32 2147483647, %v6018
  %vm6106 = vcmp.eq.f32.partialorder %v6105, 8.507059e+37
  %v6107 = vand.u32 %v6018, 2147483648
  %v6108 = vor.u32 1.1754944e-38, %v6107
  %v6109 = vsel %vm6106, %v6108, %v6104
  %v6110 = vmul.f32 %v5929, %v6109
  %v6111 = vrcp.pop %v6019
  %v6112 = vmul.f32 %v6019, %v6111
  %v6113 = vsub.f32 1.0, %v6112
  %v6114 = vmul.f32 %v6111, %v6113
  %v6115 = vadd.f32 %v6111, %v6114
  %vm6116 = vweird.f32 %v6019
  %vm6117 = vweird.f32 %v6111
  %vm6118 = vmor %vm6116, %vm6117
  %v6119 = vsel %vm6118, %v6111, %v6115
  %v6120 = vand.u32 2147483647, %v6019
  %vm6121 = vcmp.eq.f32.partialorder %v6120, 8.507059e+37
  %v6122 = vand.u32 %v6019, 2147483648
  %v6123 = vor.u32 1.1754944e-38, %v6122
  %v6124 = vsel %vm6121, %v6123, %v6119
  %v6125 = vmul.f32 %v5930, %v6124
  %v6126 = vrcp.pop %v6020
  %v6127 = vmul.f32 %v6020, %v6126
  %v6128 = vsub.f32 1.0, %v6127
  %v6129 = vmul.f32 %v6126, %v6128
  %v6130 = vadd.f32 %v6126, %v6129
  %vm6131 = vweird.f32 %v6020
  %vm6132 = vweird.f32 %v6126
  %vm6133 = vmor %vm6131, %vm6132
  %v6134 = vsel %vm6133, %v6126, %v6130
  %v6135 = vand.u32 2147483647, %v6020
  %vm6136 = vcmp.eq.f32.partialorder %v6135, 8.507059e+37
  %v6137 = vand.u32 %v6020, 2147483648
  %v6138 = vor.u32 1.1754944e-38, %v6137
  %v6139 = vsel %vm6136, %v6138, %v6134
  %v6140 = vmul.f32 %v5931, %v6139
  %v6141 = vmul.f32 %v6035, %v6035
  %v6142 = vmul.f32 %v6050, %v6050
  %v6143 = vmul.f32 %v6065, %v6065
  %v6144 = vmul.f32 %v6080, %v6080
  %v6145 = vmul.f32 %v6095, %v6095
  %v6146 = vmul.f32 %v6110, %v6110
  %v6147 = vmul.f32 %v6125, %v6125
  %v6148 = vmul.f32 %v6140, %v6140
  %v6149 = vsel %vm2510, %v6141, 0.0
  %6150 = vadd.xlane.f32.xlu0 %v6149
  %v6151 = vpop.xlane.xlu0 %6150
  %v6152 = vsel %vm2510, %v6142, 0.0
  %6153 = vadd.xlane.f32.xlu0 %v6152
  %v6154 = vpop.xlane.xlu0 %6153
  %v6155 = vsel %vm2510, %v6143, 0.0
  %6156 = vadd.xlane.f32.xlu0 %v6155
  %v6157 = vpop.xlane.xlu0 %6156
  %v6158 = vsel %vm2510, %v6144, 0.0
  %6159 = vadd.xlane.f32.xlu0 %v6158
  %v6160 = vpop.xlane.xlu0 %6159
  %v6161 = vsel %vm2510, %v6145, 0.0
  %6162 = vadd.xlane.f32.xlu0 %v6161
  %v6163 = vpop.xlane.xlu0 %6162
  %v6164 = vsel %vm2510, %v6146, 0.0
  %6165 = vadd.xlane.f32.xlu0 %v6164
  %v6166 = vpop.xlane.xlu0 %6165
  %v6167 = vsel %vm2510, %v6147, 0.0
  %6168 = vadd.xlane.f32.xlu0 %v6167
  %v6169 = vpop.xlane.xlu0 %6168
  %v6170 = vsel %vm2510, %v6148, 0.0
  %6171 = vadd.xlane.f32.xlu0 %v6170
  %v6172 = vpop.xlane.xlu0 %6171
  %v6173 = vmul.f32 %v6151, 0.01
  %v6174 = vmul.f32 %v6154, 0.01
  %v6175 = vmul.f32 %v6157, 0.01
  %v6176 = vmul.f32 %v6160, 0.01
  %v6177 = vmul.f32 %v6163, 0.01
  %v6178 = vmul.f32 %v6166, 0.01
  %v6179 = vmul.f32 %v6169, 0.01
  %v6180 = vmul.f32 %v6172, 0.01
  %v6181 = vsub.f32 1.0, %v6173
  %v6182 = vsub.f32 1.0, %v6174
  %v6183 = vsub.f32 1.0, %v6175
  %v6184 = vsub.f32 1.0, %v6176
  %v6185 = vsub.f32 1.0, %v6177
  %v6186 = vsub.f32 1.0, %v6178
  %v6187 = vsub.f32 1.0, %v6179
  %v6188 = vsub.f32 1.0, %v6180
  %v6189 = vrsqrt.pop %v6181
  %v6190 = vmul.f32 %v6189, %v6181
  %v6191 = vmul.f32 %v6190, %v6189
  %v6192 = vmul.f32 0.5, %v6191
  %v6193 = vsub.f32 1.5, %v6192
  %v6194 = vmul.f32 %v6189, %v6193
  %v6195 = vmul.f32 %v6181, %v6194
  %vm6196 = vcmp.eq.f32.partialorder %v6181, inf
  %v6197 = vsel %vm6196, %v6181, %v6195
  %vm6198 = vcmp.eq.f32.partialorder %v6181, 0.0
  %v6199 = vand.u32 %v6181, 2147483648
  %v6200 = vsel %vm6198, %v6199, %v6197
  %v6201 = vrsqrt.pop %v6182
  %v6202 = vmul.f32 %v6201, %v6182
  %v6203 = vmul.f32 %v6202, %v6201
  %v6204 = vmul.f32 0.5, %v6203
  %v6205 = vsub.f32 1.5, %v6204
  %v6206 = vmul.f32 %v6201, %v6205
  %v6207 = vmul.f32 %v6182, %v6206
  %vm6208 = vcmp.eq.f32.partialorder %v6182, inf
  %v6209 = vsel %vm6208, %v6182, %v6207
  %vm6210 = vcmp.eq.f32.partialorder %v6182, 0.0
  %v6211 = vand.u32 %v6182, 2147483648
  %v6212 = vsel %vm6210, %v6211, %v6209
  %v6213 = vrsqrt.pop %v6183
  %v6214 = vmul.f32 %v6213, %v6183
  %v6215 = vmul.f32 %v6214, %v6213
  %v6216 = vmul.f32 0.5, %v6215
  %v6217 = vsub.f32 1.5, %v6216
  %v6218 = vmul.f32 %v6213, %v6217
  %v6219 = vmul.f32 %v6183, %v6218
  %vm6220 = vcmp.eq.f32.partialorder %v6183, inf
  %v6221 = vsel %vm6220, %v6183, %v6219
  %vm6222 = vcmp.eq.f32.partialorder %v6183, 0.0
  %v6223 = vand.u32 %v6183, 2147483648
  %v6224 = vsel %vm6222, %v6223, %v6221
  %v6225 = vrsqrt.pop %v6184
  %v6226 = vmul.f32 %v6225, %v6184
  %v6227 = vmul.f32 %v6226, %v6225
  %v6228 = vmul.f32 0.5, %v6227
  %v6229 = vsub.f32 1.5, %v6228
  %v6230 = vmul.f32 %v6225, %v6229
  %v6231 = vmul.f32 %v6184, %v6230
  %vm6232 = vcmp.eq.f32.partialorder %v6184, inf
  %v6233 = vsel %vm6232, %v6184, %v6231
  %vm6234 = vcmp.eq.f32.partialorder %v6184, 0.0
  %v6235 = vand.u32 %v6184, 2147483648
  %v6236 = vsel %vm6234, %v6235, %v6233
  %v6237 = vrsqrt.pop %v6185
  %v6238 = vmul.f32 %v6237, %v6185
  %v6239 = vmul.f32 %v6238, %v6237
  %v6240 = vmul.f32 0.5, %v6239
  %v6241 = vsub.f32 1.5, %v6240
  %v6242 = vmul.f32 %v6237, %v6241
  %v6243 = vmul.f32 %v6185, %v6242
  %vm6244 = vcmp.eq.f32.partialorder %v6185, inf
  %v6245 = vsel %vm6244, %v6185, %v6243
  %vm6246 = vcmp.eq.f32.partialorder %v6185, 0.0
  %v6247 = vand.u32 %v6185, 2147483648
  %v6248 = vsel %vm6246, %v6247, %v6245
  %v6249 = vrsqrt.pop %v6186
  %v6250 = vmul.f32 %v6249, %v6186
  %v6251 = vmul.f32 %v6250, %v6249
  %v6252 = vmul.f32 0.5, %v6251
  %v6253 = vsub.f32 1.5, %v6252
  %v6254 = vmul.f32 %v6249, %v6253
  %v6255 = vmul.f32 %v6186, %v6254
  %vm6256 = vcmp.eq.f32.partialorder %v6186, inf
  %v6257 = vsel %vm6256, %v6186, %v6255
  %vm6258 = vcmp.eq.f32.partialorder %v6186, 0.0
  %v6259 = vand.u32 %v6186, 2147483648
  %v6260 = vsel %vm6258, %v6259, %v6257
  %v6261 = vrsqrt.pop %v6187
  %v6262 = vmul.f32 %v6261, %v6187
  %v6263 = vmul.f32 %v6262, %v6261
  %v6264 = vmul.f32 0.5, %v6263
  %v6265 = vsub.f32 1.5, %v6264
  %v6266 = vmul.f32 %v6261, %v6265
  %v6267 = vmul.f32 %v6187, %v6266
  %vm6268 = vcmp.eq.f32.partialorder %v6187, inf
  %v6269 = vsel %vm6268, %v6187, %v6267
  %vm6270 = vcmp.eq.f32.partialorder %v6187, 0.0
  %v6271 = vand.u32 %v6187, 2147483648
  %v6272 = vsel %vm6270, %v6271, %v6269
  %v6273 = vrsqrt.pop %v6188
  %v6274 = vmul.f32 %v6273, %v6188
  %v6275 = vmul.f32 %v6274, %v6273
  %v6276 = vmul.f32 0.5, %v6275
  %v6277 = vsub.f32 1.5, %v6276
  %v6278 = vmul.f32 %v6273, %v6277
  %v6279 = vmul.f32 %v6188, %v6278
  %vm6280 = vcmp.eq.f32.partialorder %v6188, inf
  %v6281 = vsel %vm6280, %v6188, %v6279
  %vm6282 = vcmp.eq.f32.partialorder %v6188, 0.0
  %v6283 = vand.u32 %v6188, 2147483648
  %v6284 = vsel %vm6282, %v6283, %v6281
  %v6285 = vadd.f32 %v6200, 1.0
  %v6286 = vadd.f32 %v6212, 1.0
  %v6287 = vadd.f32 %v6224, 1.0
  %v6288 = vadd.f32 %v6236, 1.0
  %v6289 = vadd.f32 %v6248, 1.0
  %v6290 = vadd.f32 %v6260, 1.0
  %v6291 = vadd.f32 %v6272, 1.0
  %v6292 = vadd.f32 %v6284, 1.0
  %v6293 = vrcp.pop %v6285
  %v6294 = vmul.f32 %v6285, %v6293
  %v6295 = vsub.f32 1.0, %v6294
  %v6296 = vmul.f32 %v6293, %v6295
  %v6297 = vadd.f32 %v6293, %v6296
  %vm6298 = vweird.f32 %v6285
  %vm6299 = vweird.f32 %v6293
  %vm6300 = vmor %vm6298, %vm6299
  %v6301 = vsel %vm6300, %v6293, %v6297
  %v6302 = vand.u32 2147483647, %v6285
  %vm6303 = vcmp.eq.f32.partialorder %v6302, 8.507059e+37
  %v6304 = vand.u32 %v6285, 2147483648
  %v6305 = vor.u32 1.1754944e-38, %v6304
  %v6306 = vsel %vm6303, %v6305, %v6301
  %v6307 = vmul.f32 1.0, %v6306
  %v6308 = vrcp.pop %v6286
  %v6309 = vmul.f32 %v6286, %v6308
  %v6310 = vsub.f32 1.0, %v6309
  %v6311 = vmul.f32 %v6308, %v6310
  %v6312 = vadd.f32 %v6308, %v6311
  %vm6313 = vweird.f32 %v6286
  %vm6314 = vweird.f32 %v6308
  %vm6315 = vmor %vm6313, %vm6314
  %v6316 = vsel %vm6315, %v6308, %v6312
  %v6317 = vand.u32 2147483647, %v6286
  %vm6318 = vcmp.eq.f32.partialorder %v6317, 8.507059e+37
  %v6319 = vand.u32 %v6286, 2147483648
  %v6320 = vor.u32 1.1754944e-38, %v6319
  %v6321 = vsel %vm6318, %v6320, %v6316
  %v6322 = vmul.f32 1.0, %v6321
  %v6323 = vrcp.pop %v6287
  %v6324 = vmul.f32 %v6287, %v6323
  %v6325 = vsub.f32 1.0, %v6324
  %v6326 = vmul.f32 %v6323, %v6325
  %v6327 = vadd.f32 %v6323, %v6326
  %vm6328 = vweird.f32 %v6287
  %vm6329 = vweird.f32 %v6323
  %vm6330 = vmor %vm6328, %vm6329
  %v6331 = vsel %vm6330, %v6323, %v6327
  %v6332 = vand.u32 2147483647, %v6287
  %vm6333 = vcmp.eq.f32.partialorder %v6332, 8.507059e+37
  %v6334 = vand.u32 %v6287, 2147483648
  %v6335 = vor.u32 1.1754944e-38, %v6334
  %v6336 = vsel %vm6333, %v6335, %v6331
  %v6337 = vmul.f32 1.0, %v6336
  %v6338 = vrcp.pop %v6288
  %v6339 = vmul.f32 %v6288, %v6338
  %v6340 = vsub.f32 1.0, %v6339
  %v6341 = vmul.f32 %v6338, %v6340
  %v6342 = vadd.f32 %v6338, %v6341
  %vm6343 = vweird.f32 %v6288
  %vm6344 = vweird.f32 %v6338
  %vm6345 = vmor %vm6343, %vm6344
  %v6346 = vsel %vm6345, %v6338, %v6342
  %v6347 = vand.u32 2147483647, %v6288
  %vm6348 = vcmp.eq.f32.partialorder %v6347, 8.507059e+37
  %v6349 = vand.u32 %v6288, 2147483648
  %v6350 = vor.u32 1.1754944e-38, %v6349
  %v6351 = vsel %vm6348, %v6350, %v6346
  %v6352 = vmul.f32 1.0, %v6351
  %v6353 = vrcp.pop %v6289
  %v6354 = vmul.f32 %v6289, %v6353
  %v6355 = vsub.f32 1.0, %v6354
  %v6356 = vmul.f32 %v6353, %v6355
  %v6357 = vadd.f32 %v6353, %v6356
  %vm6358 = vweird.f32 %v6289
  %vm6359 = vweird.f32 %v6353
  %vm6360 = vmor %vm6358, %vm6359
  %v6361 = vsel %vm6360, %v6353, %v6357
  %v6362 = vand.u32 2147483647, %v6289
  %vm6363 = vcmp.eq.f32.partialorder %v6362, 8.507059e+37
  %v6364 = vand.u32 %v6289, 2147483648
  %v6365 = vor.u32 1.1754944e-38, %v6364
  %v6366 = vsel %vm6363, %v6365, %v6361
  %v6367 = vmul.f32 1.0, %v6366
  %v6368 = vrcp.pop %v6290
  %v6369 = vmul.f32 %v6290, %v6368
  %v6370 = vsub.f32 1.0, %v6369
  %v6371 = vmul.f32 %v6368, %v6370
  %v6372 = vadd.f32 %v6368, %v6371
  %vm6373 = vweird.f32 %v6290
  %vm6374 = vweird.f32 %v6368
  %vm6375 = vmor %vm6373, %vm6374
  %v6376 = vsel %vm6375, %v6368, %v6372
  %v6377 = vand.u32 2147483647, %v6290
  %vm6378 = vcmp.eq.f32.partialorder %v6377, 8.507059e+37
  %v6379 = vand.u32 %v6290, 2147483648
  %v6380 = vor.u32 1.1754944e-38, %v6379
  %v6381 = vsel %vm6378, %v6380, %v6376
  %v6382 = vmul.f32 1.0, %v6381
  %v6383 = vrcp.pop %v6291
  %v6384 = vmul.f32 %v6291, %v6383
  %v6385 = vsub.f32 1.0, %v6384
  %v6386 = vmul.f32 %v6383, %v6385
  %v6387 = vadd.f32 %v6383, %v6386
  %vm6388 = vweird.f32 %v6291
  %vm6389 = vweird.f32 %v6383
  %vm6390 = vmor %vm6388, %vm6389
  %v6391 = vsel %vm6390, %v6383, %v6387
  %v6392 = vand.u32 2147483647, %v6291
  %vm6393 = vcmp.eq.f32.partialorder %v6392, 8.507059e+37
  %v6394 = vand.u32 %v6291, 2147483648
  %v6395 = vor.u32 1.1754944e-38, %v6394
  %v6396 = vsel %vm6393, %v6395, %v6391
  %v6397 = vmul.f32 1.0, %v6396
  %v6398 = vrcp.pop %v6292
  %v6399 = vmul.f32 %v6292, %v6398
  %v6400 = vsub.f32 1.0, %v6399
  %v6401 = vmul.f32 %v6398, %v6400
  %v6402 = vadd.f32 %v6398, %v6401
  %vm6403 = vweird.f32 %v6292
  %vm6404 = vweird.f32 %v6398
  %vm6405 = vmor %vm6403, %vm6404
  %v6406 = vsel %vm6405, %v6398, %v6402
  %v6407 = vand.u32 2147483647, %v6292
  %vm6408 = vcmp.eq.f32.partialorder %v6407, 8.507059e+37
  %v6409 = vand.u32 %v6292, 2147483648
  %v6410 = vor.u32 1.1754944e-38, %v6409
  %v6411 = vsel %vm6408, %v6410, %v6406
  %v6412 = vmul.f32 1.0, %v6411
  %v6413 = vmul.f32 %v6035, %v6307
  %v6414 = vmul.f32 %v6050, %v6322
  %v6415 = vmul.f32 %v6065, %v6337
  %v6416 = vmul.f32 %v6080, %v6352
  %v6417 = vmul.f32 %v6095, %v6367
  %v6418 = vmul.f32 %v6110, %v6382
  %v6419 = vmul.f32 %v6125, %v6397
  %v6420 = vmul.f32 %v6140, %v6412
  %v6421 = vmul.f32 %v6307, %v6307
  %v6422 = vmul.f32 %v6322, %v6322
  %v6423 = vmul.f32 %v6337, %v6337
  %v6424 = vmul.f32 %v6352, %v6352
  %v6425 = vmul.f32 %v6367, %v6367
  %v6426 = vmul.f32 %v6382, %v6382
  %v6427 = vmul.f32 %v6397, %v6397
  %v6428 = vmul.f32 %v6412, %v6412
  %v6429 = vmul.f32 %v6151, %v6421
  %v6430 = vmul.f32 %v6154, %v6422
  %v6431 = vmul.f32 %v6157, %v6423
  %v6432 = vmul.f32 %v6160, %v6424
  %v6433 = vmul.f32 %v6163, %v6425
  %v6434 = vmul.f32 %v6166, %v6426
  %v6435 = vmul.f32 %v6169, %v6427
  %v6436 = vmul.f32 %v6172, %v6428
  %vm6437 = vcmp.eq.f32.partialorder %v5742, 1.0
  %vm6438 = vcmp.eq.f32.partialorder %v5745, 1.0
  %vm6439 = vcmp.eq.f32.partialorder %v5748, 1.0
  %vm6440 = vcmp.eq.f32.partialorder %v5751, 1.0
  %vm6441 = vcmp.eq.f32.partialorder %v5754, 1.0
  %vm6442 = vcmp.eq.f32.partialorder %v5757, 1.0
  %vm6443 = vcmp.eq.f32.partialorder %v5760, 1.0
  %vm6444 = vcmp.eq.f32.partialorder %v5763, 1.0
  %vm6445 = vcmp.eq.f32.partialorder %v5766, 1.0
  %vm6446 = vcmp.eq.f32.partialorder %v5769, 1.0
  %vm6447 = vcmp.eq.f32.partialorder %v5772, 1.0
  %vm6448 = vcmp.eq.f32.partialorder %v5775, 1.0
  %vm6449 = vcmp.eq.f32.partialorder %v5778, 1.0
  %vm6450 = vcmp.eq.f32.partialorder %v5781, 1.0
  %vm6451 = vcmp.eq.f32.partialorder %v5784, 1.0
  %vm6452 = vcmp.eq.f32.partialorder %v5787, 1.0
  %v6453 = vsel %vm6437, 1, 0
  %v6454 = vsel %vm6438, 1, 0
  %v6455 = vsel %vm6439, 1, 0
  %v6456 = vsel %vm6440, 1, 0
  %v6457 = vsel %vm6441, 1, 0
  %v6458 = vsel %vm6442, 1, 0
  %v6459 = vsel %vm6443, 1, 0
  %v6460 = vsel %vm6444, 1, 0
  %v6461 = vsel %vm6445, 1, 0
  %v6462 = vsel %vm6446, 1, 0
  %v6463 = vsel %vm6447, 1, 0
  %v6464 = vsel %vm6448, 1, 0
  %v6465 = vsel %vm6449, 1, 0
  %v6466 = vsel %vm6450, 1, 0
  %v6467 = vsel %vm6451, 1, 0
  %v6468 = vsel %vm6452, 1, 0
  %v6469 = vcvt.s32.f32 %v6453
  %v6470 = vcvt.s32.f32 %v6454
  %v6471 = vcvt.s32.f32 %v6455
  %v6472 = vcvt.s32.f32 %v6456
  %v6473 = vcvt.s32.f32 %v6457
  %v6474 = vcvt.s32.f32 %v6458
  %v6475 = vcvt.s32.f32 %v6459
  %v6476 = vcvt.s32.f32 %v6460
  %v6477 = vcvt.s32.f32 %v6461
  %v6478 = vcvt.s32.f32 %v6462
  %v6479 = vcvt.s32.f32 %v6463
  %v6480 = vcvt.s32.f32 %v6464
  %v6481 = vcvt.s32.f32 %v6465
  %v6482 = vcvt.s32.f32 %v6466
  %v6483 = vcvt.s32.f32 %v6467
  %v6484 = vcvt.s32.f32 %v6468
  %v6485 = vmul.f32 %v6469, %v2342
  %v6486 = vmul.f32 %v6470, %v2343
  %v6487 = vmul.f32 %v6471, %v2344
  %v6488 = vmul.f32 %v6472, %v2345
  %v6489 = vmul.f32 %v6473, %v2346
  %v6490 = vmul.f32 %v6474, %v2347
  %v6491 = vmul.f32 %v6475, %v2348
  %v6492 = vmul.f32 %v6476, %v2349
  %v6493 = vmul.f32 %v6477, %v2350
  %v6494 = vmul.f32 %v6478, %v2351
  %v6495 = vmul.f32 %v6479, %v2352
  %v6496 = vmul.f32 %v6480, %v2353
  %v6497 = vmul.f32 %v6481, %v2354
  %v6498 = vmul.f32 %v6482, %v2355
  %v6499 = vmul.f32 %v6483, %v2356
  %v6500 = vmul.f32 %v6484, %v2357
  %v6501 = vsel %vm532, %v6485, 0.0
  %v6502 = vsel %vm536, %v6486, 0.0
  %v6503 = vadd.f32 %v6501, %v6502
  %v6504 = vrot.slane %v6503, 4
  %v6505 = vadd.f32 %v6503, %v6504
  %v6506 = vrot.slane %v6505, 2
  %v6507 = vadd.f32 %v6505, %v6506
  %v6508 = vrot.slane %v6507, 1
  %v6509 = vadd.f32 %v6507, %v6508
  %v6510 = vsel %vm532, %v6487, 0.0
  %v6511 = vsel %vm536, %v6488, 0.0
  %v6512 = vadd.f32 %v6510, %v6511
  %v6513 = vrot.slane %v6512, 4
  %v6514 = vadd.f32 %v6512, %v6513
  %v6515 = vrot.slane %v6514, 2
  %v6516 = vadd.f32 %v6514, %v6515
  %v6517 = vrot.slane %v6516, 1
  %v6518 = vadd.f32 %v6516, %v6517
  %v6519 = vsel %vm532, %v6489, 0.0
  %v6520 = vsel %vm536, %v6490, 0.0
  %v6521 = vadd.f32 %v6519, %v6520
  %v6522 = vrot.slane %v6521, 4
  %v6523 = vadd.f32 %v6521, %v6522
  %v6524 = vrot.slane %v6523, 2
  %v6525 = vadd.f32 %v6523, %v6524
  %v6526 = vrot.slane %v6525, 1
  %v6527 = vadd.f32 %v6525, %v6526
  %v6528 = vsel %vm532, %v6491, 0.0
  %v6529 = vsel %vm536, %v6492, 0.0
  %v6530 = vadd.f32 %v6528, %v6529
  %v6531 = vrot.slane %v6530, 4
  %v6532 = vadd.f32 %v6530, %v6531
  %v6533 = vrot.slane %v6532, 2
  %v6534 = vadd.f32 %v6532, %v6533
  %v6535 = vrot.slane %v6534, 1
  %v6536 = vadd.f32 %v6534, %v6535
  %v6537 = vsel %vm532, %v6493, 0.0
  %v6538 = vsel %vm536, %v6494, 0.0
  %v6539 = vadd.f32 %v6537, %v6538
  %v6540 = vrot.slane %v6539, 4
  %v6541 = vadd.f32 %v6539, %v6540
  %v6542 = vrot.slane %v6541, 2
  %v6543 = vadd.f32 %v6541, %v6542
  %v6544 = vrot.slane %v6543, 1
  %v6545 = vadd.f32 %v6543, %v6544
  %v6546 = vsel %vm532, %v6495, 0.0
  %v6547 = vsel %vm536, %v6496, 0.0
  %v6548 = vadd.f32 %v6546, %v6547
  %v6549 = vrot.slane %v6548, 4
  %v6550 = vadd.f32 %v6548, %v6549
  %v6551 = vrot.slane %v6550, 2
  %v6552 = vadd.f32 %v6550, %v6551
  %v6553 = vrot.slane %v6552, 1
  %v6554 = vadd.f32 %v6552, %v6553
  %v6555 = vsel %vm532, %v6497, 0.0
  %v6556 = vsel %vm536, %v6498, 0.0
  %v6557 = vadd.f32 %v6555, %v6556
  %v6558 = vrot.slane %v6557, 4
  %v6559 = vadd.f32 %v6557, %v6558
  %v6560 = vrot.slane %v6559, 2
  %v6561 = vadd.f32 %v6559, %v6560
  %v6562 = vrot.slane %v6561, 1
  %v6563 = vadd.f32 %v6561, %v6562
  %v6564 = vsel %vm532, %v6499, 0.0
  %v6565 = vsel %vm536, %v6500, 0.0
  %v6566 = vadd.f32 %v6564, %v6565
  %v6567 = vrot.slane %v6566, 4
  %v6568 = vadd.f32 %v6566, %v6567
  %v6569 = vrot.slane %v6568, 2
  %v6570 = vadd.f32 %v6568, %v6569
  %v6571 = vrot.slane %v6570, 1
  %v6572 = vadd.f32 %v6570, %v6571
  %v6573 = vadd.f32 %v2366, %v6509
  %v6574 = vadd.f32 %v2367, %v6518
  %v6575 = vadd.f32 %v2368, %v6527
  %v6576 = vadd.f32 %v2369, %v6536
  %v6577 = vadd.f32 %v2370, %v6545
  %v6578 = vadd.f32 %v2371, %v6554
  %v6579 = vadd.f32 %v2372, %v6563
  %v6580 = vadd.f32 %v2373, %v6572
  %v6581 = vmul.f32 %v6469, %v2191
  %v6582 = vmul.f32 %v6470, %v2201
  %v6583 = vmul.f32 %v6471, %v2211
  %v6584 = vmul.f32 %v6472, %v2221
  %v6585 = vmul.f32 %v6473, %v2231
  %v6586 = vmul.f32 %v6474, %v2241
  %v6587 = vmul.f32 %v6475, %v2251
  %v6588 = vmul.f32 %v6476, %v2261
  %v6589 = vmul.f32 %v6477, %v2271
  %v6590 = vmul.f32 %v6478, %v2281
  %v6591 = vmul.f32 %v6479, %v2291
  %v6592 = vmul.f32 %v6480, %v2301
  %v6593 = vmul.f32 %v6481, %v2311
  %v6594 = vmul.f32 %v6482, %v2321
  %v6595 = vmul.f32 %v6483, %v2331
  %v6596 = vmul.f32 %v6484, %v2341
  %v6597 = vsel %vm5948, %v6582, 0.0
  %v6598 = vadd.f32 %v6581, %v6597
  %v6599 = vrot.slane %v6598, 4
  %v6600 = vadd.f32 %v6598, %v6599
  %v6601 = vrot.slane %v6600, 2
  %v6602 = vadd.f32 %v6600, %v6601
  %v6603 = vrot.slane %v6602, 1
  %v6604 = vadd.f32 %v6602, %v6603
  %v6605 = vsel %vm5948, %v6584, 0.0
  %v6606 = vadd.f32 %v6583, %v6605
  %v6607 = vrot.slane %v6606, 4
  %v6608 = vadd.f32 %v6606, %v6607
  %v6609 = vrot.slane %v6608, 2
  %v6610 = vadd.f32 %v6608, %v6609
  %v6611 = vrot.slane %v6610, 1
  %v6612 = vadd.f32 %v6610, %v6611
  %v6613 = vsel %vm5948, %v6586, 0.0
  %v6614 = vadd.f32 %v6585, %v6613
  %v6615 = vrot.slane %v6614, 4
  %v6616 = vadd.f32 %v6614, %v6615
  %v6617 = vrot.slane %v6616, 2
  %v6618 = vadd.f32 %v6616, %v6617
  %v6619 = vrot.slane %v6618, 1
  %v6620 = vadd.f32 %v6618, %v6619
  %v6621 = vsel %vm5948, %v6588, 0.0
  %v6622 = vadd.f32 %v6587, %v6621
  %v6623 = vrot.slane %v6622, 4
  %v6624 = vadd.f32 %v6622, %v6623
  %v6625 = vrot.slane %v6624, 2
  %v6626 = vadd.f32 %v6624, %v6625
  %v6627 = vrot.slane %v6626, 1
  %v6628 = vadd.f32 %v6626, %v6627
  %v6629 = vsel %vm5948, %v6590, 0.0
  %v6630 = vadd.f32 %v6589, %v6629
  %v6631 = vrot.slane %v6630, 4
  %v6632 = vadd.f32 %v6630, %v6631
  %v6633 = vrot.slane %v6632, 2
  %v6634 = vadd.f32 %v6632, %v6633
  %v6635 = vrot.slane %v6634, 1
  %v6636 = vadd.f32 %v6634, %v6635
  %v6637 = vsel %vm5948, %v6592, 0.0
  %v6638 = vadd.f32 %v6591, %v6637
  %v6639 = vrot.slane %v6638, 4
  %v6640 = vadd.f32 %v6638, %v6639
  %v6641 = vrot.slane %v6640, 2
  %v6642 = vadd.f32 %v6640, %v6641
  %v6643 = vrot.slane %v6642, 1
  %v6644 = vadd.f32 %v6642, %v6643
  %v6645 = vsel %vm5948, %v6594, 0.0
  %v6646 = vadd.f32 %v6593, %v6645
  %v6647 = vrot.slane %v6646, 4
  %v6648 = vadd.f32 %v6646, %v6647
  %v6649 = vrot.slane %v6648, 2
  %v6650 = vadd.f32 %v6648, %v6649
  %v6651 = vrot.slane %v6650, 1
  %v6652 = vadd.f32 %v6650, %v6651
  %v6653 = vsel %vm5948, %v6596, 0.0
  %v6654 = vadd.f32 %v6595, %v6653
  %v6655 = vrot.slane %v6654, 4
  %v6656 = vadd.f32 %v6654, %v6655
  %v6657 = vrot.slane %v6656, 2
  %v6658 = vadd.f32 %v6656, %v6657
  %v6659 = vrot.slane %v6658, 1
  %v6660 = vadd.f32 %v6658, %v6659
  %v6661 = vadd.f32 %v2374, %v6604
  %v6662 = vadd.f32 %v2375, %v6612
  %v6663 = vadd.f32 %v2376, %v6620
  %v6664 = vadd.f32 %v2377, %v6628
  %v6665 = vadd.f32 %v2378, %v6636
  %v6666 = vadd.f32 %v2379, %v6644
  %v6667 = vadd.f32 %v2380, %v6652
  %v6668 = vadd.f32 %v2381, %v6660
  %v6669 = vrcp.pop %v6661
  %v6670 = vmul.f32 %v6661, %v6669
  %v6671 = vsub.f32 1.0, %v6670
  %v6672 = vmul.f32 %v6669, %v6671
  %v6673 = vadd.f32 %v6669, %v6672
  %vm6674 = vweird.f32 %v6661
  %vm6675 = vweird.f32 %v6669
  %vm6676 = vmor %vm6674, %vm6675
  %v6677 = vsel %vm6676, %v6669, %v6673
  %v6678 = vand.u32 2147483647, %v6661
  %vm6679 = vcmp.eq.f32.partialorder %v6678, 8.507059e+37
  %v6680 = vand.u32 %v6661, 2147483648
  %v6681 = vor.u32 1.1754944e-38, %v6680
  %v6682 = vsel %vm6679, %v6681, %v6677
  %v6683 = vmul.f32 %v6573, %v6682
  %v6684 = vrcp.pop %v6662
  %v6685 = vmul.f32 %v6662, %v6684
  %v6686 = vsub.f32 1.0, %v6685
  %v6687 = vmul.f32 %v6684, %v6686
  %v6688 = vadd.f32 %v6684, %v6687
  %vm6689 = vweird.f32 %v6662
  %vm6690 = vweird.f32 %v6684
  %vm6691 = vmor %vm6689, %vm6690
  %v6692 = vsel %vm6691, %v6684, %v6688
  %v6693 = vand.u32 2147483647, %v6662
  %vm6694 = vcmp.eq.f32.partialorder %v6693, 8.507059e+37
  %v6695 = vand.u32 %v6662, 2147483648
  %v6696 = vor.u32 1.1754944e-38, %v6695
  %v6697 = vsel %vm6694, %v6696, %v6692
  %v6698 = vmul.f32 %v6574, %v6697
  %v6699 = vrcp.pop %v6663
  %v6700 = vmul.f32 %v6663, %v6699
  %v6701 = vsub.f32 1.0, %v6700
  %v6702 = vmul.f32 %v6699, %v6701
  %v6703 = vadd.f32 %v6699, %v6702
  %vm6704 = vweird.f32 %v6663
  %vm6705 = vweird.f32 %v6699
  %vm6706 = vmor %vm6704, %vm6705
  %v6707 = vsel %vm6706, %v6699, %v6703
  %v6708 = vand.u32 2147483647, %v6663
  %vm6709 = vcmp.eq.f32.partialorder %v6708, 8.507059e+37
  %v6710 = vand.u32 %v6663, 2147483648
  %v6711 = vor.u32 1.1754944e-38, %v6710
  %v6712 = vsel %vm6709, %v6711, %v6707
  %v6713 = vmul.f32 %v6575, %v6712
  %v6714 = vrcp.pop %v6664
  %v6715 = vmul.f32 %v6664, %v6714
  %v6716 = vsub.f32 1.0, %v6715
  %v6717 = vmul.f32 %v6714, %v6716
  %v6718 = vadd.f32 %v6714, %v6717
  %vm6719 = vweird.f32 %v6664
  %vm6720 = vweird.f32 %v6714
  %vm6721 = vmor %vm6719, %vm6720
  %v6722 = vsel %vm6721, %v6714, %v6718
  %v6723 = vand.u32 2147483647, %v6664
  %vm6724 = vcmp.eq.f32.partialorder %v6723, 8.507059e+37
  %v6725 = vand.u32 %v6664, 2147483648
  %v6726 = vor.u32 1.1754944e-38, %v6725
  %v6727 = vsel %vm6724, %v6726, %v6722
  %v6728 = vmul.f32 %v6576, %v6727
  %v6729 = vrcp.pop %v6665
  %v6730 = vmul.f32 %v6665, %v6729
  %v6731 = vsub.f32 1.0, %v6730
  %v6732 = vmul.f32 %v6729, %v6731
  %v6733 = vadd.f32 %v6729, %v6732
  %vm6734 = vweird.f32 %v6665
  %vm6735 = vweird.f32 %v6729
  %vm6736 = vmor %vm6734, %vm6735
  %v6737 = vsel %vm6736, %v6729, %v6733
  %v6738 = vand.u32 2147483647, %v6665
  %vm6739 = vcmp.eq.f32.partialorder %v6738, 8.507059e+37
  %v6740 = vand.u32 %v6665, 2147483648
  %v6741 = vor.u32 1.1754944e-38, %v6740
  %v6742 = vsel %vm6739, %v6741, %v6737
  %v6743 = vmul.f32 %v6577, %v6742
  %v6744 = vrcp.pop %v6666
  %v6745 = vmul.f32 %v6666, %v6744
  %v6746 = vsub.f32 1.0, %v6745
  %v6747 = vmul.f32 %v6744, %v6746
  %v6748 = vadd.f32 %v6744, %v6747
  %vm6749 = vweird.f32 %v6666
  %vm6750 = vweird.f32 %v6744
  %vm6751 = vmor %vm6749, %vm6750
  %v6752 = vsel %vm6751, %v6744, %v6748
  %v6753 = vand.u32 2147483647, %v6666
  %vm6754 = vcmp.eq.f32.partialorder %v6753, 8.507059e+37
  %v6755 = vand.u32 %v6666, 2147483648
  %v6756 = vor.u32 1.1754944e-38, %v6755
  %v6757 = vsel %vm6754, %v6756, %v6752
  %v6758 = vmul.f32 %v6578, %v6757
  %v6759 = vrcp.pop %v6667
  %v6760 = vmul.f32 %v6667, %v6759
  %v6761 = vsub.f32 1.0, %v6760
  %v6762 = vmul.f32 %v6759, %v6761
  %v6763 = vadd.f32 %v6759, %v6762
  %vm6764 = vweird.f32 %v6667
  %vm6765 = vweird.f32 %v6759
  %vm6766 = vmor %vm6764, %vm6765
  %v6767 = vsel %vm6766, %v6759, %v6763
  %v6768 = vand.u32 2147483647, %v6667
  %vm6769 = vcmp.eq.f32.partialorder %v6768, 8.507059e+37
  %v6770 = vand.u32 %v6667, 2147483648
  %v6771 = vor.u32 1.1754944e-38, %v6770
  %v6772 = vsel %vm6769, %v6771, %v6767
  %v6773 = vmul.f32 %v6579, %v6772
  %v6774 = vrcp.pop %v6668
  %v6775 = vmul.f32 %v6668, %v6774
  %v6776 = vsub.f32 1.0, %v6775
  %v6777 = vmul.f32 %v6774, %v6776
  %v6778 = vadd.f32 %v6774, %v6777
  %vm6779 = vweird.f32 %v6668
  %vm6780 = vweird.f32 %v6774
  %vm6781 = vmor %vm6779, %vm6780
  %v6782 = vsel %vm6781, %v6774, %v6778
  %v6783 = vand.u32 2147483647, %v6668
  %vm6784 = vcmp.eq.f32.partialorder %v6783, 8.507059e+37
  %v6785 = vand.u32 %v6668, 2147483648
  %v6786 = vor.u32 1.1754944e-38, %v6785
  %v6787 = vsel %vm6784, %v6786, %v6782
  %v6788 = vmul.f32 %v6580, %v6787
  %v6789 = vmul.f32 %v6683, %v6683
  %v6790 = vmul.f32 %v6698, %v6698
  %v6791 = vmul.f32 %v6713, %v6713
  %v6792 = vmul.f32 %v6728, %v6728
  %v6793 = vmul.f32 %v6743, %v6743
  %v6794 = vmul.f32 %v6758, %v6758
  %v6795 = vmul.f32 %v6773, %v6773
  %v6796 = vmul.f32 %v6788, %v6788
  %v6797 = vsel %vm2799, %v6789, 0.0
  %6798 = vadd.xlane.f32.xlu0 %v6797
  %v6799 = vpop.xlane.xlu0 %6798
  %v6800 = vsel %vm2799, %v6790, 0.0
  %6801 = vadd.xlane.f32.xlu0 %v6800
  %v6802 = vpop.xlane.xlu0 %6801
  %v6803 = vsel %vm2799, %v6791, 0.0
  %6804 = vadd.xlane.f32.xlu0 %v6803
  %v6805 = vpop.xlane.xlu0 %6804
  %v6806 = vsel %vm2799, %v6792, 0.0
  %6807 = vadd.xlane.f32.xlu0 %v6806
  %v6808 = vpop.xlane.xlu0 %6807
  %v6809 = vsel %vm2799, %v6793, 0.0
  %6810 = vadd.xlane.f32.xlu0 %v6809
  %v6811 = vpop.xlane.xlu0 %6810
  %v6812 = vsel %vm2799, %v6794, 0.0
  %6813 = vadd.xlane.f32.xlu0 %v6812
  %v6814 = vpop.xlane.xlu0 %6813
  %v6815 = vsel %vm2799, %v6795, 0.0
  %6816 = vadd.xlane.f32.xlu0 %v6815
  %v6817 = vpop.xlane.xlu0 %6816
  %v6818 = vsel %vm2799, %v6796, 0.0
  %6819 = vadd.xlane.f32.xlu0 %v6818
  %v6820 = vpop.xlane.xlu0 %6819
  %v6821 = vmul.f32 %v6799, 0.01
  %v6822 = vmul.f32 %v6802, 0.01
  %v6823 = vmul.f32 %v6805, 0.01
  %v6824 = vmul.f32 %v6808, 0.01
  %v6825 = vmul.f32 %v6811, 0.01
  %v6826 = vmul.f32 %v6814, 0.01
  %v6827 = vmul.f32 %v6817, 0.01
  %v6828 = vmul.f32 %v6820, 0.01
  %v6829 = vsub.f32 1.0, %v6821
  %v6830 = vsub.f32 1.0, %v6822
  %v6831 = vsub.f32 1.0, %v6823
  %v6832 = vsub.f32 1.0, %v6824
  %v6833 = vsub.f32 1.0, %v6825
  %v6834 = vsub.f32 1.0, %v6826
  %v6835 = vsub.f32 1.0, %v6827
  %v6836 = vsub.f32 1.0, %v6828
  %v6837 = vrsqrt.pop %v6829
  %v6838 = vmul.f32 %v6837, %v6829
  %v6839 = vmul.f32 %v6838, %v6837
  %v6840 = vmul.f32 0.5, %v6839
  %v6841 = vsub.f32 1.5, %v6840
  %v6842 = vmul.f32 %v6837, %v6841
  %v6843 = vmul.f32 %v6829, %v6842
  %vm6844 = vcmp.eq.f32.partialorder %v6829, inf
  %v6845 = vsel %vm6844, %v6829, %v6843
  %vm6846 = vcmp.eq.f32.partialorder %v6829, 0.0
  %v6847 = vand.u32 %v6829, 2147483648
  %v6848 = vsel %vm6846, %v6847, %v6845
  %v6849 = vrsqrt.pop %v6830
  %v6850 = vmul.f32 %v6849, %v6830
  %v6851 = vmul.f32 %v6850, %v6849
  %v6852 = vmul.f32 0.5, %v6851
  %v6853 = vsub.f32 1.5, %v6852
  %v6854 = vmul.f32 %v6849, %v6853
  %v6855 = vmul.f32 %v6830, %v6854
  %vm6856 = vcmp.eq.f32.partialorder %v6830, inf
  %v6857 = vsel %vm6856, %v6830, %v6855
  %vm6858 = vcmp.eq.f32.partialorder %v6830, 0.0
  %v6859 = vand.u32 %v6830, 2147483648
  %v6860 = vsel %vm6858, %v6859, %v6857
  %v6861 = vrsqrt.pop %v6831
  %v6862 = vmul.f32 %v6861, %v6831
  %v6863 = vmul.f32 %v6862, %v6861
  %v6864 = vmul.f32 0.5, %v6863
  %v6865 = vsub.f32 1.5, %v6864
  %v6866 = vmul.f32 %v6861, %v6865
  %v6867 = vmul.f32 %v6831, %v6866
  %vm6868 = vcmp.eq.f32.partialorder %v6831, inf
  %v6869 = vsel %vm6868, %v6831, %v6867
  %vm6870 = vcmp.eq.f32.partialorder %v6831, 0.0
  %v6871 = vand.u32 %v6831, 2147483648
  %v6872 = vsel %vm6870, %v6871, %v6869
  %v6873 = vrsqrt.pop %v6832
  %v6874 = vmul.f32 %v6873, %v6832
  %v6875 = vmul.f32 %v6874, %v6873
  %v6876 = vmul.f32 0.5, %v6875
  %v6877 = vsub.f32 1.5, %v6876
  %v6878 = vmul.f32 %v6873, %v6877
  %v6879 = vmul.f32 %v6832, %v6878
  %vm6880 = vcmp.eq.f32.partialorder %v6832, inf
  %v6881 = vsel %vm6880, %v6832, %v6879
  %vm6882 = vcmp.eq.f32.partialorder %v6832, 0.0
  %v6883 = vand.u32 %v6832, 2147483648
  %v6884 = vsel %vm6882, %v6883, %v6881
  %v6885 = vrsqrt.pop %v6833
  %v6886 = vmul.f32 %v6885, %v6833
  %v6887 = vmul.f32 %v6886, %v6885
  %v6888 = vmul.f32 0.5, %v6887
  %v6889 = vsub.f32 1.5, %v6888
  %v6890 = vmul.f32 %v6885, %v6889
  %v6891 = vmul.f32 %v6833, %v6890
  %vm6892 = vcmp.eq.f32.partialorder %v6833, inf
  %v6893 = vsel %vm6892, %v6833, %v6891
  %vm6894 = vcmp.eq.f32.partialorder %v6833, 0.0
  %v6895 = vand.u32 %v6833, 2147483648
  %v6896 = vsel %vm6894, %v6895, %v6893
  %v6897 = vrsqrt.pop %v6834
  %v6898 = vmul.f32 %v6897, %v6834
  %v6899 = vmul.f32 %v6898, %v6897
  %v6900 = vmul.f32 0.5, %v6899
  %v6901 = vsub.f32 1.5, %v6900
  %v6902 = vmul.f32 %v6897, %v6901
  %v6903 = vmul.f32 %v6834, %v6902
  %vm6904 = vcmp.eq.f32.partialorder %v6834, inf
  %v6905 = vsel %vm6904, %v6834, %v6903
  %vm6906 = vcmp.eq.f32.partialorder %v6834, 0.0
  %v6907 = vand.u32 %v6834, 2147483648
  %v6908 = vsel %vm6906, %v6907, %v6905
  %v6909 = vrsqrt.pop %v6835
  %v6910 = vmul.f32 %v6909, %v6835
  %v6911 = vmul.f32 %v6910, %v6909
  %v6912 = vmul.f32 0.5, %v6911
  %v6913 = vsub.f32 1.5, %v6912
  %v6914 = vmul.f32 %v6909, %v6913
  %v6915 = vmul.f32 %v6835, %v6914
  %vm6916 = vcmp.eq.f32.partialorder %v6835, inf
  %v6917 = vsel %vm6916, %v6835, %v6915
  %vm6918 = vcmp.eq.f32.partialorder %v6835, 0.0
  %v6919 = vand.u32 %v6835, 2147483648
  %v6920 = vsel %vm6918, %v6919, %v6917
  %v6921 = vrsqrt.pop %v6836
  %v6922 = vmul.f32 %v6921, %v6836
  %v6923 = vmul.f32 %v6922, %v6921
  %v6924 = vmul.f32 0.5, %v6923
  %v6925 = vsub.f32 1.5, %v6924
  %v6926 = vmul.f32 %v6921, %v6925
  %v6927 = vmul.f32 %v6836, %v6926
  %vm6928 = vcmp.eq.f32.partialorder %v6836, inf
  %v6929 = vsel %vm6928, %v6836, %v6927
  %vm6930 = vcmp.eq.f32.partialorder %v6836, 0.0
  %v6931 = vand.u32 %v6836, 2147483648
  %v6932 = vsel %vm6930, %v6931, %v6929
  %v6933 = vadd.f32 %v6848, 1.0
  %v6934 = vadd.f32 %v6860, 1.0
  %v6935 = vadd.f32 %v6872, 1.0
  %v6936 = vadd.f32 %v6884, 1.0
  %v6937 = vadd.f32 %v6896, 1.0
  %v6938 = vadd.f32 %v6908, 1.0
  %v6939 = vadd.f32 %v6920, 1.0
  %v6940 = vadd.f32 %v6932, 1.0
  %v6941 = vrcp.pop %v6933
  %v6942 = vmul.f32 %v6933, %v6941
  %v6943 = vsub.f32 1.0, %v6942
  %v6944 = vmul.f32 %v6941, %v6943
  %v6945 = vadd.f32 %v6941, %v6944
  %vm6946 = vweird.f32 %v6933
  %vm6947 = vweird.f32 %v6941
  %vm6948 = vmor %vm6946, %vm6947
  %v6949 = vsel %vm6948, %v6941, %v6945
  %v6950 = vand.u32 2147483647, %v6933
  %vm6951 = vcmp.eq.f32.partialorder %v6950, 8.507059e+37
  %v6952 = vand.u32 %v6933, 2147483648
  %v6953 = vor.u32 1.1754944e-38, %v6952
  %v6954 = vsel %vm6951, %v6953, %v6949
  %v6955 = vmul.f32 1.0, %v6954
  %v6956 = vrcp.pop %v6934
  %v6957 = vmul.f32 %v6934, %v6956
  %v6958 = vsub.f32 1.0, %v6957
  %v6959 = vmul.f32 %v6956, %v6958
  %v6960 = vadd.f32 %v6956, %v6959
  %vm6961 = vweird.f32 %v6934
  %vm6962 = vweird.f32 %v6956
  %vm6963 = vmor %vm6961, %vm6962
  %v6964 = vsel %vm6963, %v6956, %v6960
  %v6965 = vand.u32 2147483647, %v6934
  %vm6966 = vcmp.eq.f32.partialorder %v6965, 8.507059e+37
  %v6967 = vand.u32 %v6934, 2147483648
  %v6968 = vor.u32 1.1754944e-38, %v6967
  %v6969 = vsel %vm6966, %v6968, %v6964
  %v6970 = vmul.f32 1.0, %v6969
  %v6971 = vrcp.pop %v6935
  %v6972 = vmul.f32 %v6935, %v6971
  %v6973 = vsub.f32 1.0, %v6972
  %v6974 = vmul.f32 %v6971, %v6973
  %v6975 = vadd.f32 %v6971, %v6974
  %vm6976 = vweird.f32 %v6935
  %vm6977 = vweird.f32 %v6971
  %vm6978 = vmor %vm6976, %vm6977
  %v6979 = vsel %vm6978, %v6971, %v6975
  %v6980 = vand.u32 2147483647, %v6935
  %vm6981 = vcmp.eq.f32.partialorder %v6980, 8.507059e+37
  %v6982 = vand.u32 %v6935, 2147483648
  %v6983 = vor.u32 1.1754944e-38, %v6982
  %v6984 = vsel %vm6981, %v6983, %v6979
  %v6985 = vmul.f32 1.0, %v6984
  %v6986 = vrcp.pop %v6936
  %v6987 = vmul.f32 %v6936, %v6986
  %v6988 = vsub.f32 1.0, %v6987
  %v6989 = vmul.f32 %v6986, %v6988
  %v6990 = vadd.f32 %v6986, %v6989
  %vm6991 = vweird.f32 %v6936
  %vm6992 = vweird.f32 %v6986
  %vm6993 = vmor %vm6991, %vm6992
  %v6994 = vsel %vm6993, %v6986, %v6990
  %v6995 = vand.u32 2147483647, %v6936
  %vm6996 = vcmp.eq.f32.partialorder %v6995, 8.507059e+37
  %v6997 = vand.u32 %v6936, 2147483648
  %v6998 = vor.u32 1.1754944e-38, %v6997
  %v6999 = vsel %vm6996, %v6998, %v6994
  %v7000 = vmul.f32 1.0, %v6999
  %v7001 = vrcp.pop %v6937
  %v7002 = vmul.f32 %v6937, %v7001
  %v7003 = vsub.f32 1.0, %v7002
  %v7004 = vmul.f32 %v7001, %v7003
  %v7005 = vadd.f32 %v7001, %v7004
  %vm7006 = vweird.f32 %v6937
  %vm7007 = vweird.f32 %v7001
  %vm7008 = vmor %vm7006, %vm7007
  %v7009 = vsel %vm7008, %v7001, %v7005
  %v7010 = vand.u32 2147483647, %v6937
  %vm7011 = vcmp.eq.f32.partialorder %v7010, 8.507059e+37
  %v7012 = vand.u32 %v6937, 2147483648
  %v7013 = vor.u32 1.1754944e-38, %v7012
  %v7014 = vsel %vm7011, %v7013, %v7009
  %v7015 = vmul.f32 1.0, %v7014
  %v7016 = vrcp.pop %v6938
  %v7017 = vmul.f32 %v6938, %v7016
  %v7018 = vsub.f32 1.0, %v7017
  %v7019 = vmul.f32 %v7016, %v7018
  %v7020 = vadd.f32 %v7016, %v7019
  %vm7021 = vweird.f32 %v6938
  %vm7022 = vweird.f32 %v7016
  %vm7023 = vmor %vm7021, %vm7022
  %v7024 = vsel %vm7023, %v7016, %v7020
  %v7025 = vand.u32 2147483647, %v6938
  %vm7026 = vcmp.eq.f32.partialorder %v7025, 8.507059e+37
  %v7027 = vand.u32 %v6938, 2147483648
  %v7028 = vor.u32 1.1754944e-38, %v7027
  %v7029 = vsel %vm7026, %v7028, %v7024
  %v7030 = vmul.f32 1.0, %v7029
  %v7031 = vrcp.pop %v6939
  %v7032 = vmul.f32 %v6939, %v7031
  %v7033 = vsub.f32 1.0, %v7032
  %v7034 = vmul.f32 %v7031, %v7033
  %v7035 = vadd.f32 %v7031, %v7034
  %vm7036 = vweird.f32 %v6939
  %vm7037 = vweird.f32 %v7031
  %vm7038 = vmor %vm7036, %vm7037
  %v7039 = vsel %vm7038, %v7031, %v7035
  %v7040 = vand.u32 2147483647, %v6939
  %vm7041 = vcmp.eq.f32.partialorder %v7040, 8.507059e+37
  %v7042 = vand.u32 %v6939, 2147483648
  %v7043 = vor.u32 1.1754944e-38, %v7042
  %v7044 = vsel %vm7041, %v7043, %v7039
  %v7045 = vmul.f32 1.0, %v7044
  %v7046 = vrcp.pop %v6940
  %v7047 = vmul.f32 %v6940, %v7046
  %v7048 = vsub.f32 1.0, %v7047
  %v7049 = vmul.f32 %v7046, %v7048
  %v7050 = vadd.f32 %v7046, %v7049
  %vm7051 = vweird.f32 %v6940
  %vm7052 = vweird.f32 %v7046
  %vm7053 = vmor %vm7051, %vm7052
  %v7054 = vsel %vm7053, %v7046, %v7050
  %v7055 = vand.u32 2147483647, %v6940
  %vm7056 = vcmp.eq.f32.partialorder %v7055, 8.507059e+37
  %v7057 = vand.u32 %v6940, 2147483648
  %v7058 = vor.u32 1.1754944e-38, %v7057
  %v7059 = vsel %vm7056, %v7058, %v7054
  %v7060 = vmul.f32 1.0, %v7059
  %v7061 = vmul.f32 %v6683, %v6955
  %v7062 = vmul.f32 %v6698, %v6970
  %v7063 = vmul.f32 %v6713, %v6985
  %v7064 = vmul.f32 %v6728, %v7000
  %v7065 = vmul.f32 %v6743, %v7015
  %v7066 = vmul.f32 %v6758, %v7030
  %v7067 = vmul.f32 %v6773, %v7045
  %v7068 = vmul.f32 %v6788, %v7060
  %v7069 = vmul.f32 %v6955, %v6955
  %v7070 = vmul.f32 %v6970, %v6970
  %v7071 = vmul.f32 %v6985, %v6985
  %v7072 = vmul.f32 %v7000, %v7000
  %v7073 = vmul.f32 %v7015, %v7015
  %v7074 = vmul.f32 %v7030, %v7030
  %v7075 = vmul.f32 %v7045, %v7045
  %v7076 = vmul.f32 %v7060, %v7060
  %v7077 = vmul.f32 %v6799, %v7069
  %v7078 = vmul.f32 %v6802, %v7070
  %v7079 = vmul.f32 %v6805, %v7071
  %v7080 = vmul.f32 %v6808, %v7072
  %v7081 = vmul.f32 %v6811, %v7073
  %v7082 = vmul.f32 %v6814, %v7074
  %v7083 = vmul.f32 %v6817, %v7075
  %v7084 = vmul.f32 %v6820, %v7076
  %vm7085 = vcmp.eq.f32.partialorder %v5742, 2.0
  %vm7086 = vcmp.eq.f32.partialorder %v5745, 2.0
  %vm7087 = vcmp.eq.f32.partialorder %v5748, 2.0
  %vm7088 = vcmp.eq.f32.partialorder %v5751, 2.0
  %vm7089 = vcmp.eq.f32.partialorder %v5754, 2.0
  %vm7090 = vcmp.eq.f32.partialorder %v5757, 2.0
  %vm7091 = vcmp.eq.f32.partialorder %v5760, 2.0
  %vm7092 = vcmp.eq.f32.partialorder %v5763, 2.0
  %vm7093 = vcmp.eq.f32.partialorder %v5766, 2.0
  %vm7094 = vcmp.eq.f32.partialorder %v5769, 2.0
  %vm7095 = vcmp.eq.f32.partialorder %v5772, 2.0
  %vm7096 = vcmp.eq.f32.partialorder %v5775, 2.0
  %vm7097 = vcmp.eq.f32.partialorder %v5778, 2.0
  %vm7098 = vcmp.eq.f32.partialorder %v5781, 2.0
  %vm7099 = vcmp.eq.f32.partialorder %v5784, 2.0
  %vm7100 = vcmp.eq.f32.partialorder %v5787, 2.0
  %v7101 = vsel %vm7085, 1, 0
  %v7102 = vsel %vm7086, 1, 0
  %v7103 = vsel %vm7087, 1, 0
  %v7104 = vsel %vm7088, 1, 0
  %v7105 = vsel %vm7089, 1, 0
  %v7106 = vsel %vm7090, 1, 0
  %v7107 = vsel %vm7091, 1, 0
  %v7108 = vsel %vm7092, 1, 0
  %v7109 = vsel %vm7093, 1, 0
  %v7110 = vsel %vm7094, 1, 0
  %v7111 = vsel %vm7095, 1, 0
  %v7112 = vsel %vm7096, 1, 0
  %v7113 = vsel %vm7097, 1, 0
  %v7114 = vsel %vm7098, 1, 0
  %v7115 = vsel %vm7099, 1, 0
  %v7116 = vsel %vm7100, 1, 0
  %v7117 = vcvt.s32.f32 %v7101
  %v7118 = vcvt.s32.f32 %v7102
  %v7119 = vcvt.s32.f32 %v7103
  %v7120 = vcvt.s32.f32 %v7104
  %v7121 = vcvt.s32.f32 %v7105
  %v7122 = vcvt.s32.f32 %v7106
  %v7123 = vcvt.s32.f32 %v7107
  %v7124 = vcvt.s32.f32 %v7108
  %v7125 = vcvt.s32.f32 %v7109
  %v7126 = vcvt.s32.f32 %v7110
  %v7127 = vcvt.s32.f32 %v7111
  %v7128 = vcvt.s32.f32 %v7112
  %v7129 = vcvt.s32.f32 %v7113
  %v7130 = vcvt.s32.f32 %v7114
  %v7131 = vcvt.s32.f32 %v7115
  %v7132 = vcvt.s32.f32 %v7116
  %v7133 = vmul.f32 %v7117, %v2342
  %v7134 = vmul.f32 %v7118, %v2343
  %v7135 = vmul.f32 %v7119, %v2344
  %v7136 = vmul.f32 %v7120, %v2345
  %v7137 = vmul.f32 %v7121, %v2346
  %v7138 = vmul.f32 %v7122, %v2347
  %v7139 = vmul.f32 %v7123, %v2348
  %v7140 = vmul.f32 %v7124, %v2349
  %v7141 = vmul.f32 %v7125, %v2350
  %v7142 = vmul.f32 %v7126, %v2351
  %v7143 = vmul.f32 %v7127, %v2352
  %v7144 = vmul.f32 %v7128, %v2353
  %v7145 = vmul.f32 %v7129, %v2354
  %v7146 = vmul.f32 %v7130, %v2355
  %v7147 = vmul.f32 %v7131, %v2356
  %v7148 = vmul.f32 %v7132, %v2357
  %v7149 = vsel %vm532, %v7133, 0.0
  %v7150 = vsel %vm536, %v7134, 0.0
  %v7151 = vadd.f32 %v7149, %v7150
  %v7152 = vrot.slane %v7151, 4
  %v7153 = vadd.f32 %v7151, %v7152
  %v7154 = vrot.slane %v7153, 2
  %v7155 = vadd.f32 %v7153, %v7154
  %v7156 = vrot.slane %v7155, 1
  %v7157 = vadd.f32 %v7155, %v7156
  %v7158 = vsel %vm532, %v7135, 0.0
  %v7159 = vsel %vm536, %v7136, 0.0
  %v7160 = vadd.f32 %v7158, %v7159
  %v7161 = vrot.slane %v7160, 4
  %v7162 = vadd.f32 %v7160, %v7161
  %v7163 = vrot.slane %v7162, 2
  %v7164 = vadd.f32 %v7162, %v7163
  %v7165 = vrot.slane %v7164, 1
  %v7166 = vadd.f32 %v7164, %v7165
  %v7167 = vsel %vm532, %v7137, 0.0
  %v7168 = vsel %vm536, %v7138, 0.0
  %v7169 = vadd.f32 %v7167, %v7168
  %v7170 = vrot.slane %v7169, 4
  %v7171 = vadd.f32 %v7169, %v7170
  %v7172 = vrot.slane %v7171, 2
  %v7173 = vadd.f32 %v7171, %v7172
  %v7174 = vrot.slane %v7173, 1
  %v7175 = vadd.f32 %v7173, %v7174
  %v7176 = vsel %vm532, %v7139, 0.0
  %v7177 = vsel %vm536, %v7140, 0.0
  %v7178 = vadd.f32 %v7176, %v7177
  %v7179 = vrot.slane %v7178, 4
  %v7180 = vadd.f32 %v7178, %v7179
  %v7181 = vrot.slane %v7180, 2
  %v7182 = vadd.f32 %v7180, %v7181
  %v7183 = vrot.slane %v7182, 1
  %v7184 = vadd.f32 %v7182, %v7183
  %v7185 = vsel %vm532, %v7141, 0.0
  %v7186 = vsel %vm536, %v7142, 0.0
  %v7187 = vadd.f32 %v7185, %v7186
  %v7188 = vrot.slane %v7187, 4
  %v7189 = vadd.f32 %v7187, %v7188
  %v7190 = vrot.slane %v7189, 2
  %v7191 = vadd.f32 %v7189, %v7190
  %v7192 = vrot.slane %v7191, 1
  %v7193 = vadd.f32 %v7191, %v7192
  %v7194 = vsel %vm532, %v7143, 0.0
  %v7195 = vsel %vm536, %v7144, 0.0
  %v7196 = vadd.f32 %v7194, %v7195
  %v7197 = vrot.slane %v7196, 4
  %v7198 = vadd.f32 %v7196, %v7197
  %v7199 = vrot.slane %v7198, 2
  %v7200 = vadd.f32 %v7198, %v7199
  %v7201 = vrot.slane %v7200, 1
  %v7202 = vadd.f32 %v7200, %v7201
  %v7203 = vsel %vm532, %v7145, 0.0
  %v7204 = vsel %vm536, %v7146, 0.0
  %v7205 = vadd.f32 %v7203, %v7204
  %v7206 = vrot.slane %v7205, 4
  %v7207 = vadd.f32 %v7205, %v7206
  %v7208 = vrot.slane %v7207, 2
  %v7209 = vadd.f32 %v7207, %v7208
  %v7210 = vrot.slane %v7209, 1
  %v7211 = vadd.f32 %v7209, %v7210
  %v7212 = vsel %vm532, %v7147, 0.0
  %v7213 = vsel %vm536, %v7148, 0.0
  %v7214 = vadd.f32 %v7212, %v7213
  %v7215 = vrot.slane %v7214, 4
  %v7216 = vadd.f32 %v7214, %v7215
  %v7217 = vrot.slane %v7216, 2
  %v7218 = vadd.f32 %v7216, %v7217
  %v7219 = vrot.slane %v7218, 1
  %v7220 = vadd.f32 %v7218, %v7219
  %v7221 = vadd.f32 %v2366, %v7157
  %v7222 = vadd.f32 %v2367, %v7166
  %v7223 = vadd.f32 %v2368, %v7175
  %v7224 = vadd.f32 %v2369, %v7184
  %v7225 = vadd.f32 %v2370, %v7193
  %v7226 = vadd.f32 %v2371, %v7202
  %v7227 = vadd.f32 %v2372, %v7211
  %v7228 = vadd.f32 %v2373, %v7220
  %v7229 = vmul.f32 %v7117, %v2191
  %v7230 = vmul.f32 %v7118, %v2201
  %v7231 = vmul.f32 %v7119, %v2211
  %v7232 = vmul.f32 %v7120, %v2221
  %v7233 = vmul.f32 %v7121, %v2231
  %v7234 = vmul.f32 %v7122, %v2241
  %v7235 = vmul.f32 %v7123, %v2251
  %v7236 = vmul.f32 %v7124, %v2261
  %v7237 = vmul.f32 %v7125, %v2271
  %v7238 = vmul.f32 %v7126, %v2281
  %v7239 = vmul.f32 %v7127, %v2291
  %v7240 = vmul.f32 %v7128, %v2301
  %v7241 = vmul.f32 %v7129, %v2311
  %v7242 = vmul.f32 %v7130, %v2321
  %v7243 = vmul.f32 %v7131, %v2331
  %v7244 = vmul.f32 %v7132, %v2341
  %v7245 = vsel %vm5948, %v7230, 0.0
  %v7246 = vadd.f32 %v7229, %v7245
  %v7247 = vrot.slane %v7246, 4
  %v7248 = vadd.f32 %v7246, %v7247
  %v7249 = vrot.slane %v7248, 2
  %v7250 = vadd.f32 %v7248, %v7249
  %v7251 = vrot.slane %v7250, 1
  %v7252 = vadd.f32 %v7250, %v7251
  %v7253 = vsel %vm5948, %v7232, 0.0
  %v7254 = vadd.f32 %v7231, %v7253
  %v7255 = vrot.slane %v7254, 4
  %v7256 = vadd.f32 %v7254, %v7255
  %v7257 = vrot.slane %v7256, 2
  %v7258 = vadd.f32 %v7256, %v7257
  %v7259 = vrot.slane %v7258, 1
  %v7260 = vadd.f32 %v7258, %v7259
  %v7261 = vsel %vm5948, %v7234, 0.0
  %v7262 = vadd.f32 %v7233, %v7261
  %v7263 = vrot.slane %v7262, 4
  %v7264 = vadd.f32 %v7262, %v7263
  %v7265 = vrot.slane %v7264, 2
  %v7266 = vadd.f32 %v7264, %v7265
  %v7267 = vrot.slane %v7266, 1
  %v7268 = vadd.f32 %v7266, %v7267
  %v7269 = vsel %vm5948, %v7236, 0.0
  %v7270 = vadd.f32 %v7235, %v7269
  %v7271 = vrot.slane %v7270, 4
  %v7272 = vadd.f32 %v7270, %v7271
  %v7273 = vrot.slane %v7272, 2
  %v7274 = vadd.f32 %v7272, %v7273
  %v7275 = vrot.slane %v7274, 1
  %v7276 = vadd.f32 %v7274, %v7275
  %v7277 = vsel %vm5948, %v7238, 0.0
  %v7278 = vadd.f32 %v7237, %v7277
  %v7279 = vrot.slane %v7278, 4
  %v7280 = vadd.f32 %v7278, %v7279
  %v7281 = vrot.slane %v7280, 2
  %v7282 = vadd.f32 %v7280, %v7281
  %v7283 = vrot.slane %v7282, 1
  %v7284 = vadd.f32 %v7282, %v7283
  %v7285 = vsel %vm5948, %v7240, 0.0
  %v7286 = vadd.f32 %v7239, %v7285
  %v7287 = vrot.slane %v7286, 4
  %v7288 = vadd.f32 %v7286, %v7287
  %v7289 = vrot.slane %v7288, 2
  %v7290 = vadd.f32 %v7288, %v7289
  %v7291 = vrot.slane %v7290, 1
  %v7292 = vadd.f32 %v7290, %v7291
  %v7293 = vsel %vm5948, %v7242, 0.0
  %v7294 = vadd.f32 %v7241, %v7293
  %v7295 = vrot.slane %v7294, 4
  %v7296 = vadd.f32 %v7294, %v7295
  %v7297 = vrot.slane %v7296, 2
  %v7298 = vadd.f32 %v7296, %v7297
  %v7299 = vrot.slane %v7298, 1
  %v7300 = vadd.f32 %v7298, %v7299
  %v7301 = vsel %vm5948, %v7244, 0.0
  %v7302 = vadd.f32 %v7243, %v7301
  %v7303 = vrot.slane %v7302, 4
  %v7304 = vadd.f32 %v7302, %v7303
  %v7305 = vrot.slane %v7304, 2
  %v7306 = vadd.f32 %v7304, %v7305
  %v7307 = vrot.slane %v7306, 1
  %v7308 = vadd.f32 %v7306, %v7307
  %v7309 = vadd.f32 %v2374, %v7252
  %v7310 = vadd.f32 %v2375, %v7260
  %v7311 = vadd.f32 %v2376, %v7268
  %v7312 = vadd.f32 %v2377, %v7276
  %v7313 = vadd.f32 %v2378, %v7284
  %v7314 = vadd.f32 %v2379, %v7292
  %v7315 = vadd.f32 %v2380, %v7300
  %v7316 = vadd.f32 %v2381, %v7308
  %v7317 = vrcp.pop %v7309
  %v7318 = vmul.f32 %v7309, %v7317
  %v7319 = vsub.f32 1.0, %v7318
  %v7320 = vmul.f32 %v7317, %v7319
  %v7321 = vadd.f32 %v7317, %v7320
  %vm7322 = vweird.f32 %v7309
  %vm7323 = vweird.f32 %v7317
  %vm7324 = vmor %vm7322, %vm7323
  %v7325 = vsel %vm7324, %v7317, %v7321
  %v7326 = vand.u32 2147483647, %v7309
  %vm7327 = vcmp.eq.f32.partialorder %v7326, 8.507059e+37
  %v7328 = vand.u32 %v7309, 2147483648
  %v7329 = vor.u32 1.1754944e-38, %v7328
  %v7330 = vsel %vm7327, %v7329, %v7325
  %v7331 = vmul.f32 %v7221, %v7330
  %v7332 = vrcp.pop %v7310
  %v7333 = vmul.f32 %v7310, %v7332
  %v7334 = vsub.f32 1.0, %v7333
  %v7335 = vmul.f32 %v7332, %v7334
  %v7336 = vadd.f32 %v7332, %v7335
  %vm7337 = vweird.f32 %v7310
  %vm7338 = vweird.f32 %v7332
  %vm7339 = vmor %vm7337, %vm7338
  %v7340 = vsel %vm7339, %v7332, %v7336
  %v7341 = vand.u32 2147483647, %v7310
  %vm7342 = vcmp.eq.f32.partialorder %v7341, 8.507059e+37
  %v7343 = vand.u32 %v7310, 2147483648
  %v7344 = vor.u32 1.1754944e-38, %v7343
  %v7345 = vsel %vm7342, %v7344, %v7340
  %v7346 = vmul.f32 %v7222, %v7345
  %v7347 = vrcp.pop %v7311
  %v7348 = vmul.f32 %v7311, %v7347
  %v7349 = vsub.f32 1.0, %v7348
  %v7350 = vmul.f32 %v7347, %v7349
  %v7351 = vadd.f32 %v7347, %v7350
  %vm7352 = vweird.f32 %v7311
  %vm7353 = vweird.f32 %v7347
  %vm7354 = vmor %vm7352, %vm7353
  %v7355 = vsel %vm7354, %v7347, %v7351
  %v7356 = vand.u32 2147483647, %v7311
  %vm7357 = vcmp.eq.f32.partialorder %v7356, 8.507059e+37
  %v7358 = vand.u32 %v7311, 2147483648
  %v7359 = vor.u32 1.1754944e-38, %v7358
  %v7360 = vsel %vm7357, %v7359, %v7355
  %v7361 = vmul.f32 %v7223, %v7360
  %v7362 = vrcp.pop %v7312
  %v7363 = vmul.f32 %v7312, %v7362
  %v7364 = vsub.f32 1.0, %v7363
  %v7365 = vmul.f32 %v7362, %v7364
  %v7366 = vadd.f32 %v7362, %v7365
  %vm7367 = vweird.f32 %v7312
  %vm7368 = vweird.f32 %v7362
  %vm7369 = vmor %vm7367, %vm7368
  %v7370 = vsel %vm7369, %v7362, %v7366
  %v7371 = vand.u32 2147483647, %v7312
  %vm7372 = vcmp.eq.f32.partialorder %v7371, 8.507059e+37
  %v7373 = vand.u32 %v7312, 2147483648
  %v7374 = vor.u32 1.1754944e-38, %v7373
  %v7375 = vsel %vm7372, %v7374, %v7370
  %v7376 = vmul.f32 %v7224, %v7375
  %v7377 = vrcp.pop %v7313
  %v7378 = vmul.f32 %v7313, %v7377
  %v7379 = vsub.f32 1.0, %v7378
  %v7380 = vmul.f32 %v7377, %v7379
  %v7381 = vadd.f32 %v7377, %v7380
  %vm7382 = vweird.f32 %v7313
  %vm7383 = vweird.f32 %v7377
  %vm7384 = vmor %vm7382, %vm7383
  %v7385 = vsel %vm7384, %v7377, %v7381
  %v7386 = vand.u32 2147483647, %v7313
  %vm7387 = vcmp.eq.f32.partialorder %v7386, 8.507059e+37
  %v7388 = vand.u32 %v7313, 2147483648
  %v7389 = vor.u32 1.1754944e-38, %v7388
  %v7390 = vsel %vm7387, %v7389, %v7385
  %v7391 = vmul.f32 %v7225, %v7390
  %v7392 = vrcp.pop %v7314
  %v7393 = vmul.f32 %v7314, %v7392
  %v7394 = vsub.f32 1.0, %v7393
  %v7395 = vmul.f32 %v7392, %v7394
  %v7396 = vadd.f32 %v7392, %v7395
  %vm7397 = vweird.f32 %v7314
  %vm7398 = vweird.f32 %v7392
  %vm7399 = vmor %vm7397, %vm7398
  %v7400 = vsel %vm7399, %v7392, %v7396
  %v7401 = vand.u32 2147483647, %v7314
  %vm7402 = vcmp.eq.f32.partialorder %v7401, 8.507059e+37
  %v7403 = vand.u32 %v7314, 2147483648
  %v7404 = vor.u32 1.1754944e-38, %v7403
  %v7405 = vsel %vm7402, %v7404, %v7400
  %v7406 = vmul.f32 %v7226, %v7405
  %v7407 = vrcp.pop %v7315
  %v7408 = vmul.f32 %v7315, %v7407
  %v7409 = vsub.f32 1.0, %v7408
  %v7410 = vmul.f32 %v7407, %v7409
  %v7411 = vadd.f32 %v7407, %v7410
  %vm7412 = vweird.f32 %v7315
  %vm7413 = vweird.f32 %v7407
  %vm7414 = vmor %vm7412, %vm7413
  %v7415 = vsel %vm7414, %v7407, %v7411
  %v7416 = vand.u32 2147483647, %v7315
  %vm7417 = vcmp.eq.f32.partialorder %v7416, 8.507059e+37
  %v7418 = vand.u32 %v7315, 2147483648
  %v7419 = vor.u32 1.1754944e-38, %v7418
  %v7420 = vsel %vm7417, %v7419, %v7415
  %v7421 = vmul.f32 %v7227, %v7420
  %v7422 = vrcp.pop %v7316
  %v7423 = vmul.f32 %v7316, %v7422
  %v7424 = vsub.f32 1.0, %v7423
  %v7425 = vmul.f32 %v7422, %v7424
  %v7426 = vadd.f32 %v7422, %v7425
  %vm7427 = vweird.f32 %v7316
  %vm7428 = vweird.f32 %v7422
  %vm7429 = vmor %vm7427, %vm7428
  %v7430 = vsel %vm7429, %v7422, %v7426
  %v7431 = vand.u32 2147483647, %v7316
  %vm7432 = vcmp.eq.f32.partialorder %v7431, 8.507059e+37
  %v7433 = vand.u32 %v7316, 2147483648
  %v7434 = vor.u32 1.1754944e-38, %v7433
  %v7435 = vsel %vm7432, %v7434, %v7430
  %v7436 = vmul.f32 %v7228, %v7435
  %v7437 = vmul.f32 %v7331, %v7331
  %v7438 = vmul.f32 %v7346, %v7346
  %v7439 = vmul.f32 %v7361, %v7361
  %v7440 = vmul.f32 %v7376, %v7376
  %v7441 = vmul.f32 %v7391, %v7391
  %v7442 = vmul.f32 %v7406, %v7406
  %v7443 = vmul.f32 %v7421, %v7421
  %v7444 = vmul.f32 %v7436, %v7436
  %v7445 = vsel %vm3088, %v7437, 0.0
  %7446 = vadd.xlane.f32.xlu0 %v7445
  %v7447 = vpop.xlane.xlu0 %7446
  %v7448 = vsel %vm3088, %v7438, 0.0
  %7449 = vadd.xlane.f32.xlu0 %v7448
  %v7450 = vpop.xlane.xlu0 %7449
  %v7451 = vsel %vm3088, %v7439, 0.0
  %7452 = vadd.xlane.f32.xlu0 %v7451
  %v7453 = vpop.xlane.xlu0 %7452
  %v7454 = vsel %vm3088, %v7440, 0.0
  %7455 = vadd.xlane.f32.xlu0 %v7454
  %v7456 = vpop.xlane.xlu0 %7455
  %v7457 = vsel %vm3088, %v7441, 0.0
  %7458 = vadd.xlane.f32.xlu0 %v7457
  %v7459 = vpop.xlane.xlu0 %7458
  %v7460 = vsel %vm3088, %v7442, 0.0
  %7461 = vadd.xlane.f32.xlu0 %v7460
  %v7462 = vpop.xlane.xlu0 %7461
  %v7463 = vsel %vm3088, %v7443, 0.0
  %7464 = vadd.xlane.f32.xlu0 %v7463
  %v7465 = vpop.xlane.xlu0 %7464
  %v7466 = vsel %vm3088, %v7444, 0.0
  %7467 = vadd.xlane.f32.xlu0 %v7466
  %v7468 = vpop.xlane.xlu0 %7467
  %v7469 = vmul.f32 %v7447, 0.01
  %v7470 = vmul.f32 %v7450, 0.01
  %v7471 = vmul.f32 %v7453, 0.01
  %v7472 = vmul.f32 %v7456, 0.01
  %v7473 = vmul.f32 %v7459, 0.01
  %v7474 = vmul.f32 %v7462, 0.01
  %v7475 = vmul.f32 %v7465, 0.01
  %v7476 = vmul.f32 %v7468, 0.01
  %v7477 = vsub.f32 1.0, %v7469
  %v7478 = vsub.f32 1.0, %v7470
  %v7479 = vsub.f32 1.0, %v7471
  %v7480 = vsub.f32 1.0, %v7472
  %v7481 = vsub.f32 1.0, %v7473
  %v7482 = vsub.f32 1.0, %v7474
  %v7483 = vsub.f32 1.0, %v7475
  %v7484 = vsub.f32 1.0, %v7476
  %v7485 = vrsqrt.pop %v7477
  %v7486 = vmul.f32 %v7485, %v7477
  %v7487 = vmul.f32 %v7486, %v7485
  %v7488 = vmul.f32 0.5, %v7487
  %v7489 = vsub.f32 1.5, %v7488
  %v7490 = vmul.f32 %v7485, %v7489
  %v7491 = vmul.f32 %v7477, %v7490
  %vm7492 = vcmp.eq.f32.partialorder %v7477, inf
  %v7493 = vsel %vm7492, %v7477, %v7491
  %vm7494 = vcmp.eq.f32.partialorder %v7477, 0.0
  %v7495 = vand.u32 %v7477, 2147483648
  %v7496 = vsel %vm7494, %v7495, %v7493
  %v7497 = vrsqrt.pop %v7478
  %v7498 = vmul.f32 %v7497, %v7478
  %v7499 = vmul.f32 %v7498, %v7497
  %v7500 = vmul.f32 0.5, %v7499
  %v7501 = vsub.f32 1.5, %v7500
  %v7502 = vmul.f32 %v7497, %v7501
  %v7503 = vmul.f32 %v7478, %v7502
  %vm7504 = vcmp.eq.f32.partialorder %v7478, inf
  %v7505 = vsel %vm7504, %v7478, %v7503
  %vm7506 = vcmp.eq.f32.partialorder %v7478, 0.0
  %v7507 = vand.u32 %v7478, 2147483648
  %v7508 = vsel %vm7506, %v7507, %v7505
  %v7509 = vrsqrt.pop %v7479
  %v7510 = vmul.f32 %v7509, %v7479
  %v7511 = vmul.f32 %v7510, %v7509
  %v7512 = vmul.f32 0.5, %v7511
  %v7513 = vsub.f32 1.5, %v7512
  %v7514 = vmul.f32 %v7509, %v7513
  %v7515 = vmul.f32 %v7479, %v7514
  %vm7516 = vcmp.eq.f32.partialorder %v7479, inf
  %v7517 = vsel %vm7516, %v7479, %v7515
  %vm7518 = vcmp.eq.f32.partialorder %v7479, 0.0
  %v7519 = vand.u32 %v7479, 2147483648
  %v7520 = vsel %vm7518, %v7519, %v7517
  %v7521 = vrsqrt.pop %v7480
  %v7522 = vmul.f32 %v7521, %v7480
  %v7523 = vmul.f32 %v7522, %v7521
  %v7524 = vmul.f32 0.5, %v7523
  %v7525 = vsub.f32 1.5, %v7524
  %v7526 = vmul.f32 %v7521, %v7525
  %v7527 = vmul.f32 %v7480, %v7526
  %vm7528 = vcmp.eq.f32.partialorder %v7480, inf
  %v7529 = vsel %vm7528, %v7480, %v7527
  %vm7530 = vcmp.eq.f32.partialorder %v7480, 0.0
  %v7531 = vand.u32 %v7480, 2147483648
  %v7532 = vsel %vm7530, %v7531, %v7529
  %v7533 = vrsqrt.pop %v7481
  %v7534 = vmul.f32 %v7533, %v7481
  %v7535 = vmul.f32 %v7534, %v7533
  %v7536 = vmul.f32 0.5, %v7535
  %v7537 = vsub.f32 1.5, %v7536
  %v7538 = vmul.f32 %v7533, %v7537
  %v7539 = vmul.f32 %v7481, %v7538
  %vm7540 = vcmp.eq.f32.partialorder %v7481, inf
  %v7541 = vsel %vm7540, %v7481, %v7539
  %vm7542 = vcmp.eq.f32.partialorder %v7481, 0.0
  %v7543 = vand.u32 %v7481, 2147483648
  %v7544 = vsel %vm7542, %v7543, %v7541
  %v7545 = vrsqrt.pop %v7482
  %v7546 = vmul.f32 %v7545, %v7482
  %v7547 = vmul.f32 %v7546, %v7545
  %v7548 = vmul.f32 0.5, %v7547
  %v7549 = vsub.f32 1.5, %v7548
  %v7550 = vmul.f32 %v7545, %v7549
  %v7551 = vmul.f32 %v7482, %v7550
  %vm7552 = vcmp.eq.f32.partialorder %v7482, inf
  %v7553 = vsel %vm7552, %v7482, %v7551
  %vm7554 = vcmp.eq.f32.partialorder %v7482, 0.0
  %v7555 = vand.u32 %v7482, 2147483648
  %v7556 = vsel %vm7554, %v7555, %v7553
  %v7557 = vrsqrt.pop %v7483
  %v7558 = vmul.f32 %v7557, %v7483
  %v7559 = vmul.f32 %v7558, %v7557
  %v7560 = vmul.f32 0.5, %v7559
  %v7561 = vsub.f32 1.5, %v7560
  %v7562 = vmul.f32 %v7557, %v7561
  %v7563 = vmul.f32 %v7483, %v7562
  %vm7564 = vcmp.eq.f32.partialorder %v7483, inf
  %v7565 = vsel %vm7564, %v7483, %v7563
  %vm7566 = vcmp.eq.f32.partialorder %v7483, 0.0
  %v7567 = vand.u32 %v7483, 2147483648
  %v7568 = vsel %vm7566, %v7567, %v7565
  %v7569 = vrsqrt.pop %v7484
  %v7570 = vmul.f32 %v7569, %v7484
  %v7571 = vmul.f32 %v7570, %v7569
  %v7572 = vmul.f32 0.5, %v7571
  %v7573 = vsub.f32 1.5, %v7572
  %v7574 = vmul.f32 %v7569, %v7573
  %v7575 = vmul.f32 %v7484, %v7574
  %vm7576 = vcmp.eq.f32.partialorder %v7484, inf
  %v7577 = vsel %vm7576, %v7484, %v7575
  %vm7578 = vcmp.eq.f32.partialorder %v7484, 0.0
  %v7579 = vand.u32 %v7484, 2147483648
  %v7580 = vsel %vm7578, %v7579, %v7577
  %v7581 = vadd.f32 %v7496, 1.0
  %v7582 = vadd.f32 %v7508, 1.0
  %v7583 = vadd.f32 %v7520, 1.0
  %v7584 = vadd.f32 %v7532, 1.0
  %v7585 = vadd.f32 %v7544, 1.0
  %v7586 = vadd.f32 %v7556, 1.0
  %v7587 = vadd.f32 %v7568, 1.0
  %v7588 = vadd.f32 %v7580, 1.0
  %v7589 = vrcp.pop %v7581
  %v7590 = vmul.f32 %v7581, %v7589
  %v7591 = vsub.f32 1.0, %v7590
  %v7592 = vmul.f32 %v7589, %v7591
  %v7593 = vadd.f32 %v7589, %v7592
  %vm7594 = vweird.f32 %v7581
  %vm7595 = vweird.f32 %v7589
  %vm7596 = vmor %vm7594, %vm7595
  %v7597 = vsel %vm7596, %v7589, %v7593
  %v7598 = vand.u32 2147483647, %v7581
  %vm7599 = vcmp.eq.f32.partialorder %v7598, 8.507059e+37
  %v7600 = vand.u32 %v7581, 2147483648
  %v7601 = vor.u32 1.1754944e-38, %v7600
  %v7602 = vsel %vm7599, %v7601, %v7597
  %v7603 = vmul.f32 1.0, %v7602
  %v7604 = vrcp.pop %v7582
  %v7605 = vmul.f32 %v7582, %v7604
  %v7606 = vsub.f32 1.0, %v7605
  %v7607 = vmul.f32 %v7604, %v7606
  %v7608 = vadd.f32 %v7604, %v7607
  %vm7609 = vweird.f32 %v7582
  %vm7610 = vweird.f32 %v7604
  %vm7611 = vmor %vm7609, %vm7610
  %v7612 = vsel %vm7611, %v7604, %v7608
  %v7613 = vand.u32 2147483647, %v7582
  %vm7614 = vcmp.eq.f32.partialorder %v7613, 8.507059e+37
  %v7615 = vand.u32 %v7582, 2147483648
  %v7616 = vor.u32 1.1754944e-38, %v7615
  %v7617 = vsel %vm7614, %v7616, %v7612
  %v7618 = vmul.f32 1.0, %v7617
  %v7619 = vrcp.pop %v7583
  %v7620 = vmul.f32 %v7583, %v7619
  %v7621 = vsub.f32 1.0, %v7620
  %v7622 = vmul.f32 %v7619, %v7621
  %v7623 = vadd.f32 %v7619, %v7622
  %vm7624 = vweird.f32 %v7583
  %vm7625 = vweird.f32 %v7619
  %vm7626 = vmor %vm7624, %vm7625
  %v7627 = vsel %vm7626, %v7619, %v7623
  %v7628 = vand.u32 2147483647, %v7583
  %vm7629 = vcmp.eq.f32.partialorder %v7628, 8.507059e+37
  %v7630 = vand.u32 %v7583, 2147483648
  %v7631 = vor.u32 1.1754944e-38, %v7630
  %v7632 = vsel %vm7629, %v7631, %v7627
  %v7633 = vmul.f32 1.0, %v7632
  %v7634 = vrcp.pop %v7584
  %v7635 = vmul.f32 %v7584, %v7634
  %v7636 = vsub.f32 1.0, %v7635
  %v7637 = vmul.f32 %v7634, %v7636
  %v7638 = vadd.f32 %v7634, %v7637
  %vm7639 = vweird.f32 %v7584
  %vm7640 = vweird.f32 %v7634
  %vm7641 = vmor %vm7639, %vm7640
  %v7642 = vsel %vm7641, %v7634, %v7638
  %v7643 = vand.u32 2147483647, %v7584
  %vm7644 = vcmp.eq.f32.partialorder %v7643, 8.507059e+37
  %v7645 = vand.u32 %v7584, 2147483648
  %v7646 = vor.u32 1.1754944e-38, %v7645
  %v7647 = vsel %vm7644, %v7646, %v7642
  %v7648 = vmul.f32 1.0, %v7647
  %v7649 = vrcp.pop %v7585
  %v7650 = vmul.f32 %v7585, %v7649
  %v7651 = vsub.f32 1.0, %v7650
  %v7652 = vmul.f32 %v7649, %v7651
  %v7653 = vadd.f32 %v7649, %v7652
  %vm7654 = vweird.f32 %v7585
  %vm7655 = vweird.f32 %v7649
  %vm7656 = vmor %vm7654, %vm7655
  %v7657 = vsel %vm7656, %v7649, %v7653
  %v7658 = vand.u32 2147483647, %v7585
  %vm7659 = vcmp.eq.f32.partialorder %v7658, 8.507059e+37
  %v7660 = vand.u32 %v7585, 2147483648
  %v7661 = vor.u32 1.1754944e-38, %v7660
  %v7662 = vsel %vm7659, %v7661, %v7657
  %v7663 = vmul.f32 1.0, %v7662
  %v7664 = vrcp.pop %v7586
  %v7665 = vmul.f32 %v7586, %v7664
  %v7666 = vsub.f32 1.0, %v7665
  %v7667 = vmul.f32 %v7664, %v7666
  %v7668 = vadd.f32 %v7664, %v7667
  %vm7669 = vweird.f32 %v7586
  %vm7670 = vweird.f32 %v7664
  %vm7671 = vmor %vm7669, %vm7670
  %v7672 = vsel %vm7671, %v7664, %v7668
  %v7673 = vand.u32 2147483647, %v7586
  %vm7674 = vcmp.eq.f32.partialorder %v7673, 8.507059e+37
  %v7675 = vand.u32 %v7586, 2147483648
  %v7676 = vor.u32 1.1754944e-38, %v7675
  %v7677 = vsel %vm7674, %v7676, %v7672
  %v7678 = vmul.f32 1.0, %v7677
  %v7679 = vrcp.pop %v7587
  %v7680 = vmul.f32 %v7587, %v7679
  %v7681 = vsub.f32 1.0, %v7680
  %v7682 = vmul.f32 %v7679, %v7681
  %v7683 = vadd.f32 %v7679, %v7682
  %vm7684 = vweird.f32 %v7587
  %vm7685 = vweird.f32 %v7679
  %vm7686 = vmor %vm7684, %vm7685
  %v7687 = vsel %vm7686, %v7679, %v7683
  %v7688 = vand.u32 2147483647, %v7587
  %vm7689 = vcmp.eq.f32.partialorder %v7688, 8.507059e+37
  %v7690 = vand.u32 %v7587, 2147483648
  %v7691 = vor.u32 1.1754944e-38, %v7690
  %v7692 = vsel %vm7689, %v7691, %v7687
  %v7693 = vmul.f32 1.0, %v7692
  %v7694 = vrcp.pop %v7588
  %v7695 = vmul.f32 %v7588, %v7694
  %v7696 = vsub.f32 1.0, %v7695
  %v7697 = vmul.f32 %v7694, %v7696
  %v7698 = vadd.f32 %v7694, %v7697
  %vm7699 = vweird.f32 %v7588
  %vm7700 = vweird.f32 %v7694
  %vm7701 = vmor %vm7699, %vm7700
  %v7702 = vsel %vm7701, %v7694, %v7698
  %v7703 = vand.u32 2147483647, %v7588
  %vm7704 = vcmp.eq.f32.partialorder %v7703, 8.507059e+37
  %v7705 = vand.u32 %v7588, 2147483648
  %v7706 = vor.u32 1.1754944e-38, %v7705
  %v7707 = vsel %vm7704, %v7706, %v7702
  %v7708 = vmul.f32 1.0, %v7707
  %v7709 = vmul.f32 %v7331, %v7603
  %v7710 = vmul.f32 %v7346, %v7618
  %v7711 = vmul.f32 %v7361, %v7633
  %v7712 = vmul.f32 %v7376, %v7648
  %v7713 = vmul.f32 %v7391, %v7663
  %v7714 = vmul.f32 %v7406, %v7678
  %v7715 = vmul.f32 %v7421, %v7693
  %v7716 = vmul.f32 %v7436, %v7708
  %v7717 = vmul.f32 %v7603, %v7603
  %v7718 = vmul.f32 %v7618, %v7618
  %v7719 = vmul.f32 %v7633, %v7633
  %v7720 = vmul.f32 %v7648, %v7648
  %v7721 = vmul.f32 %v7663, %v7663
  %v7722 = vmul.f32 %v7678, %v7678
  %v7723 = vmul.f32 %v7693, %v7693
  %v7724 = vmul.f32 %v7708, %v7708
  %v7725 = vmul.f32 %v7447, %v7717
  %v7726 = vmul.f32 %v7450, %v7718
  %v7727 = vmul.f32 %v7453, %v7719
  %v7728 = vmul.f32 %v7456, %v7720
  %v7729 = vmul.f32 %v7459, %v7721
  %v7730 = vmul.f32 %v7462, %v7722
  %v7731 = vmul.f32 %v7465, %v7723
  %v7732 = vmul.f32 %v7468, %v7724
  %vm7733 = vcmp.eq.f32.partialorder %v5742, 3.0
  %vm7734 = vcmp.eq.f32.partialorder %v5745, 3.0
  %vm7735 = vcmp.eq.f32.partialorder %v5748, 3.0
  %vm7736 = vcmp.eq.f32.partialorder %v5751, 3.0
  %vm7737 = vcmp.eq.f32.partialorder %v5754, 3.0
  %vm7738 = vcmp.eq.f32.partialorder %v5757, 3.0
  %vm7739 = vcmp.eq.f32.partialorder %v5760, 3.0
  %vm7740 = vcmp.eq.f32.partialorder %v5763, 3.0
  %vm7741 = vcmp.eq.f32.partialorder %v5766, 3.0
  %vm7742 = vcmp.eq.f32.partialorder %v5769, 3.0
  %vm7743 = vcmp.eq.f32.partialorder %v5772, 3.0
  %vm7744 = vcmp.eq.f32.partialorder %v5775, 3.0
  %vm7745 = vcmp.eq.f32.partialorder %v5778, 3.0
  %vm7746 = vcmp.eq.f32.partialorder %v5781, 3.0
  %vm7747 = vcmp.eq.f32.partialorder %v5784, 3.0
  %vm7748 = vcmp.eq.f32.partialorder %v5787, 3.0
  %v7749 = vsel %vm7733, 1, 0
  %v7750 = vsel %vm7734, 1, 0
  %v7751 = vsel %vm7735, 1, 0
  %v7752 = vsel %vm7736, 1, 0
  %v7753 = vsel %vm7737, 1, 0
  %v7754 = vsel %vm7738, 1, 0
  %v7755 = vsel %vm7739, 1, 0
  %v7756 = vsel %vm7740, 1, 0
  %v7757 = vsel %vm7741, 1, 0
  %v7758 = vsel %vm7742, 1, 0
  %v7759 = vsel %vm7743, 1, 0
  %v7760 = vsel %vm7744, 1, 0
  %v7761 = vsel %vm7745, 1, 0
  %v7762 = vsel %vm7746, 1, 0
  %v7763 = vsel %vm7747, 1, 0
  %v7764 = vsel %vm7748, 1, 0
  %v7765 = vcvt.s32.f32 %v7749
  %v7766 = vcvt.s32.f32 %v7750
  %v7767 = vcvt.s32.f32 %v7751
  %v7768 = vcvt.s32.f32 %v7752
  %v7769 = vcvt.s32.f32 %v7753
  %v7770 = vcvt.s32.f32 %v7754
  %v7771 = vcvt.s32.f32 %v7755
  %v7772 = vcvt.s32.f32 %v7756
  %v7773 = vcvt.s32.f32 %v7757
  %v7774 = vcvt.s32.f32 %v7758
  %v7775 = vcvt.s32.f32 %v7759
  %v7776 = vcvt.s32.f32 %v7760
  %v7777 = vcvt.s32.f32 %v7761
  %v7778 = vcvt.s32.f32 %v7762
  %v7779 = vcvt.s32.f32 %v7763
  %v7780 = vcvt.s32.f32 %v7764
  %v7781 = vmul.f32 %v7765, %v2342
  %v7782 = vmul.f32 %v7766, %v2343
  %v7783 = vmul.f32 %v7767, %v2344
  %v7784 = vmul.f32 %v7768, %v2345
  %v7785 = vmul.f32 %v7769, %v2346
  %v7786 = vmul.f32 %v7770, %v2347
  %v7787 = vmul.f32 %v7771, %v2348
  %v7788 = vmul.f32 %v7772, %v2349
  %v7789 = vmul.f32 %v7773, %v2350
  %v7790 = vmul.f32 %v7774, %v2351
  %v7791 = vmul.f32 %v7775, %v2352
  %v7792 = vmul.f32 %v7776, %v2353
  %v7793 = vmul.f32 %v7777, %v2354
  %v7794 = vmul.f32 %v7778, %v2355
  %v7795 = vmul.f32 %v7779, %v2356
  %v7796 = vmul.f32 %v7780, %v2357
  %v7797 = vsel %vm532, %v7781, 0.0
  %v7798 = vsel %vm536, %v7782, 0.0
  %v7799 = vadd.f32 %v7797, %v7798
  %v7800 = vrot.slane %v7799, 4
  %v7801 = vadd.f32 %v7799, %v7800
  %v7802 = vrot.slane %v7801, 2
  %v7803 = vadd.f32 %v7801, %v7802
  %v7804 = vrot.slane %v7803, 1
  %v7805 = vadd.f32 %v7803, %v7804
  %v7806 = vsel %vm532, %v7783, 0.0
  %v7807 = vsel %vm536, %v7784, 0.0
  %v7808 = vadd.f32 %v7806, %v7807
  %v7809 = vrot.slane %v7808, 4
  %v7810 = vadd.f32 %v7808, %v7809
  %v7811 = vrot.slane %v7810, 2
  %v7812 = vadd.f32 %v7810, %v7811
  %v7813 = vrot.slane %v7812, 1
  %v7814 = vadd.f32 %v7812, %v7813
  %v7815 = vsel %vm532, %v7785, 0.0
  %v7816 = vsel %vm536, %v7786, 0.0
  %v7817 = vadd.f32 %v7815, %v7816
  %v7818 = vrot.slane %v7817, 4
  %v7819 = vadd.f32 %v7817, %v7818
  %v7820 = vrot.slane %v7819, 2
  %v7821 = vadd.f32 %v7819, %v7820
  %v7822 = vrot.slane %v7821, 1
  %v7823 = vadd.f32 %v7821, %v7822
  %v7824 = vsel %vm532, %v7787, 0.0
  %v7825 = vsel %vm536, %v7788, 0.0
  %v7826 = vadd.f32 %v7824, %v7825
  %v7827 = vrot.slane %v7826, 4
  %v7828 = vadd.f32 %v7826, %v7827
  %v7829 = vrot.slane %v7828, 2
  %v7830 = vadd.f32 %v7828, %v7829
  %v7831 = vrot.slane %v7830, 1
  %v7832 = vadd.f32 %v7830, %v7831
  %v7833 = vsel %vm532, %v7789, 0.0
  %v7834 = vsel %vm536, %v7790, 0.0
  %v7835 = vadd.f32 %v7833, %v7834
  %v7836 = vrot.slane %v7835, 4
  %v7837 = vadd.f32 %v7835, %v7836
  %v7838 = vrot.slane %v7837, 2
  %v7839 = vadd.f32 %v7837, %v7838
  %v7840 = vrot.slane %v7839, 1
  %v7841 = vadd.f32 %v7839, %v7840
  %v7842 = vsel %vm532, %v7791, 0.0
  %v7843 = vsel %vm536, %v7792, 0.0
  %v7844 = vadd.f32 %v7842, %v7843
  %v7845 = vrot.slane %v7844, 4
  %v7846 = vadd.f32 %v7844, %v7845
  %v7847 = vrot.slane %v7846, 2
  %v7848 = vadd.f32 %v7846, %v7847
  %v7849 = vrot.slane %v7848, 1
  %v7850 = vadd.f32 %v7848, %v7849
  %v7851 = vsel %vm532, %v7793, 0.0
  %v7852 = vsel %vm536, %v7794, 0.0
  %v7853 = vadd.f32 %v7851, %v7852
  %v7854 = vrot.slane %v7853, 4
  %v7855 = vadd.f32 %v7853, %v7854
  %v7856 = vrot.slane %v7855, 2
  %v7857 = vadd.f32 %v7855, %v7856
  %v7858 = vrot.slane %v7857, 1
  %v7859 = vadd.f32 %v7857, %v7858
  %v7860 = vsel %vm532, %v7795, 0.0
  %v7861 = vsel %vm536, %v7796, 0.0
  %v7862 = vadd.f32 %v7860, %v7861
  %v7863 = vrot.slane %v7862, 4
  %v7864 = vadd.f32 %v7862, %v7863
  %v7865 = vrot.slane %v7864, 2
  %v7866 = vadd.f32 %v7864, %v7865
  %v7867 = vrot.slane %v7866, 1
  %v7868 = vadd.f32 %v7866, %v7867
  %v7869 = vadd.f32 %v2366, %v7805
  %v7870 = vadd.f32 %v2367, %v7814
  %v7871 = vadd.f32 %v2368, %v7823
  %v7872 = vadd.f32 %v2369, %v7832
  %v7873 = vadd.f32 %v2370, %v7841
  %v7874 = vadd.f32 %v2371, %v7850
  %v7875 = vadd.f32 %v2372, %v7859
  %v7876 = vadd.f32 %v2373, %v7868
  %v7877 = vmul.f32 %v7765, %v2191
  %v7878 = vmul.f32 %v7766, %v2201
  %v7879 = vmul.f32 %v7767, %v2211
  %v7880 = vmul.f32 %v7768, %v2221
  %v7881 = vmul.f32 %v7769, %v2231
  %v7882 = vmul.f32 %v7770, %v2241
  %v7883 = vmul.f32 %v7771, %v2251
  %v7884 = vmul.f32 %v7772, %v2261
  %v7885 = vmul.f32 %v7773, %v2271
  %v7886 = vmul.f32 %v7774, %v2281
  %v7887 = vmul.f32 %v7775, %v2291
  %v7888 = vmul.f32 %v7776, %v2301
  %v7889 = vmul.f32 %v7777, %v2311
  %v7890 = vmul.f32 %v7778, %v2321
  %v7891 = vmul.f32 %v7779, %v2331
  %v7892 = vmul.f32 %v7780, %v2341
  %v7893 = vsel %vm5948, %v7878, 0.0
  %v7894 = vadd.f32 %v7877, %v7893
  %v7895 = vrot.slane %v7894, 4
  %v7896 = vadd.f32 %v7894, %v7895
  %v7897 = vrot.slane %v7896, 2
  %v7898 = vadd.f32 %v7896, %v7897
  %v7899 = vrot.slane %v7898, 1
  %v7900 = vadd.f32 %v7898, %v7899
  %v7901 = vsel %vm5948, %v7880, 0.0
  %v7902 = vadd.f32 %v7879, %v7901
  %v7903 = vrot.slane %v7902, 4
  %v7904 = vadd.f32 %v7902, %v7903
  %v7905 = vrot.slane %v7904, 2
  %v7906 = vadd.f32 %v7904, %v7905
  %v7907 = vrot.slane %v7906, 1
  %v7908 = vadd.f32 %v7906, %v7907
  %v7909 = vsel %vm5948, %v7882, 0.0
  %v7910 = vadd.f32 %v7881, %v7909
  %v7911 = vrot.slane %v7910, 4
  %v7912 = vadd.f32 %v7910, %v7911
  %v7913 = vrot.slane %v7912, 2
  %v7914 = vadd.f32 %v7912, %v7913
  %v7915 = vrot.slane %v7914, 1
  %v7916 = vadd.f32 %v7914, %v7915
  %v7917 = vsel %vm5948, %v7884, 0.0
  %v7918 = vadd.f32 %v7883, %v7917
  %v7919 = vrot.slane %v7918, 4
  %v7920 = vadd.f32 %v7918, %v7919
  %v7921 = vrot.slane %v7920, 2
  %v7922 = vadd.f32 %v7920, %v7921
  %v7923 = vrot.slane %v7922, 1
  %v7924 = vadd.f32 %v7922, %v7923
  %v7925 = vsel %vm5948, %v7886, 0.0
  %v7926 = vadd.f32 %v7885, %v7925
  %v7927 = vrot.slane %v7926, 4
  %v7928 = vadd.f32 %v7926, %v7927
  %v7929 = vrot.slane %v7928, 2
  %v7930 = vadd.f32 %v7928, %v7929
  %v7931 = vrot.slane %v7930, 1
  %v7932 = vadd.f32 %v7930, %v7931
  %v7933 = vsel %vm5948, %v7888, 0.0
  %v7934 = vadd.f32 %v7887, %v7933
  %v7935 = vrot.slane %v7934, 4
  %v7936 = vadd.f32 %v7934, %v7935
  %v7937 = vrot.slane %v7936, 2
  %v7938 = vadd.f32 %v7936, %v7937
  %v7939 = vrot.slane %v7938, 1
  %v7940 = vadd.f32 %v7938, %v7939
  %v7941 = vsel %vm5948, %v7890, 0.0
  %v7942 = vadd.f32 %v7889, %v7941
  %v7943 = vrot.slane %v7942, 4
  %v7944 = vadd.f32 %v7942, %v7943
  %v7945 = vrot.slane %v7944, 2
  %v7946 = vadd.f32 %v7944, %v7945
  %v7947 = vrot.slane %v7946, 1
  %v7948 = vadd.f32 %v7946, %v7947
  %v7949 = vsel %vm5948, %v7892, 0.0
  %v7950 = vadd.f32 %v7891, %v7949
  %v7951 = vrot.slane %v7950, 4
  %v7952 = vadd.f32 %v7950, %v7951
  %v7953 = vrot.slane %v7952, 2
  %v7954 = vadd.f32 %v7952, %v7953
  %v7955 = vrot.slane %v7954, 1
  %v7956 = vadd.f32 %v7954, %v7955
  %v7957 = vadd.f32 %v2374, %v7900
  %v7958 = vadd.f32 %v2375, %v7908
  %v7959 = vadd.f32 %v2376, %v7916
  %v7960 = vadd.f32 %v2377, %v7924
  %v7961 = vadd.f32 %v2378, %v7932
  %v7962 = vadd.f32 %v2379, %v7940
  %v7963 = vadd.f32 %v2380, %v7948
  %v7964 = vadd.f32 %v2381, %v7956
  %v7965 = vrcp.pop %v7957
  %v7966 = vmul.f32 %v7957, %v7965
  %v7967 = vsub.f32 1.0, %v7966
  %v7968 = vmul.f32 %v7965, %v7967
  %v7969 = vadd.f32 %v7965, %v7968
  %vm7970 = vweird.f32 %v7957
  %vm7971 = vweird.f32 %v7965
  %vm7972 = vmor %vm7970, %vm7971
  %v7973 = vsel %vm7972, %v7965, %v7969
  %v7974 = vand.u32 2147483647, %v7957
  %vm7975 = vcmp.eq.f32.partialorder %v7974, 8.507059e+37
  %v7976 = vand.u32 %v7957, 2147483648
  %v7977 = vor.u32 1.1754944e-38, %v7976
  %v7978 = vsel %vm7975, %v7977, %v7973
  %v7979 = vmul.f32 %v7869, %v7978
  %v7980 = vrcp.pop %v7958
  %v7981 = vmul.f32 %v7958, %v7980
  %v7982 = vsub.f32 1.0, %v7981
  %v7983 = vmul.f32 %v7980, %v7982
  %v7984 = vadd.f32 %v7980, %v7983
  %vm7985 = vweird.f32 %v7958
  %vm7986 = vweird.f32 %v7980
  %vm7987 = vmor %vm7985, %vm7986
  %v7988 = vsel %vm7987, %v7980, %v7984
  %v7989 = vand.u32 2147483647, %v7958
  %vm7990 = vcmp.eq.f32.partialorder %v7989, 8.507059e+37
  %v7991 = vand.u32 %v7958, 2147483648
  %v7992 = vor.u32 1.1754944e-38, %v7991
  %v7993 = vsel %vm7990, %v7992, %v7988
  %v7994 = vmul.f32 %v7870, %v7993
  %v7995 = vrcp.pop %v7959
  %v7996 = vmul.f32 %v7959, %v7995
  %v7997 = vsub.f32 1.0, %v7996
  %v7998 = vmul.f32 %v7995, %v7997
  %v7999 = vadd.f32 %v7995, %v7998
  %vm8000 = vweird.f32 %v7959
  %vm8001 = vweird.f32 %v7995
  %vm8002 = vmor %vm8000, %vm8001
  %v8003 = vsel %vm8002, %v7995, %v7999
  %v8004 = vand.u32 2147483647, %v7959
  %vm8005 = vcmp.eq.f32.partialorder %v8004, 8.507059e+37
  %v8006 = vand.u32 %v7959, 2147483648
  %v8007 = vor.u32 1.1754944e-38, %v8006
  %v8008 = vsel %vm8005, %v8007, %v8003
  %v8009 = vmul.f32 %v7871, %v8008
  %v8010 = vrcp.pop %v7960
  %v8011 = vmul.f32 %v7960, %v8010
  %v8012 = vsub.f32 1.0, %v8011
  %v8013 = vmul.f32 %v8010, %v8012
  %v8014 = vadd.f32 %v8010, %v8013
  %vm8015 = vweird.f32 %v7960
  %vm8016 = vweird.f32 %v8010
  %vm8017 = vmor %vm8015, %vm8016
  %v8018 = vsel %vm8017, %v8010, %v8014
  %v8019 = vand.u32 2147483647, %v7960
  %vm8020 = vcmp.eq.f32.partialorder %v8019, 8.507059e+37
  %v8021 = vand.u32 %v7960, 2147483648
  %v8022 = vor.u32 1.1754944e-38, %v8021
  %v8023 = vsel %vm8020, %v8022, %v8018
  %v8024 = vmul.f32 %v7872, %v8023
  %v8025 = vrcp.pop %v7961
  %v8026 = vmul.f32 %v7961, %v8025
  %v8027 = vsub.f32 1.0, %v8026
  %v8028 = vmul.f32 %v8025, %v8027
  %v8029 = vadd.f32 %v8025, %v8028
  %vm8030 = vweird.f32 %v7961
  %vm8031 = vweird.f32 %v8025
  %vm8032 = vmor %vm8030, %vm8031
  %v8033 = vsel %vm8032, %v8025, %v8029
  %v8034 = vand.u32 2147483647, %v7961
  %vm8035 = vcmp.eq.f32.partialorder %v8034, 8.507059e+37
  %v8036 = vand.u32 %v7961, 2147483648
  %v8037 = vor.u32 1.1754944e-38, %v8036
  %v8038 = vsel %vm8035, %v8037, %v8033
  %v8039 = vmul.f32 %v7873, %v8038
  %v8040 = vrcp.pop %v7962
  %v8041 = vmul.f32 %v7962, %v8040
  %v8042 = vsub.f32 1.0, %v8041
  %v8043 = vmul.f32 %v8040, %v8042
  %v8044 = vadd.f32 %v8040, %v8043
  %vm8045 = vweird.f32 %v7962
  %vm8046 = vweird.f32 %v8040
  %vm8047 = vmor %vm8045, %vm8046
  %v8048 = vsel %vm8047, %v8040, %v8044
  %v8049 = vand.u32 2147483647, %v7962
  %vm8050 = vcmp.eq.f32.partialorder %v8049, 8.507059e+37
  %v8051 = vand.u32 %v7962, 2147483648
  %v8052 = vor.u32 1.1754944e-38, %v8051
  %v8053 = vsel %vm8050, %v8052, %v8048
  %v8054 = vmul.f32 %v7874, %v8053
  %v8055 = vrcp.pop %v7963
  %v8056 = vmul.f32 %v7963, %v8055
  %v8057 = vsub.f32 1.0, %v8056
  %v8058 = vmul.f32 %v8055, %v8057
  %v8059 = vadd.f32 %v8055, %v8058
  %vm8060 = vweird.f32 %v7963
  %vm8061 = vweird.f32 %v8055
  %vm8062 = vmor %vm8060, %vm8061
  %v8063 = vsel %vm8062, %v8055, %v8059
  %v8064 = vand.u32 2147483647, %v7963
  %vm8065 = vcmp.eq.f32.partialorder %v8064, 8.507059e+37
  %v8066 = vand.u32 %v7963, 2147483648
  %v8067 = vor.u32 1.1754944e-38, %v8066
  %v8068 = vsel %vm8065, %v8067, %v8063
  %v8069 = vmul.f32 %v7875, %v8068
  %v8070 = vrcp.pop %v7964
  %v8071 = vmul.f32 %v7964, %v8070
  %v8072 = vsub.f32 1.0, %v8071
  %v8073 = vmul.f32 %v8070, %v8072
  %v8074 = vadd.f32 %v8070, %v8073
  %vm8075 = vweird.f32 %v7964
  %vm8076 = vweird.f32 %v8070
  %vm8077 = vmor %vm8075, %vm8076
  %v8078 = vsel %vm8077, %v8070, %v8074
  %v8079 = vand.u32 2147483647, %v7964
  %vm8080 = vcmp.eq.f32.partialorder %v8079, 8.507059e+37
  %v8081 = vand.u32 %v7964, 2147483648
  %v8082 = vor.u32 1.1754944e-38, %v8081
  %v8083 = vsel %vm8080, %v8082, %v8078
  %v8084 = vmul.f32 %v7876, %v8083
  %v8085 = vmul.f32 %v7979, %v7979
  %v8086 = vmul.f32 %v7994, %v7994
  %v8087 = vmul.f32 %v8009, %v8009
  %v8088 = vmul.f32 %v8024, %v8024
  %v8089 = vmul.f32 %v8039, %v8039
  %v8090 = vmul.f32 %v8054, %v8054
  %v8091 = vmul.f32 %v8069, %v8069
  %v8092 = vmul.f32 %v8084, %v8084
  %v8093 = vsel %vm3377, %v8085, 0.0
  %8094 = vadd.xlane.f32.xlu0 %v8093
  %v8095 = vpop.xlane.xlu0 %8094
  %v8096 = vsel %vm3377, %v8086, 0.0
  %8097 = vadd.xlane.f32.xlu0 %v8096
  %v8098 = vpop.xlane.xlu0 %8097
  %v8099 = vsel %vm3377, %v8087, 0.0
  %8100 = vadd.xlane.f32.xlu0 %v8099
  %v8101 = vpop.xlane.xlu0 %8100
  %v8102 = vsel %vm3377, %v8088, 0.0
  %8103 = vadd.xlane.f32.xlu0 %v8102
  %v8104 = vpop.xlane.xlu0 %8103
  %v8105 = vsel %vm3377, %v8089, 0.0
  %8106 = vadd.xlane.f32.xlu0 %v8105
  %v8107 = vpop.xlane.xlu0 %8106
  %v8108 = vsel %vm3377, %v8090, 0.0
  %8109 = vadd.xlane.f32.xlu0 %v8108
  %v8110 = vpop.xlane.xlu0 %8109
  %v8111 = vsel %vm3377, %v8091, 0.0
  %8112 = vadd.xlane.f32.xlu0 %v8111
  %v8113 = vpop.xlane.xlu0 %8112
  %v8114 = vsel %vm3377, %v8092, 0.0
  %8115 = vadd.xlane.f32.xlu0 %v8114
  %v8116 = vpop.xlane.xlu0 %8115
  %v8117 = vmul.f32 %v8095, 0.01
  %v8118 = vmul.f32 %v8098, 0.01
  %v8119 = vmul.f32 %v8101, 0.01
  %v8120 = vmul.f32 %v8104, 0.01
  %v8121 = vmul.f32 %v8107, 0.01
  %v8122 = vmul.f32 %v8110, 0.01
  %v8123 = vmul.f32 %v8113, 0.01
  %v8124 = vmul.f32 %v8116, 0.01
  %v8125 = vsub.f32 1.0, %v8117
  %v8126 = vsub.f32 1.0, %v8118
  %v8127 = vsub.f32 1.0, %v8119
  %v8128 = vsub.f32 1.0, %v8120
  %v8129 = vsub.f32 1.0, %v8121
  %v8130 = vsub.f32 1.0, %v8122
  %v8131 = vsub.f32 1.0, %v8123
  %v8132 = vsub.f32 1.0, %v8124
  %v8133 = vrsqrt.pop %v8125
  %v8134 = vmul.f32 %v8133, %v8125
  %v8135 = vmul.f32 %v8134, %v8133
  %v8136 = vmul.f32 0.5, %v8135
  %v8137 = vsub.f32 1.5, %v8136
  %v8138 = vmul.f32 %v8133, %v8137
  %v8139 = vmul.f32 %v8125, %v8138
  %vm8140 = vcmp.eq.f32.partialorder %v8125, inf
  %v8141 = vsel %vm8140, %v8125, %v8139
  %vm8142 = vcmp.eq.f32.partialorder %v8125, 0.0
  %v8143 = vand.u32 %v8125, 2147483648
  %v8144 = vsel %vm8142, %v8143, %v8141
  %v8145 = vrsqrt.pop %v8126
  %v8146 = vmul.f32 %v8145, %v8126
  %v8147 = vmul.f32 %v8146, %v8145
  %v8148 = vmul.f32 0.5, %v8147
  %v8149 = vsub.f32 1.5, %v8148
  %v8150 = vmul.f32 %v8145, %v8149
  %v8151 = vmul.f32 %v8126, %v8150
  %vm8152 = vcmp.eq.f32.partialorder %v8126, inf
  %v8153 = vsel %vm8152, %v8126, %v8151
  %vm8154 = vcmp.eq.f32.partialorder %v8126, 0.0
  %v8155 = vand.u32 %v8126, 2147483648
  %v8156 = vsel %vm8154, %v8155, %v8153
  %v8157 = vrsqrt.pop %v8127
  %v8158 = vmul.f32 %v8157, %v8127
  %v8159 = vmul.f32 %v8158, %v8157
  %v8160 = vmul.f32 0.5, %v8159
  %v8161 = vsub.f32 1.5, %v8160
  %v8162 = vmul.f32 %v8157, %v8161
  %v8163 = vmul.f32 %v8127, %v8162
  %vm8164 = vcmp.eq.f32.partialorder %v8127, inf
  %v8165 = vsel %vm8164, %v8127, %v8163
  %vm8166 = vcmp.eq.f32.partialorder %v8127, 0.0
  %v8167 = vand.u32 %v8127, 2147483648
  %v8168 = vsel %vm8166, %v8167, %v8165
  %v8169 = vrsqrt.pop %v8128
  %v8170 = vmul.f32 %v8169, %v8128
  %v8171 = vmul.f32 %v8170, %v8169
  %v8172 = vmul.f32 0.5, %v8171
  %v8173 = vsub.f32 1.5, %v8172
  %v8174 = vmul.f32 %v8169, %v8173
  %v8175 = vmul.f32 %v8128, %v8174
  %vm8176 = vcmp.eq.f32.partialorder %v8128, inf
  %v8177 = vsel %vm8176, %v8128, %v8175
  %vm8178 = vcmp.eq.f32.partialorder %v8128, 0.0
  %v8179 = vand.u32 %v8128, 2147483648
  %v8180 = vsel %vm8178, %v8179, %v8177
  %v8181 = vrsqrt.pop %v8129
  %v8182 = vmul.f32 %v8181, %v8129
  %v8183 = vmul.f32 %v8182, %v8181
  %v8184 = vmul.f32 0.5, %v8183
  %v8185 = vsub.f32 1.5, %v8184
  %v8186 = vmul.f32 %v8181, %v8185
  %v8187 = vmul.f32 %v8129, %v8186
  %vm8188 = vcmp.eq.f32.partialorder %v8129, inf
  %v8189 = vsel %vm8188, %v8129, %v8187
  %vm8190 = vcmp.eq.f32.partialorder %v8129, 0.0
  %v8191 = vand.u32 %v8129, 2147483648
  %v8192 = vsel %vm8190, %v8191, %v8189
  %v8193 = vrsqrt.pop %v8130
  %v8194 = vmul.f32 %v8193, %v8130
  %v8195 = vmul.f32 %v8194, %v8193
  %v8196 = vmul.f32 0.5, %v8195
  %v8197 = vsub.f32 1.5, %v8196
  %v8198 = vmul.f32 %v8193, %v8197
  %v8199 = vmul.f32 %v8130, %v8198
  %vm8200 = vcmp.eq.f32.partialorder %v8130, inf
  %v8201 = vsel %vm8200, %v8130, %v8199
  %vm8202 = vcmp.eq.f32.partialorder %v8130, 0.0
  %v8203 = vand.u32 %v8130, 2147483648
  %v8204 = vsel %vm8202, %v8203, %v8201
  %v8205 = vrsqrt.pop %v8131
  %v8206 = vmul.f32 %v8205, %v8131
  %v8207 = vmul.f32 %v8206, %v8205
  %v8208 = vmul.f32 0.5, %v8207
  %v8209 = vsub.f32 1.5, %v8208
  %v8210 = vmul.f32 %v8205, %v8209
  %v8211 = vmul.f32 %v8131, %v8210
  %vm8212 = vcmp.eq.f32.partialorder %v8131, inf
  %v8213 = vsel %vm8212, %v8131, %v8211
  %vm8214 = vcmp.eq.f32.partialorder %v8131, 0.0
  %v8215 = vand.u32 %v8131, 2147483648
  %v8216 = vsel %vm8214, %v8215, %v8213
  %v8217 = vrsqrt.pop %v8132
  %v8218 = vmul.f32 %v8217, %v8132
  %v8219 = vmul.f32 %v8218, %v8217
  %v8220 = vmul.f32 0.5, %v8219
  %v8221 = vsub.f32 1.5, %v8220
  %v8222 = vmul.f32 %v8217, %v8221
  %v8223 = vmul.f32 %v8132, %v8222
  %vm8224 = vcmp.eq.f32.partialorder %v8132, inf
  %v8225 = vsel %vm8224, %v8132, %v8223
  %vm8226 = vcmp.eq.f32.partialorder %v8132, 0.0
  %v8227 = vand.u32 %v8132, 2147483648
  %v8228 = vsel %vm8226, %v8227, %v8225
  %v8229 = vadd.f32 %v8144, 1.0
  %v8230 = vadd.f32 %v8156, 1.0
  %v8231 = vadd.f32 %v8168, 1.0
  %v8232 = vadd.f32 %v8180, 1.0
  %v8233 = vadd.f32 %v8192, 1.0
  %v8234 = vadd.f32 %v8204, 1.0
  %v8235 = vadd.f32 %v8216, 1.0
  %v8236 = vadd.f32 %v8228, 1.0
  %v8237 = vrcp.pop %v8229
  %v8238 = vmul.f32 %v8229, %v8237
  %v8239 = vsub.f32 1.0, %v8238
  %v8240 = vmul.f32 %v8237, %v8239
  %v8241 = vadd.f32 %v8237, %v8240
  %vm8242 = vweird.f32 %v8229
  %vm8243 = vweird.f32 %v8237
  %vm8244 = vmor %vm8242, %vm8243
  %v8245 = vsel %vm8244, %v8237, %v8241
  %v8246 = vand.u32 2147483647, %v8229
  %vm8247 = vcmp.eq.f32.partialorder %v8246, 8.507059e+37
  %v8248 = vand.u32 %v8229, 2147483648
  %v8249 = vor.u32 1.1754944e-38, %v8248
  %v8250 = vsel %vm8247, %v8249, %v8245
  %v8251 = vmul.f32 1.0, %v8250
  %v8252 = vrcp.pop %v8230
  %v8253 = vmul.f32 %v8230, %v8252
  %v8254 = vsub.f32 1.0, %v8253
  %v8255 = vmul.f32 %v8252, %v8254
  %v8256 = vadd.f32 %v8252, %v8255
  %vm8257 = vweird.f32 %v8230
  %vm8258 = vweird.f32 %v8252
  %vm8259 = vmor %vm8257, %vm8258
  %v8260 = vsel %vm8259, %v8252, %v8256
  %v8261 = vand.u32 2147483647, %v8230
  %vm8262 = vcmp.eq.f32.partialorder %v8261, 8.507059e+37
  %v8263 = vand.u32 %v8230, 2147483648
  %v8264 = vor.u32 1.1754944e-38, %v8263
  %v8265 = vsel %vm8262, %v8264, %v8260
  %v8266 = vmul.f32 1.0, %v8265
  %v8267 = vrcp.pop %v8231
  %v8268 = vmul.f32 %v8231, %v8267
  %v8269 = vsub.f32 1.0, %v8268
  %v8270 = vmul.f32 %v8267, %v8269
  %v8271 = vadd.f32 %v8267, %v8270
  %vm8272 = vweird.f32 %v8231
  %vm8273 = vweird.f32 %v8267
  %vm8274 = vmor %vm8272, %vm8273
  %v8275 = vsel %vm8274, %v8267, %v8271
  %v8276 = vand.u32 2147483647, %v8231
  %vm8277 = vcmp.eq.f32.partialorder %v8276, 8.507059e+37
  %v8278 = vand.u32 %v8231, 2147483648
  %v8279 = vor.u32 1.1754944e-38, %v8278
  %v8280 = vsel %vm8277, %v8279, %v8275
  %v8281 = vmul.f32 1.0, %v8280
  %v8282 = vrcp.pop %v8232
  %v8283 = vmul.f32 %v8232, %v8282
  %v8284 = vsub.f32 1.0, %v8283
  %v8285 = vmul.f32 %v8282, %v8284
  %v8286 = vadd.f32 %v8282, %v8285
  %vm8287 = vweird.f32 %v8232
  %vm8288 = vweird.f32 %v8282
  %vm8289 = vmor %vm8287, %vm8288
  %v8290 = vsel %vm8289, %v8282, %v8286
  %v8291 = vand.u32 2147483647, %v8232
  %vm8292 = vcmp.eq.f32.partialorder %v8291, 8.507059e+37
  %v8293 = vand.u32 %v8232, 2147483648
  %v8294 = vor.u32 1.1754944e-38, %v8293
  %v8295 = vsel %vm8292, %v8294, %v8290
  %v8296 = vmul.f32 1.0, %v8295
  %v8297 = vrcp.pop %v8233
  %v8298 = vmul.f32 %v8233, %v8297
  %v8299 = vsub.f32 1.0, %v8298
  %v8300 = vmul.f32 %v8297, %v8299
  %v8301 = vadd.f32 %v8297, %v8300
  %vm8302 = vweird.f32 %v8233
  %vm8303 = vweird.f32 %v8297
  %vm8304 = vmor %vm8302, %vm8303
  %v8305 = vsel %vm8304, %v8297, %v8301
  %v8306 = vand.u32 2147483647, %v8233
  %vm8307 = vcmp.eq.f32.partialorder %v8306, 8.507059e+37
  %v8308 = vand.u32 %v8233, 2147483648
  %v8309 = vor.u32 1.1754944e-38, %v8308
  %v8310 = vsel %vm8307, %v8309, %v8305
  %v8311 = vmul.f32 1.0, %v8310
  %v8312 = vrcp.pop %v8234
  %v8313 = vmul.f32 %v8234, %v8312
  %v8314 = vsub.f32 1.0, %v8313
  %v8315 = vmul.f32 %v8312, %v8314
  %v8316 = vadd.f32 %v8312, %v8315
  %vm8317 = vweird.f32 %v8234
  %vm8318 = vweird.f32 %v8312
  %vm8319 = vmor %vm8317, %vm8318
  %v8320 = vsel %vm8319, %v8312, %v8316
  %v8321 = vand.u32 2147483647, %v8234
  %vm8322 = vcmp.eq.f32.partialorder %v8321, 8.507059e+37
  %v8323 = vand.u32 %v8234, 2147483648
  %v8324 = vor.u32 1.1754944e-38, %v8323
  %v8325 = vsel %vm8322, %v8324, %v8320
  %v8326 = vmul.f32 1.0, %v8325
  %v8327 = vrcp.pop %v8235
  %v8328 = vmul.f32 %v8235, %v8327
  %v8329 = vsub.f32 1.0, %v8328
  %v8330 = vmul.f32 %v8327, %v8329
  %v8331 = vadd.f32 %v8327, %v8330
  %vm8332 = vweird.f32 %v8235
  %vm8333 = vweird.f32 %v8327
  %vm8334 = vmor %vm8332, %vm8333
  %v8335 = vsel %vm8334, %v8327, %v8331
  %v8336 = vand.u32 2147483647, %v8235
  %vm8337 = vcmp.eq.f32.partialorder %v8336, 8.507059e+37
  %v8338 = vand.u32 %v8235, 2147483648
  %v8339 = vor.u32 1.1754944e-38, %v8338
  %v8340 = vsel %vm8337, %v8339, %v8335
  %v8341 = vmul.f32 1.0, %v8340
  %v8342 = vrcp.pop %v8236
  %v8343 = vmul.f32 %v8236, %v8342
  %v8344 = vsub.f32 1.0, %v8343
  %v8345 = vmul.f32 %v8342, %v8344
  %v8346 = vadd.f32 %v8342, %v8345
  %vm8347 = vweird.f32 %v8236
  %vm8348 = vweird.f32 %v8342
  %vm8349 = vmor %vm8347, %vm8348
  %v8350 = vsel %vm8349, %v8342, %v8346
  %v8351 = vand.u32 2147483647, %v8236
  %vm8352 = vcmp.eq.f32.partialorder %v8351, 8.507059e+37
  %v8353 = vand.u32 %v8236, 2147483648
  %v8354 = vor.u32 1.1754944e-38, %v8353
  %v8355 = vsel %vm8352, %v8354, %v8350
  %v8356 = vmul.f32 1.0, %v8355
  %v8357 = vmul.f32 %v7979, %v8251
  %v8358 = vmul.f32 %v7994, %v8266
  %v8359 = vmul.f32 %v8009, %v8281
  %v8360 = vmul.f32 %v8024, %v8296
  %v8361 = vmul.f32 %v8039, %v8311
  %v8362 = vmul.f32 %v8054, %v8326
  %v8363 = vmul.f32 %v8069, %v8341
  %v8364 = vmul.f32 %v8084, %v8356
  %v8365 = vmul.f32 %v8251, %v8251
  %v8366 = vmul.f32 %v8266, %v8266
  %v8367 = vmul.f32 %v8281, %v8281
  %v8368 = vmul.f32 %v8296, %v8296
  %v8369 = vmul.f32 %v8311, %v8311
  %v8370 = vmul.f32 %v8326, %v8326
  %v8371 = vmul.f32 %v8341, %v8341
  %v8372 = vmul.f32 %v8356, %v8356
  %v8373 = vmul.f32 %v8095, %v8365
  %v8374 = vmul.f32 %v8098, %v8366
  %v8375 = vmul.f32 %v8101, %v8367
  %v8376 = vmul.f32 %v8104, %v8368
  %v8377 = vmul.f32 %v8107, %v8369
  %v8378 = vmul.f32 %v8110, %v8370
  %v8379 = vmul.f32 %v8113, %v8371
  %v8380 = vmul.f32 %v8116, %v8372
  %vm8381 = vcmp.eq.f32.partialorder %v5742, 4.0
  %vm8382 = vcmp.eq.f32.partialorder %v5745, 4.0
  %vm8383 = vcmp.eq.f32.partialorder %v5748, 4.0
  %vm8384 = vcmp.eq.f32.partialorder %v5751, 4.0
  %vm8385 = vcmp.eq.f32.partialorder %v5754, 4.0
  %vm8386 = vcmp.eq.f32.partialorder %v5757, 4.0
  %vm8387 = vcmp.eq.f32.partialorder %v5760, 4.0
  %vm8388 = vcmp.eq.f32.partialorder %v5763, 4.0
  %vm8389 = vcmp.eq.f32.partialorder %v5766, 4.0
  %vm8390 = vcmp.eq.f32.partialorder %v5769, 4.0
  %vm8391 = vcmp.eq.f32.partialorder %v5772, 4.0
  %vm8392 = vcmp.eq.f32.partialorder %v5775, 4.0
  %vm8393 = vcmp.eq.f32.partialorder %v5778, 4.0
  %vm8394 = vcmp.eq.f32.partialorder %v5781, 4.0
  %vm8395 = vcmp.eq.f32.partialorder %v5784, 4.0
  %vm8396 = vcmp.eq.f32.partialorder %v5787, 4.0
  %v8397 = vsel %vm8381, 1, 0
  %v8398 = vsel %vm8382, 1, 0
  %v8399 = vsel %vm8383, 1, 0
  %v8400 = vsel %vm8384, 1, 0
  %v8401 = vsel %vm8385, 1, 0
  %v8402 = vsel %vm8386, 1, 0
  %v8403 = vsel %vm8387, 1, 0
  %v8404 = vsel %vm8388, 1, 0
  %v8405 = vsel %vm8389, 1, 0
  %v8406 = vsel %vm8390, 1, 0
  %v8407 = vsel %vm8391, 1, 0
  %v8408 = vsel %vm8392, 1, 0
  %v8409 = vsel %vm8393, 1, 0
  %v8410 = vsel %vm8394, 1, 0
  %v8411 = vsel %vm8395, 1, 0
  %v8412 = vsel %vm8396, 1, 0
  %v8413 = vcvt.s32.f32 %v8397
  %v8414 = vcvt.s32.f32 %v8398
  %v8415 = vcvt.s32.f32 %v8399
  %v8416 = vcvt.s32.f32 %v8400
  %v8417 = vcvt.s32.f32 %v8401
  %v8418 = vcvt.s32.f32 %v8402
  %v8419 = vcvt.s32.f32 %v8403
  %v8420 = vcvt.s32.f32 %v8404
  %v8421 = vcvt.s32.f32 %v8405
  %v8422 = vcvt.s32.f32 %v8406
  %v8423 = vcvt.s32.f32 %v8407
  %v8424 = vcvt.s32.f32 %v8408
  %v8425 = vcvt.s32.f32 %v8409
  %v8426 = vcvt.s32.f32 %v8410
  %v8427 = vcvt.s32.f32 %v8411
  %v8428 = vcvt.s32.f32 %v8412
  %v8429 = vmul.f32 %v8413, %v2342
  %v8430 = vmul.f32 %v8414, %v2343
  %v8431 = vmul.f32 %v8415, %v2344
  %v8432 = vmul.f32 %v8416, %v2345
  %v8433 = vmul.f32 %v8417, %v2346
  %v8434 = vmul.f32 %v8418, %v2347
  %v8435 = vmul.f32 %v8419, %v2348
  %v8436 = vmul.f32 %v8420, %v2349
  %v8437 = vmul.f32 %v8421, %v2350
  %v8438 = vmul.f32 %v8422, %v2351
  %v8439 = vmul.f32 %v8423, %v2352
  %v8440 = vmul.f32 %v8424, %v2353
  %v8441 = vmul.f32 %v8425, %v2354
  %v8442 = vmul.f32 %v8426, %v2355
  %v8443 = vmul.f32 %v8427, %v2356
  %v8444 = vmul.f32 %v8428, %v2357
  %v8445 = vsel %vm532, %v8429, 0.0
  %v8446 = vsel %vm536, %v8430, 0.0
  %v8447 = vadd.f32 %v8445, %v8446
  %v8448 = vrot.slane %v8447, 4
  %v8449 = vadd.f32 %v8447, %v8448
  %v8450 = vrot.slane %v8449, 2
  %v8451 = vadd.f32 %v8449, %v8450
  %v8452 = vrot.slane %v8451, 1
  %v8453 = vadd.f32 %v8451, %v8452
  %v8454 = vsel %vm532, %v8431, 0.0
  %v8455 = vsel %vm536, %v8432, 0.0
  %v8456 = vadd.f32 %v8454, %v8455
  %v8457 = vrot.slane %v8456, 4
  %v8458 = vadd.f32 %v8456, %v8457
  %v8459 = vrot.slane %v8458, 2
  %v8460 = vadd.f32 %v8458, %v8459
  %v8461 = vrot.slane %v8460, 1
  %v8462 = vadd.f32 %v8460, %v8461
  %v8463 = vsel %vm532, %v8433, 0.0
  %v8464 = vsel %vm536, %v8434, 0.0
  %v8465 = vadd.f32 %v8463, %v8464
  %v8466 = vrot.slane %v8465, 4
  %v8467 = vadd.f32 %v8465, %v8466
  %v8468 = vrot.slane %v8467, 2
  %v8469 = vadd.f32 %v8467, %v8468
  %v8470 = vrot.slane %v8469, 1
  %v8471 = vadd.f32 %v8469, %v8470
  %v8472 = vsel %vm532, %v8435, 0.0
  %v8473 = vsel %vm536, %v8436, 0.0
  %v8474 = vadd.f32 %v8472, %v8473
  %v8475 = vrot.slane %v8474, 4
  %v8476 = vadd.f32 %v8474, %v8475
  %v8477 = vrot.slane %v8476, 2
  %v8478 = vadd.f32 %v8476, %v8477
  %v8479 = vrot.slane %v8478, 1
  %v8480 = vadd.f32 %v8478, %v8479
  %v8481 = vsel %vm532, %v8437, 0.0
  %v8482 = vsel %vm536, %v8438, 0.0
  %v8483 = vadd.f32 %v8481, %v8482
  %v8484 = vrot.slane %v8483, 4
  %v8485 = vadd.f32 %v8483, %v8484
  %v8486 = vrot.slane %v8485, 2
  %v8487 = vadd.f32 %v8485, %v8486
  %v8488 = vrot.slane %v8487, 1
  %v8489 = vadd.f32 %v8487, %v8488
  %v8490 = vsel %vm532, %v8439, 0.0
  %v8491 = vsel %vm536, %v8440, 0.0
  %v8492 = vadd.f32 %v8490, %v8491
  %v8493 = vrot.slane %v8492, 4
  %v8494 = vadd.f32 %v8492, %v8493
  %v8495 = vrot.slane %v8494, 2
  %v8496 = vadd.f32 %v8494, %v8495
  %v8497 = vrot.slane %v8496, 1
  %v8498 = vadd.f32 %v8496, %v8497
  %v8499 = vsel %vm532, %v8441, 0.0
  %v8500 = vsel %vm536, %v8442, 0.0
  %v8501 = vadd.f32 %v8499, %v8500
  %v8502 = vrot.slane %v8501, 4
  %v8503 = vadd.f32 %v8501, %v8502
  %v8504 = vrot.slane %v8503, 2
  %v8505 = vadd.f32 %v8503, %v8504
  %v8506 = vrot.slane %v8505, 1
  %v8507 = vadd.f32 %v8505, %v8506
  %v8508 = vsel %vm532, %v8443, 0.0
  %v8509 = vsel %vm536, %v8444, 0.0
  %v8510 = vadd.f32 %v8508, %v8509
  %v8511 = vrot.slane %v8510, 4
  %v8512 = vadd.f32 %v8510, %v8511
  %v8513 = vrot.slane %v8512, 2
  %v8514 = vadd.f32 %v8512, %v8513
  %v8515 = vrot.slane %v8514, 1
  %v8516 = vadd.f32 %v8514, %v8515
  %v8517 = vadd.f32 %v2366, %v8453
  %v8518 = vadd.f32 %v2367, %v8462
  %v8519 = vadd.f32 %v2368, %v8471
  %v8520 = vadd.f32 %v2369, %v8480
  %v8521 = vadd.f32 %v2370, %v8489
  %v8522 = vadd.f32 %v2371, %v8498
  %v8523 = vadd.f32 %v2372, %v8507
  %v8524 = vadd.f32 %v2373, %v8516
  %v8525 = vmul.f32 %v8413, %v2191
  %v8526 = vmul.f32 %v8414, %v2201
  %v8527 = vmul.f32 %v8415, %v2211
  %v8528 = vmul.f32 %v8416, %v2221
  %v8529 = vmul.f32 %v8417, %v2231
  %v8530 = vmul.f32 %v8418, %v2241
  %v8531 = vmul.f32 %v8419, %v2251
  %v8532 = vmul.f32 %v8420, %v2261
  %v8533 = vmul.f32 %v8421, %v2271
  %v8534 = vmul.f32 %v8422, %v2281
  %v8535 = vmul.f32 %v8423, %v2291
  %v8536 = vmul.f32 %v8424, %v2301
  %v8537 = vmul.f32 %v8425, %v2311
  %v8538 = vmul.f32 %v8426, %v2321
  %v8539 = vmul.f32 %v8427, %v2331
  %v8540 = vmul.f32 %v8428, %v2341
  %v8541 = vsel %vm5948, %v8526, 0.0
  %v8542 = vadd.f32 %v8525, %v8541
  %v8543 = vrot.slane %v8542, 4
  %v8544 = vadd.f32 %v8542, %v8543
  %v8545 = vrot.slane %v8544, 2
  %v8546 = vadd.f32 %v8544, %v8545
  %v8547 = vrot.slane %v8546, 1
  %v8548 = vadd.f32 %v8546, %v8547
  %v8549 = vsel %vm5948, %v8528, 0.0
  %v8550 = vadd.f32 %v8527, %v8549
  %v8551 = vrot.slane %v8550, 4
  %v8552 = vadd.f32 %v8550, %v8551
  %v8553 = vrot.slane %v8552, 2
  %v8554 = vadd.f32 %v8552, %v8553
  %v8555 = vrot.slane %v8554, 1
  %v8556 = vadd.f32 %v8554, %v8555
  %v8557 = vsel %vm5948, %v8530, 0.0
  %v8558 = vadd.f32 %v8529, %v8557
  %v8559 = vrot.slane %v8558, 4
  %v8560 = vadd.f32 %v8558, %v8559
  %v8561 = vrot.slane %v8560, 2
  %v8562 = vadd.f32 %v8560, %v8561
  %v8563 = vrot.slane %v8562, 1
  %v8564 = vadd.f32 %v8562, %v8563
  %v8565 = vsel %vm5948, %v8532, 0.0
  %v8566 = vadd.f32 %v8531, %v8565
  %v8567 = vrot.slane %v8566, 4
  %v8568 = vadd.f32 %v8566, %v8567
  %v8569 = vrot.slane %v8568, 2
  %v8570 = vadd.f32 %v8568, %v8569
  %v8571 = vrot.slane %v8570, 1
  %v8572 = vadd.f32 %v8570, %v8571
  %v8573 = vsel %vm5948, %v8534, 0.0
  %v8574 = vadd.f32 %v8533, %v8573
  %v8575 = vrot.slane %v8574, 4
  %v8576 = vadd.f32 %v8574, %v8575
  %v8577 = vrot.slane %v8576, 2
  %v8578 = vadd.f32 %v8576, %v8577
  %v8579 = vrot.slane %v8578, 1
  %v8580 = vadd.f32 %v8578, %v8579
  %v8581 = vsel %vm5948, %v8536, 0.0
  %v8582 = vadd.f32 %v8535, %v8581
  %v8583 = vrot.slane %v8582, 4
  %v8584 = vadd.f32 %v8582, %v8583
  %v8585 = vrot.slane %v8584, 2
  %v8586 = vadd.f32 %v8584, %v8585
  %v8587 = vrot.slane %v8586, 1
  %v8588 = vadd.f32 %v8586, %v8587
  %v8589 = vsel %vm5948, %v8538, 0.0
  %v8590 = vadd.f32 %v8537, %v8589
  %v8591 = vrot.slane %v8590, 4
  %v8592 = vadd.f32 %v8590, %v8591
  %v8593 = vrot.slane %v8592, 2
  %v8594 = vadd.f32 %v8592, %v8593
  %v8595 = vrot.slane %v8594, 1
  %v8596 = vadd.f32 %v8594, %v8595
  %v8597 = vsel %vm5948, %v8540, 0.0
  %v8598 = vadd.f32 %v8539, %v8597
  %v8599 = vrot.slane %v8598, 4
  %v8600 = vadd.f32 %v8598, %v8599
  %v8601 = vrot.slane %v8600, 2
  %v8602 = vadd.f32 %v8600, %v8601
  %v8603 = vrot.slane %v8602, 1
  %v8604 = vadd.f32 %v8602, %v8603
  %v8605 = vadd.f32 %v2374, %v8548
  %v8606 = vadd.f32 %v2375, %v8556
  %v8607 = vadd.f32 %v2376, %v8564
  %v8608 = vadd.f32 %v2377, %v8572
  %v8609 = vadd.f32 %v2378, %v8580
  %v8610 = vadd.f32 %v2379, %v8588
  %v8611 = vadd.f32 %v2380, %v8596
  %v8612 = vadd.f32 %v2381, %v8604
  %v8613 = vrcp.pop %v8605
  %v8614 = vmul.f32 %v8605, %v8613
  %v8615 = vsub.f32 1.0, %v8614
  %v8616 = vmul.f32 %v8613, %v8615
  %v8617 = vadd.f32 %v8613, %v8616
  %vm8618 = vweird.f32 %v8605
  %vm8619 = vweird.f32 %v8613
  %vm8620 = vmor %vm8618, %vm8619
  %v8621 = vsel %vm8620, %v8613, %v8617
  %v8622 = vand.u32 2147483647, %v8605
  %vm8623 = vcmp.eq.f32.partialorder %v8622, 8.507059e+37
  %v8624 = vand.u32 %v8605, 2147483648
  %v8625 = vor.u32 1.1754944e-38, %v8624
  %v8626 = vsel %vm8623, %v8625, %v8621
  %v8627 = vmul.f32 %v8517, %v8626
  %v8628 = vrcp.pop %v8606
  %v8629 = vmul.f32 %v8606, %v8628
  %v8630 = vsub.f32 1.0, %v8629
  %v8631 = vmul.f32 %v8628, %v8630
  %v8632 = vadd.f32 %v8628, %v8631
  %vm8633 = vweird.f32 %v8606
  %vm8634 = vweird.f32 %v8628
  %vm8635 = vmor %vm8633, %vm8634
  %v8636 = vsel %vm8635, %v8628, %v8632
  %v8637 = vand.u32 2147483647, %v8606
  %vm8638 = vcmp.eq.f32.partialorder %v8637, 8.507059e+37
  %v8639 = vand.u32 %v8606, 2147483648
  %v8640 = vor.u32 1.1754944e-38, %v8639
  %v8641 = vsel %vm8638, %v8640, %v8636
  %v8642 = vmul.f32 %v8518, %v8641
  %v8643 = vrcp.pop %v8607
  %v8644 = vmul.f32 %v8607, %v8643
  %v8645 = vsub.f32 1.0, %v8644
  %v8646 = vmul.f32 %v8643, %v8645
  %v8647 = vadd.f32 %v8643, %v8646
  %vm8648 = vweird.f32 %v8607
  %vm8649 = vweird.f32 %v8643
  %vm8650 = vmor %vm8648, %vm8649
  %v8651 = vsel %vm8650, %v8643, %v8647
  %v8652 = vand.u32 2147483647, %v8607
  %vm8653 = vcmp.eq.f32.partialorder %v8652, 8.507059e+37
  %v8654 = vand.u32 %v8607, 2147483648
  %v8655 = vor.u32 1.1754944e-38, %v8654
  %v8656 = vsel %vm8653, %v8655, %v8651
  %v8657 = vmul.f32 %v8519, %v8656
  %v8658 = vrcp.pop %v8608
  %v8659 = vmul.f32 %v8608, %v8658
  %v8660 = vsub.f32 1.0, %v8659
  %v8661 = vmul.f32 %v8658, %v8660
  %v8662 = vadd.f32 %v8658, %v8661
  %vm8663 = vweird.f32 %v8608
  %vm8664 = vweird.f32 %v8658
  %vm8665 = vmor %vm8663, %vm8664
  %v8666 = vsel %vm8665, %v8658, %v8662
  %v8667 = vand.u32 2147483647, %v8608
  %vm8668 = vcmp.eq.f32.partialorder %v8667, 8.507059e+37
  %v8669 = vand.u32 %v8608, 2147483648
  %v8670 = vor.u32 1.1754944e-38, %v8669
  %v8671 = vsel %vm8668, %v8670, %v8666
  %v8672 = vmul.f32 %v8520, %v8671
  %v8673 = vrcp.pop %v8609
  %v8674 = vmul.f32 %v8609, %v8673
  %v8675 = vsub.f32 1.0, %v8674
  %v8676 = vmul.f32 %v8673, %v8675
  %v8677 = vadd.f32 %v8673, %v8676
  %vm8678 = vweird.f32 %v8609
  %vm8679 = vweird.f32 %v8673
  %vm8680 = vmor %vm8678, %vm8679
  %v8681 = vsel %vm8680, %v8673, %v8677
  %v8682 = vand.u32 2147483647, %v8609
  %vm8683 = vcmp.eq.f32.partialorder %v8682, 8.507059e+37
  %v8684 = vand.u32 %v8609, 2147483648
  %v8685 = vor.u32 1.1754944e-38, %v8684
  %v8686 = vsel %vm8683, %v8685, %v8681
  %v8687 = vmul.f32 %v8521, %v8686
  %v8688 = vrcp.pop %v8610
  %v8689 = vmul.f32 %v8610, %v8688
  %v8690 = vsub.f32 1.0, %v8689
  %v8691 = vmul.f32 %v8688, %v8690
  %v8692 = vadd.f32 %v8688, %v8691
  %vm8693 = vweird.f32 %v8610
  %vm8694 = vweird.f32 %v8688
  %vm8695 = vmor %vm8693, %vm8694
  %v8696 = vsel %vm8695, %v8688, %v8692
  %v8697 = vand.u32 2147483647, %v8610
  %vm8698 = vcmp.eq.f32.partialorder %v8697, 8.507059e+37
  %v8699 = vand.u32 %v8610, 2147483648
  %v8700 = vor.u32 1.1754944e-38, %v8699
  %v8701 = vsel %vm8698, %v8700, %v8696
  %v8702 = vmul.f32 %v8522, %v8701
  %v8703 = vrcp.pop %v8611
  %v8704 = vmul.f32 %v8611, %v8703
  %v8705 = vsub.f32 1.0, %v8704
  %v8706 = vmul.f32 %v8703, %v8705
  %v8707 = vadd.f32 %v8703, %v8706
  %vm8708 = vweird.f32 %v8611
  %vm8709 = vweird.f32 %v8703
  %vm8710 = vmor %vm8708, %vm8709
  %v8711 = vsel %vm8710, %v8703, %v8707
  %v8712 = vand.u32 2147483647, %v8611
  %vm8713 = vcmp.eq.f32.partialorder %v8712, 8.507059e+37
  %v8714 = vand.u32 %v8611, 2147483648
  %v8715 = vor.u32 1.1754944e-38, %v8714
  %v8716 = vsel %vm8713, %v8715, %v8711
  %v8717 = vmul.f32 %v8523, %v8716
  %v8718 = vrcp.pop %v8612
  %v8719 = vmul.f32 %v8612, %v8718
  %v8720 = vsub.f32 1.0, %v8719
  %v8721 = vmul.f32 %v8718, %v8720
  %v8722 = vadd.f32 %v8718, %v8721
  %vm8723 = vweird.f32 %v8612
  %vm8724 = vweird.f32 %v8718
  %vm8725 = vmor %vm8723, %vm8724
  %v8726 = vsel %vm8725, %v8718, %v8722
  %v8727 = vand.u32 2147483647, %v8612
  %vm8728 = vcmp.eq.f32.partialorder %v8727, 8.507059e+37
  %v8729 = vand.u32 %v8612, 2147483648
  %v8730 = vor.u32 1.1754944e-38, %v8729
  %v8731 = vsel %vm8728, %v8730, %v8726
  %v8732 = vmul.f32 %v8524, %v8731
  %v8733 = vmul.f32 %v8627, %v8627
  %v8734 = vmul.f32 %v8642, %v8642
  %v8735 = vmul.f32 %v8657, %v8657
  %v8736 = vmul.f32 %v8672, %v8672
  %v8737 = vmul.f32 %v8687, %v8687
  %v8738 = vmul.f32 %v8702, %v8702
  %v8739 = vmul.f32 %v8717, %v8717
  %v8740 = vmul.f32 %v8732, %v8732
  %v8741 = vsel %vm3666, %v8733, 0.0
  %8742 = vadd.xlane.f32.xlu0 %v8741
  %v8743 = vpop.xlane.xlu0 %8742
  %v8744 = vsel %vm3666, %v8734, 0.0
  %8745 = vadd.xlane.f32.xlu0 %v8744
  %v8746 = vpop.xlane.xlu0 %8745
  %v8747 = vsel %vm3666, %v8735, 0.0
  %8748 = vadd.xlane.f32.xlu0 %v8747
  %v8749 = vpop.xlane.xlu0 %8748
  %v8750 = vsel %vm3666, %v8736, 0.0
  %8751 = vadd.xlane.f32.xlu0 %v8750
  %v8752 = vpop.xlane.xlu0 %8751
  %v8753 = vsel %vm3666, %v8737, 0.0
  %8754 = vadd.xlane.f32.xlu0 %v8753
  %v8755 = vpop.xlane.xlu0 %8754
  %v8756 = vsel %vm3666, %v8738, 0.0
  %8757 = vadd.xlane.f32.xlu0 %v8756
  %v8758 = vpop.xlane.xlu0 %8757
  %v8759 = vsel %vm3666, %v8739, 0.0
  %8760 = vadd.xlane.f32.xlu0 %v8759
  %v8761 = vpop.xlane.xlu0 %8760
  %v8762 = vsel %vm3666, %v8740, 0.0
  %8763 = vadd.xlane.f32.xlu0 %v8762
  %v8764 = vpop.xlane.xlu0 %8763
  %v8765 = vmul.f32 %v8743, 0.01
  %v8766 = vmul.f32 %v8746, 0.01
  %v8767 = vmul.f32 %v8749, 0.01
  %v8768 = vmul.f32 %v8752, 0.01
  %v8769 = vmul.f32 %v8755, 0.01
  %v8770 = vmul.f32 %v8758, 0.01
  %v8771 = vmul.f32 %v8761, 0.01
  %v8772 = vmul.f32 %v8764, 0.01
  %v8773 = vsub.f32 1.0, %v8765
  %v8774 = vsub.f32 1.0, %v8766
  %v8775 = vsub.f32 1.0, %v8767
  %v8776 = vsub.f32 1.0, %v8768
  %v8777 = vsub.f32 1.0, %v8769
  %v8778 = vsub.f32 1.0, %v8770
  %v8779 = vsub.f32 1.0, %v8771
  %v8780 = vsub.f32 1.0, %v8772
  %v8781 = vrsqrt.pop %v8773
  %v8782 = vmul.f32 %v8781, %v8773
  %v8783 = vmul.f32 %v8782, %v8781
  %v8784 = vmul.f32 0.5, %v8783
  %v8785 = vsub.f32 1.5, %v8784
  %v8786 = vmul.f32 %v8781, %v8785
  %v8787 = vmul.f32 %v8773, %v8786
  %vm8788 = vcmp.eq.f32.partialorder %v8773, inf
  %v8789 = vsel %vm8788, %v8773, %v8787
  %vm8790 = vcmp.eq.f32.partialorder %v8773, 0.0
  %v8791 = vand.u32 %v8773, 2147483648
  %v8792 = vsel %vm8790, %v8791, %v8789
  %v8793 = vrsqrt.pop %v8774
  %v8794 = vmul.f32 %v8793, %v8774
  %v8795 = vmul.f32 %v8794, %v8793
  %v8796 = vmul.f32 0.5, %v8795
  %v8797 = vsub.f32 1.5, %v8796
  %v8798 = vmul.f32 %v8793, %v8797
  %v8799 = vmul.f32 %v8774, %v8798
  %vm8800 = vcmp.eq.f32.partialorder %v8774, inf
  %v8801 = vsel %vm8800, %v8774, %v8799
  %vm8802 = vcmp.eq.f32.partialorder %v8774, 0.0
  %v8803 = vand.u32 %v8774, 2147483648
  %v8804 = vsel %vm8802, %v8803, %v8801
  %v8805 = vrsqrt.pop %v8775
  %v8806 = vmul.f32 %v8805, %v8775
  %v8807 = vmul.f32 %v8806, %v8805
  %v8808 = vmul.f32 0.5, %v8807
  %v8809 = vsub.f32 1.5, %v8808
  %v8810 = vmul.f32 %v8805, %v8809
  %v8811 = vmul.f32 %v8775, %v8810
  %vm8812 = vcmp.eq.f32.partialorder %v8775, inf
  %v8813 = vsel %vm8812, %v8775, %v8811
  %vm8814 = vcmp.eq.f32.partialorder %v8775, 0.0
  %v8815 = vand.u32 %v8775, 2147483648
  %v8816 = vsel %vm8814, %v8815, %v8813
  %v8817 = vrsqrt.pop %v8776
  %v8818 = vmul.f32 %v8817, %v8776
  %v8819 = vmul.f32 %v8818, %v8817
  %v8820 = vmul.f32 0.5, %v8819
  %v8821 = vsub.f32 1.5, %v8820
  %v8822 = vmul.f32 %v8817, %v8821
  %v8823 = vmul.f32 %v8776, %v8822
  %vm8824 = vcmp.eq.f32.partialorder %v8776, inf
  %v8825 = vsel %vm8824, %v8776, %v8823
  %vm8826 = vcmp.eq.f32.partialorder %v8776, 0.0
  %v8827 = vand.u32 %v8776, 2147483648
  %v8828 = vsel %vm8826, %v8827, %v8825
  %v8829 = vrsqrt.pop %v8777
  %v8830 = vmul.f32 %v8829, %v8777
  %v8831 = vmul.f32 %v8830, %v8829
  %v8832 = vmul.f32 0.5, %v8831
  %v8833 = vsub.f32 1.5, %v8832
  %v8834 = vmul.f32 %v8829, %v8833
  %v8835 = vmul.f32 %v8777, %v8834
  %vm8836 = vcmp.eq.f32.partialorder %v8777, inf
  %v8837 = vsel %vm8836, %v8777, %v8835
  %vm8838 = vcmp.eq.f32.partialorder %v8777, 0.0
  %v8839 = vand.u32 %v8777, 2147483648
  %v8840 = vsel %vm8838, %v8839, %v8837
  %v8841 = vrsqrt.pop %v8778
  %v8842 = vmul.f32 %v8841, %v8778
  %v8843 = vmul.f32 %v8842, %v8841
  %v8844 = vmul.f32 0.5, %v8843
  %v8845 = vsub.f32 1.5, %v8844
  %v8846 = vmul.f32 %v8841, %v8845
  %v8847 = vmul.f32 %v8778, %v8846
  %vm8848 = vcmp.eq.f32.partialorder %v8778, inf
  %v8849 = vsel %vm8848, %v8778, %v8847
  %vm8850 = vcmp.eq.f32.partialorder %v8778, 0.0
  %v8851 = vand.u32 %v8778, 2147483648
  %v8852 = vsel %vm8850, %v8851, %v8849
  %v8853 = vrsqrt.pop %v8779
  %v8854 = vmul.f32 %v8853, %v8779
  %v8855 = vmul.f32 %v8854, %v8853
  %v8856 = vmul.f32 0.5, %v8855
  %v8857 = vsub.f32 1.5, %v8856
  %v8858 = vmul.f32 %v8853, %v8857
  %v8859 = vmul.f32 %v8779, %v8858
  %vm8860 = vcmp.eq.f32.partialorder %v8779, inf
  %v8861 = vsel %vm8860, %v8779, %v8859
  %vm8862 = vcmp.eq.f32.partialorder %v8779, 0.0
  %v8863 = vand.u32 %v8779, 2147483648
  %v8864 = vsel %vm8862, %v8863, %v8861
  %v8865 = vrsqrt.pop %v8780
  %v8866 = vmul.f32 %v8865, %v8780
  %v8867 = vmul.f32 %v8866, %v8865
  %v8868 = vmul.f32 0.5, %v8867
  %v8869 = vsub.f32 1.5, %v8868
  %v8870 = vmul.f32 %v8865, %v8869
  %v8871 = vmul.f32 %v8780, %v8870
  %vm8872 = vcmp.eq.f32.partialorder %v8780, inf
  %v8873 = vsel %vm8872, %v8780, %v8871
  %vm8874 = vcmp.eq.f32.partialorder %v8780, 0.0
  %v8875 = vand.u32 %v8780, 2147483648
  %v8876 = vsel %vm8874, %v8875, %v8873
  %v8877 = vadd.f32 %v8792, 1.0
  %v8878 = vadd.f32 %v8804, 1.0
  %v8879 = vadd.f32 %v8816, 1.0
  %v8880 = vadd.f32 %v8828, 1.0
  %v8881 = vadd.f32 %v8840, 1.0
  %v8882 = vadd.f32 %v8852, 1.0
  %v8883 = vadd.f32 %v8864, 1.0
  %v8884 = vadd.f32 %v8876, 1.0
  %v8885 = vrcp.pop %v8877
  %v8886 = vmul.f32 %v8877, %v8885
  %v8887 = vsub.f32 1.0, %v8886
  %v8888 = vmul.f32 %v8885, %v8887
  %v8889 = vadd.f32 %v8885, %v8888
  %vm8890 = vweird.f32 %v8877
  %vm8891 = vweird.f32 %v8885
  %vm8892 = vmor %vm8890, %vm8891
  %v8893 = vsel %vm8892, %v8885, %v8889
  %v8894 = vand.u32 2147483647, %v8877
  %vm8895 = vcmp.eq.f32.partialorder %v8894, 8.507059e+37
  %v8896 = vand.u32 %v8877, 2147483648
  %v8897 = vor.u32 1.1754944e-38, %v8896
  %v8898 = vsel %vm8895, %v8897, %v8893
  %v8899 = vmul.f32 1.0, %v8898
  %v8900 = vrcp.pop %v8878
  %v8901 = vmul.f32 %v8878, %v8900
  %v8902 = vsub.f32 1.0, %v8901
  %v8903 = vmul.f32 %v8900, %v8902
  %v8904 = vadd.f32 %v8900, %v8903
  %vm8905 = vweird.f32 %v8878
  %vm8906 = vweird.f32 %v8900
  %vm8907 = vmor %vm8905, %vm8906
  %v8908 = vsel %vm8907, %v8900, %v8904
  %v8909 = vand.u32 2147483647, %v8878
  %vm8910 = vcmp.eq.f32.partialorder %v8909, 8.507059e+37
  %v8911 = vand.u32 %v8878, 2147483648
  %v8912 = vor.u32 1.1754944e-38, %v8911
  %v8913 = vsel %vm8910, %v8912, %v8908
  %v8914 = vmul.f32 1.0, %v8913
  %v8915 = vrcp.pop %v8879
  %v8916 = vmul.f32 %v8879, %v8915
  %v8917 = vsub.f32 1.0, %v8916
  %v8918 = vmul.f32 %v8915, %v8917
  %v8919 = vadd.f32 %v8915, %v8918
  %vm8920 = vweird.f32 %v8879
  %vm8921 = vweird.f32 %v8915
  %vm8922 = vmor %vm8920, %vm8921
  %v8923 = vsel %vm8922, %v8915, %v8919
  %v8924 = vand.u32 2147483647, %v8879
  %vm8925 = vcmp.eq.f32.partialorder %v8924, 8.507059e+37
  %v8926 = vand.u32 %v8879, 2147483648
  %v8927 = vor.u32 1.1754944e-38, %v8926
  %v8928 = vsel %vm8925, %v8927, %v8923
  %v8929 = vmul.f32 1.0, %v8928
  %v8930 = vrcp.pop %v8880
  %v8931 = vmul.f32 %v8880, %v8930
  %v8932 = vsub.f32 1.0, %v8931
  %v8933 = vmul.f32 %v8930, %v8932
  %v8934 = vadd.f32 %v8930, %v8933
  %vm8935 = vweird.f32 %v8880
  %vm8936 = vweird.f32 %v8930
  %vm8937 = vmor %vm8935, %vm8936
  %v8938 = vsel %vm8937, %v8930, %v8934
  %v8939 = vand.u32 2147483647, %v8880
  %vm8940 = vcmp.eq.f32.partialorder %v8939, 8.507059e+37
  %v8941 = vand.u32 %v8880, 2147483648
  %v8942 = vor.u32 1.1754944e-38, %v8941
  %v8943 = vsel %vm8940, %v8942, %v8938
  %v8944 = vmul.f32 1.0, %v8943
  %v8945 = vrcp.pop %v8881
  %v8946 = vmul.f32 %v8881, %v8945
  %v8947 = vsub.f32 1.0, %v8946
  %v8948 = vmul.f32 %v8945, %v8947
  %v8949 = vadd.f32 %v8945, %v8948
  %vm8950 = vweird.f32 %v8881
  %vm8951 = vweird.f32 %v8945
  %vm8952 = vmor %vm8950, %vm8951
  %v8953 = vsel %vm8952, %v8945, %v8949
  %v8954 = vand.u32 2147483647, %v8881
  %vm8955 = vcmp.eq.f32.partialorder %v8954, 8.507059e+37
  %v8956 = vand.u32 %v8881, 2147483648
  %v8957 = vor.u32 1.1754944e-38, %v8956
  %v8958 = vsel %vm8955, %v8957, %v8953
  %v8959 = vmul.f32 1.0, %v8958
  %v8960 = vrcp.pop %v8882
  %v8961 = vmul.f32 %v8882, %v8960
  %v8962 = vsub.f32 1.0, %v8961
  %v8963 = vmul.f32 %v8960, %v8962
  %v8964 = vadd.f32 %v8960, %v8963
  %vm8965 = vweird.f32 %v8882
  %vm8966 = vweird.f32 %v8960
  %vm8967 = vmor %vm8965, %vm8966
  %v8968 = vsel %vm8967, %v8960, %v8964
  %v8969 = vand.u32 2147483647, %v8882
  %vm8970 = vcmp.eq.f32.partialorder %v8969, 8.507059e+37
  %v8971 = vand.u32 %v8882, 2147483648
  %v8972 = vor.u32 1.1754944e-38, %v8971
  %v8973 = vsel %vm8970, %v8972, %v8968
  %v8974 = vmul.f32 1.0, %v8973
  %v8975 = vrcp.pop %v8883
  %v8976 = vmul.f32 %v8883, %v8975
  %v8977 = vsub.f32 1.0, %v8976
  %v8978 = vmul.f32 %v8975, %v8977
  %v8979 = vadd.f32 %v8975, %v8978
  %vm8980 = vweird.f32 %v8883
  %vm8981 = vweird.f32 %v8975
  %vm8982 = vmor %vm8980, %vm8981
  %v8983 = vsel %vm8982, %v8975, %v8979
  %v8984 = vand.u32 2147483647, %v8883
  %vm8985 = vcmp.eq.f32.partialorder %v8984, 8.507059e+37
  %v8986 = vand.u32 %v8883, 2147483648
  %v8987 = vor.u32 1.1754944e-38, %v8986
  %v8988 = vsel %vm8985, %v8987, %v8983
  %v8989 = vmul.f32 1.0, %v8988
  %v8990 = vrcp.pop %v8884
  %v8991 = vmul.f32 %v8884, %v8990
  %v8992 = vsub.f32 1.0, %v8991
  %v8993 = vmul.f32 %v8990, %v8992
  %v8994 = vadd.f32 %v8990, %v8993
  %vm8995 = vweird.f32 %v8884
  %vm8996 = vweird.f32 %v8990
  %vm8997 = vmor %vm8995, %vm8996
  %v8998 = vsel %vm8997, %v8990, %v8994
  %v8999 = vand.u32 2147483647, %v8884
  %vm9000 = vcmp.eq.f32.partialorder %v8999, 8.507059e+37
  %v9001 = vand.u32 %v8884, 2147483648
  %v9002 = vor.u32 1.1754944e-38, %v9001
  %v9003 = vsel %vm9000, %v9002, %v8998
  %v9004 = vmul.f32 1.0, %v9003
  %v9005 = vmul.f32 %v8627, %v8899
  %v9006 = vmul.f32 %v8642, %v8914
  %v9007 = vmul.f32 %v8657, %v8929
  %v9008 = vmul.f32 %v8672, %v8944
  %v9009 = vmul.f32 %v8687, %v8959
  %v9010 = vmul.f32 %v8702, %v8974
  %v9011 = vmul.f32 %v8717, %v8989
  %v9012 = vmul.f32 %v8732, %v9004
  %v9013 = vmul.f32 %v8899, %v8899
  %v9014 = vmul.f32 %v8914, %v8914
  %v9015 = vmul.f32 %v8929, %v8929
  %v9016 = vmul.f32 %v8944, %v8944
  %v9017 = vmul.f32 %v8959, %v8959
  %v9018 = vmul.f32 %v8974, %v8974
  %v9019 = vmul.f32 %v8989, %v8989
  %v9020 = vmul.f32 %v9004, %v9004
  %v9021 = vmul.f32 %v8743, %v9013
  %v9022 = vmul.f32 %v8746, %v9014
  %v9023 = vmul.f32 %v8749, %v9015
  %v9024 = vmul.f32 %v8752, %v9016
  %v9025 = vmul.f32 %v8755, %v9017
  %v9026 = vmul.f32 %v8758, %v9018
  %v9027 = vmul.f32 %v8761, %v9019
  %v9028 = vmul.f32 %v8764, %v9020
  %v9029 = vperm.slane %v6413, 0
  %v9030 = vperm.slane %v6414, 0
  %v9031 = vperm.slane %v6415, 0
  %v9032 = vperm.slane %v6416, 0
  %v9033 = vperm.slane %v6417, 0
  %v9034 = vperm.slane %v6418, 0
  %v9035 = vperm.slane %v6419, 0
  %v9036 = vperm.slane %v6420, 0
  %v9037 = vmul.f32 %v1414, %v9029
  %v9038 = vmul.f32 %v1415, %v9029
  %v9039 = vmul.f32 %v1416, %v9030
  %v9040 = vmul.f32 %v1417, %v9030
  %v9041 = vmul.f32 %v1418, %v9031
  %v9042 = vmul.f32 %v1419, %v9031
  %v9043 = vmul.f32 %v1420, %v9032
  %v9044 = vmul.f32 %v1421, %v9032
  %v9045 = vmul.f32 %v1422, %v9033
  %v9046 = vmul.f32 %v1423, %v9033
  %v9047 = vmul.f32 %v1424, %v9034
  %v9048 = vmul.f32 %v1425, %v9034
  %v9049 = vmul.f32 %v1426, %v9035
  %v9050 = vmul.f32 %v1427, %v9035
  %v9051 = vmul.f32 %v1428, %v9036
  %v9052 = vmul.f32 %v1429, %v9036
  %v9053 = vsel %vm532, %v9037, 0.0
  %9054 = vadd.xlane.f32.xlu0 %v9053
  %v9055 = vpop.xlane.xlu0 %9054
  %v9056 = vsel %vm536, %v9038, 0.0
  %9057 = vadd.xlane.f32.xlu0 %v9056
  %v9058 = vpop.xlane.xlu0 %9057
  %v9059 = vsel %vm532, %v9039, 0.0
  %9060 = vadd.xlane.f32.xlu0 %v9059
  %v9061 = vpop.xlane.xlu0 %9060
  %v9062 = vsel %vm536, %v9040, 0.0
  %9063 = vadd.xlane.f32.xlu0 %v9062
  %v9064 = vpop.xlane.xlu0 %9063
  %v9065 = vsel %vm532, %v9041, 0.0
  %9066 = vadd.xlane.f32.xlu0 %v9065
  %v9067 = vpop.xlane.xlu0 %9066
  %v9068 = vsel %vm536, %v9042, 0.0
  %9069 = vadd.xlane.f32.xlu0 %v9068
  %v9070 = vpop.xlane.xlu0 %9069
  %v9071 = vsel %vm532, %v9043, 0.0
  %9072 = vadd.xlane.f32.xlu0 %v9071
  %v9073 = vpop.xlane.xlu0 %9072
  %v9074 = vsel %vm536, %v9044, 0.0
  %9075 = vadd.xlane.f32.xlu0 %v9074
  %v9076 = vpop.xlane.xlu0 %9075
  %v9077 = vsel %vm532, %v9045, 0.0
  %9078 = vadd.xlane.f32.xlu0 %v9077
  %v9079 = vpop.xlane.xlu0 %9078
  %v9080 = vsel %vm536, %v9046, 0.0
  %9081 = vadd.xlane.f32.xlu0 %v9080
  %v9082 = vpop.xlane.xlu0 %9081
  %v9083 = vsel %vm532, %v9047, 0.0
  %9084 = vadd.xlane.f32.xlu0 %v9083
  %v9085 = vpop.xlane.xlu0 %9084
  %v9086 = vsel %vm536, %v9048, 0.0
  %9087 = vadd.xlane.f32.xlu0 %v9086
  %v9088 = vpop.xlane.xlu0 %9087
  %v9089 = vsel %vm532, %v9049, 0.0
  %9090 = vadd.xlane.f32.xlu0 %v9089
  %v9091 = vpop.xlane.xlu0 %9090
  %v9092 = vsel %vm536, %v9050, 0.0
  %9093 = vadd.xlane.f32.xlu0 %v9092
  %v9094 = vpop.xlane.xlu0 %9093
  %v9095 = vsel %vm532, %v9051, 0.0
  %9096 = vadd.xlane.f32.xlu0 %v9095
  %v9097 = vpop.xlane.xlu0 %9096
  %v9098 = vsel %vm536, %v9052, 0.0
  %9099 = vadd.xlane.f32.xlu0 %v9098
  %v9100 = vpop.xlane.xlu0 %9099
  %v9101 = vsel %vm4029, %v9055, 0.0
  %v9102 = vsel %vm4029, %v9058, 0.0
  %v9103 = vsel %vm4029, %v9061, 0.0
  %v9104 = vsel %vm4029, %v9064, 0.0
  %v9105 = vsel %vm4029, %v9067, 0.0
  %v9106 = vsel %vm4029, %v9070, 0.0
  %v9107 = vsel %vm4029, %v9073, 0.0
  %v9108 = vsel %vm4029, %v9076, 0.0
  %v9109 = vsel %vm4029, %v9079, 0.0
  %v9110 = vsel %vm4029, %v9082, 0.0
  %v9111 = vsel %vm4029, %v9085, 0.0
  %v9112 = vsel %vm4029, %v9088, 0.0
  %v9113 = vsel %vm4029, %v9091, 0.0
  %v9114 = vsel %vm4029, %v9094, 0.0
  %v9115 = vsel %vm4029, %v9097, 0.0
  %v9116 = vsel %vm4029, %v9100, 0.0
  %v9117 = vsel %vm4029, %v6429, 0.0
  %v9118 = vsel %vm4029, %v6430, 0.0
  %v9119 = vsel %vm4029, %v6431, 0.0
  %v9120 = vsel %vm4029, %v6432, 0.0
  %v9121 = vsel %vm4029, %v6433, 0.0
  %v9122 = vsel %vm4029, %v6434, 0.0
  %v9123 = vsel %vm4029, %v6435, 0.0
  %v9124 = vsel %vm4029, %v6436, 0.0
  %v9125 = vperm.slane %v7061, 1
  %v9126 = vperm.slane %v7062, 1
  %v9127 = vperm.slane %v7063, 1
  %v9128 = vperm.slane %v7064, 1
  %v9129 = vperm.slane %v7065, 1
  %v9130 = vperm.slane %v7066, 1
  %v9131 = vperm.slane %v7067, 1
  %v9132 = vperm.slane %v7068, 1
  %v9133 = vmul.f32 %v1414, %v9125
  %v9134 = vmul.f32 %v1415, %v9125
  %v9135 = vmul.f32 %v1416, %v9126
  %v9136 = vmul.f32 %v1417, %v9126
  %v9137 = vmul.f32 %v1418, %v9127
  %v9138 = vmul.f32 %v1419, %v9127
  %v9139 = vmul.f32 %v1420, %v9128
  %v9140 = vmul.f32 %v1421, %v9128
  %v9141 = vmul.f32 %v1422, %v9129
  %v9142 = vmul.f32 %v1423, %v9129
  %v9143 = vmul.f32 %v1424, %v9130
  %v9144 = vmul.f32 %v1425, %v9130
  %v9145 = vmul.f32 %v1426, %v9131
  %v9146 = vmul.f32 %v1427, %v9131
  %v9147 = vmul.f32 %v1428, %v9132
  %v9148 = vmul.f32 %v1429, %v9132
  %v9149 = vsel %vm532, %v9133, 0.0
  %9150 = vadd.xlane.f32.xlu0 %v9149
  %v9151 = vpop.xlane.xlu0 %9150
  %v9152 = vsel %vm536, %v9134, 0.0
  %9153 = vadd.xlane.f32.xlu0 %v9152
  %v9154 = vpop.xlane.xlu0 %9153
  %v9155 = vsel %vm532, %v9135, 0.0
  %9156 = vadd.xlane.f32.xlu0 %v9155
  %v9157 = vpop.xlane.xlu0 %9156
  %v9158 = vsel %vm536, %v9136, 0.0
  %9159 = vadd.xlane.f32.xlu0 %v9158
  %v9160 = vpop.xlane.xlu0 %9159
  %v9161 = vsel %vm532, %v9137, 0.0
  %9162 = vadd.xlane.f32.xlu0 %v9161
  %v9163 = vpop.xlane.xlu0 %9162
  %v9164 = vsel %vm536, %v9138, 0.0
  %9165 = vadd.xlane.f32.xlu0 %v9164
  %v9166 = vpop.xlane.xlu0 %9165
  %v9167 = vsel %vm532, %v9139, 0.0
  %9168 = vadd.xlane.f32.xlu0 %v9167
  %v9169 = vpop.xlane.xlu0 %9168
  %v9170 = vsel %vm536, %v9140, 0.0
  %9171 = vadd.xlane.f32.xlu0 %v9170
  %v9172 = vpop.xlane.xlu0 %9171
  %v9173 = vsel %vm532, %v9141, 0.0
  %9174 = vadd.xlane.f32.xlu0 %v9173
  %v9175 = vpop.xlane.xlu0 %9174
  %v9176 = vsel %vm536, %v9142, 0.0
  %9177 = vadd.xlane.f32.xlu0 %v9176
  %v9178 = vpop.xlane.xlu0 %9177
  %v9179 = vsel %vm532, %v9143, 0.0
  %9180 = vadd.xlane.f32.xlu0 %v9179
  %v9181 = vpop.xlane.xlu0 %9180
  %v9182 = vsel %vm536, %v9144, 0.0
  %9183 = vadd.xlane.f32.xlu0 %v9182
  %v9184 = vpop.xlane.xlu0 %9183
  %v9185 = vsel %vm532, %v9145, 0.0
  %9186 = vadd.xlane.f32.xlu0 %v9185
  %v9187 = vpop.xlane.xlu0 %9186
  %v9188 = vsel %vm536, %v9146, 0.0
  %9189 = vadd.xlane.f32.xlu0 %v9188
  %v9190 = vpop.xlane.xlu0 %9189
  %v9191 = vsel %vm532, %v9147, 0.0
  %9192 = vadd.xlane.f32.xlu0 %v9191
  %v9193 = vpop.xlane.xlu0 %9192
  %v9194 = vsel %vm536, %v9148, 0.0
  %9195 = vadd.xlane.f32.xlu0 %v9194
  %v9196 = vpop.xlane.xlu0 %9195
  %v9197 = vsel %vm4128, %v9151, %v9101
  %v9198 = vsel %vm4128, %v9154, %v9102
  %v9199 = vsel %vm4128, %v9157, %v9103
  %v9200 = vsel %vm4128, %v9160, %v9104
  %v9201 = vsel %vm4128, %v9163, %v9105
  %v9202 = vsel %vm4128, %v9166, %v9106
  %v9203 = vsel %vm4128, %v9169, %v9107
  %v9204 = vsel %vm4128, %v9172, %v9108
  %v9205 = vsel %vm4128, %v9175, %v9109
  %v9206 = vsel %vm4128, %v9178, %v9110
  %v9207 = vsel %vm4128, %v9181, %v9111
  %v9208 = vsel %vm4128, %v9184, %v9112
  %v9209 = vsel %vm4128, %v9187, %v9113
  %v9210 = vsel %vm4128, %v9190, %v9114
  %v9211 = vsel %vm4128, %v9193, %v9115
  %v9212 = vsel %vm4128, %v9196, %v9116
  %v9221 = vrot.slane %v9117, 7
  %v9222 = vrot.slane %v9118, 7
  %v9223 = vrot.slane %v9119, 7
  %v9224 = vrot.slane %v9120, 7
  %v9225 = vrot.slane %v9121, 7
  %v9226 = vrot.slane %v9122, 7
  %v9227 = vrot.slane %v9123, 7
  %v9228 = vrot.slane %v9124, 7
  %v9237 = vsel %vm4128, %v7077, %v9221
  %v9238 = vsel %vm4128, %v7078, %v9222
  %v9239 = vsel %vm4128, %v7079, %v9223
  %v9240 = vsel %vm4128, %v7080, %v9224
  %v9241 = vsel %vm4128, %v7081, %v9225
  %v9242 = vsel %vm4128, %v7082, %v9226
  %v9243 = vsel %vm4128, %v7083, %v9227
  %v9244 = vsel %vm4128, %v7084, %v9228
  %v9245 = vperm.slane %v7709, 2
  %v9246 = vperm.slane %v7710, 2
  %v9247 = vperm.slane %v7711, 2
  %v9248 = vperm.slane %v7712, 2
  %v9249 = vperm.slane %v7713, 2
  %v9250 = vperm.slane %v7714, 2
  %v9251 = vperm.slane %v7715, 2
  %v9252 = vperm.slane %v7716, 2
  %v9253 = vmul.f32 %v1414, %v9245
  %v9254 = vmul.f32 %v1415, %v9245
  %v9255 = vmul.f32 %v1416, %v9246
  %v9256 = vmul.f32 %v1417, %v9246
  %v9257 = vmul.f32 %v1418, %v9247
  %v9258 = vmul.f32 %v1419, %v9247
  %v9259 = vmul.f32 %v1420, %v9248
  %v9260 = vmul.f32 %v1421, %v9248
  %v9261 = vmul.f32 %v1422, %v9249
  %v9262 = vmul.f32 %v1423, %v9249
  %v9263 = vmul.f32 %v1424, %v9250
  %v9264 = vmul.f32 %v1425, %v9250
  %v9265 = vmul.f32 %v1426, %v9251
  %v9266 = vmul.f32 %v1427, %v9251
  %v9267 = vmul.f32 %v1428, %v9252
  %v9268 = vmul.f32 %v1429, %v9252
  %v9269 = vsel %vm532, %v9253, 0.0
  %9270 = vadd.xlane.f32.xlu0 %v9269
  %v9271 = vpop.xlane.xlu0 %9270
  %v9272 = vsel %vm536, %v9254, 0.0
  %9273 = vadd.xlane.f32.xlu0 %v9272
  %v9274 = vpop.xlane.xlu0 %9273
  %v9275 = vsel %vm532, %v9255, 0.0
  %9276 = vadd.xlane.f32.xlu0 %v9275
  %v9277 = vpop.xlane.xlu0 %9276
  %v9278 = vsel %vm536, %v9256, 0.0
  %9279 = vadd.xlane.f32.xlu0 %v9278
  %v9280 = vpop.xlane.xlu0 %9279
  %v9281 = vsel %vm532, %v9257, 0.0
  %9282 = vadd.xlane.f32.xlu0 %v9281
  %v9283 = vpop.xlane.xlu0 %9282
  %v9284 = vsel %vm536, %v9258, 0.0
  %9285 = vadd.xlane.f32.xlu0 %v9284
  %v9286 = vpop.xlane.xlu0 %9285
  %v9287 = vsel %vm532, %v9259, 0.0
  %9288 = vadd.xlane.f32.xlu0 %v9287
  %v9289 = vpop.xlane.xlu0 %9288
  %v9290 = vsel %vm536, %v9260, 0.0
  %9291 = vadd.xlane.f32.xlu0 %v9290
  %v9292 = vpop.xlane.xlu0 %9291
  %v9293 = vsel %vm532, %v9261, 0.0
  %9294 = vadd.xlane.f32.xlu0 %v9293
  %v9295 = vpop.xlane.xlu0 %9294
  %v9296 = vsel %vm536, %v9262, 0.0
  %9297 = vadd.xlane.f32.xlu0 %v9296
  %v9298 = vpop.xlane.xlu0 %9297
  %v9299 = vsel %vm532, %v9263, 0.0
  %9300 = vadd.xlane.f32.xlu0 %v9299
  %v9301 = vpop.xlane.xlu0 %9300
  %v9302 = vsel %vm536, %v9264, 0.0
  %9303 = vadd.xlane.f32.xlu0 %v9302
  %v9304 = vpop.xlane.xlu0 %9303
  %v9305 = vsel %vm532, %v9265, 0.0
  %9306 = vadd.xlane.f32.xlu0 %v9305
  %v9307 = vpop.xlane.xlu0 %9306
  %v9308 = vsel %vm536, %v9266, 0.0
  %9309 = vadd.xlane.f32.xlu0 %v9308
  %v9310 = vpop.xlane.xlu0 %9309
  %v9311 = vsel %vm532, %v9267, 0.0
  %9312 = vadd.xlane.f32.xlu0 %v9311
  %v9313 = vpop.xlane.xlu0 %9312
  %v9314 = vsel %vm536, %v9268, 0.0
  %9315 = vadd.xlane.f32.xlu0 %v9314
  %v9316 = vpop.xlane.xlu0 %9315
  %v9317 = vsel %vm4251, %v9271, %v9197
  %v9318 = vsel %vm4251, %v9274, %v9198
  %v9319 = vsel %vm4251, %v9277, %v9199
  %v9320 = vsel %vm4251, %v9280, %v9200
  %v9321 = vsel %vm4251, %v9283, %v9201
  %v9322 = vsel %vm4251, %v9286, %v9202
  %v9323 = vsel %vm4251, %v9289, %v9203
  %v9324 = vsel %vm4251, %v9292, %v9204
  %v9325 = vsel %vm4251, %v9295, %v9205
  %v9326 = vsel %vm4251, %v9298, %v9206
  %v9327 = vsel %vm4251, %v9301, %v9207
  %v9328 = vsel %vm4251, %v9304, %v9208
  %v9329 = vsel %vm4251, %v9307, %v9209
  %v9330 = vsel %vm4251, %v9310, %v9210
  %v9331 = vsel %vm4251, %v9313, %v9211
  %v9332 = vsel %vm4251, %v9316, %v9212
  %v9341 = vrot.slane %v9237, 7
  %v9342 = vrot.slane %v9238, 7
  %v9343 = vrot.slane %v9239, 7
  %v9344 = vrot.slane %v9240, 7
  %v9345 = vrot.slane %v9241, 7
  %v9346 = vrot.slane %v9242, 7
  %v9347 = vrot.slane %v9243, 7
  %v9348 = vrot.slane %v9244, 7
  %v9357 = vsel %vm4251, %v7725, %v9341
  %v9358 = vsel %vm4251, %v7726, %v9342
  %v9359 = vsel %vm4251, %v7727, %v9343
  %v9360 = vsel %vm4251, %v7728, %v9344
  %v9361 = vsel %vm4251, %v7729, %v9345
  %v9362 = vsel %vm4251, %v7730, %v9346
  %v9363 = vsel %vm4251, %v7731, %v9347
  %v9364 = vsel %vm4251, %v7732, %v9348
  %v9365 = vperm.slane %v8357, 3
  %v9366 = vperm.slane %v8358, 3
  %v9367 = vperm.slane %v8359, 3
  %v9368 = vperm.slane %v8360, 3
  %v9369 = vperm.slane %v8361, 3
  %v9370 = vperm.slane %v8362, 3
  %v9371 = vperm.slane %v8363, 3
  %v9372 = vperm.slane %v8364, 3
  %v9373 = vmul.f32 %v1414, %v9365
  %v9374 = vmul.f32 %v1415, %v9365
  %v9375 = vmul.f32 %v1416, %v9366
  %v9376 = vmul.f32 %v1417, %v9366
  %v9377 = vmul.f32 %v1418, %v9367
  %v9378 = vmul.f32 %v1419, %v9367
  %v9379 = vmul.f32 %v1420, %v9368
  %v9380 = vmul.f32 %v1421, %v9368
  %v9381 = vmul.f32 %v1422, %v9369
  %v9382 = vmul.f32 %v1423, %v9369
  %v9383 = vmul.f32 %v1424, %v9370
  %v9384 = vmul.f32 %v1425, %v9370
  %v9385 = vmul.f32 %v1426, %v9371
  %v9386 = vmul.f32 %v1427, %v9371
  %v9387 = vmul.f32 %v1428, %v9372
  %v9388 = vmul.f32 %v1429, %v9372
  %v9389 = vsel %vm532, %v9373, 0.0
  %9390 = vadd.xlane.f32.xlu0 %v9389
  %v9391 = vpop.xlane.xlu0 %9390
  %v9392 = vsel %vm536, %v9374, 0.0
  %9393 = vadd.xlane.f32.xlu0 %v9392
  %v9394 = vpop.xlane.xlu0 %9393
  %v9395 = vsel %vm532, %v9375, 0.0
  %9396 = vadd.xlane.f32.xlu0 %v9395
  %v9397 = vpop.xlane.xlu0 %9396
  %v9398 = vsel %vm536, %v9376, 0.0
  %9399 = vadd.xlane.f32.xlu0 %v9398
  %v9400 = vpop.xlane.xlu0 %9399
  %v9401 = vsel %vm532, %v9377, 0.0
  %9402 = vadd.xlane.f32.xlu0 %v9401
  %v9403 = vpop.xlane.xlu0 %9402
  %v9404 = vsel %vm536, %v9378, 0.0
  %9405 = vadd.xlane.f32.xlu0 %v9404
  %v9406 = vpop.xlane.xlu0 %9405
  %v9407 = vsel %vm532, %v9379, 0.0
  %9408 = vadd.xlane.f32.xlu0 %v9407
  %v9409 = vpop.xlane.xlu0 %9408
  %v9410 = vsel %vm536, %v9380, 0.0
  %9411 = vadd.xlane.f32.xlu0 %v9410
  %v9412 = vpop.xlane.xlu0 %9411
  %v9413 = vsel %vm532, %v9381, 0.0
  %9414 = vadd.xlane.f32.xlu0 %v9413
  %v9415 = vpop.xlane.xlu0 %9414
  %v9416 = vsel %vm536, %v9382, 0.0
  %9417 = vadd.xlane.f32.xlu0 %v9416
  %v9418 = vpop.xlane.xlu0 %9417
  %v9419 = vsel %vm532, %v9383, 0.0
  %9420 = vadd.xlane.f32.xlu0 %v9419
  %v9421 = vpop.xlane.xlu0 %9420
  %v9422 = vsel %vm536, %v9384, 0.0
  %9423 = vadd.xlane.f32.xlu0 %v9422
  %v9424 = vpop.xlane.xlu0 %9423
  %v9425 = vsel %vm532, %v9385, 0.0
  %9426 = vadd.xlane.f32.xlu0 %v9425
  %v9427 = vpop.xlane.xlu0 %9426
  %v9428 = vsel %vm536, %v9386, 0.0
  %9429 = vadd.xlane.f32.xlu0 %v9428
  %v9430 = vpop.xlane.xlu0 %9429
  %v9431 = vsel %vm532, %v9387, 0.0
  %9432 = vadd.xlane.f32.xlu0 %v9431
  %v9433 = vpop.xlane.xlu0 %9432
  %v9434 = vsel %vm536, %v9388, 0.0
  %9435 = vadd.xlane.f32.xlu0 %v9434
  %v9436 = vpop.xlane.xlu0 %9435
  %v9437 = vsel %vm4374, %v9391, %v9317
  %v9438 = vsel %vm4374, %v9394, %v9318
  %v9439 = vsel %vm4374, %v9397, %v9319
  %v9440 = vsel %vm4374, %v9400, %v9320
  %v9441 = vsel %vm4374, %v9403, %v9321
  %v9442 = vsel %vm4374, %v9406, %v9322
  %v9443 = vsel %vm4374, %v9409, %v9323
  %v9444 = vsel %vm4374, %v9412, %v9324
  %v9445 = vsel %vm4374, %v9415, %v9325
  %v9446 = vsel %vm4374, %v9418, %v9326
  %v9447 = vsel %vm4374, %v9421, %v9327
  %v9448 = vsel %vm4374, %v9424, %v9328
  %v9449 = vsel %vm4374, %v9427, %v9329
  %v9450 = vsel %vm4374, %v9430, %v9330
  %v9451 = vsel %vm4374, %v9433, %v9331
  %v9452 = vsel %vm4374, %v9436, %v9332
  %v9461 = vrot.slane %v9357, 7
  %v9462 = vrot.slane %v9358, 7
  %v9463 = vrot.slane %v9359, 7
  %v9464 = vrot.slane %v9360, 7
  %v9465 = vrot.slane %v9361, 7
  %v9466 = vrot.slane %v9362, 7
  %v9467 = vrot.slane %v9363, 7
  %v9468 = vrot.slane %v9364, 7
  %v9477 = vsel %vm4374, %v8373, %v9461
  %v9478 = vsel %vm4374, %v8374, %v9462
  %v9479 = vsel %vm4374, %v8375, %v9463
  %v9480 = vsel %vm4374, %v8376, %v9464
  %v9481 = vsel %vm4374, %v8377, %v9465
  %v9482 = vsel %vm4374, %v8378, %v9466
  %v9483 = vsel %vm4374, %v8379, %v9467
  %v9484 = vsel %vm4374, %v8380, %v9468
  %v9485 = vperm.slane %v9005, 4
  %v9486 = vperm.slane %v9006, 4
  %v9487 = vperm.slane %v9007, 4
  %v9488 = vperm.slane %v9008, 4
  %v9489 = vperm.slane %v9009, 4
  %v9490 = vperm.slane %v9010, 4
  %v9491 = vperm.slane %v9011, 4
  %v9492 = vperm.slane %v9012, 4
  %v9493 = vmul.f32 %v1414, %v9485
  %v9494 = vmul.f32 %v1415, %v9485
  %v9495 = vmul.f32 %v1416, %v9486
  %v9496 = vmul.f32 %v1417, %v9486
  %v9497 = vmul.f32 %v1418, %v9487
  %v9498 = vmul.f32 %v1419, %v9487
  %v9499 = vmul.f32 %v1420, %v9488
  %v9500 = vmul.f32 %v1421, %v9488
  %v9501 = vmul.f32 %v1422, %v9489
  %v9502 = vmul.f32 %v1423, %v9489
  %v9503 = vmul.f32 %v1424, %v9490
  %v9504 = vmul.f32 %v1425, %v9490
  %v9505 = vmul.f32 %v1426, %v9491
  %v9506 = vmul.f32 %v1427, %v9491
  %v9507 = vmul.f32 %v1428, %v9492
  %v9508 = vmul.f32 %v1429, %v9492
  %v9509 = vsel %vm532, %v9493, 0.0
  %9510 = vadd.xlane.f32.xlu0 %v9509
  %v9511 = vpop.xlane.xlu0 %9510
  %v9512 = vsel %vm536, %v9494, 0.0
  %9513 = vadd.xlane.f32.xlu0 %v9512
  %v9514 = vpop.xlane.xlu0 %9513
  %v9515 = vsel %vm532, %v9495, 0.0
  %9516 = vadd.xlane.f32.xlu0 %v9515
  %v9517 = vpop.xlane.xlu0 %9516
  %v9518 = vsel %vm536, %v9496, 0.0
  %9519 = vadd.xlane.f32.xlu0 %v9518
  %v9520 = vpop.xlane.xlu0 %9519
  %v9521 = vsel %vm532, %v9497, 0.0
  %9522 = vadd.xlane.f32.xlu0 %v9521
  %v9523 = vpop.xlane.xlu0 %9522
  %v9524 = vsel %vm536, %v9498, 0.0
  %9525 = vadd.xlane.f32.xlu0 %v9524
  %v9526 = vpop.xlane.xlu0 %9525
  %v9527 = vsel %vm532, %v9499, 0.0
  %9528 = vadd.xlane.f32.xlu0 %v9527
  %v9529 = vpop.xlane.xlu0 %9528
  %v9530 = vsel %vm536, %v9500, 0.0
  %9531 = vadd.xlane.f32.xlu0 %v9530
  %v9532 = vpop.xlane.xlu0 %9531
  %v9533 = vsel %vm532, %v9501, 0.0
  %9534 = vadd.xlane.f32.xlu0 %v9533
  %v9535 = vpop.xlane.xlu0 %9534
  %v9536 = vsel %vm536, %v9502, 0.0
  %9537 = vadd.xlane.f32.xlu0 %v9536
  %v9538 = vpop.xlane.xlu0 %9537
  %v9539 = vsel %vm532, %v9503, 0.0
  %9540 = vadd.xlane.f32.xlu0 %v9539
  %v9541 = vpop.xlane.xlu0 %9540
  %v9542 = vsel %vm536, %v9504, 0.0
  %9543 = vadd.xlane.f32.xlu0 %v9542
  %v9544 = vpop.xlane.xlu0 %9543
  %v9545 = vsel %vm532, %v9505, 0.0
  %9546 = vadd.xlane.f32.xlu0 %v9545
  %v9547 = vpop.xlane.xlu0 %9546
  %v9548 = vsel %vm536, %v9506, 0.0
  %9549 = vadd.xlane.f32.xlu0 %v9548
  %v9550 = vpop.xlane.xlu0 %9549
  %v9551 = vsel %vm532, %v9507, 0.0
  %9552 = vadd.xlane.f32.xlu0 %v9551
  %v9553 = vpop.xlane.xlu0 %9552
  %v9554 = vsel %vm536, %v9508, 0.0
  %9555 = vadd.xlane.f32.xlu0 %v9554
  %v9556 = vpop.xlane.xlu0 %9555
  %v9557 = vsel %vm4497, %v9511, %v9437
  %v9558 = vsel %vm4497, %v9514, %v9438
  %v9559 = vsel %vm4497, %v9517, %v9439
  %v9560 = vsel %vm4497, %v9520, %v9440
  %v9561 = vsel %vm4497, %v9523, %v9441
  %v9562 = vsel %vm4497, %v9526, %v9442
  %v9563 = vsel %vm4497, %v9529, %v9443
  %v9564 = vsel %vm4497, %v9532, %v9444
  %v9565 = vsel %vm4497, %v9535, %v9445
  %v9566 = vsel %vm4497, %v9538, %v9446
  %v9567 = vsel %vm4497, %v9541, %v9447
  %v9568 = vsel %vm4497, %v9544, %v9448
  %v9569 = vsel %vm4497, %v9547, %v9449
  %v9570 = vsel %vm4497, %v9550, %v9450
  %v9571 = vsel %vm4497, %v9553, %v9451
  %v9572 = vsel %vm4497, %v9556, %v9452
  %v9581 = vrot.slane %v9477, 7
  %v9582 = vrot.slane %v9478, 7
  %v9583 = vrot.slane %v9479, 7
  %v9584 = vrot.slane %v9480, 7
  %v9585 = vrot.slane %v9481, 7
  %v9586 = vrot.slane %v9482, 7
  %v9587 = vrot.slane %v9483, 7
  %v9588 = vrot.slane %v9484, 7
  %v9597 = vsel %vm4497, %v9021, %v9581
  %v9598 = vsel %vm4497, %v9022, %v9582
  %v9599 = vsel %vm4497, %v9023, %v9583
  %v9600 = vsel %vm4497, %v9024, %v9584
  %v9601 = vsel %vm4497, %v9025, %v9585
  %v9602 = vsel %vm4497, %v9026, %v9586
  %v9603 = vsel %vm4497, %v9027, %v9587
  %v9604 = vsel %vm4497, %v9028, %v9588
  %v9605 = vsub.f32 0.0, %v9557
  %v9606 = vsub.f32 0.0, %v9558
  %v9607 = vsub.f32 0.0, %v9559
  %v9608 = vsub.f32 0.0, %v9560
  %v9609 = vsub.f32 0.0, %v9561
  %v9610 = vsub.f32 0.0, %v9562
  %v9611 = vsub.f32 0.0, %v9563
  %v9612 = vsub.f32 0.0, %v9564
  %v9613 = vsub.f32 0.0, %v9565
  %v9614 = vsub.f32 0.0, %v9566
  %v9615 = vsub.f32 0.0, %v9567
  %v9616 = vsub.f32 0.0, %v9568
  %v9617 = vsub.f32 0.0, %v9569
  %v9618 = vsub.f32 0.0, %v9570
  %v9619 = vsub.f32 0.0, %v9571
  %v9620 = vsub.f32 0.0, %v9572
  %v9621 = vmul.f32 %v9605, 0.02
  %v9622 = vmul.f32 %v9606, 0.02
  %v9623 = vmul.f32 %v9607, 0.02
  %v9624 = vmul.f32 %v9608, 0.02
  %v9625 = vmul.f32 %v9609, 0.02
  %v9626 = vmul.f32 %v9610, 0.02
  %v9627 = vmul.f32 %v9611, 0.02
  %v9628 = vmul.f32 %v9612, 0.02
  %v9629 = vmul.f32 %v9613, 0.02
  %v9630 = vmul.f32 %v9614, 0.02
  %v9631 = vmul.f32 %v9615, 0.02
  %v9632 = vmul.f32 %v9616, 0.02
  %v9633 = vmul.f32 %v9617, 0.02
  %v9634 = vmul.f32 %v9618, 0.02
  %v9635 = vmul.f32 %v9619, 0.02
  %v9636 = vmul.f32 %v9620, 0.02
  %v9637 = vadd.f32 %v9621, 1.0
  %v9638 = vadd.f32 %v9622, 1.0
  %v9639 = vadd.f32 %v9623, 1.0
  %v9640 = vadd.f32 %v9624, 1.0
  %v9641 = vadd.f32 %v9625, 1.0
  %v9642 = vadd.f32 %v9626, 1.0
  %v9643 = vadd.f32 %v9627, 1.0
  %v9644 = vadd.f32 %v9628, 1.0
  %v9645 = vadd.f32 %v9629, 1.0
  %v9646 = vadd.f32 %v9630, 1.0
  %v9647 = vadd.f32 %v9631, 1.0
  %v9648 = vadd.f32 %v9632, 1.0
  %v9649 = vadd.f32 %v9633, 1.0
  %v9650 = vadd.f32 %v9634, 1.0
  %v9651 = vadd.f32 %v9635, 1.0
  %v9652 = vadd.f32 %v9636, 1.0
  %v9653 = vmul.f32 %v9597, 0.01
  %v9654 = vmul.f32 %v9598, 0.01
  %v9655 = vmul.f32 %v9599, 0.01
  %v9656 = vmul.f32 %v9600, 0.01
  %v9657 = vmul.f32 %v9601, 0.01
  %v9658 = vmul.f32 %v9602, 0.01
  %v9659 = vmul.f32 %v9603, 0.01
  %v9660 = vmul.f32 %v9604, 0.01
  %v9661 = vperm.slane %v9653, 4
  %v9662 = vperm.slane %v9654, 4
  %v9663 = vperm.slane %v9655, 4
  %v9664 = vperm.slane %v9656, 4
  %v9665 = vperm.slane %v9657, 4
  %v9666 = vperm.slane %v9658, 4
  %v9667 = vperm.slane %v9659, 4
  %v9668 = vperm.slane %v9660, 4
  %v9669 = vadd.f32 %v9637, %v9661
  %v9670 = vadd.f32 %v9638, %v9661
  %v9671 = vadd.f32 %v9639, %v9662
  %v9672 = vadd.f32 %v9640, %v9662
  %v9673 = vadd.f32 %v9641, %v9663
  %v9674 = vadd.f32 %v9642, %v9663
  %v9675 = vadd.f32 %v9643, %v9664
  %v9676 = vadd.f32 %v9644, %v9664
  %v9677 = vadd.f32 %v9645, %v9665
  %v9678 = vadd.f32 %v9646, %v9665
  %v9679 = vadd.f32 %v9647, %v9666
  %v9680 = vadd.f32 %v9648, %v9666
  %v9681 = vadd.f32 %v9649, %v9667
  %v9682 = vadd.f32 %v9650, %v9667
  %v9683 = vadd.f32 %v9651, %v9668
  %v9684 = vadd.f32 %v9652, %v9668
  %v9685 = vperm.slane %v9597, 4
  %v9686 = vperm.slane %v9598, 4
  %v9687 = vperm.slane %v9599, 4
  %v9688 = vperm.slane %v9600, 4
  %v9689 = vperm.slane %v9601, 4
  %v9690 = vperm.slane %v9602, 4
  %v9691 = vperm.slane %v9603, 4
  %v9692 = vperm.slane %v9604, 4
  %v9693 = vmul.f32 %v4642, %v9685
  %v9694 = vmul.f32 %v4643, %v9685
  %v9695 = vmul.f32 %v4644, %v9686
  %v9696 = vmul.f32 %v4645, %v9686
  %v9697 = vmul.f32 %v4646, %v9687
  %v9698 = vmul.f32 %v4647, %v9687
  %v9699 = vmul.f32 %v4648, %v9688
  %v9700 = vmul.f32 %v4649, %v9688
  %v9701 = vmul.f32 %v4650, %v9689
  %v9702 = vmul.f32 %v4651, %v9689
  %v9703 = vmul.f32 %v4652, %v9690
  %v9704 = vmul.f32 %v4653, %v9690
  %v9705 = vmul.f32 %v4654, %v9691
  %v9706 = vmul.f32 %v4655, %v9691
  %v9707 = vmul.f32 %v4656, %v9692
  %v9708 = vmul.f32 %v4657, %v9692
  %v9709 = vadd.f32 %v9637, %v9693
  %v9710 = vadd.f32 %v9638, %v9694
  %v9711 = vadd.f32 %v9639, %v9695
  %v9712 = vadd.f32 %v9640, %v9696
  %v9713 = vadd.f32 %v9641, %v9697
  %v9714 = vadd.f32 %v9642, %v9698
  %v9715 = vadd.f32 %v9643, %v9699
  %v9716 = vadd.f32 %v9644, %v9700
  %v9717 = vadd.f32 %v9645, %v9701
  %v9718 = vadd.f32 %v9646, %v9702
  %v9719 = vadd.f32 %v9647, %v9703
  %v9720 = vadd.f32 %v9648, %v9704
  %v9721 = vadd.f32 %v9649, %v9705
  %v9722 = vadd.f32 %v9650, %v9706
  %v9723 = vadd.f32 %v9651, %v9707
  %v9724 = vadd.f32 %v9652, %v9708
  %v9725 = vmul.f32 %v9669, %v9669
  %v9726 = vmul.f32 %v9670, %v9670
  %v9727 = vmul.f32 %v9671, %v9671
  %v9728 = vmul.f32 %v9672, %v9672
  %v9729 = vmul.f32 %v9673, %v9673
  %v9730 = vmul.f32 %v9674, %v9674
  %v9731 = vmul.f32 %v9675, %v9675
  %v9732 = vmul.f32 %v9676, %v9676
  %v9733 = vmul.f32 %v9677, %v9677
  %v9734 = vmul.f32 %v9678, %v9678
  %v9735 = vmul.f32 %v9679, %v9679
  %v9736 = vmul.f32 %v9680, %v9680
  %v9737 = vmul.f32 %v9681, %v9681
  %v9738 = vmul.f32 %v9682, %v9682
  %v9739 = vmul.f32 %v9683, %v9683
  %v9740 = vmul.f32 %v9684, %v9684
  %v9741 = vmul.f32 %v9725, %v1480
  %v9742 = vmul.f32 %v9726, %v1483
  %v9743 = vmul.f32 %v9727, %v1486
  %v9744 = vmul.f32 %v9728, %v1489
  %v9745 = vmul.f32 %v9729, %v1492
  %v9746 = vmul.f32 %v9730, %v1495
  %v9747 = vmul.f32 %v9731, %v1498
  %v9748 = vmul.f32 %v9732, %v1501
  %v9749 = vmul.f32 %v9733, %v1504
  %v9750 = vmul.f32 %v9734, %v1507
  %v9751 = vmul.f32 %v9735, %v1510
  %v9752 = vmul.f32 %v9736, %v1513
  %v9753 = vmul.f32 %v9737, %v1516
  %v9754 = vmul.f32 %v9738, %v1519
  %v9755 = vmul.f32 %v9739, %v1522
  %v9756 = vmul.f32 %v9740, %v1525
  %v9757 = vmul.f32 %v9669, 2.0
  %v9758 = vmul.f32 %v9670, 2.0
  %v9759 = vmul.f32 %v9671, 2.0
  %v9760 = vmul.f32 %v9672, 2.0
  %v9761 = vmul.f32 %v9673, 2.0
  %v9762 = vmul.f32 %v9674, 2.0
  %v9763 = vmul.f32 %v9675, 2.0
  %v9764 = vmul.f32 %v9676, 2.0
  %v9765 = vmul.f32 %v9677, 2.0
  %v9766 = vmul.f32 %v9678, 2.0
  %v9767 = vmul.f32 %v9679, 2.0
  %v9768 = vmul.f32 %v9680, 2.0
  %v9769 = vmul.f32 %v9681, 2.0
  %v9770 = vmul.f32 %v9682, 2.0
  %v9771 = vmul.f32 %v9683, 2.0
  %v9772 = vmul.f32 %v9684, 2.0
  %v9773 = vmul.f32 %v9757, %v4626
  %v9774 = vmul.f32 %v9758, %v4627
  %v9775 = vmul.f32 %v9759, %v4628
  %v9776 = vmul.f32 %v9760, %v4629
  %v9777 = vmul.f32 %v9761, %v4630
  %v9778 = vmul.f32 %v9762, %v4631
  %v9779 = vmul.f32 %v9763, %v4632
  %v9780 = vmul.f32 %v9764, %v4633
  %v9781 = vmul.f32 %v9765, %v4634
  %v9782 = vmul.f32 %v9766, %v4635
  %v9783 = vmul.f32 %v9767, %v4636
  %v9784 = vmul.f32 %v9768, %v4637
  %v9785 = vmul.f32 %v9769, %v4638
  %v9786 = vmul.f32 %v9770, %v4639
  %v9787 = vmul.f32 %v9771, %v4640
  %v9788 = vmul.f32 %v9772, %v4641
  %v9789 = vmul.f32 %v9773, %v9605
  %v9790 = vmul.f32 %v9774, %v9606
  %v9791 = vmul.f32 %v9775, %v9607
  %v9792 = vmul.f32 %v9776, %v9608
  %v9793 = vmul.f32 %v9777, %v9609
  %v9794 = vmul.f32 %v9778, %v9610
  %v9795 = vmul.f32 %v9779, %v9611
  %v9796 = vmul.f32 %v9780, %v9612
  %v9797 = vmul.f32 %v9781, %v9613
  %v9798 = vmul.f32 %v9782, %v9614
  %v9799 = vmul.f32 %v9783, %v9615
  %v9800 = vmul.f32 %v9784, %v9616
  %v9801 = vmul.f32 %v9785, %v9617
  %v9802 = vmul.f32 %v9786, %v9618
  %v9803 = vmul.f32 %v9787, %v9619
  %v9804 = vmul.f32 %v9788, %v9620
  %v9805 = vadd.f32 %v9741, %v9789
  %v9806 = vadd.f32 %v9742, %v9790
  %v9807 = vadd.f32 %v9743, %v9791
  %v9808 = vadd.f32 %v9744, %v9792
  %v9809 = vadd.f32 %v9745, %v9793
  %v9810 = vadd.f32 %v9746, %v9794
  %v9811 = vadd.f32 %v9747, %v9795
  %v9812 = vadd.f32 %v9748, %v9796
  %v9813 = vadd.f32 %v9749, %v9797
  %v9814 = vadd.f32 %v9750, %v9798
  %v9815 = vadd.f32 %v9751, %v9799
  %v9816 = vadd.f32 %v9752, %v9800
  %v9817 = vadd.f32 %v9753, %v9801
  %v9818 = vadd.f32 %v9754, %v9802
  %v9819 = vadd.f32 %v9755, %v9803
  %v9820 = vadd.f32 %v9756, %v9804
  %v9821 = vmul.f32 %v4794, %v9685
  %v9822 = vmul.f32 %v4795, %v9685
  %v9823 = vmul.f32 %v4796, %v9686
  %v9824 = vmul.f32 %v4797, %v9686
  %v9825 = vmul.f32 %v4798, %v9687
  %v9826 = vmul.f32 %v4799, %v9687
  %v9827 = vmul.f32 %v4800, %v9688
  %v9828 = vmul.f32 %v4801, %v9688
  %v9829 = vmul.f32 %v4802, %v9689
  %v9830 = vmul.f32 %v4803, %v9689
  %v9831 = vmul.f32 %v4804, %v9690
  %v9832 = vmul.f32 %v4805, %v9690
  %v9833 = vmul.f32 %v4806, %v9691
  %v9834 = vmul.f32 %v4807, %v9691
  %v9835 = vmul.f32 %v4808, %v9692
  %v9836 = vmul.f32 %v4809, %v9692
  %v9837 = vadd.f32 %v9805, %v9821
  %v9838 = vadd.f32 %v9806, %v9822
  %v9839 = vadd.f32 %v9807, %v9823
  %v9840 = vadd.f32 %v9808, %v9824
  %v9841 = vadd.f32 %v9809, %v9825
  %v9842 = vadd.f32 %v9810, %v9826
  %v9843 = vadd.f32 %v9811, %v9827
  %v9844 = vadd.f32 %v9812, %v9828
  %v9845 = vadd.f32 %v9813, %v9829
  %v9846 = vadd.f32 %v9814, %v9830
  %v9847 = vadd.f32 %v9815, %v9831
  %v9848 = vadd.f32 %v9816, %v9832
  %v9849 = vadd.f32 %v9817, %v9833
  %v9850 = vadd.f32 %v9818, %v9834
  %v9851 = vadd.f32 %v9819, %v9835
  %v9852 = vadd.f32 %v9820, %v9836
  %v9853 = vmax.f32 %v9837, 0.0
  %v9854 = vmax.f32 %v9838, 0.0
  %v9855 = vmax.f32 %v9839, 0.0
  %v9856 = vmax.f32 %v9840, 0.0
  %v9857 = vmax.f32 %v9841, 0.0
  %v9858 = vmax.f32 %v9842, 0.0
  %v9859 = vmax.f32 %v9843, 0.0
  %v9860 = vmax.f32 %v9844, 0.0
  %v9861 = vmax.f32 %v9845, 0.0
  %v9862 = vmax.f32 %v9846, 0.0
  %v9863 = vmax.f32 %v9847, 0.0
  %v9864 = vmax.f32 %v9848, 0.0
  %v9865 = vmax.f32 %v9849, 0.0
  %v9866 = vmax.f32 %v9850, 0.0
  %v9867 = vmax.f32 %v9851, 0.0
  %v9868 = vmax.f32 %v9852, 0.0
  %v9869 = vrsqrt.pop %v9853
  %v9870 = vmul.f32 %v9869, %v9853
  %v9871 = vmul.f32 %v9870, %v9869
  %v9872 = vmul.f32 0.5, %v9871
  %v9873 = vsub.f32 1.5, %v9872
  %v9874 = vmul.f32 %v9869, %v9873
  %v9875 = vmul.f32 %v9853, %v9874
  %vm9876 = vcmp.eq.f32.partialorder %v9853, inf
  %v9877 = vsel %vm9876, %v9853, %v9875
  %vm9878 = vcmp.eq.f32.partialorder %v9853, 0.0
  %v9879 = vand.u32 %v9853, 2147483648
  %v9880 = vsel %vm9878, %v9879, %v9877
  %v9881 = vrsqrt.pop %v9854
  %v9882 = vmul.f32 %v9881, %v9854
  %v9883 = vmul.f32 %v9882, %v9881
  %v9884 = vmul.f32 0.5, %v9883
  %v9885 = vsub.f32 1.5, %v9884
  %v9886 = vmul.f32 %v9881, %v9885
  %v9887 = vmul.f32 %v9854, %v9886
  %vm9888 = vcmp.eq.f32.partialorder %v9854, inf
  %v9889 = vsel %vm9888, %v9854, %v9887
  %vm9890 = vcmp.eq.f32.partialorder %v9854, 0.0
  %v9891 = vand.u32 %v9854, 2147483648
  %v9892 = vsel %vm9890, %v9891, %v9889
  %v9893 = vrsqrt.pop %v9855
  %v9894 = vmul.f32 %v9893, %v9855
  %v9895 = vmul.f32 %v9894, %v9893
  %v9896 = vmul.f32 0.5, %v9895
  %v9897 = vsub.f32 1.5, %v9896
  %v9898 = vmul.f32 %v9893, %v9897
  %v9899 = vmul.f32 %v9855, %v9898
  %vm9900 = vcmp.eq.f32.partialorder %v9855, inf
  %v9901 = vsel %vm9900, %v9855, %v9899
  %vm9902 = vcmp.eq.f32.partialorder %v9855, 0.0
  %v9903 = vand.u32 %v9855, 2147483648
  %v9904 = vsel %vm9902, %v9903, %v9901
  %v9905 = vrsqrt.pop %v9856
  %v9906 = vmul.f32 %v9905, %v9856
  %v9907 = vmul.f32 %v9906, %v9905
  %v9908 = vmul.f32 0.5, %v9907
  %v9909 = vsub.f32 1.5, %v9908
  %v9910 = vmul.f32 %v9905, %v9909
  %v9911 = vmul.f32 %v9856, %v9910
  %vm9912 = vcmp.eq.f32.partialorder %v9856, inf
  %v9913 = vsel %vm9912, %v9856, %v9911
  %vm9914 = vcmp.eq.f32.partialorder %v9856, 0.0
  %v9915 = vand.u32 %v9856, 2147483648
  %v9916 = vsel %vm9914, %v9915, %v9913
  %v9917 = vrsqrt.pop %v9857
  %v9918 = vmul.f32 %v9917, %v9857
  %v9919 = vmul.f32 %v9918, %v9917
  %v9920 = vmul.f32 0.5, %v9919
  %v9921 = vsub.f32 1.5, %v9920
  %v9922 = vmul.f32 %v9917, %v9921
  %v9923 = vmul.f32 %v9857, %v9922
  %vm9924 = vcmp.eq.f32.partialorder %v9857, inf
  %v9925 = vsel %vm9924, %v9857, %v9923
  %vm9926 = vcmp.eq.f32.partialorder %v9857, 0.0
  %v9927 = vand.u32 %v9857, 2147483648
  %v9928 = vsel %vm9926, %v9927, %v9925
  %v9929 = vrsqrt.pop %v9858
  %v9930 = vmul.f32 %v9929, %v9858
  %v9931 = vmul.f32 %v9930, %v9929
  %v9932 = vmul.f32 0.5, %v9931
  %v9933 = vsub.f32 1.5, %v9932
  %v9934 = vmul.f32 %v9929, %v9933
  %v9935 = vmul.f32 %v9858, %v9934
  %vm9936 = vcmp.eq.f32.partialorder %v9858, inf
  %v9937 = vsel %vm9936, %v9858, %v9935
  %vm9938 = vcmp.eq.f32.partialorder %v9858, 0.0
  %v9939 = vand.u32 %v9858, 2147483648
  %v9940 = vsel %vm9938, %v9939, %v9937
  %v9941 = vrsqrt.pop %v9859
  %v9942 = vmul.f32 %v9941, %v9859
  %v9943 = vmul.f32 %v9942, %v9941
  %v9944 = vmul.f32 0.5, %v9943
  %v9945 = vsub.f32 1.5, %v9944
  %v9946 = vmul.f32 %v9941, %v9945
  %v9947 = vmul.f32 %v9859, %v9946
  %vm9948 = vcmp.eq.f32.partialorder %v9859, inf
  %v9949 = vsel %vm9948, %v9859, %v9947
  %vm9950 = vcmp.eq.f32.partialorder %v9859, 0.0
  %v9951 = vand.u32 %v9859, 2147483648
  %v9952 = vsel %vm9950, %v9951, %v9949
  %v9953 = vrsqrt.pop %v9860
  %v9954 = vmul.f32 %v9953, %v9860
  %v9955 = vmul.f32 %v9954, %v9953
  %v9956 = vmul.f32 0.5, %v9955
  %v9957 = vsub.f32 1.5, %v9956
  %v9958 = vmul.f32 %v9953, %v9957
  %v9959 = vmul.f32 %v9860, %v9958
  %vm9960 = vcmp.eq.f32.partialorder %v9860, inf
  %v9961 = vsel %vm9960, %v9860, %v9959
  %vm9962 = vcmp.eq.f32.partialorder %v9860, 0.0
  %v9963 = vand.u32 %v9860, 2147483648
  %v9964 = vsel %vm9962, %v9963, %v9961
  %v9965 = vrsqrt.pop %v9861
  %v9966 = vmul.f32 %v9965, %v9861
  %v9967 = vmul.f32 %v9966, %v9965
  %v9968 = vmul.f32 0.5, %v9967
  %v9969 = vsub.f32 1.5, %v9968
  %v9970 = vmul.f32 %v9965, %v9969
  %v9971 = vmul.f32 %v9861, %v9970
  %vm9972 = vcmp.eq.f32.partialorder %v9861, inf
  %v9973 = vsel %vm9972, %v9861, %v9971
  %vm9974 = vcmp.eq.f32.partialorder %v9861, 0.0
  %v9975 = vand.u32 %v9861, 2147483648
  %v9976 = vsel %vm9974, %v9975, %v9973
  %v9977 = vrsqrt.pop %v9862
  %v9978 = vmul.f32 %v9977, %v9862
  %v9979 = vmul.f32 %v9978, %v9977
  %v9980 = vmul.f32 0.5, %v9979
  %v9981 = vsub.f32 1.5, %v9980
  %v9982 = vmul.f32 %v9977, %v9981
  %v9983 = vmul.f32 %v9862, %v9982
  %vm9984 = vcmp.eq.f32.partialorder %v9862, inf
  %v9985 = vsel %vm9984, %v9862, %v9983
  %vm9986 = vcmp.eq.f32.partialorder %v9862, 0.0
  %v9987 = vand.u32 %v9862, 2147483648
  %v9988 = vsel %vm9986, %v9987, %v9985
  %v9989 = vrsqrt.pop %v9863
  %v9990 = vmul.f32 %v9989, %v9863
  %v9991 = vmul.f32 %v9990, %v9989
  %v9992 = vmul.f32 0.5, %v9991
  %v9993 = vsub.f32 1.5, %v9992
  %v9994 = vmul.f32 %v9989, %v9993
  %v9995 = vmul.f32 %v9863, %v9994
  %vm9996 = vcmp.eq.f32.partialorder %v9863, inf
  %v9997 = vsel %vm9996, %v9863, %v9995
  %vm9998 = vcmp.eq.f32.partialorder %v9863, 0.0
  %v9999 = vand.u32 %v9863, 2147483648
  %v10000 = vsel %vm9998, %v9999, %v9997
  %v10001 = vrsqrt.pop %v9864
  %v10002 = vmul.f32 %v10001, %v9864
  %v10003 = vmul.f32 %v10002, %v10001
  %v10004 = vmul.f32 0.5, %v10003
  %v10005 = vsub.f32 1.5, %v10004
  %v10006 = vmul.f32 %v10001, %v10005
  %v10007 = vmul.f32 %v9864, %v10006
  %vm10008 = vcmp.eq.f32.partialorder %v9864, inf
  %v10009 = vsel %vm10008, %v9864, %v10007
  %vm10010 = vcmp.eq.f32.partialorder %v9864, 0.0
  %v10011 = vand.u32 %v9864, 2147483648
  %v10012 = vsel %vm10010, %v10011, %v10009
  %v10013 = vrsqrt.pop %v9865
  %v10014 = vmul.f32 %v10013, %v9865
  %v10015 = vmul.f32 %v10014, %v10013
  %v10016 = vmul.f32 0.5, %v10015
  %v10017 = vsub.f32 1.5, %v10016
  %v10018 = vmul.f32 %v10013, %v10017
  %v10019 = vmul.f32 %v9865, %v10018
  %vm10020 = vcmp.eq.f32.partialorder %v9865, inf
  %v10021 = vsel %vm10020, %v9865, %v10019
  %vm10022 = vcmp.eq.f32.partialorder %v9865, 0.0
  %v10023 = vand.u32 %v9865, 2147483648
  %v10024 = vsel %vm10022, %v10023, %v10021
  %v10025 = vrsqrt.pop %v9866
  %v10026 = vmul.f32 %v10025, %v9866
  %v10027 = vmul.f32 %v10026, %v10025
  %v10028 = vmul.f32 0.5, %v10027
  %v10029 = vsub.f32 1.5, %v10028
  %v10030 = vmul.f32 %v10025, %v10029
  %v10031 = vmul.f32 %v9866, %v10030
  %vm10032 = vcmp.eq.f32.partialorder %v9866, inf
  %v10033 = vsel %vm10032, %v9866, %v10031
  %vm10034 = vcmp.eq.f32.partialorder %v9866, 0.0
  %v10035 = vand.u32 %v9866, 2147483648
  %v10036 = vsel %vm10034, %v10035, %v10033
  %v10037 = vrsqrt.pop %v9867
  %v10038 = vmul.f32 %v10037, %v9867
  %v10039 = vmul.f32 %v10038, %v10037
  %v10040 = vmul.f32 0.5, %v10039
  %v10041 = vsub.f32 1.5, %v10040
  %v10042 = vmul.f32 %v10037, %v10041
  %v10043 = vmul.f32 %v9867, %v10042
  %vm10044 = vcmp.eq.f32.partialorder %v9867, inf
  %v10045 = vsel %vm10044, %v9867, %v10043
  %vm10046 = vcmp.eq.f32.partialorder %v9867, 0.0
  %v10047 = vand.u32 %v9867, 2147483648
  %v10048 = vsel %vm10046, %v10047, %v10045
  %v10049 = vrsqrt.pop %v9868
  %v10050 = vmul.f32 %v10049, %v9868
  %v10051 = vmul.f32 %v10050, %v10049
  %v10052 = vmul.f32 0.5, %v10051
  %v10053 = vsub.f32 1.5, %v10052
  %v10054 = vmul.f32 %v10049, %v10053
  %v10055 = vmul.f32 %v9868, %v10054
  %vm10056 = vcmp.eq.f32.partialorder %v9868, inf
  %v10057 = vsel %vm10056, %v9868, %v10055
  %vm10058 = vcmp.eq.f32.partialorder %v9868, 0.0
  %v10059 = vand.u32 %v9868, 2147483648
  %v10060 = vsel %vm10058, %v10059, %v10057
  %v10061 = vadd.f32 %v9709, 1e-05
  %v10062 = vadd.f32 %v9710, 1e-05
  %v10063 = vadd.f32 %v9711, 1e-05
  %v10064 = vadd.f32 %v9712, 1e-05
  %v10065 = vadd.f32 %v9713, 1e-05
  %v10066 = vadd.f32 %v9714, 1e-05
  %v10067 = vadd.f32 %v9715, 1e-05
  %v10068 = vadd.f32 %v9716, 1e-05
  %v10069 = vadd.f32 %v9717, 1e-05
  %v10070 = vadd.f32 %v9718, 1e-05
  %v10071 = vadd.f32 %v9719, 1e-05
  %v10072 = vadd.f32 %v9720, 1e-05
  %v10073 = vadd.f32 %v9721, 1e-05
  %v10074 = vadd.f32 %v9722, 1e-05
  %v10075 = vadd.f32 %v9723, 1e-05
  %v10076 = vadd.f32 %v9724, 1e-05
  %v10077 = vrcp.pop %v10061
  %v10078 = vmul.f32 %v10061, %v10077
  %v10079 = vsub.f32 1.0, %v10078
  %v10080 = vmul.f32 %v10077, %v10079
  %v10081 = vadd.f32 %v10077, %v10080
  %vm10082 = vweird.f32 %v10061
  %vm10083 = vweird.f32 %v10077
  %vm10084 = vmor %vm10082, %vm10083
  %v10085 = vsel %vm10084, %v10077, %v10081
  %v10086 = vand.u32 2147483647, %v10061
  %vm10087 = vcmp.eq.f32.partialorder %v10086, 8.507059e+37
  %v10088 = vand.u32 %v10061, 2147483648
  %v10089 = vor.u32 1.1754944e-38, %v10088
  %v10090 = vsel %vm10087, %v10089, %v10085
  %v10091 = vmul.f32 %v9880, %v10090
  %v10092 = vrcp.pop %v10062
  %v10093 = vmul.f32 %v10062, %v10092
  %v10094 = vsub.f32 1.0, %v10093
  %v10095 = vmul.f32 %v10092, %v10094
  %v10096 = vadd.f32 %v10092, %v10095
  %vm10097 = vweird.f32 %v10062
  %vm10098 = vweird.f32 %v10092
  %vm10099 = vmor %vm10097, %vm10098
  %v10100 = vsel %vm10099, %v10092, %v10096
  %v10101 = vand.u32 2147483647, %v10062
  %vm10102 = vcmp.eq.f32.partialorder %v10101, 8.507059e+37
  %v10103 = vand.u32 %v10062, 2147483648
  %v10104 = vor.u32 1.1754944e-38, %v10103
  %v10105 = vsel %vm10102, %v10104, %v10100
  %v10106 = vmul.f32 %v9892, %v10105
  %v10107 = vrcp.pop %v10063
  %v10108 = vmul.f32 %v10063, %v10107
  %v10109 = vsub.f32 1.0, %v10108
  %v10110 = vmul.f32 %v10107, %v10109
  %v10111 = vadd.f32 %v10107, %v10110
  %vm10112 = vweird.f32 %v10063
  %vm10113 = vweird.f32 %v10107
  %vm10114 = vmor %vm10112, %vm10113
  %v10115 = vsel %vm10114, %v10107, %v10111
  %v10116 = vand.u32 2147483647, %v10063
  %vm10117 = vcmp.eq.f32.partialorder %v10116, 8.507059e+37
  %v10118 = vand.u32 %v10063, 2147483648
  %v10119 = vor.u32 1.1754944e-38, %v10118
  %v10120 = vsel %vm10117, %v10119, %v10115
  %v10121 = vmul.f32 %v9904, %v10120
  %v10122 = vrcp.pop %v10064
  %v10123 = vmul.f32 %v10064, %v10122
  %v10124 = vsub.f32 1.0, %v10123
  %v10125 = vmul.f32 %v10122, %v10124
  %v10126 = vadd.f32 %v10122, %v10125
  %vm10127 = vweird.f32 %v10064
  %vm10128 = vweird.f32 %v10122
  %vm10129 = vmor %vm10127, %vm10128
  %v10130 = vsel %vm10129, %v10122, %v10126
  %v10131 = vand.u32 2147483647, %v10064
  %vm10132 = vcmp.eq.f32.partialorder %v10131, 8.507059e+37
  %v10133 = vand.u32 %v10064, 2147483648
  %v10134 = vor.u32 1.1754944e-38, %v10133
  %v10135 = vsel %vm10132, %v10134, %v10130
  %v10136 = vmul.f32 %v9916, %v10135
  %v10137 = vrcp.pop %v10065
  %v10138 = vmul.f32 %v10065, %v10137
  %v10139 = vsub.f32 1.0, %v10138
  %v10140 = vmul.f32 %v10137, %v10139
  %v10141 = vadd.f32 %v10137, %v10140
  %vm10142 = vweird.f32 %v10065
  %vm10143 = vweird.f32 %v10137
  %vm10144 = vmor %vm10142, %vm10143
  %v10145 = vsel %vm10144, %v10137, %v10141
  %v10146 = vand.u32 2147483647, %v10065
  %vm10147 = vcmp.eq.f32.partialorder %v10146, 8.507059e+37
  %v10148 = vand.u32 %v10065, 2147483648
  %v10149 = vor.u32 1.1754944e-38, %v10148
  %v10150 = vsel %vm10147, %v10149, %v10145
  %v10151 = vmul.f32 %v9928, %v10150
  %v10152 = vrcp.pop %v10066
  %v10153 = vmul.f32 %v10066, %v10152
  %v10154 = vsub.f32 1.0, %v10153
  %v10155 = vmul.f32 %v10152, %v10154
  %v10156 = vadd.f32 %v10152, %v10155
  %vm10157 = vweird.f32 %v10066
  %vm10158 = vweird.f32 %v10152
  %vm10159 = vmor %vm10157, %vm10158
  %v10160 = vsel %vm10159, %v10152, %v10156
  %v10161 = vand.u32 2147483647, %v10066
  %vm10162 = vcmp.eq.f32.partialorder %v10161, 8.507059e+37
  %v10163 = vand.u32 %v10066, 2147483648
  %v10164 = vor.u32 1.1754944e-38, %v10163
  %v10165 = vsel %vm10162, %v10164, %v10160
  %v10166 = vmul.f32 %v9940, %v10165
  %v10167 = vrcp.pop %v10067
  %v10168 = vmul.f32 %v10067, %v10167
  %v10169 = vsub.f32 1.0, %v10168
  %v10170 = vmul.f32 %v10167, %v10169
  %v10171 = vadd.f32 %v10167, %v10170
  %vm10172 = vweird.f32 %v10067
  %vm10173 = vweird.f32 %v10167
  %vm10174 = vmor %vm10172, %vm10173
  %v10175 = vsel %vm10174, %v10167, %v10171
  %v10176 = vand.u32 2147483647, %v10067
  %vm10177 = vcmp.eq.f32.partialorder %v10176, 8.507059e+37
  %v10178 = vand.u32 %v10067, 2147483648
  %v10179 = vor.u32 1.1754944e-38, %v10178
  %v10180 = vsel %vm10177, %v10179, %v10175
  %v10181 = vmul.f32 %v9952, %v10180
  %v10182 = vrcp.pop %v10068
  %v10183 = vmul.f32 %v10068, %v10182
  %v10184 = vsub.f32 1.0, %v10183
  %v10185 = vmul.f32 %v10182, %v10184
  %v10186 = vadd.f32 %v10182, %v10185
  %vm10187 = vweird.f32 %v10068
  %vm10188 = vweird.f32 %v10182
  %vm10189 = vmor %vm10187, %vm10188
  %v10190 = vsel %vm10189, %v10182, %v10186
  %v10191 = vand.u32 2147483647, %v10068
  %vm10192 = vcmp.eq.f32.partialorder %v10191, 8.507059e+37
  %v10193 = vand.u32 %v10068, 2147483648
  %v10194 = vor.u32 1.1754944e-38, %v10193
  %v10195 = vsel %vm10192, %v10194, %v10190
  %v10196 = vmul.f32 %v9964, %v10195
  %v10197 = vrcp.pop %v10069
  %v10198 = vmul.f32 %v10069, %v10197
  %v10199 = vsub.f32 1.0, %v10198
  %v10200 = vmul.f32 %v10197, %v10199
  %v10201 = vadd.f32 %v10197, %v10200
  %vm10202 = vweird.f32 %v10069
  %vm10203 = vweird.f32 %v10197
  %vm10204 = vmor %vm10202, %vm10203
  %v10205 = vsel %vm10204, %v10197, %v10201
  %v10206 = vand.u32 2147483647, %v10069
  %vm10207 = vcmp.eq.f32.partialorder %v10206, 8.507059e+37
  %v10208 = vand.u32 %v10069, 2147483648
  %v10209 = vor.u32 1.1754944e-38, %v10208
  %v10210 = vsel %vm10207, %v10209, %v10205
  %v10211 = vmul.f32 %v9976, %v10210
  %v10212 = vrcp.pop %v10070
  %v10213 = vmul.f32 %v10070, %v10212
  %v10214 = vsub.f32 1.0, %v10213
  %v10215 = vmul.f32 %v10212, %v10214
  %v10216 = vadd.f32 %v10212, %v10215
  %vm10217 = vweird.f32 %v10070
  %vm10218 = vweird.f32 %v10212
  %vm10219 = vmor %vm10217, %vm10218
  %v10220 = vsel %vm10219, %v10212, %v10216
  %v10221 = vand.u32 2147483647, %v10070
  %vm10222 = vcmp.eq.f32.partialorder %v10221, 8.507059e+37
  %v10223 = vand.u32 %v10070, 2147483648
  %v10224 = vor.u32 1.1754944e-38, %v10223
  %v10225 = vsel %vm10222, %v10224, %v10220
  %v10226 = vmul.f32 %v9988, %v10225
  %v10227 = vrcp.pop %v10071
  %v10228 = vmul.f32 %v10071, %v10227
  %v10229 = vsub.f32 1.0, %v10228
  %v10230 = vmul.f32 %v10227, %v10229
  %v10231 = vadd.f32 %v10227, %v10230
  %vm10232 = vweird.f32 %v10071
  %vm10233 = vweird.f32 %v10227
  %vm10234 = vmor %vm10232, %vm10233
  %v10235 = vsel %vm10234, %v10227, %v10231
  %v10236 = vand.u32 2147483647, %v10071
  %vm10237 = vcmp.eq.f32.partialorder %v10236, 8.507059e+37
  %v10238 = vand.u32 %v10071, 2147483648
  %v10239 = vor.u32 1.1754944e-38, %v10238
  %v10240 = vsel %vm10237, %v10239, %v10235
  %v10241 = vmul.f32 %v10000, %v10240
  %v10242 = vrcp.pop %v10072
  %v10243 = vmul.f32 %v10072, %v10242
  %v10244 = vsub.f32 1.0, %v10243
  %v10245 = vmul.f32 %v10242, %v10244
  %v10246 = vadd.f32 %v10242, %v10245
  %vm10247 = vweird.f32 %v10072
  %vm10248 = vweird.f32 %v10242
  %vm10249 = vmor %vm10247, %vm10248
  %v10250 = vsel %vm10249, %v10242, %v10246
  %v10251 = vand.u32 2147483647, %v10072
  %vm10252 = vcmp.eq.f32.partialorder %v10251, 8.507059e+37
  %v10253 = vand.u32 %v10072, 2147483648
  %v10254 = vor.u32 1.1754944e-38, %v10253
  %v10255 = vsel %vm10252, %v10254, %v10250
  %v10256 = vmul.f32 %v10012, %v10255
  %v10257 = vrcp.pop %v10073
  %v10258 = vmul.f32 %v10073, %v10257
  %v10259 = vsub.f32 1.0, %v10258
  %v10260 = vmul.f32 %v10257, %v10259
  %v10261 = vadd.f32 %v10257, %v10260
  %vm10262 = vweird.f32 %v10073
  %vm10263 = vweird.f32 %v10257
  %vm10264 = vmor %vm10262, %vm10263
  %v10265 = vsel %vm10264, %v10257, %v10261
  %v10266 = vand.u32 2147483647, %v10073
  %vm10267 = vcmp.eq.f32.partialorder %v10266, 8.507059e+37
  %v10268 = vand.u32 %v10073, 2147483648
  %v10269 = vor.u32 1.1754944e-38, %v10268
  %v10270 = vsel %vm10267, %v10269, %v10265
  %v10271 = vmul.f32 %v10024, %v10270
  %v10272 = vrcp.pop %v10074
  %v10273 = vmul.f32 %v10074, %v10272
  %v10274 = vsub.f32 1.0, %v10273
  %v10275 = vmul.f32 %v10272, %v10274
  %v10276 = vadd.f32 %v10272, %v10275
  %vm10277 = vweird.f32 %v10074
  %vm10278 = vweird.f32 %v10272
  %vm10279 = vmor %vm10277, %vm10278
  %v10280 = vsel %vm10279, %v10272, %v10276
  %v10281 = vand.u32 2147483647, %v10074
  %vm10282 = vcmp.eq.f32.partialorder %v10281, 8.507059e+37
  %v10283 = vand.u32 %v10074, 2147483648
  %v10284 = vor.u32 1.1754944e-38, %v10283
  %v10285 = vsel %vm10282, %v10284, %v10280
  %v10286 = vmul.f32 %v10036, %v10285
  %v10287 = vrcp.pop %v10075
  %v10288 = vmul.f32 %v10075, %v10287
  %v10289 = vsub.f32 1.0, %v10288
  %v10290 = vmul.f32 %v10287, %v10289
  %v10291 = vadd.f32 %v10287, %v10290
  %vm10292 = vweird.f32 %v10075
  %vm10293 = vweird.f32 %v10287
  %vm10294 = vmor %vm10292, %vm10293
  %v10295 = vsel %vm10294, %v10287, %v10291
  %v10296 = vand.u32 2147483647, %v10075
  %vm10297 = vcmp.eq.f32.partialorder %v10296, 8.507059e+37
  %v10298 = vand.u32 %v10075, 2147483648
  %v10299 = vor.u32 1.1754944e-38, %v10298
  %v10300 = vsel %vm10297, %v10299, %v10295
  %v10301 = vmul.f32 %v10048, %v10300
  %v10302 = vrcp.pop %v10076
  %v10303 = vmul.f32 %v10076, %v10302
  %v10304 = vsub.f32 1.0, %v10303
  %v10305 = vmul.f32 %v10302, %v10304
  %v10306 = vadd.f32 %v10302, %v10305
  %vm10307 = vweird.f32 %v10076
  %vm10308 = vweird.f32 %v10302
  %vm10309 = vmor %vm10307, %vm10308
  %v10310 = vsel %vm10309, %v10302, %v10306
  %v10311 = vand.u32 2147483647, %v10076
  %vm10312 = vcmp.eq.f32.partialorder %v10311, 8.507059e+37
  %v10313 = vand.u32 %v10076, 2147483648
  %v10314 = vor.u32 1.1754944e-38, %v10313
  %v10315 = vsel %vm10312, %v10314, %v10310
  %v10316 = vmul.f32 %v10060, %v10315
  %v10317 = vmul.f32 %v10091, 0.1
  %v10318 = vmul.f32 %v10106, 0.1
  %v10319 = vmul.f32 %v10121, 0.1
  %v10320 = vmul.f32 %v10136, 0.1
  %v10321 = vmul.f32 %v10151, 0.1
  %v10322 = vmul.f32 %v10166, 0.1
  %v10323 = vmul.f32 %v10181, 0.1
  %v10324 = vmul.f32 %v10196, 0.1
  %v10325 = vmul.f32 %v10211, 0.1
  %v10326 = vmul.f32 %v10226, 0.1
  %v10327 = vmul.f32 %v10241, 0.1
  %v10328 = vmul.f32 %v10256, 0.1
  %v10329 = vmul.f32 %v10271, 0.1
  %v10330 = vmul.f32 %v10286, 0.1
  %v10331 = vmul.f32 %v10301, 0.1
  %v10332 = vmul.f32 %v10316, 0.1
  %v10333 = vmin.f32 %v10317, 0.99999
  %v10334 = vmin.f32 %v10318, 0.99999
  %v10335 = vmin.f32 %v10319, 0.99999
  %v10336 = vmin.f32 %v10320, 0.99999
  %v10337 = vmin.f32 %v10321, 0.99999
  %v10338 = vmin.f32 %v10322, 0.99999
  %v10339 = vmin.f32 %v10323, 0.99999
  %v10340 = vmin.f32 %v10324, 0.99999
  %v10341 = vmin.f32 %v10325, 0.99999
  %v10342 = vmin.f32 %v10326, 0.99999
  %v10343 = vmin.f32 %v10327, 0.99999
  %v10344 = vmin.f32 %v10328, 0.99999
  %v10345 = vmin.f32 %v10329, 0.99999
  %v10346 = vmin.f32 %v10330, 0.99999
  %v10347 = vmin.f32 %v10331, 0.99999
  %v10348 = vmin.f32 %v10332, 0.99999
  %v10349 = vadd.f32 %v10333, 1.0
  %v10350 = vadd.f32 %v10334, 1.0
  %v10351 = vadd.f32 %v10335, 1.0
  %v10352 = vadd.f32 %v10336, 1.0
  %v10353 = vadd.f32 %v10337, 1.0
  %v10354 = vadd.f32 %v10338, 1.0
  %v10355 = vadd.f32 %v10339, 1.0
  %v10356 = vadd.f32 %v10340, 1.0
  %v10357 = vadd.f32 %v10341, 1.0
  %v10358 = vadd.f32 %v10342, 1.0
  %v10359 = vadd.f32 %v10343, 1.0
  %v10360 = vadd.f32 %v10344, 1.0
  %v10361 = vadd.f32 %v10345, 1.0
  %v10362 = vadd.f32 %v10346, 1.0
  %v10363 = vadd.f32 %v10347, 1.0
  %v10364 = vadd.f32 %v10348, 1.0
  %v10365 = vsub.f32 1.0, %v10333
  %v10366 = vsub.f32 1.0, %v10334
  %v10367 = vsub.f32 1.0, %v10335
  %v10368 = vsub.f32 1.0, %v10336
  %v10369 = vsub.f32 1.0, %v10337
  %v10370 = vsub.f32 1.0, %v10338
  %v10371 = vsub.f32 1.0, %v10339
  %v10372 = vsub.f32 1.0, %v10340
  %v10373 = vsub.f32 1.0, %v10341
  %v10374 = vsub.f32 1.0, %v10342
  %v10375 = vsub.f32 1.0, %v10343
  %v10376 = vsub.f32 1.0, %v10344
  %v10377 = vsub.f32 1.0, %v10345
  %v10378 = vsub.f32 1.0, %v10346
  %v10379 = vsub.f32 1.0, %v10347
  %v10380 = vsub.f32 1.0, %v10348
  %v10381 = vrcp.pop %v10365
  %v10382 = vmul.f32 %v10365, %v10381
  %v10383 = vsub.f32 1.0, %v10382
  %v10384 = vmul.f32 %v10381, %v10383
  %v10385 = vadd.f32 %v10381, %v10384
  %vm10386 = vweird.f32 %v10365
  %vm10387 = vweird.f32 %v10381
  %vm10388 = vmor %vm10386, %vm10387
  %v10389 = vsel %vm10388, %v10381, %v10385
  %v10390 = vand.u32 2147483647, %v10365
  %vm10391 = vcmp.eq.f32.partialorder %v10390, 8.507059e+37
  %v10392 = vand.u32 %v10365, 2147483648
  %v10393 = vor.u32 1.1754944e-38, %v10392
  %v10394 = vsel %vm10391, %v10393, %v10389
  %v10395 = vmul.f32 %v10349, %v10394
  %v10396 = vrcp.pop %v10366
  %v10397 = vmul.f32 %v10366, %v10396
  %v10398 = vsub.f32 1.0, %v10397
  %v10399 = vmul.f32 %v10396, %v10398
  %v10400 = vadd.f32 %v10396, %v10399
  %vm10401 = vweird.f32 %v10366
  %vm10402 = vweird.f32 %v10396
  %vm10403 = vmor %vm10401, %vm10402
  %v10404 = vsel %vm10403, %v10396, %v10400
  %v10405 = vand.u32 2147483647, %v10366
  %vm10406 = vcmp.eq.f32.partialorder %v10405, 8.507059e+37
  %v10407 = vand.u32 %v10366, 2147483648
  %v10408 = vor.u32 1.1754944e-38, %v10407
  %v10409 = vsel %vm10406, %v10408, %v10404
  %v10410 = vmul.f32 %v10350, %v10409
  %v10411 = vrcp.pop %v10367
  %v10412 = vmul.f32 %v10367, %v10411
  %v10413 = vsub.f32 1.0, %v10412
  %v10414 = vmul.f32 %v10411, %v10413
  %v10415 = vadd.f32 %v10411, %v10414
  %vm10416 = vweird.f32 %v10367
  %vm10417 = vweird.f32 %v10411
  %vm10418 = vmor %vm10416, %vm10417
  %v10419 = vsel %vm10418, %v10411, %v10415
  %v10420 = vand.u32 2147483647, %v10367
  %vm10421 = vcmp.eq.f32.partialorder %v10420, 8.507059e+37
  %v10422 = vand.u32 %v10367, 2147483648
  %v10423 = vor.u32 1.1754944e-38, %v10422
  %v10424 = vsel %vm10421, %v10423, %v10419
  %v10425 = vmul.f32 %v10351, %v10424
  %v10426 = vrcp.pop %v10368
  %v10427 = vmul.f32 %v10368, %v10426
  %v10428 = vsub.f32 1.0, %v10427
  %v10429 = vmul.f32 %v10426, %v10428
  %v10430 = vadd.f32 %v10426, %v10429
  %vm10431 = vweird.f32 %v10368
  %vm10432 = vweird.f32 %v10426
  %vm10433 = vmor %vm10431, %vm10432
  %v10434 = vsel %vm10433, %v10426, %v10430
  %v10435 = vand.u32 2147483647, %v10368
  %vm10436 = vcmp.eq.f32.partialorder %v10435, 8.507059e+37
  %v10437 = vand.u32 %v10368, 2147483648
  %v10438 = vor.u32 1.1754944e-38, %v10437
  %v10439 = vsel %vm10436, %v10438, %v10434
  %v10440 = vmul.f32 %v10352, %v10439
  %v10441 = vrcp.pop %v10369
  %v10442 = vmul.f32 %v10369, %v10441
  %v10443 = vsub.f32 1.0, %v10442
  %v10444 = vmul.f32 %v10441, %v10443
  %v10445 = vadd.f32 %v10441, %v10444
  %vm10446 = vweird.f32 %v10369
  %vm10447 = vweird.f32 %v10441
  %vm10448 = vmor %vm10446, %vm10447
  %v10449 = vsel %vm10448, %v10441, %v10445
  %v10450 = vand.u32 2147483647, %v10369
  %vm10451 = vcmp.eq.f32.partialorder %v10450, 8.507059e+37
  %v10452 = vand.u32 %v10369, 2147483648
  %v10453 = vor.u32 1.1754944e-38, %v10452
  %v10454 = vsel %vm10451, %v10453, %v10449
  %v10455 = vmul.f32 %v10353, %v10454
  %v10456 = vrcp.pop %v10370
  %v10457 = vmul.f32 %v10370, %v10456
  %v10458 = vsub.f32 1.0, %v10457
  %v10459 = vmul.f32 %v10456, %v10458
  %v10460 = vadd.f32 %v10456, %v10459
  %vm10461 = vweird.f32 %v10370
  %vm10462 = vweird.f32 %v10456
  %vm10463 = vmor %vm10461, %vm10462
  %v10464 = vsel %vm10463, %v10456, %v10460
  %v10465 = vand.u32 2147483647, %v10370
  %vm10466 = vcmp.eq.f32.partialorder %v10465, 8.507059e+37
  %v10467 = vand.u32 %v10370, 2147483648
  %v10468 = vor.u32 1.1754944e-38, %v10467
  %v10469 = vsel %vm10466, %v10468, %v10464
  %v10470 = vmul.f32 %v10354, %v10469
  %v10471 = vrcp.pop %v10371
  %v10472 = vmul.f32 %v10371, %v10471
  %v10473 = vsub.f32 1.0, %v10472
  %v10474 = vmul.f32 %v10471, %v10473
  %v10475 = vadd.f32 %v10471, %v10474
  %vm10476 = vweird.f32 %v10371
  %vm10477 = vweird.f32 %v10471
  %vm10478 = vmor %vm10476, %vm10477
  %v10479 = vsel %vm10478, %v10471, %v10475
  %v10480 = vand.u32 2147483647, %v10371
  %vm10481 = vcmp.eq.f32.partialorder %v10480, 8.507059e+37
  %v10482 = vand.u32 %v10371, 2147483648
  %v10483 = vor.u32 1.1754944e-38, %v10482
  %v10484 = vsel %vm10481, %v10483, %v10479
  %v10485 = vmul.f32 %v10355, %v10484
  %v10486 = vrcp.pop %v10372
  %v10487 = vmul.f32 %v10372, %v10486
  %v10488 = vsub.f32 1.0, %v10487
  %v10489 = vmul.f32 %v10486, %v10488
  %v10490 = vadd.f32 %v10486, %v10489
  %vm10491 = vweird.f32 %v10372
  %vm10492 = vweird.f32 %v10486
  %vm10493 = vmor %vm10491, %vm10492
  %v10494 = vsel %vm10493, %v10486, %v10490
  %v10495 = vand.u32 2147483647, %v10372
  %vm10496 = vcmp.eq.f32.partialorder %v10495, 8.507059e+37
  %v10497 = vand.u32 %v10372, 2147483648
  %v10498 = vor.u32 1.1754944e-38, %v10497
  %v10499 = vsel %vm10496, %v10498, %v10494
  %v10500 = vmul.f32 %v10356, %v10499
  %v10501 = vrcp.pop %v10373
  %v10502 = vmul.f32 %v10373, %v10501
  %v10503 = vsub.f32 1.0, %v10502
  %v10504 = vmul.f32 %v10501, %v10503
  %v10505 = vadd.f32 %v10501, %v10504
  %vm10506 = vweird.f32 %v10373
  %vm10507 = vweird.f32 %v10501
  %vm10508 = vmor %vm10506, %vm10507
  %v10509 = vsel %vm10508, %v10501, %v10505
  %v10510 = vand.u32 2147483647, %v10373
  %vm10511 = vcmp.eq.f32.partialorder %v10510, 8.507059e+37
  %v10512 = vand.u32 %v10373, 2147483648
  %v10513 = vor.u32 1.1754944e-38, %v10512
  %v10514 = vsel %vm10511, %v10513, %v10509
  %v10515 = vmul.f32 %v10357, %v10514
  %v10516 = vrcp.pop %v10374
  %v10517 = vmul.f32 %v10374, %v10516
  %v10518 = vsub.f32 1.0, %v10517
  %v10519 = vmul.f32 %v10516, %v10518
  %v10520 = vadd.f32 %v10516, %v10519
  %vm10521 = vweird.f32 %v10374
  %vm10522 = vweird.f32 %v10516
  %vm10523 = vmor %vm10521, %vm10522
  %v10524 = vsel %vm10523, %v10516, %v10520
  %v10525 = vand.u32 2147483647, %v10374
  %vm10526 = vcmp.eq.f32.partialorder %v10525, 8.507059e+37
  %v10527 = vand.u32 %v10374, 2147483648
  %v10528 = vor.u32 1.1754944e-38, %v10527
  %v10529 = vsel %vm10526, %v10528, %v10524
  %v10530 = vmul.f32 %v10358, %v10529
  %v10531 = vrcp.pop %v10375
  %v10532 = vmul.f32 %v10375, %v10531
  %v10533 = vsub.f32 1.0, %v10532
  %v10534 = vmul.f32 %v10531, %v10533
  %v10535 = vadd.f32 %v10531, %v10534
  %vm10536 = vweird.f32 %v10375
  %vm10537 = vweird.f32 %v10531
  %vm10538 = vmor %vm10536, %vm10537
  %v10539 = vsel %vm10538, %v10531, %v10535
  %v10540 = vand.u32 2147483647, %v10375
  %vm10541 = vcmp.eq.f32.partialorder %v10540, 8.507059e+37
  %v10542 = vand.u32 %v10375, 2147483648
  %v10543 = vor.u32 1.1754944e-38, %v10542
  %v10544 = vsel %vm10541, %v10543, %v10539
  %v10545 = vmul.f32 %v10359, %v10544
  %v10546 = vrcp.pop %v10376
  %v10547 = vmul.f32 %v10376, %v10546
  %v10548 = vsub.f32 1.0, %v10547
  %v10549 = vmul.f32 %v10546, %v10548
  %v10550 = vadd.f32 %v10546, %v10549
  %vm10551 = vweird.f32 %v10376
  %vm10552 = vweird.f32 %v10546
  %vm10553 = vmor %vm10551, %vm10552
  %v10554 = vsel %vm10553, %v10546, %v10550
  %v10555 = vand.u32 2147483647, %v10376
  %vm10556 = vcmp.eq.f32.partialorder %v10555, 8.507059e+37
  %v10557 = vand.u32 %v10376, 2147483648
  %v10558 = vor.u32 1.1754944e-38, %v10557
  %v10559 = vsel %vm10556, %v10558, %v10554
  %v10560 = vmul.f32 %v10360, %v10559
  %v10561 = vrcp.pop %v10377
  %v10562 = vmul.f32 %v10377, %v10561
  %v10563 = vsub.f32 1.0, %v10562
  %v10564 = vmul.f32 %v10561, %v10563
  %v10565 = vadd.f32 %v10561, %v10564
  %vm10566 = vweird.f32 %v10377
  %vm10567 = vweird.f32 %v10561
  %vm10568 = vmor %vm10566, %vm10567
  %v10569 = vsel %vm10568, %v10561, %v10565
  %v10570 = vand.u32 2147483647, %v10377
  %vm10571 = vcmp.eq.f32.partialorder %v10570, 8.507059e+37
  %v10572 = vand.u32 %v10377, 2147483648
  %v10573 = vor.u32 1.1754944e-38, %v10572
  %v10574 = vsel %vm10571, %v10573, %v10569
  %v10575 = vmul.f32 %v10361, %v10574
  %v10576 = vrcp.pop %v10378
  %v10577 = vmul.f32 %v10378, %v10576
  %v10578 = vsub.f32 1.0, %v10577
  %v10579 = vmul.f32 %v10576, %v10578
  %v10580 = vadd.f32 %v10576, %v10579
  %vm10581 = vweird.f32 %v10378
  %vm10582 = vweird.f32 %v10576
  %vm10583 = vmor %vm10581, %vm10582
  %v10584 = vsel %vm10583, %v10576, %v10580
  %v10585 = vand.u32 2147483647, %v10378
  %vm10586 = vcmp.eq.f32.partialorder %v10585, 8.507059e+37
  %v10587 = vand.u32 %v10378, 2147483648
  %v10588 = vor.u32 1.1754944e-38, %v10587
  %v10589 = vsel %vm10586, %v10588, %v10584
  %v10590 = vmul.f32 %v10362, %v10589
  %v10591 = vrcp.pop %v10379
  %v10592 = vmul.f32 %v10379, %v10591
  %v10593 = vsub.f32 1.0, %v10592
  %v10594 = vmul.f32 %v10591, %v10593
  %v10595 = vadd.f32 %v10591, %v10594
  %vm10596 = vweird.f32 %v10379
  %vm10597 = vweird.f32 %v10591
  %vm10598 = vmor %vm10596, %vm10597
  %v10599 = vsel %vm10598, %v10591, %v10595
  %v10600 = vand.u32 2147483647, %v10379
  %vm10601 = vcmp.eq.f32.partialorder %v10600, 8.507059e+37
  %v10602 = vand.u32 %v10379, 2147483648
  %v10603 = vor.u32 1.1754944e-38, %v10602
  %v10604 = vsel %vm10601, %v10603, %v10599
  %v10605 = vmul.f32 %v10363, %v10604
  %v10606 = vrcp.pop %v10380
  %v10607 = vmul.f32 %v10380, %v10606
  %v10608 = vsub.f32 1.0, %v10607
  %v10609 = vmul.f32 %v10606, %v10608
  %v10610 = vadd.f32 %v10606, %v10609
  %vm10611 = vweird.f32 %v10380
  %vm10612 = vweird.f32 %v10606
  %vm10613 = vmor %vm10611, %vm10612
  %v10614 = vsel %vm10613, %v10606, %v10610
  %v10615 = vand.u32 2147483647, %v10380
  %vm10616 = vcmp.eq.f32.partialorder %v10615, 8.507059e+37
  %v10617 = vand.u32 %v10380, 2147483648
  %v10618 = vor.u32 1.1754944e-38, %v10617
  %v10619 = vsel %vm10616, %v10618, %v10614
  %v10620 = vmul.f32 %v10364, %v10619
  %v10621 = vlog2.pop %v10395
  %v10622 = vmul.f32 %v10621, 0.6931472
  %v10623 = vlog2.pop %v10410
  %v10624 = vmul.f32 %v10623, 0.6931472
  %v10625 = vlog2.pop %v10425
  %v10626 = vmul.f32 %v10625, 0.6931472
  %v10627 = vlog2.pop %v10440
  %v10628 = vmul.f32 %v10627, 0.6931472
  %v10629 = vlog2.pop %v10455
  %v10630 = vmul.f32 %v10629, 0.6931472
  %v10631 = vlog2.pop %v10470
  %v10632 = vmul.f32 %v10631, 0.6931472
  %v10633 = vlog2.pop %v10485
  %v10634 = vmul.f32 %v10633, 0.6931472
  %v10635 = vlog2.pop %v10500
  %v10636 = vmul.f32 %v10635, 0.6931472
  %v10637 = vlog2.pop %v10515
  %v10638 = vmul.f32 %v10637, 0.6931472
  %v10639 = vlog2.pop %v10530
  %v10640 = vmul.f32 %v10639, 0.6931472
  %v10641 = vlog2.pop %v10545
  %v10642 = vmul.f32 %v10641, 0.6931472
  %v10643 = vlog2.pop %v10560
  %v10644 = vmul.f32 %v10643, 0.6931472
  %v10645 = vlog2.pop %v10575
  %v10646 = vmul.f32 %v10645, 0.6931472
  %v10647 = vlog2.pop %v10590
  %v10648 = vmul.f32 %v10647, 0.6931472
  %v10649 = vlog2.pop %v10605
  %v10650 = vmul.f32 %v10649, 0.6931472
  %v10651 = vlog2.pop %v10620
  %v10652 = vmul.f32 %v10651, 0.6931472
  %v10653 = vmul.f32 %v10622, 10.0
  %v10654 = vmul.f32 %v10624, 10.0
  %v10655 = vmul.f32 %v10626, 10.0
  %v10656 = vmul.f32 %v10628, 10.0
  %v10657 = vmul.f32 %v10630, 10.0
  %v10658 = vmul.f32 %v10632, 10.0
  %v10659 = vmul.f32 %v10634, 10.0
  %v10660 = vmul.f32 %v10636, 10.0
  %v10661 = vmul.f32 %v10638, 10.0
  %v10662 = vmul.f32 %v10640, 10.0
  %v10663 = vmul.f32 %v10642, 10.0
  %v10664 = vmul.f32 %v10644, 10.0
  %v10665 = vmul.f32 %v10646, 10.0
  %v10666 = vmul.f32 %v10648, 10.0
  %v10667 = vmul.f32 %v10650, 10.0
  %v10668 = vmul.f32 %v10652, 10.0
  %v10669 = vsub.f32 0.0, %v10653
  %v10670 = vsub.f32 0.0, %v10654
  %v10671 = vsub.f32 0.0, %v10655
  %v10672 = vsub.f32 0.0, %v10656
  %v10673 = vsub.f32 0.0, %v10657
  %v10674 = vsub.f32 0.0, %v10658
  %v10675 = vsub.f32 0.0, %v10659
  %v10676 = vsub.f32 0.0, %v10660
  %v10677 = vsub.f32 0.0, %v10661
  %v10678 = vsub.f32 0.0, %v10662
  %v10679 = vsub.f32 0.0, %v10663
  %v10680 = vsub.f32 0.0, %v10664
  %v10681 = vsub.f32 0.0, %v10665
  %v10682 = vsub.f32 0.0, %v10666
  %v10683 = vsub.f32 0.0, %v10667
  %v10684 = vsub.f32 0.0, %v10668
  %v10685 = vsel %vm5658, %v10669, -inf
  %10686 = vmax.xlane.f32.xlu0 %v10685
  %v10687 = vpop.xlane.xlu0 %10686
  %v10688 = vsel %vm5662, %v10670, -inf
  %10689 = vmax.xlane.f32.xlu0 %v10688
  %v10690 = vpop.xlane.xlu0 %10689
  %v10691 = vsel %vm5658, %v10671, -inf
  %10692 = vmax.xlane.f32.xlu0 %v10691
  %v10693 = vpop.xlane.xlu0 %10692
  %v10694 = vsel %vm5662, %v10672, -inf
  %10695 = vmax.xlane.f32.xlu0 %v10694
  %v10696 = vpop.xlane.xlu0 %10695
  %v10697 = vsel %vm5658, %v10673, -inf
  %10698 = vmax.xlane.f32.xlu0 %v10697
  %v10699 = vpop.xlane.xlu0 %10698
  %v10700 = vsel %vm5662, %v10674, -inf
  %10701 = vmax.xlane.f32.xlu0 %v10700
  %v10702 = vpop.xlane.xlu0 %10701
  %v10703 = vsel %vm5658, %v10675, -inf
  %10704 = vmax.xlane.f32.xlu0 %v10703
  %v10705 = vpop.xlane.xlu0 %10704
  %v10706 = vsel %vm5662, %v10676, -inf
  %10707 = vmax.xlane.f32.xlu0 %v10706
  %v10708 = vpop.xlane.xlu0 %10707
  %v10709 = vsel %vm5658, %v10677, -inf
  %10710 = vmax.xlane.f32.xlu0 %v10709
  %v10711 = vpop.xlane.xlu0 %10710
  %v10712 = vsel %vm5662, %v10678, -inf
  %10713 = vmax.xlane.f32.xlu0 %v10712
  %v10714 = vpop.xlane.xlu0 %10713
  %v10715 = vsel %vm5658, %v10679, -inf
  %10716 = vmax.xlane.f32.xlu0 %v10715
  %v10717 = vpop.xlane.xlu0 %10716
  %v10718 = vsel %vm5662, %v10680, -inf
  %10719 = vmax.xlane.f32.xlu0 %v10718
  %v10720 = vpop.xlane.xlu0 %10719
  %v10721 = vsel %vm5658, %v10681, -inf
  %10722 = vmax.xlane.f32.xlu0 %v10721
  %v10723 = vpop.xlane.xlu0 %10722
  %v10724 = vsel %vm5662, %v10682, -inf
  %10725 = vmax.xlane.f32.xlu0 %v10724
  %v10726 = vpop.xlane.xlu0 %10725
  %v10727 = vsel %vm5658, %v10683, -inf
  %10728 = vmax.xlane.f32.xlu0 %v10727
  %v10729 = vpop.xlane.xlu0 %10728
  %v10730 = vsel %vm5662, %v10684, -inf
  %10731 = vmax.xlane.f32.xlu0 %v10730
  %v10732 = vpop.xlane.xlu0 %10731
  %v10733 = vsub.f32 %v10669, %v10687
  %v10734 = vsub.f32 %v10670, %v10690
  %v10735 = vsub.f32 %v10671, %v10693
  %v10736 = vsub.f32 %v10672, %v10696
  %v10737 = vsub.f32 %v10673, %v10699
  %v10738 = vsub.f32 %v10674, %v10702
  %v10739 = vsub.f32 %v10675, %v10705
  %v10740 = vsub.f32 %v10676, %v10708
  %v10741 = vsub.f32 %v10677, %v10711
  %v10742 = vsub.f32 %v10678, %v10714
  %v10743 = vsub.f32 %v10679, %v10717
  %v10744 = vsub.f32 %v10680, %v10720
  %v10745 = vsub.f32 %v10681, %v10723
  %v10746 = vsub.f32 %v10682, %v10726
  %v10747 = vsub.f32 %v10683, %v10729
  %v10748 = vsub.f32 %v10684, %v10732
  %v10749 = vmul.f32 %v10733, 1.442695
  %v10750 = vpow.pop %v10749
  %v10751 = vmul.f32 %v10734, 1.442695
  %v10752 = vpow.pop %v10751
  %v10753 = vmul.f32 %v10735, 1.442695
  %v10754 = vpow.pop %v10753
  %v10755 = vmul.f32 %v10736, 1.442695
  %v10756 = vpow.pop %v10755
  %v10757 = vmul.f32 %v10737, 1.442695
  %v10758 = vpow.pop %v10757
  %v10759 = vmul.f32 %v10738, 1.442695
  %v10760 = vpow.pop %v10759
  %v10761 = vmul.f32 %v10739, 1.442695
  %v10762 = vpow.pop %v10761
  %v10763 = vmul.f32 %v10740, 1.442695
  %v10764 = vpow.pop %v10763
  %v10765 = vmul.f32 %v10741, 1.442695
  %v10766 = vpow.pop %v10765
  %v10767 = vmul.f32 %v10742, 1.442695
  %v10768 = vpow.pop %v10767
  %v10769 = vmul.f32 %v10743, 1.442695
  %v10770 = vpow.pop %v10769
  %v10771 = vmul.f32 %v10744, 1.442695
  %v10772 = vpow.pop %v10771
  %v10773 = vmul.f32 %v10745, 1.442695
  %v10774 = vpow.pop %v10773
  %v10775 = vmul.f32 %v10746, 1.442695
  %v10776 = vpow.pop %v10775
  %v10777 = vmul.f32 %v10747, 1.442695
  %v10778 = vpow.pop %v10777
  %v10779 = vmul.f32 %v10748, 1.442695
  %v10780 = vpow.pop %v10779
  %v10781 = vsel %vm5658, %v10750, 0.0
  %10782 = vadd.xlane.f32.xlu0 %v10781
  %v10783 = vpop.xlane.xlu0 %10782
  %v10784 = vsel %vm5662, %v10752, 0.0
  %10785 = vadd.xlane.f32.xlu0 %v10784
  %v10786 = vpop.xlane.xlu0 %10785
  %v10787 = vsel %vm5658, %v10754, 0.0
  %10788 = vadd.xlane.f32.xlu0 %v10787
  %v10789 = vpop.xlane.xlu0 %10788
  %v10790 = vsel %vm5662, %v10756, 0.0
  %10791 = vadd.xlane.f32.xlu0 %v10790
  %v10792 = vpop.xlane.xlu0 %10791
  %v10793 = vsel %vm5658, %v10758, 0.0
  %10794 = vadd.xlane.f32.xlu0 %v10793
  %v10795 = vpop.xlane.xlu0 %10794
  %v10796 = vsel %vm5662, %v10760, 0.0
  %10797 = vadd.xlane.f32.xlu0 %v10796
  %v10798 = vpop.xlane.xlu0 %10797
  %v10799 = vsel %vm5658, %v10762, 0.0
  %10800 = vadd.xlane.f32.xlu0 %v10799
  %v10801 = vpop.xlane.xlu0 %10800
  %v10802 = vsel %vm5662, %v10764, 0.0
  %10803 = vadd.xlane.f32.xlu0 %v10802
  %v10804 = vpop.xlane.xlu0 %10803
  %v10805 = vsel %vm5658, %v10766, 0.0
  %10806 = vadd.xlane.f32.xlu0 %v10805
  %v10807 = vpop.xlane.xlu0 %10806
  %v10808 = vsel %vm5662, %v10768, 0.0
  %10809 = vadd.xlane.f32.xlu0 %v10808
  %v10810 = vpop.xlane.xlu0 %10809
  %v10811 = vsel %vm5658, %v10770, 0.0
  %10812 = vadd.xlane.f32.xlu0 %v10811
  %v10813 = vpop.xlane.xlu0 %10812
  %v10814 = vsel %vm5662, %v10772, 0.0
  %10815 = vadd.xlane.f32.xlu0 %v10814
  %v10816 = vpop.xlane.xlu0 %10815
  %v10817 = vsel %vm5658, %v10774, 0.0
  %10818 = vadd.xlane.f32.xlu0 %v10817
  %v10819 = vpop.xlane.xlu0 %10818
  %v10820 = vsel %vm5662, %v10776, 0.0
  %10821 = vadd.xlane.f32.xlu0 %v10820
  %v10822 = vpop.xlane.xlu0 %10821
  %v10823 = vsel %vm5658, %v10778, 0.0
  %10824 = vadd.xlane.f32.xlu0 %v10823
  %v10825 = vpop.xlane.xlu0 %10824
  %v10826 = vsel %vm5662, %v10780, 0.0
  %10827 = vadd.xlane.f32.xlu0 %v10826
  %v10828 = vpop.xlane.xlu0 %10827
  %v10829 = vrcp.pop %v10783
  %v10830 = vrcp.pop %v10786
  %v10831 = vrcp.pop %v10789
  %v10832 = vrcp.pop %v10792
  %v10833 = vrcp.pop %v10795
  %v10834 = vrcp.pop %v10798
  %v10835 = vrcp.pop %v10801
  %v10836 = vrcp.pop %v10804
  %v10837 = vrcp.pop %v10807
  %v10838 = vrcp.pop %v10810
  %v10839 = vrcp.pop %v10813
  %v10840 = vrcp.pop %v10816
  %v10841 = vrcp.pop %v10819
  %v10842 = vrcp.pop %v10822
  %v10843 = vrcp.pop %v10825
  %v10844 = vrcp.pop %v10828
  %v10845 = vmul.f32 %v10750, %v10829
  %v10846 = vmul.f32 %v10752, %v10830
  %v10847 = vmul.f32 %v10754, %v10831
  %v10848 = vmul.f32 %v10756, %v10832
  %v10849 = vmul.f32 %v10758, %v10833
  %v10850 = vmul.f32 %v10760, %v10834
  %v10851 = vmul.f32 %v10762, %v10835
  %v10852 = vmul.f32 %v10764, %v10836
  %v10853 = vmul.f32 %v10766, %v10837
  %v10854 = vmul.f32 %v10768, %v10838
  %v10855 = vmul.f32 %v10770, %v10839
  %v10856 = vmul.f32 %v10772, %v10840
  %v10857 = vmul.f32 %v10774, %v10841
  %v10858 = vmul.f32 %v10776, %v10842
  %v10859 = vmul.f32 %v10778, %v10843
  %v10860 = vmul.f32 %v10780, %v10844
  %10861 = vst.msk [vmem:[%s3] sm:$0xff] %vm5658, %v10845
  %10862 = vst.msk [vmem:[%s3 + $0x8] sm:$0x7f] %vm5662, %v10846
  %10863 = vst.msk [vmem:[%s3 + $0x10] sm:$0xff] %vm5658, %v10847
  %10864 = vst.msk [vmem:[%s3 + $0x18] sm:$0x7f] %vm5662, %v10848
  %10865 = vst.msk [vmem:[%s3 + $0x20] sm:$0xff] %vm5658, %v10849
  %10866 = vst.msk [vmem:[%s3 + $0x28] sm:$0x7f] %vm5662, %v10850
  %10867 = vst.msk [vmem:[%s3 + $0x30] sm:$0xff] %vm5658, %v10851
  %10868 = vst.msk [vmem:[%s3 + $0x38] sm:$0x7f] %vm5662, %v10852
  %10869 = vst.msk [vmem:[%s3 + $0x40] sm:$0xff] %vm5658, %v10853
  %10870 = vst.msk [vmem:[%s3 + $0x48] sm:$0x7f] %vm5662, %v10854
  %10871 = vst.msk [vmem:[%s3 + $0x50] sm:$0xff] %vm5658, %v10855
  %10872 = vst.msk [vmem:[%s3 + $0x58] sm:$0x7f] %vm5662, %v10856
  %10873 = vst.msk [vmem:[%s3 + $0x60] sm:$0xff] %vm5658, %v10857
  %10874 = vst.msk [vmem:[%s3 + $0x68] sm:$0x7f] %vm5662, %v10858
  %10875 = vst.msk [vmem:[%s3 + $0x70] sm:$0xff] %vm5658, %v10859
  %10876 = vst.msk [vmem:[%s3 + $0x78] sm:$0x7f] %vm5662, %v10860
  %v10877 = vsub.f32 0.0, %v5642
  %v10878 = vsub.f32 0.0, %v5643
  %v10879 = vsub.f32 0.0, %v5644
  %v10880 = vsub.f32 0.0, %v5645
  %v10881 = vsub.f32 0.0, %v5646
  %v10882 = vsub.f32 0.0, %v5647
  %v10883 = vsub.f32 0.0, %v5648
  %v10884 = vsub.f32 0.0, %v5649
  %v10885 = vsub.f32 0.0, %v5650
  %v10886 = vsub.f32 0.0, %v5651
  %v10887 = vsub.f32 0.0, %v5652
  %v10888 = vsub.f32 0.0, %v5653
  %v10889 = vsub.f32 0.0, %v5654
  %v10890 = vsub.f32 0.0, %v5655
  %v10891 = vsub.f32 0.0, %v5656
  %v10892 = vsub.f32 0.0, %v5657
  %v10893 = vsel %vm5658, %v10877, -inf
  %10894 = vmax.xlane.f32.xlu0 %v10893
  %v10895 = vpop.xlane.xlu0 %10894
  %v10896 = vsel %vm5662, %v10878, -inf
  %10897 = vmax.xlane.f32.xlu0 %v10896
  %v10898 = vpop.xlane.xlu0 %10897
  %v10899 = vsel %vm5658, %v10879, -inf
  %10900 = vmax.xlane.f32.xlu0 %v10899
  %v10901 = vpop.xlane.xlu0 %10900
  %v10902 = vsel %vm5662, %v10880, -inf
  %10903 = vmax.xlane.f32.xlu0 %v10902
  %v10904 = vpop.xlane.xlu0 %10903
  %v10905 = vsel %vm5658, %v10881, -inf
  %10906 = vmax.xlane.f32.xlu0 %v10905
  %v10907 = vpop.xlane.xlu0 %10906
  %v10908 = vsel %vm5662, %v10882, -inf
  %10909 = vmax.xlane.f32.xlu0 %v10908
  %v10910 = vpop.xlane.xlu0 %10909
  %v10911 = vsel %vm5658, %v10883, -inf
  %10912 = vmax.xlane.f32.xlu0 %v10911
  %v10913 = vpop.xlane.xlu0 %10912
  %v10914 = vsel %vm5662, %v10884, -inf
  %10915 = vmax.xlane.f32.xlu0 %v10914
  %v10916 = vpop.xlane.xlu0 %10915
  %v10917 = vsel %vm5658, %v10885, -inf
  %10918 = vmax.xlane.f32.xlu0 %v10917
  %v10919 = vpop.xlane.xlu0 %10918
  %v10920 = vsel %vm5662, %v10886, -inf
  %10921 = vmax.xlane.f32.xlu0 %v10920
  %v10922 = vpop.xlane.xlu0 %10921
  %v10923 = vsel %vm5658, %v10887, -inf
  %10924 = vmax.xlane.f32.xlu0 %v10923
  %v10925 = vpop.xlane.xlu0 %10924
  %v10926 = vsel %vm5662, %v10888, -inf
  %10927 = vmax.xlane.f32.xlu0 %v10926
  %v10928 = vpop.xlane.xlu0 %10927
  %v10929 = vsel %vm5658, %v10889, -inf
  %10930 = vmax.xlane.f32.xlu0 %v10929
  %v10931 = vpop.xlane.xlu0 %10930
  %v10932 = vsel %vm5662, %v10890, -inf
  %10933 = vmax.xlane.f32.xlu0 %v10932
  %v10934 = vpop.xlane.xlu0 %10933
  %v10935 = vsel %vm5658, %v10891, -inf
  %10936 = vmax.xlane.f32.xlu0 %v10935
  %v10937 = vpop.xlane.xlu0 %10936
  %v10938 = vsel %vm5662, %v10892, -inf
  %10939 = vmax.xlane.f32.xlu0 %v10938
  %v10940 = vpop.xlane.xlu0 %10939
  %v10941 = vsub.f32 %v10877, %v10895
  %v10942 = vsub.f32 %v10878, %v10898
  %v10943 = vsub.f32 %v10879, %v10901
  %v10944 = vsub.f32 %v10880, %v10904
  %v10945 = vsub.f32 %v10881, %v10907
  %v10946 = vsub.f32 %v10882, %v10910
  %v10947 = vsub.f32 %v10883, %v10913
  %v10948 = vsub.f32 %v10884, %v10916
  %v10949 = vsub.f32 %v10885, %v10919
  %v10950 = vsub.f32 %v10886, %v10922
  %v10951 = vsub.f32 %v10887, %v10925
  %v10952 = vsub.f32 %v10888, %v10928
  %v10953 = vsub.f32 %v10889, %v10931
  %v10954 = vsub.f32 %v10890, %v10934
  %v10955 = vsub.f32 %v10891, %v10937
  %v10956 = vsub.f32 %v10892, %v10940
  %v10957 = vmul.f32 %v10941, 1.442695
  %v10958 = vpow.pop %v10957
  %v10959 = vmul.f32 %v10942, 1.442695
  %v10960 = vpow.pop %v10959
  %v10961 = vmul.f32 %v10943, 1.442695
  %v10962 = vpow.pop %v10961
  %v10963 = vmul.f32 %v10944, 1.442695
  %v10964 = vpow.pop %v10963
  %v10965 = vmul.f32 %v10945, 1.442695
  %v10966 = vpow.pop %v10965
  %v10967 = vmul.f32 %v10946, 1.442695
  %v10968 = vpow.pop %v10967
  %v10969 = vmul.f32 %v10947, 1.442695
  %v10970 = vpow.pop %v10969
  %v10971 = vmul.f32 %v10948, 1.442695
  %v10972 = vpow.pop %v10971
  %v10973 = vmul.f32 %v10949, 1.442695
  %v10974 = vpow.pop %v10973
  %v10975 = vmul.f32 %v10950, 1.442695
  %v10976 = vpow.pop %v10975
  %v10977 = vmul.f32 %v10951, 1.442695
  %v10978 = vpow.pop %v10977
  %v10979 = vmul.f32 %v10952, 1.442695
  %v10980 = vpow.pop %v10979
  %v10981 = vmul.f32 %v10953, 1.442695
  %v10982 = vpow.pop %v10981
  %v10983 = vmul.f32 %v10954, 1.442695
  %v10984 = vpow.pop %v10983
  %v10985 = vmul.f32 %v10955, 1.442695
  %v10986 = vpow.pop %v10985
  %v10987 = vmul.f32 %v10956, 1.442695
  %v10988 = vpow.pop %v10987
  %v10989 = vsel %vm5658, %v10958, 0.0
  %10990 = vadd.xlane.f32.xlu0 %v10989
  %v10991 = vpop.xlane.xlu0 %10990
  %v10992 = vsel %vm5662, %v10960, 0.0
  %10993 = vadd.xlane.f32.xlu0 %v10992
  %v10994 = vpop.xlane.xlu0 %10993
  %v10995 = vsel %vm5658, %v10962, 0.0
  %10996 = vadd.xlane.f32.xlu0 %v10995
  %v10997 = vpop.xlane.xlu0 %10996
  %v10998 = vsel %vm5662, %v10964, 0.0
  %10999 = vadd.xlane.f32.xlu0 %v10998
  %v11000 = vpop.xlane.xlu0 %10999
  %v11001 = vsel %vm5658, %v10966, 0.0
  %11002 = vadd.xlane.f32.xlu0 %v11001
  %v11003 = vpop.xlane.xlu0 %11002
  %v11004 = vsel %vm5662, %v10968, 0.0
  %11005 = vadd.xlane.f32.xlu0 %v11004
  %v11006 = vpop.xlane.xlu0 %11005
  %v11007 = vsel %vm5658, %v10970, 0.0
  %11008 = vadd.xlane.f32.xlu0 %v11007
  %v11009 = vpop.xlane.xlu0 %11008
  %v11010 = vsel %vm5662, %v10972, 0.0
  %11011 = vadd.xlane.f32.xlu0 %v11010
  %v11012 = vpop.xlane.xlu0 %11011
  %v11013 = vsel %vm5658, %v10974, 0.0
  %11014 = vadd.xlane.f32.xlu0 %v11013
  %v11015 = vpop.xlane.xlu0 %11014
  %v11016 = vsel %vm5662, %v10976, 0.0
  %11017 = vadd.xlane.f32.xlu0 %v11016
  %v11018 = vpop.xlane.xlu0 %11017
  %v11019 = vsel %vm5658, %v10978, 0.0
  %11020 = vadd.xlane.f32.xlu0 %v11019
  %v11021 = vpop.xlane.xlu0 %11020
  %v11022 = vsel %vm5662, %v10980, 0.0
  %11023 = vadd.xlane.f32.xlu0 %v11022
  %v11024 = vpop.xlane.xlu0 %11023
  %v11025 = vsel %vm5658, %v10982, 0.0
  %11026 = vadd.xlane.f32.xlu0 %v11025
  %v11027 = vpop.xlane.xlu0 %11026
  %v11028 = vsel %vm5662, %v10984, 0.0
  %11029 = vadd.xlane.f32.xlu0 %v11028
  %v11030 = vpop.xlane.xlu0 %11029
  %v11031 = vsel %vm5658, %v10986, 0.0
  %11032 = vadd.xlane.f32.xlu0 %v11031
  %v11033 = vpop.xlane.xlu0 %11032
  %v11034 = vsel %vm5662, %v10988, 0.0
  %11035 = vadd.xlane.f32.xlu0 %v11034
  %v11036 = vpop.xlane.xlu0 %11035
  %v11037 = vlog2.pop %v10991
  %v11038 = vmul.f32 %v11037, 0.6931472
  %v11039 = vlog2.pop %v10994
  %v11040 = vmul.f32 %v11039, 0.6931472
  %v11041 = vlog2.pop %v10997
  %v11042 = vmul.f32 %v11041, 0.6931472
  %v11043 = vlog2.pop %v11000
  %v11044 = vmul.f32 %v11043, 0.6931472
  %v11045 = vlog2.pop %v11003
  %v11046 = vmul.f32 %v11045, 0.6931472
  %v11047 = vlog2.pop %v11006
  %v11048 = vmul.f32 %v11047, 0.6931472
  %v11049 = vlog2.pop %v11009
  %v11050 = vmul.f32 %v11049, 0.6931472
  %v11051 = vlog2.pop %v11012
  %v11052 = vmul.f32 %v11051, 0.6931472
  %v11053 = vlog2.pop %v11015
  %v11054 = vmul.f32 %v11053, 0.6931472
  %v11055 = vlog2.pop %v11018
  %v11056 = vmul.f32 %v11055, 0.6931472
  %v11057 = vlog2.pop %v11021
  %v11058 = vmul.f32 %v11057, 0.6931472
  %v11059 = vlog2.pop %v11024
  %v11060 = vmul.f32 %v11059, 0.6931472
  %v11061 = vlog2.pop %v11027
  %v11062 = vmul.f32 %v11061, 0.6931472
  %v11063 = vlog2.pop %v11030
  %v11064 = vmul.f32 %v11063, 0.6931472
  %v11065 = vlog2.pop %v11033
  %v11066 = vmul.f32 %v11065, 0.6931472
  %v11067 = vlog2.pop %v11036
  %v11068 = vmul.f32 %v11067, 0.6931472
  %v11069 = vadd.f32 %v10895, %v11038
  %v11070 = vadd.f32 %v10898, %v11040
  %v11071 = vadd.f32 %v10901, %v11042
  %v11072 = vadd.f32 %v10904, %v11044
  %v11073 = vadd.f32 %v10907, %v11046
  %v11074 = vadd.f32 %v10910, %v11048
  %v11075 = vadd.f32 %v10913, %v11050
  %v11076 = vadd.f32 %v10916, %v11052
  %v11077 = vadd.f32 %v10919, %v11054
  %v11078 = vadd.f32 %v10922, %v11056
  %v11079 = vadd.f32 %v10925, %v11058
  %v11080 = vadd.f32 %v10928, %v11060
  %v11081 = vadd.f32 %v10931, %v11062
  %v11082 = vadd.f32 %v10934, %v11064
  %v11083 = vadd.f32 %v10937, %v11066
  %v11084 = vadd.f32 %v10940, %v11068
  %v11085 = vsub.f32 %v10877, %v11069
  %v11086 = vsub.f32 %v10878, %v11070
  %v11087 = vsub.f32 %v10879, %v11071
  %v11088 = vsub.f32 %v10880, %v11072
  %v11089 = vsub.f32 %v10881, %v11073
  %v11090 = vsub.f32 %v10882, %v11074
  %v11091 = vsub.f32 %v10883, %v11075
  %v11092 = vsub.f32 %v10884, %v11076
  %v11093 = vsub.f32 %v10885, %v11077
  %v11094 = vsub.f32 %v10886, %v11078
  %v11095 = vsub.f32 %v10887, %v11079
  %v11096 = vsub.f32 %v10888, %v11080
  %v11097 = vsub.f32 %v10889, %v11081
  %v11098 = vsub.f32 %v10890, %v11082
  %v11099 = vsub.f32 %v10891, %v11083
  %v11100 = vsub.f32 %v10892, %v11084
  %v11101 = vsel %vm5658, %v11085, -inf
  %11102 = vmax.xlane.f32.xlu0 %v11101
  %v11103 = vpop.xlane.xlu0 %11102
  %v11104 = vsel %vm5662, %v11086, -inf
  %11105 = vmax.xlane.f32.xlu0 %v11104
  %v11106 = vpop.xlane.xlu0 %11105
  %v11107 = vsel %vm5658, %v11087, -inf
  %11108 = vmax.xlane.f32.xlu0 %v11107
  %v11109 = vpop.xlane.xlu0 %11108
  %v11110 = vsel %vm5662, %v11088, -inf
  %11111 = vmax.xlane.f32.xlu0 %v11110
  %v11112 = vpop.xlane.xlu0 %11111
  %v11113 = vsel %vm5658, %v11089, -inf
  %11114 = vmax.xlane.f32.xlu0 %v11113
  %v11115 = vpop.xlane.xlu0 %11114
  %v11116 = vsel %vm5662, %v11090, -inf
  %11117 = vmax.xlane.f32.xlu0 %v11116
  %v11118 = vpop.xlane.xlu0 %11117
  %v11119 = vsel %vm5658, %v11091, -inf
  %11120 = vmax.xlane.f32.xlu0 %v11119
  %v11121 = vpop.xlane.xlu0 %11120
  %v11122 = vsel %vm5662, %v11092, -inf
  %11123 = vmax.xlane.f32.xlu0 %v11122
  %v11124 = vpop.xlane.xlu0 %11123
  %v11125 = vsel %vm5658, %v11093, -inf
  %11126 = vmax.xlane.f32.xlu0 %v11125
  %v11127 = vpop.xlane.xlu0 %11126
  %v11128 = vsel %vm5662, %v11094, -inf
  %11129 = vmax.xlane.f32.xlu0 %v11128
  %v11130 = vpop.xlane.xlu0 %11129
  %v11131 = vsel %vm5658, %v11095, -inf
  %11132 = vmax.xlane.f32.xlu0 %v11131
  %v11133 = vpop.xlane.xlu0 %11132
  %v11134 = vsel %vm5662, %v11096, -inf
  %11135 = vmax.xlane.f32.xlu0 %v11134
  %v11136 = vpop.xlane.xlu0 %11135
  %v11137 = vsel %vm5658, %v11097, -inf
  %11138 = vmax.xlane.f32.xlu0 %v11137
  %v11139 = vpop.xlane.xlu0 %11138
  %v11140 = vsel %vm5662, %v11098, -inf
  %11141 = vmax.xlane.f32.xlu0 %v11140
  %v11142 = vpop.xlane.xlu0 %11141
  %v11143 = vsel %vm5658, %v11099, -inf
  %11144 = vmax.xlane.f32.xlu0 %v11143
  %v11145 = vpop.xlane.xlu0 %11144
  %v11146 = vsel %vm5662, %v11100, -inf
  %11147 = vmax.xlane.f32.xlu0 %v11146
  %v11148 = vpop.xlane.xlu0 %11147
  %v11149 = vsub.f32 %v11085, %v11103
  %v11150 = vsub.f32 %v11086, %v11106
  %v11151 = vsub.f32 %v11087, %v11109
  %v11152 = vsub.f32 %v11088, %v11112
  %v11153 = vsub.f32 %v11089, %v11115
  %v11154 = vsub.f32 %v11090, %v11118
  %v11155 = vsub.f32 %v11091, %v11121
  %v11156 = vsub.f32 %v11092, %v11124
  %v11157 = vsub.f32 %v11093, %v11127
  %v11158 = vsub.f32 %v11094, %v11130
  %v11159 = vsub.f32 %v11095, %v11133
  %v11160 = vsub.f32 %v11096, %v11136
  %v11161 = vsub.f32 %v11097, %v11139
  %v11162 = vsub.f32 %v11098, %v11142
  %v11163 = vsub.f32 %v11099, %v11145
  %v11164 = vsub.f32 %v11100, %v11148
  %v11165 = vmul.f32 %v11149, 1.442695
  %v11166 = vpow.pop %v11165
  %v11167 = vmul.f32 %v11150, 1.442695
  %v11168 = vpow.pop %v11167
  %v11169 = vmul.f32 %v11151, 1.442695
  %v11170 = vpow.pop %v11169
  %v11171 = vmul.f32 %v11152, 1.442695
  %v11172 = vpow.pop %v11171
  %v11173 = vmul.f32 %v11153, 1.442695
  %v11174 = vpow.pop %v11173
  %v11175 = vmul.f32 %v11154, 1.442695
  %v11176 = vpow.pop %v11175
  %v11177 = vmul.f32 %v11155, 1.442695
  %v11178 = vpow.pop %v11177
  %v11179 = vmul.f32 %v11156, 1.442695
  %v11180 = vpow.pop %v11179
  %v11181 = vmul.f32 %v11157, 1.442695
  %v11182 = vpow.pop %v11181
  %v11183 = vmul.f32 %v11158, 1.442695
  %v11184 = vpow.pop %v11183
  %v11185 = vmul.f32 %v11159, 1.442695
  %v11186 = vpow.pop %v11185
  %v11187 = vmul.f32 %v11160, 1.442695
  %v11188 = vpow.pop %v11187
  %v11189 = vmul.f32 %v11161, 1.442695
  %v11190 = vpow.pop %v11189
  %v11191 = vmul.f32 %v11162, 1.442695
  %v11192 = vpow.pop %v11191
  %v11193 = vmul.f32 %v11163, 1.442695
  %v11194 = vpow.pop %v11193
  %v11195 = vmul.f32 %v11164, 1.442695
  %v11196 = vpow.pop %v11195
  %v11197 = vsel %vm5658, %v11166, 0.0
  %11198 = vadd.xlane.f32.xlu0 %v11197
  %v11199 = vpop.xlane.xlu0 %11198
  %v11200 = vsel %vm5662, %v11168, 0.0
  %11201 = vadd.xlane.f32.xlu0 %v11200
  %v11202 = vpop.xlane.xlu0 %11201
  %v11203 = vsel %vm5658, %v11170, 0.0
  %11204 = vadd.xlane.f32.xlu0 %v11203
  %v11205 = vpop.xlane.xlu0 %11204
  %v11206 = vsel %vm5662, %v11172, 0.0
  %11207 = vadd.xlane.f32.xlu0 %v11206
  %v11208 = vpop.xlane.xlu0 %11207
  %v11209 = vsel %vm5658, %v11174, 0.0
  %11210 = vadd.xlane.f32.xlu0 %v11209
  %v11211 = vpop.xlane.xlu0 %11210
  %v11212 = vsel %vm5662, %v11176, 0.0
  %11213 = vadd.xlane.f32.xlu0 %v11212
  %v11214 = vpop.xlane.xlu0 %11213
  %v11215 = vsel %vm5658, %v11178, 0.0
  %11216 = vadd.xlane.f32.xlu0 %v11215
  %v11217 = vpop.xlane.xlu0 %11216
  %v11218 = vsel %vm5662, %v11180, 0.0
  %11219 = vadd.xlane.f32.xlu0 %v11218
  %v11220 = vpop.xlane.xlu0 %11219
  %v11221 = vsel %vm5658, %v11182, 0.0
  %11222 = vadd.xlane.f32.xlu0 %v11221
  %v11223 = vpop.xlane.xlu0 %11222
  %v11224 = vsel %vm5662, %v11184, 0.0
  %11225 = vadd.xlane.f32.xlu0 %v11224
  %v11226 = vpop.xlane.xlu0 %11225
  %v11227 = vsel %vm5658, %v11186, 0.0
  %11228 = vadd.xlane.f32.xlu0 %v11227
  %v11229 = vpop.xlane.xlu0 %11228
  %v11230 = vsel %vm5662, %v11188, 0.0
  %11231 = vadd.xlane.f32.xlu0 %v11230
  %v11232 = vpop.xlane.xlu0 %11231
  %v11233 = vsel %vm5658, %v11190, 0.0
  %11234 = vadd.xlane.f32.xlu0 %v11233
  %v11235 = vpop.xlane.xlu0 %11234
  %v11236 = vsel %vm5662, %v11192, 0.0
  %11237 = vadd.xlane.f32.xlu0 %v11236
  %v11238 = vpop.xlane.xlu0 %11237
  %v11239 = vsel %vm5658, %v11194, 0.0
  %11240 = vadd.xlane.f32.xlu0 %v11239
  %v11241 = vpop.xlane.xlu0 %11240
  %v11242 = vsel %vm5662, %v11196, 0.0
  %11243 = vadd.xlane.f32.xlu0 %v11242
  %v11244 = vpop.xlane.xlu0 %11243
  %v11245 = vlog2.pop %v11199
  %v11246 = vmul.f32 %v11245, 0.6931472
  %v11247 = vlog2.pop %v11202
  %v11248 = vmul.f32 %v11247, 0.6931472
  %v11249 = vlog2.pop %v11205
  %v11250 = vmul.f32 %v11249, 0.6931472
  %v11251 = vlog2.pop %v11208
  %v11252 = vmul.f32 %v11251, 0.6931472
  %v11253 = vlog2.pop %v11211
  %v11254 = vmul.f32 %v11253, 0.6931472
  %v11255 = vlog2.pop %v11214
  %v11256 = vmul.f32 %v11255, 0.6931472
  %v11257 = vlog2.pop %v11217
  %v11258 = vmul.f32 %v11257, 0.6931472
  %v11259 = vlog2.pop %v11220
  %v11260 = vmul.f32 %v11259, 0.6931472
  %v11261 = vlog2.pop %v11223
  %v11262 = vmul.f32 %v11261, 0.6931472
  %v11263 = vlog2.pop %v11226
  %v11264 = vmul.f32 %v11263, 0.6931472
  %v11265 = vlog2.pop %v11229
  %v11266 = vmul.f32 %v11265, 0.6931472
  %v11267 = vlog2.pop %v11232
  %v11268 = vmul.f32 %v11267, 0.6931472
  %v11269 = vlog2.pop %v11235
  %v11270 = vmul.f32 %v11269, 0.6931472
  %v11271 = vlog2.pop %v11238
  %v11272 = vmul.f32 %v11271, 0.6931472
  %v11273 = vlog2.pop %v11241
  %v11274 = vmul.f32 %v11273, 0.6931472
  %v11275 = vlog2.pop %v11244
  %v11276 = vmul.f32 %v11275, 0.6931472
  %v11277 = vadd.f32 %v11103, %v11246
  %v11278 = vadd.f32 %v11106, %v11248
  %v11279 = vadd.f32 %v11109, %v11250
  %v11280 = vadd.f32 %v11112, %v11252
  %v11281 = vadd.f32 %v11115, %v11254
  %v11282 = vadd.f32 %v11118, %v11256
  %v11283 = vadd.f32 %v11121, %v11258
  %v11284 = vadd.f32 %v11124, %v11260
  %v11285 = vadd.f32 %v11127, %v11262
  %v11286 = vadd.f32 %v11130, %v11264
  %v11287 = vadd.f32 %v11133, %v11266
  %v11288 = vadd.f32 %v11136, %v11268
  %v11289 = vadd.f32 %v11139, %v11270
  %v11290 = vadd.f32 %v11142, %v11272
  %v11291 = vadd.f32 %v11145, %v11274
  %v11292 = vadd.f32 %v11148, %v11276
  %11293 = vset.pattern.permute.xlu0 0
  %11294 = vperm.xlu0 %11293, %v43
  %v11295 = vpop.permute.xlu0 %11294
  %11296 = vset.pattern.permute.xlu0 0
  %11297 = vperm.xlu0 %11296, %v44
  %v11298 = vpop.permute.xlu0 %11297
  %11299 = vset.pattern.permute.xlu0 0
  %11300 = vperm.xlu0 %11299, %v45
  %v11301 = vpop.permute.xlu0 %11300
  %11302 = vset.pattern.permute.xlu0 0
  %11303 = vperm.xlu0 %11302, %v46
  %v11304 = vpop.permute.xlu0 %11303
  %11305 = vset.pattern.permute.xlu0 0
  %11306 = vperm.xlu0 %11305, %v47
  %v11307 = vpop.permute.xlu0 %11306
  %11308 = vset.pattern.permute.xlu0 0
  %11309 = vperm.xlu0 %11308, %v48
  %v11310 = vpop.permute.xlu0 %11309
  %11311 = vset.pattern.permute.xlu0 0
  %11312 = vperm.xlu0 %11311, %v49
  %v11313 = vpop.permute.xlu0 %11312
  %11314 = vset.pattern.permute.xlu0 0
  %11315 = vperm.xlu0 %11314, %v50
  %v11316 = vpop.permute.xlu0 %11315
  %11317 = vset.pattern.permute.xlu0 0
  %11318 = vperm.xlu0 %11317, %v51
  %v11319 = vpop.permute.xlu0 %11318
  %11320 = vset.pattern.permute.xlu0 0
  %11321 = vperm.xlu0 %11320, %v52
  %v11322 = vpop.permute.xlu0 %11321
  %11323 = vset.pattern.permute.xlu0 0
  %11324 = vperm.xlu0 %11323, %v53
  %v11325 = vpop.permute.xlu0 %11324
  %11326 = vset.pattern.permute.xlu0 0
  %11327 = vperm.xlu0 %11326, %v54
  %v11328 = vpop.permute.xlu0 %11327
  %11329 = vset.pattern.permute.xlu0 0
  %11330 = vperm.xlu0 %11329, %v55
  %v11331 = vpop.permute.xlu0 %11330
  %11332 = vset.pattern.permute.xlu0 0
  %11333 = vperm.xlu0 %11332, %v56
  %v11334 = vpop.permute.xlu0 %11333
  %11335 = vset.pattern.permute.xlu0 0
  %11336 = vperm.xlu0 %11335, %v57
  %v11337 = vpop.permute.xlu0 %11336
  %11338 = vset.pattern.permute.xlu0 0
  %11339 = vperm.xlu0 %11338, %v58
  %v11340 = vpop.permute.xlu0 %11339
  %vm11341 = vcmp.eq.s32.totalorder %v17, %v11295
  %vm11342 = vcmp.eq.s32.totalorder %v17, %v11298
  %vm11343 = vcmp.eq.s32.totalorder %v17, %v11301
  %vm11344 = vcmp.eq.s32.totalorder %v17, %v11304
  %vm11345 = vcmp.eq.s32.totalorder %v17, %v11307
  %vm11346 = vcmp.eq.s32.totalorder %v17, %v11310
  %vm11347 = vcmp.eq.s32.totalorder %v17, %v11313
  %vm11348 = vcmp.eq.s32.totalorder %v17, %v11316
  %vm11349 = vcmp.eq.s32.totalorder %v17, %v11319
  %vm11350 = vcmp.eq.s32.totalorder %v17, %v11322
  %vm11351 = vcmp.eq.s32.totalorder %v17, %v11325
  %vm11352 = vcmp.eq.s32.totalorder %v17, %v11328
  %vm11353 = vcmp.eq.s32.totalorder %v17, %v11331
  %vm11354 = vcmp.eq.s32.totalorder %v17, %v11334
  %vm11355 = vcmp.eq.s32.totalorder %v17, %v11337
  %vm11356 = vcmp.eq.s32.totalorder %v17, %v11340
  %v11357 = vsel %vm11341, %v11085, 0.0
  %v11358 = vsel %vm11342, %v11086, 0.0
  %v11359 = vsel %vm11343, %v11087, 0.0
  %v11360 = vsel %vm11344, %v11088, 0.0
  %v11361 = vsel %vm11345, %v11089, 0.0
  %v11362 = vsel %vm11346, %v11090, 0.0
  %v11363 = vsel %vm11347, %v11091, 0.0
  %v11364 = vsel %vm11348, %v11092, 0.0
  %v11365 = vsel %vm11349, %v11093, 0.0
  %v11366 = vsel %vm11350, %v11094, 0.0
  %v11367 = vsel %vm11351, %v11095, 0.0
  %v11368 = vsel %vm11352, %v11096, 0.0
  %v11369 = vsel %vm11353, %v11097, 0.0
  %v11370 = vsel %vm11354, %v11098, 0.0
  %v11371 = vsel %vm11355, %v11099, 0.0
  %v11372 = vsel %vm11356, %v11100, 0.0
  %v11373 = vsel %vm5658, %v11357, 0.0
  %11374 = vadd.xlane.f32.xlu0 %v11373
  %v11375 = vpop.xlane.xlu0 %11374
  %v11376 = vsel %vm5662, %v11358, 0.0
  %11377 = vadd.xlane.f32.xlu0 %v11376
  %v11378 = vpop.xlane.xlu0 %11377
  %v11379 = vsel %vm5658, %v11359, 0.0
  %11380 = vadd.xlane.f32.xlu0 %v11379
  %v11381 = vpop.xlane.xlu0 %11380
  %v11382 = vsel %vm5662, %v11360, 0.0
  %11383 = vadd.xlane.f32.xlu0 %v11382
  %v11384 = vpop.xlane.xlu0 %11383
  %v11385 = vsel %vm5658, %v11361, 0.0
  %11386 = vadd.xlane.f32.xlu0 %v11385
  %v11387 = vpop.xlane.xlu0 %11386
  %v11388 = vsel %vm5662, %v11362, 0.0
  %11389 = vadd.xlane.f32.xlu0 %v11388
  %v11390 = vpop.xlane.xlu0 %11389
  %v11391 = vsel %vm5658, %v11363, 0.0
  %11392 = vadd.xlane.f32.xlu0 %v11391
  %v11393 = vpop.xlane.xlu0 %11392
  %v11394 = vsel %vm5662, %v11364, 0.0
  %11395 = vadd.xlane.f32.xlu0 %v11394
  %v11396 = vpop.xlane.xlu0 %11395
  %v11397 = vsel %vm5658, %v11365, 0.0
  %11398 = vadd.xlane.f32.xlu0 %v11397
  %v11399 = vpop.xlane.xlu0 %11398
  %v11400 = vsel %vm5662, %v11366, 0.0
  %11401 = vadd.xlane.f32.xlu0 %v11400
  %v11402 = vpop.xlane.xlu0 %11401
  %v11403 = vsel %vm5658, %v11367, 0.0
  %11404 = vadd.xlane.f32.xlu0 %v11403
  %v11405 = vpop.xlane.xlu0 %11404
  %v11406 = vsel %vm5662, %v11368, 0.0
  %11407 = vadd.xlane.f32.xlu0 %v11406
  %v11408 = vpop.xlane.xlu0 %11407
  %v11409 = vsel %vm5658, %v11369, 0.0
  %11410 = vadd.xlane.f32.xlu0 %v11409
  %v11411 = vpop.xlane.xlu0 %11410
  %v11412 = vsel %vm5662, %v11370, 0.0
  %11413 = vadd.xlane.f32.xlu0 %v11412
  %v11414 = vpop.xlane.xlu0 %11413
  %v11415 = vsel %vm5658, %v11371, 0.0
  %11416 = vadd.xlane.f32.xlu0 %v11415
  %v11417 = vpop.xlane.xlu0 %11416
  %v11418 = vsel %vm5662, %v11372, 0.0
  %11419 = vadd.xlane.f32.xlu0 %v11418
  %v11420 = vpop.xlane.xlu0 %11419
  %v11421 = vsub.f32 %v11277, %v11375
  %v11422 = vsub.f32 %v11278, %v11378
  %v11423 = vsub.f32 %v11279, %v11381
  %v11424 = vsub.f32 %v11280, %v11384
  %v11425 = vsub.f32 %v11281, %v11387
  %v11426 = vsub.f32 %v11282, %v11390
  %v11427 = vsub.f32 %v11283, %v11393
  %v11428 = vsub.f32 %v11284, %v11396
  %v11429 = vsub.f32 %v11285, %v11399
  %v11430 = vsub.f32 %v11286, %v11402
  %v11431 = vsub.f32 %v11287, %v11405
  %v11432 = vsub.f32 %v11288, %v11408
  %v11433 = vsub.f32 %v11289, %v11411
  %v11434 = vsub.f32 %v11290, %v11414
  %v11435 = vsub.f32 %v11291, %v11417
  %v11436 = vsub.f32 %v11292, %v11420
  %v11437 = vsel %vm5948, %v11422, 0.0
  %v11438 = vadd.f32 %v11421, %v11437
  %v11439 = vrot.slane %v11438, 4
  %v11440 = vadd.f32 %v11438, %v11439
  %v11441 = vrot.slane %v11440, 2
  %v11442 = vadd.f32 %v11440, %v11441
  %v11443 = vrot.slane %v11442, 1
  %v11444 = vadd.f32 %v11442, %v11443
  %v11445 = vsel %vm5948, %v11424, 0.0
  %v11446 = vadd.f32 %v11423, %v11445
  %v11447 = vrot.slane %v11446, 4
  %v11448 = vadd.f32 %v11446, %v11447
  %v11449 = vrot.slane %v11448, 2
  %v11450 = vadd.f32 %v11448, %v11449
  %v11451 = vrot.slane %v11450, 1
  %v11452 = vadd.f32 %v11450, %v11451
  %v11453 = vsel %vm5948, %v11426, 0.0
  %v11454 = vadd.f32 %v11425, %v11453
  %v11455 = vrot.slane %v11454, 4
  %v11456 = vadd.f32 %v11454, %v11455
  %v11457 = vrot.slane %v11456, 2
  %v11458 = vadd.f32 %v11456, %v11457
  %v11459 = vrot.slane %v11458, 1
  %v11460 = vadd.f32 %v11458, %v11459
  %v11461 = vsel %vm5948, %v11428, 0.0
  %v11462 = vadd.f32 %v11427, %v11461
  %v11463 = vrot.slane %v11462, 4
  %v11464 = vadd.f32 %v11462, %v11463
  %v11465 = vrot.slane %v11464, 2
  %v11466 = vadd.f32 %v11464, %v11465
  %v11467 = vrot.slane %v11466, 1
  %v11468 = vadd.f32 %v11466, %v11467
  %v11469 = vsel %vm5948, %v11430, 0.0
  %v11470 = vadd.f32 %v11429, %v11469
  %v11471 = vrot.slane %v11470, 4
  %v11472 = vadd.f32 %v11470, %v11471
  %v11473 = vrot.slane %v11472, 2
  %v11474 = vadd.f32 %v11472, %v11473
  %v11475 = vrot.slane %v11474, 1
  %v11476 = vadd.f32 %v11474, %v11475
  %v11477 = vsel %vm5948, %v11432, 0.0
  %v11478 = vadd.f32 %v11431, %v11477
  %v11479 = vrot.slane %v11478, 4
  %v11480 = vadd.f32 %v11478, %v11479
  %v11481 = vrot.slane %v11480, 2
  %v11482 = vadd.f32 %v11480, %v11481
  %v11483 = vrot.slane %v11482, 1
  %v11484 = vadd.f32 %v11482, %v11483
  %v11485 = vsel %vm5948, %v11434, 0.0
  %v11486 = vadd.f32 %v11433, %v11485
  %v11487 = vrot.slane %v11486, 4
  %v11488 = vadd.f32 %v11486, %v11487
  %v11489 = vrot.slane %v11488, 2
  %v11490 = vadd.f32 %v11488, %v11489
  %v11491 = vrot.slane %v11490, 1
  %v11492 = vadd.f32 %v11490, %v11491
  %v11493 = vsel %vm5948, %v11436, 0.0
  %v11494 = vadd.f32 %v11435, %v11493
  %v11495 = vrot.slane %v11494, 4
  %v11496 = vadd.f32 %v11494, %v11495
  %v11497 = vrot.slane %v11496, 2
  %v11498 = vadd.f32 %v11496, %v11497
  %v11499 = vrot.slane %v11498, 1
  %v11500 = vadd.f32 %v11498, %v11499
  %v11501 = vmul.f32 %v11444, 0.06666667
  %v11502 = vmul.f32 %v11452, 0.06666667
  %v11503 = vmul.f32 %v11460, 0.06666667
  %v11504 = vmul.f32 %v11468, 0.06666667
  %v11505 = vmul.f32 %v11476, 0.06666667
  %v11506 = vmul.f32 %v11484, 0.06666667
  %v11507 = vmul.f32 %v11492, 0.06666667
  %v11508 = vmul.f32 %v11500, 0.06666667
  %vm11509 = vcmask 0
  %11510 = vst.msk [vmem:[%s4] sm:$0x1] %vm11509, %v11501
  %11511 = vst.msk [vmem:[%s4 + $0x1] sm:$0x1] %vm11509, %v11502
  %11512 = vst.msk [vmem:[%s4 + $0x2] sm:$0x1] %vm11509, %v11503
  %11513 = vst.msk [vmem:[%s4 + $0x3] sm:$0x1] %vm11509, %v11504
  %11514 = vst.msk [vmem:[%s4 + $0x4] sm:$0x1] %vm11509, %v11505
  %11515 = vst.msk [vmem:[%s4 + $0x5] sm:$0x1] %vm11509, %v11506
  %11516 = vst.msk [vmem:[%s4 + $0x6] sm:$0x1] %vm11509, %v11507
  %11517 = vst.msk [vmem:[%s4 + $0x7] sm:$0x1] %vm11509, %v11508
  // Predicated region
  $region14: #{hpr_d_forward_batched.1} parent=0 // pred_check
    _
  $region15: #{hpr_d_forward_batched.1} parent=0 // pred_check_branch
    %11519 = sbr.rel (0) target = $region17
  $region16: #{hpr_d_forward_batched.1} parent=0 // pred_region
    _
  $region17: #{hpr_d_forward_batched.1} parent=0 // pred_fallthru
    _
  // Predicated region
  $region18: #{hpr_d_forward_batched.1} parent=0 // pred_check
    _
  $region19: #{hpr_d_forward_batched.1} parent=0 // pred_check_branch
    %11521 = sbr.rel (0) target = $region21
  $region20: #{hpr_d_forward_batched.1} parent=0 // pred_region
    _
  $region21: #{hpr_d_forward_batched.1} parent=0 // pred_fallthru
    _
  // Predicated region
  $region22: #{hpr_d_forward_batched.1} parent=0 // pred_check
    _
  $region23: #{hpr_d_forward_batched.1} parent=0 // pred_check_branch
    %11523 = sbr.rel (0) target = $region25
  $region24: #{hpr_d_forward_batched.1} parent=0 // pred_region
    _
  $region25: #{hpr_d_forward_batched.1} parent=0 // pred_fallthru
    _
  // Predicated region
  $region26: #{hpr_d_forward_batched.1} parent=0 // pred_check
    _
  $region27: #{hpr_d_forward_batched.1} parent=0 // pred_check_branch
    %11525 = sbr.rel (0) target = $region29
  $region28: #{hpr_d_forward_batched.1} parent=0 // pred_region
    _
  $region29: #{hpr_d_forward_batched.1} parent=0 // pred_fallthru
    _

</llo_original>
